<compile_context>
chip_gen: v5e
topology: v5e:2x2
jax: 0.10.0
libtpu: 0.0.40
codegen_flags: <defaults>
</compile_context>

<pallas_src>
import functools

import jax
import jax.numpy as jnp
from jax.experimental import pallas as pl
from jax.experimental.pallas import tpu as pltpu


def _rcu_kernel(x_ref, xt_ref, xb_ref, w1_ref, b1_ref, w2_ref, b2_ref, o_ref,
                xp1_ref, xp2_ref, *, W, W_pad, tile_h, fuse_dx):
    """One (batch, row-tile) step of the fused ResidualConvUnit.

    x_ref  : (1, th, W, C) f32   tile of x (also the residual)
    xt_ref : (1, 2,  W, C) f32   2 rows above the tile (masked at the top edge)
    xb_ref : (1, 2,  W, C) f32   2 rows below the tile (masked at the bottom edge)
    w*_ref : (3, 3C, C)    bf16  tap weights, dy-major, rows = [dx=-1 | dx=0 | dx=+1]
    b*_ref : (1, C)        f32
    o_ref  : (1, th, W, C) f32
    xp1/2  : VMEM bf16 scratch holding the zero-padded conv inputs.
    """
    C = o_ref.shape[-1]
    th = tile_h
    i = pl.program_id(1)
    nt = pl.num_programs(1)
    bf16 = jnp.bfloat16

    n1 = th + 8          # xp1 rows: 2 pad | th+4 data | 2 pad
    n2 = th + 6          # xp2 rows: 2 pad | th+2 data | 2 pad

    # Re-zero only the thin padding strips (cheap, and safe under megacore since
    # every grid step fully re-establishes the state it reads).
    xp1_ref[pl.ds(0, 2), :, :] = jnp.zeros((2, W_pad, C), bf16)
    xp1_ref[pl.ds(n1 - 2, 2), :, :] = jnp.zeros((2, W_pad, C), bf16)
    xp1_ref[pl.ds(0, n1), pl.ds(W, W_pad - W), :] = jnp.zeros((n1, W_pad - W, C), bf16)
    xp2_ref[pl.ds(0, 2), :, :] = jnp.zeros((2, W_pad, C), bf16)
    xp2_ref[pl.ds(n2 - 2, 2), :, :] = jnp.zeros((2, W_pad, C), bf16)
    xp2_ref[pl.ds(0, n2), pl.ds(W, W_pad - W), :] = jnp.zeros((n2, W_pad - W, C), bf16)

    # conv1 input = relu(x) with a 2-row halo; halo rows outside the image are zero.
    top = jnp.where(i > 0, xt_ref[0], 0.0)          # rows r0-2, r0-1
    bot = jnp.where(i < nt - 1, xb_ref[0], 0.0)     # rows r0+th, r0+th+1
    x_mid = x_ref[0]                                # (th, W, C) f32 (residual source)
    xp1_ref[pl.ds(2, 2), pl.ds(0, W), :] = jnp.maximum(top, 0.0).astype(bf16)
    xp1_ref[pl.ds(4, th), pl.ds(0, W), :] = jnp.maximum(x_mid, 0.0).astype(bf16)
    xp1_ref[pl.ds(4 + th, 2), pl.ds(0, W), :] = jnp.maximum(bot, 0.0).astype(bf16)

    def conv3x3(xp_ref, n_rows, w_ref, b_ref):
        # Data sits at buffer rows [2, ...). Outputs are produced for data rows
        # [1, 1 + n_rows) (buffer rows [3, 3 + n_rows)).  Rows are W_pad wide with
        # zero columns [W, W_pad), so the flat +-1 column shifts read zeros at the
        # image borders -- no masks, no concatenated pads.
        slab = xp_ref[pl.ds(1, n_rows + 4), :, :]              # buffer rows 1 .. n_rows+4
        flat = slab.reshape((n_rows + 4) * W_pad, C)           # tile-aligned merge
        R = n_rows * W_pad
        acc = None
        for dy in (-1, 0, 1):
            s0 = (2 + dy) * W_pad                              # dx = 0 start within slab
            if fuse_dx:
                lhs = jnp.concatenate(
                    [flat[s0 - 1:s0 - 1 + R],
                     flat[s0:s0 + R],
                     flat[s0 + 1:s0 + 1 + R]], axis=-1)        # (R, 3C) -> K = 3C matmul
                part = jnp.dot(lhs, w_ref[dy + 1],
                               preferred_element_type=jnp.float32)
            else:
                # v5e path: keep 9 K=C matmuls (128-deep MXU), no lane concat.
                wdy = w_ref[dy + 1]                            # (3C, C)
                part = None
                for k, dx in enumerate((-1, 0, 1)):
                    p = jnp.dot(flat[s0 + dx:s0 + dx + R],
                                wdy[k * C:(k + 1) * C, :],
                                preferred_element_type=jnp.float32)
                    part = p if part is None else part + p
            acc = part if acc is None else acc + part
        return acc + b_ref[...]                                # (R, C) f32

    # conv1 -> ReLU -> intermediate (th+2 rows: 1-row halo recomputed per tile).
    h = conv3x3(xp1_ref, th + 2, w1_ref, b1_ref)
    h = jnp.maximum(h, 0.0).reshape(th + 2, W_pad, C)
    xp2_ref[pl.ds(2, th + 2), pl.ds(0, W), :] = h[:, :W, :].astype(bf16)

    # Intermediate rows that fall outside the image must be zero-padding, not
    # "conv applied to zero rows".
    @pl.when(i == 0)
    def _():
        xp2_ref[pl.ds(2, 1), pl.ds(0, W), :] = jnp.zeros((1, W, C), bf16)

    @pl.when(i == nt - 1)
    def _():
        xp2_ref[pl.ds(2 + th + 1, 1), pl.ds(0, W), :] = jnp.zeros((1, W, C), bf16)

    # conv2 -> + residual -> output (skip_add.add(out, x)).
    out = conv3x3(xp2_ref, th, w2_ref, b2_ref)
    out = out.reshape(th, W_pad, C)[:, :W, :] + x_mid
    o_ref[0] = out.astype(o_ref.dtype)


def _weights_to_taps(w_oihw):
    """PyTorch (C_out, C_in, 3, 3) -> (3, 3*C_in, C_out) bf16, dy-major, dx blocks on rows."""
    w = jnp.transpose(w_oihw, (2, 3, 1, 0))            # (kh, kw, C_in, C_out)
    kh, kw, cin, cout = w.shape
    return w.reshape(kh, kw * cin, cout).astype(jnp.bfloat16)


def _vmem_bytes_estimate(tile_h, W, W_pad, C, fuse_dx):
    f32, bf16 = 4, 2
    th = tile_h
    b = 2 * th * W * C * f32                         # x tile, double buffered
    b += 2 * 2 * 2 * W * C * f32                     # two 2-row halos, double buffered
    b += 2 * th * W * C * f32                        # output, double buffered
    b += 2 * 3 * 3 * C * C * bf16                    # two weights, single buffered
    b += 2 * 2 * C * f32                             # biases
    b += ((th + 8) + (th + 6)) * W_pad * C * bf16    # scratch
    # generous allowance for in-kernel temporaries (matmul operands, f32 accumulators)
    b += (th + 2) * W_pad * C * (f32 + (3 * bf16 if fuse_dx else bf16)) * 2
    return b


def _pick_tile_h(H, W, W_pad, C, fuse_dx, budget=24 << 20, max_rows=512):
    best = None
    for t in range(2, min(H, max_rows) + 1, 2):
        if H % t == 0 and _vmem_bytes_estimate(t, W, W_pad, C, fuse_dx) <= budget:
            best = t
    if best is None:
        for t in range(2, H + 1, 2):
            if H % t == 0:
                best = t
                break
    return best if best is not None else H


@functools.partial(jax.jit, static_argnames=("tile_h", "fuse_dx_taps"))
def residual_conv_unit(x_nhwc, params, *, tile_h=None, fuse_dx_taps=True):
    """Fused relu->conv3x3->relu->conv3x3 + residual.  x_nhwc: (B, H, W, C) f32."""
    B, H, W, C = x_nhwc.shape
    W_pad = ((W + 1 + 15) // 16) * 16                 # bf16 sublane-pack aligned row width
    if tile_h is None:
        tile_h = _pick_tile_h(H, W, W_pad, C, fuse_dx_taps)
    if (H % 2) or (tile_h % 2) or (H % tile_h):
        # TODO(synk): ragged/odd H row tiling not implemented.
        raise NotImplementedError("residual_conv_unit needs even H and an even tile_h dividing H")
    th = tile_h
    nt = H // th
    hb = H // 2                                       # number of 2-row halo blocks along H

    w1 = _weights_to_taps(params["w1"])
    w2 = _weights_to_taps(params["w2"])
    b1 = params["b1"].reshape(1, C).astype(jnp.float32)
    b2 = params["b2"].reshape(1, C).astype(jnp.float32)

    kernel = functools.partial(_rcu_kernel, W=W, W_pad=W_pad, tile_h=th,
                               fuse_dx=fuse_dx_taps)
    est = _vmem_bytes_estimate(th, W, W_pad, C, fuse_dx_taps)
    vmem_limit = int(min(64 << 20, max(32 << 20, 2 * est)))

    w_spec = lambda: pl.BlockSpec((3, 3 * C, C), lambda b, i: (0, 0, 0),
                                  pipeline_mode=pl.Buffered(1))  # constant block: 1 buffer

    return pl.pallas_call(
        kernel,
        out_shape=jax.ShapeDtypeStruct((B, H, W, C), x_nhwc.dtype),
        grid=(B, nt),
        in_specs=[
            pl.BlockSpec((1, th, W, C), lambda b, i: (b, i, 0, 0)),
            pl.BlockSpec((1, 2, W, C),
                         lambda b, i: (b, jnp.maximum(i * (th // 2) - 1, 0), 0, 0)),
            pl.BlockSpec((1, 2, W, C),
                         lambda b, i: (b, jnp.minimum((i + 1) * (th // 2), hb - 1), 0, 0)),
            w_spec(),
            pl.BlockSpec((1, C), lambda b, i: (0, 0)),
            w_spec(),
            pl.BlockSpec((1, C), lambda b, i: (0, 0)),
        ],
        out_specs=pl.BlockSpec((1, th, W, C), lambda b, i: (b, i, 0, 0)),
        scratch_shapes=[
            pltpu.VMEM((th + 8, W_pad, C), jnp.bfloat16),   # padded conv1 input
            pltpu.VMEM((th + 6, W_pad, C), jnp.bfloat16),   # padded conv2 input
        ],
        compiler_params=pltpu.CompilerParams(
            dimension_semantics=("parallel", "parallel"),
            vmem_limit_bytes=vmem_limit),
    )(x_nhwc, x_nhwc, x_nhwc, w1, b1, w2, b2)


# ---------------- pure-JAX reference (matching bf16 MXU-operand numerics) ----------------


def residual_conv_unit_ref(x_nhwc, params):
    def conv(inp, w, b):
        out = jax.lax.conv_general_dilated(
            inp.astype(jnp.bfloat16), w.astype(jnp.bfloat16),
            window_strides=(1, 1), padding=((1, 1), (1, 1)),
            dimension_numbers=("NHWC", "OIHW", "NHWC"),
            preferred_element_type=jnp.float32)
        return out + b.reshape(1, 1, 1, -1)

    h = jnp.maximum(x_nhwc, 0.0)
    h = conv(h, params["w1"], params["b1"])
    h = jnp.maximum(h, 0.0)
    h = conv(h, params["w2"], params["b2"])
    return h + x_nhwc


if __name__ == "__main__":
    # Small shapes consistent with the module; features=128 keeps the channel axis
    # lane-dense (full (8,128) tiles, unmasked stores).  Channels-last layout end-to-end.
    B, C, H, W = 2, 128, 16, 16

    key = jax.random.PRNGKey(0)
    kx, k1, k2, k3, k4 = jax.random.split(key, 5)
    x = jax.random.normal(kx, (B, H, W, C), jnp.float32)
    params = {
        "w1": 0.05 * jax.random.normal(k1, (C, C, 3, 3), jnp.float32),
        "b1": 0.05 * jax.random.normal(k2, (C,), jnp.float32),
        "w2": 0.05 * jax.random.normal(k3, (C, C, 3, 3), jnp.float32),
        "b2": 0.05 * jax.random.normal(k4, (C,), jnp.float32),
    }

    ref = residual_conv_unit_ref(x, params)

    configs = (
        dict(),                              # auto tile (single tile at H=16), K=3C matmuls
        dict(tile_h=4),                      # exercises the row-tiling + halo path
        dict(tile_h=8, fuse_dx_taps=False),  # v5e-style 9x K=C matmuls
    )
    for cfg in configs:
        out = jax.block_until_ready(residual_conv_unit(x, params, **cfg))
        assert out.shape == x.shape
        err = float(jnp.max(jnp.abs(out - ref)))
        # Tolerance accounts for bf16 MXU operands (f32 accumulation) on both sides.
        assert jnp.allclose(out, ref, atol=3e-2, rtol=3e-2), (cfg, err)

    print("KERNEL_OK")
</pallas_src>

<mosaic_0001>
module attributes {stable_mosaic.version = 11 : i64} {
  func.func @_rcu_kernel(%arg0: i32, %arg1: i32, %arg2: memref<1x16x16x128xf32, #tpu.memory_space<vmem>>, %arg3: memref<1x2x16x128xf32, #tpu.memory_space<vmem>>, %arg4: memref<1x2x16x128xf32, #tpu.memory_space<vmem>>, %arg5: memref<3x384x128xbf16, #tpu.memory_space<vmem>>, %arg6: memref<1x128xf32, #tpu.memory_space<vmem>>, %arg7: memref<3x384x128xbf16, #tpu.memory_space<vmem>>, %arg8: memref<1x128xf32, #tpu.memory_space<vmem>>, %arg9: memref<1x16x16x128xf32, #tpu.memory_space<vmem>>, %arg10: memref<24x32x128xbf16, #tpu.memory_space<vmem>>, %arg11: memref<22x32x128xbf16, #tpu.memory_space<vmem>>) attributes {dimension_semantics = [#tpu.dimension_semantics<parallel>, #tpu.dimension_semantics<parallel>], iteration_bounds = array<i64: 2, 1>, scalar_prefetch = 0 : i64, scratch_operands = 2 : i64, tpu.core_type = #tpu.core_type<tc>, window_params = [{transform_indices = @transform_0, window_bounds = array<i64: 1, 16, 16, 128>}, {transform_indices = @transform_1, window_bounds = array<i64: 1, 2, 16, 128>}, {transform_indices = @transform_2, window_bounds = array<i64: 1, 2, 16, 128>}, {pipeline_mode = #tpu.pipeline_mode<synchronous>, transform_indices = @transform_3, window_bounds = array<i64: 3, 384, 128>}, {pipeline_mode = #tpu.pipeline_mode<synchronous>, transform_indices = @transform_4, window_bounds = array<i64: 1, 128>}, {pipeline_mode = #tpu.pipeline_mode<synchronous>, transform_indices = @transform_5, window_bounds = array<i64: 3, 384, 128>}, {pipeline_mode = #tpu.pipeline_mode<synchronous>, transform_indices = @transform_6, window_bounds = array<i64: 1, 128>}, {transform_indices = @transform_7, window_bounds = array<i64: 1, 16, 16, 128>}]} {
    %cst = arith.constant 0.000000e+00 : bf16
    %0 = vector.broadcast %cst : bf16 to vector<2x32x128xbf16>
    %c0 = arith.constant 0 : index
    %c0_0 = arith.constant 0 : index
    %c0_1 = arith.constant 0 : index
    %1 = vector.load %arg10[%c0, %c0_0, %c0_1] : memref<24x32x128xbf16, #tpu.memory_space<vmem>>, vector<2x32x128xbf16>
    tpu.vector_store %arg10[%c0, %c0_0, %c0_1], %0 {strides = array<i32>} : memref<24x32x128xbf16, #tpu.memory_space<vmem>>, vector<2x32x128xbf16>,
    %cst_2 = arith.constant 0.000000e+00 : bf16
    %2 = vector.broadcast %cst_2 : bf16 to vector<2x32x128xbf16>
    %c22 = arith.constant 22 : index
    %c0_3 = arith.constant 0 : index
    %c0_4 = arith.constant 0 : index
    %3 = vector.load %arg10[%c22, %c0_3, %c0_4] : memref<24x32x128xbf16, #tpu.memory_space<vmem>>, vector<2x32x128xbf16>
    tpu.vector_store %arg10[%c22, %c0_3, %c0_4], %2 {strides = array<i32>} : memref<24x32x128xbf16, #tpu.memory_space<vmem>>, vector<2x32x128xbf16>,
    %cst_5 = arith.constant 0.000000e+00 : bf16
    %4 = vector.broadcast %cst_5 : bf16 to vector<24x16x128xbf16>
    %c0_6 = arith.constant 0 : index
    %c16 = arith.constant 16 : index
    %c0_7 = arith.constant 0 : index
    %5 = vector.load %arg10[%c0_6, %c16, %c0_7] : memref<24x32x128xbf16, #tpu.memory_space<vmem>>, vector<24x16x128xbf16>
    tpu.vector_store %arg10[%c0_6, %c16, %c0_7], %4 {strides = array<i32>} : memref<24x32x128xbf16, #tpu.memory_space<vmem>>, vector<24x16x128xbf16>,
    %cst_8 = arith.constant 0.000000e+00 : bf16
    %6 = vector.broadcast %cst_8 : bf16 to vector<2x32x128xbf16>
    %c0_9 = arith.constant 0 : index
    %c0_10 = arith.constant 0 : index
    %c0_11 = arith.constant 0 : index
    %7 = vector.load %arg11[%c0_9, %c0_10, %c0_11] : memref<22x32x128xbf16, #tpu.memory_space<vmem>>, vector<2x32x128xbf16>
    tpu.vector_store %arg11[%c0_9, %c0_10, %c0_11], %6 {strides = array<i32>} : memref<22x32x128xbf16, #tpu.memory_space<vmem>>, vector<2x32x128xbf16>,
    %cst_12 = arith.constant 0.000000e+00 : bf16
    %8 = vector.broadcast %cst_12 : bf16 to vector<2x32x128xbf16>
    %c20 = arith.constant 20 : index
    %c0_13 = arith.constant 0 : index
    %c0_14 = arith.constant 0 : index
    %9 = vector.load %arg11[%c20, %c0_13, %c0_14] : memref<22x32x128xbf16, #tpu.memory_space<vmem>>, vector<2x32x128xbf16>
    tpu.vector_store %arg11[%c20, %c0_13, %c0_14], %8 {strides = array<i32>} : memref<22x32x128xbf16, #tpu.memory_space<vmem>>, vector<2x32x128xbf16>,
    %cst_15 = arith.constant 0.000000e+00 : bf16
    %10 = vector.broadcast %cst_15 : bf16 to vector<22x16x128xbf16>
    %c0_16 = arith.constant 0 : index
    %c16_17 = arith.constant 16 : index
    %c0_18 = arith.constant 0 : index
    %11 = vector.load %arg11[%c0_16, %c16_17, %c0_18] : memref<22x32x128xbf16, #tpu.memory_space<vmem>>, vector<22x16x128xbf16>
    tpu.vector_store %arg11[%c0_16, %c16_17, %c0_18], %10 {strides = array<i32>} : memref<22x32x128xbf16, #tpu.memory_space<vmem>>, vector<22x16x128xbf16>,
    %c0_i32 = arith.constant 0 : i32
    %12 = arith.cmpi sgt, %arg1, %c0_i32 : i32
    %c0_19 = arith.constant 0 : index
    %c0_20 = arith.constant 0 : index
    %c0_21 = arith.constant 0 : index
    %c0_22 = arith.constant 0 : index
    %13 = vector.load %arg3[%c0_19, %c0_20, %c0_21, %c0_22] : memref<1x2x16x128xf32, #tpu.memory_space<vmem>>, vector<1x2x16x128xf32>
    %14 = vector.shape_cast %13 : vector<1x2x16x128xf32> to vector<2x16x128xf32>
    %cst_23 = arith.constant 0.000000e+00 : f32
    %15 = vector.broadcast %cst_23 : f32 to vector<2x16x128xf32>
    %16 = arith.select %12, %14, %15 : vector<2x16x128xf32>
    %c0_i32_24 = arith.constant 0 : i32
    %17 = arith.cmpi slt, %arg1, %c0_i32_24 : i32
    %c0_25 = arith.constant 0 : index
    %c0_26 = arith.constant 0 : index
    %c0_27 = arith.constant 0 : index
    %c0_28 = arith.constant 0 : index
    %18 = vector.load %arg4[%c0_25, %c0_26, %c0_27, %c0_28] : memref<1x2x16x128xf32, #tpu.memory_space<vmem>>, vector<1x2x16x128xf32>
    %19 = vector.shape_cast %18 : vector<1x2x16x128xf32> to vector<2x16x128xf32>
    %cst_29 = arith.constant 0.000000e+00 : f32
    %20 = vector.broadcast %cst_29 : f32 to vector<2x16x128xf32>
    %21 = arith.select %17, %19, %20 : vector<2x16x128xf32>
    %c0_30 = arith.constant 0 : index
    %c0_31 = arith.constant 0 : index
    %c0_32 = arith.constant 0 : index
    %c0_33 = arith.constant 0 : index
    %22 = vector.load %arg2[%c0_30, %c0_31, %c0_32, %c0_33] : memref<1x16x16x128xf32, #tpu.memory_space<vmem>>, vector<1x16x16x128xf32>
    %23 = vector.shape_cast %22 : vector<1x16x16x128xf32> to vector<16x16x128xf32>
    %cst_34 = arith.constant 0.000000e+00 : f32
    %24 = vector.broadcast %cst_34 : f32 to vector<2x16x128xf32>
    %25 = arith.maximumf %16, %24 : vector<2x16x128xf32>
    %26 = arith.truncf %25 : vector<2x16x128xf32> to vector<2x16x128xbf16>
    %c2 = arith.constant 2 : index
    %c0_35 = arith.constant 0 : index
    %c0_36 = arith.constant 0 : index
    %27 = vector.load %arg10[%c2, %c0_35, %c0_36] : memref<24x32x128xbf16, #tpu.memory_space<vmem>>, vector<2x16x128xbf16>
    tpu.vector_store %arg10[%c2, %c0_35, %c0_36], %26 {strides = array<i32>} : memref<24x32x128xbf16, #tpu.memory_space<vmem>>, vector<2x16x128xbf16>,
    %cst_37 = arith.constant 0.000000e+00 : f32
    %28 = vector.broadcast %cst_37 : f32 to vector<16x16x128xf32>
    %29 = arith.maximumf %23, %28 : vector<16x16x128xf32>
    %30 = arith.truncf %29 : vector<16x16x128xf32> to vector<16x16x128xbf16>
    %c4 = arith.constant 4 : index
    %c0_38 = arith.constant 0 : index
    %c0_39 = arith.constant 0 : index
    %31 = vector.load %arg10[%c4, %c0_38, %c0_39] : memref<24x32x128xbf16, #tpu.memory_space<vmem>>, vector<16x16x128xbf16>
    tpu.vector_store %arg10[%c4, %c0_38, %c0_39], %30 {strides = array<i32>} : memref<24x32x128xbf16, #tpu.memory_space<vmem>>, vector<16x16x128xbf16>,
    %cst_40 = arith.constant 0.000000e+00 : f32
    %32 = vector.broadcast %cst_40 : f32 to vector<2x16x128xf32>
    %33 = arith.maximumf %21, %32 : vector<2x16x128xf32>
    %34 = arith.truncf %33 : vector<2x16x128xf32> to vector<2x16x128xbf16>
    %c20_41 = arith.constant 20 : index
    %c0_42 = arith.constant 0 : index
    %c0_43 = arith.constant 0 : index
    %35 = vector.load %arg10[%c20_41, %c0_42, %c0_43] : memref<24x32x128xbf16, #tpu.memory_space<vmem>>, vector<2x16x128xbf16>
    tpu.vector_store %arg10[%c20_41, %c0_42, %c0_43], %34 {strides = array<i32>} : memref<24x32x128xbf16, #tpu.memory_space<vmem>>, vector<2x16x128xbf16>,
    %c1 = arith.constant 1 : index
    %c0_44 = arith.constant 0 : index
    %c0_45 = arith.constant 0 : index
    %36 = vector.load %arg10[%c1, %c0_44, %c0_45] : memref<24x32x128xbf16, #tpu.memory_space<vmem>>, vector<22x32x128xbf16>
    %37 = vector.shape_cast %36 : vector<22x32x128xbf16> to vector<704x128xbf16>
    %38 = vector.extract_strided_slice %37 {offsets = [31, 0], sizes = [576, 128], strides = [1, 1]} : vector<704x128xbf16> to vector<576x128xbf16>
    %39 = vector.extract_strided_slice %37 {offsets = [32, 0], sizes = [576, 128], strides = [1, 1]} : vector<704x128xbf16> to vector<576x128xbf16>
    %40 = vector.extract_strided_slice %37 {offsets = [33, 0], sizes = [576, 128], strides = [1, 1]} : vector<704x128xbf16> to vector<576x128xbf16>
    %41 = tpu.concatenate %38, %39, %40 in 1 : vector<576x128xbf16>, vector<576x128xbf16>, vector<576x128xbf16> -> vector<576x384xbf16>
    %c0_46 = arith.constant 0 : index
    %c0_47 = arith.constant 0 : index
    %c0_48 = arith.constant 0 : index
    %42 = vector.load %arg5[%c0_46, %c0_47, %c0_48] : memref<3x384x128xbf16, #tpu.memory_space<vmem>>, vector<1x384x128xbf16>
    %43 = vector.shape_cast %42 : vector<1x384x128xbf16> to vector<384x128xbf16>
    %cst_49 = arith.constant dense<0.000000e+00> : vector<576x128xf32>
    %44 = tpu.matmul %41, %43, %cst_49 {dimension_numbers = #tpu.dot_dimension_numbers<[1], [0], [0], [1], [0, 0, 1, 1], [], []>} : vector<576x384xbf16>, vector<384x128xbf16>, vector<576x128xf32> -> vector<576x128xf32>
    %45 = vector.extract_strided_slice %37 {offsets = [63, 0], sizes = [576, 128], strides = [1, 1]} : vector<704x128xbf16> to vector<576x128xbf16>
    %46 = vector.extract_strided_slice %37 {offsets = [64, 0], sizes = [576, 128], strides = [1, 1]} : vector<704x128xbf16> to vector<576x128xbf16>
    %47 = vector.extract_strided_slice %37 {offsets = [65, 0], sizes = [576, 128], strides = [1, 1]} : vector<704x128xbf16> to vector<576x128xbf16>
    %48 = tpu.concatenate %45, %46, %47 in 1 : vector<576x128xbf16>, vector<576x128xbf16>, vector<576x128xbf16> -> vector<576x384xbf16>
    %c1_50 = arith.constant 1 : index
    %c0_51 = arith.constant 0 : index
    %c0_52 = arith.constant 0 : index
    %49 = vector.load %arg5[%c1_50, %c0_51, %c0_52] : memref<3x384x128xbf16, #tpu.memory_space<vmem>>, vector<1x384x128xbf16>
    %50 = vector.shape_cast %49 : vector<1x384x128xbf16> to vector<384x128xbf16>
    %cst_53 = arith.constant dense<0.000000e+00> : vector<576x128xf32>
    %51 = tpu.matmul %48, %50, %cst_53 {dimension_numbers = #tpu.dot_dimension_numbers<[1], [0], [0], [1], [0, 0, 1, 1], [], []>} : vector<576x384xbf16>, vector<384x128xbf16>, vector<576x128xf32> -> vector<576x128xf32>
    %52 = arith.addf %44, %51 : vector<576x128xf32>
    %53 = vector.extract_strided_slice %37 {offsets = [95, 0], sizes = [576, 128], strides = [1, 1]} : vector<704x128xbf16> to vector<576x128xbf16>
    %54 = vector.extract_strided_slice %37 {offsets = [96, 0], sizes = [576, 128], strides = [1, 1]} : vector<704x128xbf16> to vector<576x128xbf16>
    %55 = vector.extract_strided_slice %37 {offsets = [97, 0], sizes = [576, 128], strides = [1, 1]} : vector<704x128xbf16> to vector<576x128xbf16>
    %56 = tpu.concatenate %53, %54, %55 in 1 : vector<576x128xbf16>, vector<576x128xbf16>, vector<576x128xbf16> -> vector<576x384xbf16>
    %c2_54 = arith.constant 2 : index
    %c0_55 = arith.constant 0 : index
    %c0_56 = arith.constant 0 : index
    %57 = vector.load %arg5[%c2_54, %c0_55, %c0_56] : memref<3x384x128xbf16, #tpu.memory_space<vmem>>, vector<1x384x128xbf16>
    %58 = vector.shape_cast %57 : vector<1x384x128xbf16> to vector<384x128xbf16>
    %cst_57 = arith.constant dense<0.000000e+00> : vector<576x128xf32>
    %59 = tpu.matmul %56, %58, %cst_57 {dimension_numbers = #tpu.dot_dimension_numbers<[1], [0], [0], [1], [0, 0, 1, 1], [], []>} : vector<576x384xbf16>, vector<384x128xbf16>, vector<576x128xf32> -> vector<576x128xf32>
    %60 = arith.addf %52, %59 : vector<576x128xf32>
    %c0_58 = arith.constant 0 : index
    %c0_59 = arith.constant 0 : index
    %61 = vector.load %arg6[%c0_58, %c0_59] : memref<1x128xf32, #tpu.memory_space<vmem>>, vector<1x128xf32>
    %62 = vector.broadcast %61 : vector<1x128xf32> to vector<576x128xf32>
    %63 = arith.addf %60, %62 : vector<576x128xf32>
    %cst_60 = arith.constant 0.000000e+00 : f32
    %64 = vector.broadcast %cst_60 : f32 to vector<576x128xf32>
    %65 = arith.maximumf %63, %64 : vector<576x128xf32>
    %66 = vector.shape_cast %65 : vector<576x128xf32> to vector<18x32x128xf32>
    %67 = vector.extract_strided_slice %66 {offsets = [0, 0, 0], sizes = [18, 16, 128], strides = [1, 1, 1]} : vector<18x32x128xf32> to vector<18x16x128xf32>
    %68 = arith.truncf %67 : vector<18x16x128xf32> to vector<18x16x128xbf16>
    %c2_61 = arith.constant 2 : index
    %c0_62 = arith.constant 0 : index
    %c0_63 = arith.constant 0 : index
    %69 = vector.load %arg11[%c2_61, %c0_62, %c0_63] : memref<22x32x128xbf16, #tpu.memory_space<vmem>>, vector<18x16x128xbf16>
    tpu.vector_store %arg11[%c2_61, %c0_62, %c0_63], %68 {strides = array<i32>} : memref<22x32x128xbf16, #tpu.memory_space<vmem>>, vector<18x16x128xbf16>,
    %c0_i32_64 = arith.constant 0 : i32
    %70 = arith.cmpi eq, %arg1, %c0_i32_64 : i32
    %71 = arith.extui %70 : i1 to i32
    %c0_i32_65 = arith.constant 0 : i32
    %72 = arith.cmpi ne, %71, %c0_i32_65 : i32
    scf.if %72 {
      %cst_89 = arith.constant 0.000000e+00 : bf16
      %110 = vector.broadcast %cst_89 : bf16 to vector<1x16x128xbf16>
      %c2_90 = arith.constant 2 : index
      %c0_91 = arith.constant 0 : index
      %c0_92 = arith.constant 0 : index
      %111 = vector.load %arg11[%c2_90, %c0_91, %c0_92] : memref<22x32x128xbf16, #tpu.memory_space<vmem>>, vector<1x16x128xbf16>
      tpu.vector_store %arg11[%c2_90, %c0_91, %c0_92], %110 {strides = array<i32>} : memref<22x32x128xbf16, #tpu.memory_space<vmem>>, vector<1x16x128xbf16>,
    } else {
    }
    %c0_i32_66 = arith.constant 0 : i32
    %73 = arith.cmpi eq, %arg1, %c0_i32_66 : i32
    %74 = arith.extui %73 : i1 to i32
    %c0_i32_67 = arith.constant 0 : i32
    %75 = arith.cmpi ne, %74, %c0_i32_67 : i32
    scf.if %75 {
      %cst_89 = arith.constant 0.000000e+00 : bf16
      %110 = vector.broadcast %cst_89 : bf16 to vector<1x16x128xbf16>
      %c19 = arith.constant 19 : index
      %c0_90 = arith.constant 0 : index
      %c0_91 = arith.constant 0 : index
      %111 = vector.load %arg11[%c19, %c0_90, %c0_91] : memref<22x32x128xbf16, #tpu.memory_space<vmem>>, vector<1x16x128xbf16>
      tpu.vector_store %arg11[%c19, %c0_90, %c0_91], %110 {strides = array<i32>} : memref<22x32x128xbf16, #tpu.memory_space<vmem>>, vector<1x16x128xbf16>,
    } else {
    }
    %c1_68 = arith.constant 1 : index
    %c0_69 = arith.constant 0 : index
    %c0_70 = arith.constant 0 : index
    %76 = vector.load %arg11[%c1_68, %c0_69, %c0_70] : memref<22x32x128xbf16, #tpu.memory_space<vmem>>, vector<20x32x128xbf16>
    %77 = vector.shape_cast %76 : vector<20x32x128xbf16> to vector<640x128xbf16>
    %78 = vector.extract_strided_slice %77 {offsets = [31, 0], sizes = [512, 128], strides = [1, 1]} : vector<640x128xbf16> to vector<512x128xbf16>
    %79 = vector.extract_strided_slice %77 {offsets = [32, 0], sizes = [512, 128], strides = [1, 1]} : vector<640x128xbf16> to vector<512x128xbf16>
    %80 = vector.extract_strided_slice %77 {offsets = [33, 0], sizes = [512, 128], strides = [1, 1]} : vector<640x128xbf16> to vector<512x128xbf16>
    %81 = tpu.concatenate %78, %79, %80 in 1 : vector<512x128xbf16>, vector<512x128xbf16>, vector<512x128xbf16> -> vector<512x384xbf16>
    %c0_71 = arith.constant 0 : index
    %c0_72 = arith.constant 0 : index
    %c0_73 = arith.constant 0 : index
    %82 = vector.load %arg7[%c0_71, %c0_72, %c0_73] : memref<3x384x128xbf16, #tpu.memory_space<vmem>>, vector<1x384x128xbf16>
    %83 = vector.shape_cast %82 : vector<1x384x128xbf16> to vector<384x128xbf16>
    %cst_74 = arith.constant dense<0.000000e+00> : vector<512x128xf32>
    %84 = tpu.matmul %81, %83, %cst_74 {dimension_numbers = #tpu.dot_dimension_numbers<[1], [0], [0], [1], [0, 0, 1, 1], [], []>} : vector<512x384xbf16>, vector<384x128xbf16>, vector<512x128xf32> -> vector<512x128xf32>
    %85 = vector.extract_strided_slice %77 {offsets = [63, 0], sizes = [512, 128], strides = [1, 1]} : vector<640x128xbf16> to vector<512x128xbf16>
    %86 = vector.extract_strided_slice %77 {offsets = [64, 0], sizes = [512, 128], strides = [1, 1]} : vector<640x128xbf16> to vector<512x128xbf16>
    %87 = vector.extract_strided_slice %77 {offsets = [65, 0], sizes = [512, 128], strides = [1, 1]} : vector<640x128xbf16> to vector<512x128xbf16>
    %88 = tpu.concatenate %85, %86, %87 in 1 : vector<512x128xbf16>, vector<512x128xbf16>, vector<512x128xbf16> -> vector<512x384xbf16>
    %c1_75 = arith.constant 1 : index
    %c0_76 = arith.constant 0 : index
    %c0_77 = arith.constant 0 : index
    %89 = vector.load %arg7[%c1_75, %c0_76, %c0_77] : memref<3x384x128xbf16, #tpu.memory_space<vmem>>, vector<1x384x128xbf16>
    %90 = vector.shape_cast %89 : vector<1x384x128xbf16> to vector<384x128xbf16>
    %cst_78 = arith.constant dense<0.000000e+00> : vector<512x128xf32>
    %91 = tpu.matmul %88, %90, %cst_78 {dimension_numbers = #tpu.dot_dimension_numbers<[1], [0], [0], [1], [0, 0, 1, 1], [], []>} : vector<512x384xbf16>, vector<384x128xbf16>, vector<512x128xf32> -> vector<512x128xf32>
    %92 = arith.addf %84, %91 : vector<512x128xf32>
    %93 = vector.extract_strided_slice %77 {offsets = [95, 0], sizes = [512, 128], strides = [1, 1]} : vector<640x128xbf16> to vector<512x128xbf16>
    %94 = vector.extract_strided_slice %77 {offsets = [96, 0], sizes = [512, 128], strides = [1, 1]} : vector<640x128xbf16> to vector<512x128xbf16>
    %95 = vector.extract_strided_slice %77 {offsets = [97, 0], sizes = [512, 128], strides = [1, 1]} : vector<640x128xbf16> to vector<512x128xbf16>
    %96 = tpu.concatenate %93, %94, %95 in 1 : vector<512x128xbf16>, vector<512x128xbf16>, vector<512x128xbf16> -> vector<512x384xbf16>
    %c2_79 = arith.constant 2 : index
    %c0_80 = arith.constant 0 : index
    %c0_81 = arith.constant 0 : index
    %97 = vector.load %arg7[%c2_79, %c0_80, %c0_81] : memref<3x384x128xbf16, #tpu.memory_space<vmem>>, vector<1x384x128xbf16>
    %98 = vector.shape_cast %97 : vector<1x384x128xbf16> to vector<384x128xbf16>
    %cst_82 = arith.constant dense<0.000000e+00> : vector<512x128xf32>
    %99 = tpu.matmul %96, %98, %cst_82 {dimension_numbers = #tpu.dot_dimension_numbers<[1], [0], [0], [1], [0, 0, 1, 1], [], []>} : vector<512x384xbf16>, vector<384x128xbf16>, vector<512x128xf32> -> vector<512x128xf32>
    %100 = arith.addf %92, %99 : vector<512x128xf32>
    %c0_83 = arith.constant 0 : index
    %c0_84 = arith.constant 0 : index
    %101 = vector.load %arg8[%c0_83, %c0_84] : memref<1x128xf32, #tpu.memory_space<vmem>>, vector<1x128xf32>
    %102 = vector.broadcast %101 : vector<1x128xf32> to vector<512x128xf32>
    %103 = arith.addf %100, %102 : vector<512x128xf32>
    %104 = vector.shape_cast %103 : vector<512x128xf32> to vector<16x32x128xf32>
    %105 = vector.extract_strided_slice %104 {offsets = [0, 0, 0], sizes = [16, 16, 128], strides = [1, 1, 1]} : vector<16x32x128xf32> to vector<16x16x128xf32>
    %106 = arith.addf %105, %23 : vector<16x16x128xf32>
    %c0_85 = arith.constant 0 : index
    %c0_86 = arith.constant 0 : index
    %c0_87 = arith.constant 0 : index
    %c0_88 = arith.constant 0 : index
    %107 = vector.load %arg9[%c0_85, %c0_86, %c0_87, %c0_88] : memref<1x16x16x128xf32, #tpu.memory_space<vmem>>, vector<1x16x16x128xf32>
    %108 = vector.shape_cast %107 : vector<1x16x16x128xf32> to vector<16x16x128xf32>
    %109 = vector.shape_cast %106 : vector<16x16x128xf32> to vector<1x16x16x128xf32>
    tpu.vector_store %arg9[%c0_85, %c0_86, %c0_87, %c0_88], %109 {strides = array<i32>} : memref<1x16x16x128xf32, #tpu.memory_space<vmem>>, vector<1x16x16x128xf32>,
    return
  }
  func.func @transform_0(%arg0: i32, %arg1: i32) -> (i32, i32, i32, i32) {
    %c0_i32 = arith.constant 0 : i32
    %c0_i32_0 = arith.constant 0 : i32
    %c0_i32_1 = arith.constant 0 : i32
    return %arg0, %arg1, %c0_i32, %c0_i32_0 : i32, i32, i32, i32
  }
  func.func @transform_1(%arg0: i32, %arg1: i32) -> (i32, i32, i32, i32) {
    %c8_i32 = arith.constant 8 : i32
    %0 = arith.muli %arg1, %c8_i32 : i32
    %c1_i32 = arith.constant 1 : i32
    %1 = arith.subi %0, %c1_i32 : i32
    %c0_i32 = arith.constant 0 : i32
    %2 = arith.maxsi %1, %c0_i32 : i32
    %c0_i32_0 = arith.constant 0 : i32
    %c0_i32_1 = arith.constant 0 : i32
    %c0_i32_2 = arith.constant 0 : i32
    return %arg0, %2, %c0_i32_0, %c0_i32_1 : i32, i32, i32, i32
  }
  func.func @transform_2(%arg0: i32, %arg1: i32) -> (i32, i32, i32, i32) {
    %c1_i32 = arith.constant 1 : i32
    %0 = arith.addi %arg1, %c1_i32 : i32
    %c8_i32 = arith.constant 8 : i32
    %1 = arith.muli %0, %c8_i32 : i32
    %c7_i32 = arith.constant 7 : i32
    %2 = arith.minsi %1, %c7_i32 : i32
    %c0_i32 = arith.constant 0 : i32
    %c0_i32_0 = arith.constant 0 : i32
    %c0_i32_1 = arith.constant 0 : i32
    return %arg0, %2, %c0_i32, %c0_i32_0 : i32, i32, i32, i32
  }
  func.func @transform_3(%arg0: i32, %arg1: i32) -> (i32, i32, i32) {
    %c0_i32 = arith.constant 0 : i32
    %c0_i32_0 = arith.constant 0 : i32
    %c0_i32_1 = arith.constant 0 : i32
    %c0_i32_2 = arith.constant 0 : i32
    return %c0_i32, %c0_i32_0, %c0_i32_1 : i32, i32, i32
  }
  func.func @transform_4(%arg0: i32, %arg1: i32) -> (i32, i32) {
    %c0_i32 = arith.constant 0 : i32
    %c0_i32_0 = arith.constant 0 : i32
    %c0_i32_1 = arith.constant 0 : i32
    return %c0_i32, %c0_i32_0 : i32, i32
  }
  func.func @transform_5(%arg0: i32, %arg1: i32) -> (i32, i32, i32) {
    %c0_i32 = arith.constant 0 : i32
    %c0_i32_0 = arith.constant 0 : i32
    %c0_i32_1 = arith.constant 0 : i32
    %c0_i32_2 = arith.constant 0 : i32
    return %c0_i32, %c0_i32_0, %c0_i32_1 : i32, i32, i32
  }
  func.func @transform_6(%arg0: i32, %arg1: i32) -> (i32, i32) {
    %c0_i32 = arith.constant 0 : i32
    %c0_i32_0 = arith.constant 0 : i32
    %c0_i32_1 = arith.constant 0 : i32
    return %c0_i32, %c0_i32_0 : i32, i32
  }
  func.func @transform_7(%arg0: i32, %arg1: i32) -> (i32, i32, i32, i32) {
    %c0_i32 = arith.constant 0 : i32
    %c0_i32_0 = arith.constant 0 : i32
    %c0_i32_1 = arith.constant 0 : i32
    return %arg0, %arg1, %c0_i32, %c0_i32_0 : i32, i32, i32, i32
  }
}

</mosaic_0001>

<llo_original>
// kernel: residual_conv_unit.1
$region0: #{residual_conv_unit.1}
  #allocation0 [shape = 'u32[]', space=smem, size = 0x4, offset = 0x4, fixed_abs, tag = 'smem constant byte address 0x4 - core index']
  #allocation1 [shape = 'u32[72,128]{1,0:T(1,128)}', space=vmem, size = 0x9000, scoped, tag = 'internal scratch']
  #allocation2 [shape = 'bf16[24,32,128]{2,1,0:T(8,128)(2,1)}', space=vmem, size = 0x30000, scoped, tag = 'scratch operand']
  #allocation3 [shape = 'bf16[22,32,128]{2,1,0:T(8,128)(2,1)}', space=vmem, size = 0x2c000, scoped, tag = 'scratch operand']
  %s0 = inlined_call_operand.vmem [shape: f32[2,16,16,128], index: 0, kind: input, shape index: {}, may-alias: {0,1,2}]
  %s1 = inlined_call_operand.vmem [shape: f32[2,16,16,128], index: 1, kind: input, shape index: {}, may-alias: {0,1,2}]
  %s2 = inlined_call_operand.vmem [shape: f32[2,16,16,128], index: 2, kind: input, shape index: {}, may-alias: {0,1,2}]
  %s3 = inlined_call_operand.vmem [shape: bf16[3,384,128], index: 3, kind: input, shape index: {}]
  %s4 = inlined_call_operand.vmem [shape: f32[1,128], index: 4, kind: input, shape index: {}]
  %s5 = inlined_call_operand.vmem [shape: bf16[3,384,128], index: 5, kind: input, shape index: {}]
  %s6 = inlined_call_operand.vmem [shape: f32[1,128], index: 6, kind: input, shape index: {}]
  %s7 = inlined_call_operand.hbm [shape: f32[2,16,16,128], index: 7, kind: output, shape index: {}]
  %s8 = sld [smem:[#allocation0]]
  $region65: #{residual_conv_unit.1} parent=0
    _
  %s10 = ssub.s32 1, %s8
  %s11 = scalar_select 0, %s10, %s8
  $region1: #{residual_conv_unit.1} parent=0
    #allocation4 [shape = 'u8[262144]{0}', space=vmem, size = 0x40000, scoped, tag = 'output window, operand 0']
    #allocation5 [shape = 's32[2]{0}', space=sflag, size = 0x8, scoped, tag = 'scoped memory for residual_conv_unit.1']
    %12 = vsyncpa [#allocation5], 0
    %s13 = scalar_lea.sflag [#allocation5], 1
    %14 = vsyncpa %s13, 0
    loop: start=0, step=1, limit=4
    $region2: #{residual_conv_unit.1} parent=1 // loop_pre_header
      _
    $region3: #{residual_conv_unit.1} parent=1 // loop_header
      %s16 = sphi 0, %s20
      %p17 = scmp.ge.s32.totalorder %s16, 4
      %s23 = sphi 0, %s35
      %s24 = sphi 0, %s31
      %s25 = sphi 0, %s23
      %s26 = sphi 0, %s24
      %s27 = sphi 0, %s25
      %s28 = sphi 0, %s26
      %s40 = sphi 0, %s42
      %s43 = sphi 0, %s40
      %s44 = sphi 0, %s43
      %s60 = sphi 0, %s44
      %s76 = sphi 0, %s78
      %s79 = sphi 0, %s76
      %s80 = sphi 0, %s79
      %s96 = sphi 0, %s80
      %s112 = sphi 0, %s114
      %s115 = sphi 0, %s112
      %s116 = sphi 0, %s115
      %s132 = sphi 0, %s116
      %s136 = sphi 0, %s136
      %s138 = sphi 0, %s136
      %s139 = sphi 0, %s138
      %s153 = sphi 0, %s139
      %s157 = sphi 0, %s157
      %s159 = sphi 0, %s157
      %s160 = sphi 0, %s159
      %s174 = sphi 0, %s160
      %s178 = sphi 0, %s178
      %s180 = sphi 0, %s178
      %s181 = sphi 0, %s180
      %s195 = sphi 0, %s181
      %s199 = sphi 0, %s199
      %s201 = sphi 0, %s199
      %s202 = sphi 0, %s201
      %s216 = sphi 0, %s202
      %s224 = sphi 0, %s226
      %s227 = sphi 0, %s224
      %s228 = sphi 0, %s227
      %s244 = sphi 0, %s228
    $region4: #{residual_conv_unit.1} parent=1 // loop_header_branch
      %19 = sbr.rel (%p17) target = $region8
    $region5: #{residual_conv_unit.1} parent=1 // loop_body
      %s21 = ssub.s32 %s16, 1
      %s22 = ssub.s32 %s16, 2
      %s29 = sadd.s32 1, %s24
      %p30 = scmp.ge.s32.totalorder %s29, 1
      %s31 = scalar_select %p30, 0, %s29
      %s32 = sadd.s32 1, %s23
      %s33 = scalar_select %p30, %s32, %s23
      %p34 = scmp.ge.s32.totalorder %s33, 2
      %s35 = scalar_select %p34, 0, %s33
      %s36 = ssub.s32 %s23, %s35
      %s37 = ssub.s32 %s24, %s31
      %s38 = sor.u32 %s36, %s37
      %p39 = scmp.eq.s32.totalorder %s38, 0
      %s41 = sadd.s32 %s40, 1
      %s42 = scalar_select %p39, %s40, %s41
      %p45 = pneg %p39
      %p46 = scmp.eq.s32.totalorder %s16, 1
      %p47 = por %p45, %p46
      %p48 = scmp.ne.s32.totalorder %s40, %s43
      %p49 = scmp.eq.s32.totalorder %s16, 0
      %p50 = por %p48, %p49
      %p51 = scmp.ne.s32.totalorder %s40, %s43
      %p52 = scmp.eq.s32.totalorder %s21, 1
      %p53 = por %p51, %p52
      %p54 = scmp.ne.s32.totalorder %s43, %s44
      %p55 = scmp.eq.s32.totalorder %s21, 0
      %p56 = por %p54, %p55
      %p57 = scmp.ne.s32.totalorder %s43, %s44
      %p58 = scmp.eq.s32.totalorder %s22, 1
      %p59 = por %p57, %p58
      %p61 = scmp.ne.s32.totalorder %s44, %s60
      %p62 = scmp.eq.s32.totalorder %s22, 0
      %p63 = por %p61, %p62
      %s64 = smul.u32 %s24, 8
      %s65 = ssub.s32 %s64, 1
      %p66 = scmp.gt.s32.totalorder %s65, 0
      %s67 = scalar_select %p66, %s65, 0
      %s68 = smul.u32 %s31, 8
      %s69 = ssub.s32 %s68, 1
      %p70 = scmp.gt.s32.totalorder %s69, 0
      %s71 = scalar_select %p70, %s69, 0
      %s72 = ssub.s32 %s23, %s35
      %s73 = ssub.s32 %s67, %s71
      %s74 = sor.u32 %s72, %s73
      %p75 = scmp.eq.s32.totalorder %s74, 0
      %s77 = sadd.s32 %s76, 1
      %s78 = scalar_select %p75, %s76, %s77
      %p81 = pneg %p75
      %p82 = scmp.eq.s32.totalorder %s16, 1
      %p83 = por %p81, %p82
      %p84 = scmp.ne.s32.totalorder %s76, %s79
      %p85 = scmp.eq.s32.totalorder %s16, 0
      %p86 = por %p84, %p85
      %p87 = scmp.ne.s32.totalorder %s76, %s79
      %p88 = scmp.eq.s32.totalorder %s21, 1
      %p89 = por %p87, %p88
      %p90 = scmp.ne.s32.totalorder %s79, %s80
      %p91 = scmp.eq.s32.totalorder %s21, 0
      %p92 = por %p90, %p91
      %p93 = scmp.ne.s32.totalorder %s79, %s80
      %p94 = scmp.eq.s32.totalorder %s22, 1
      %p95 = por %p93, %p94
      %p97 = scmp.ne.s32.totalorder %s80, %s96
      %p98 = scmp.eq.s32.totalorder %s22, 0
      %p99 = por %p97, %p98
      %s100 = sadd.s32 %s24, 1
      %s101 = smul.u32 %s100, 8
      %p102 = scmp.lt.s32.totalorder %s101, 7
      %s103 = scalar_select %p102, %s101, 7
      %s104 = sadd.s32 %s31, 1
      %s105 = smul.u32 %s104, 8
      %p106 = scmp.lt.s32.totalorder %s105, 7
      %s107 = scalar_select %p106, %s105, 7
      %s108 = ssub.s32 %s23, %s35
      %s109 = ssub.s32 %s103, %s107
      %s110 = sor.u32 %s108, %s109
      %p111 = scmp.eq.s32.totalorder %s110, 0
      %s113 = sadd.s32 %s112, 1
      %s114 = scalar_select %p111, %s112, %s113
      %p117 = pneg %p111
      %p118 = scmp.eq.s32.totalorder %s16, 1
      %p119 = por %p117, %p118
      %p120 = scmp.ne.s32.totalorder %s112, %s115
      %p121 = scmp.eq.s32.totalorder %s16, 0
      %p122 = por %p120, %p121
      %p123 = scmp.ne.s32.totalorder %s112, %s115
      %p124 = scmp.eq.s32.totalorder %s21, 1
      %p125 = por %p123, %p124
      %p126 = scmp.ne.s32.totalorder %s115, %s116
      %p127 = scmp.eq.s32.totalorder %s21, 0
      %p128 = por %p126, %p127
      %p129 = scmp.ne.s32.totalorder %s115, %s116
      %p130 = scmp.eq.s32.totalorder %s22, 1
      %p131 = por %p129, %p130
      %p133 = scmp.ne.s32.totalorder %s116, %s132
      %p134 = scmp.eq.s32.totalorder %s22, 0
      %p135 = por %p133, %p134
      %s137 = sadd.s32 %s136, 1
      %p140 = scmp.eq.s32.totalorder %s16, 1
      %p141 = scmp.ne.s32.totalorder %s136, %s138
      %p142 = scmp.eq.s32.totalorder %s16, 0
      %p143 = por %p141, %p142
      %p144 = scmp.ne.s32.totalorder %s136, %s138
      %p145 = scmp.eq.s32.totalorder %s21, 1
      %p146 = por %p144, %p145
      %p147 = scmp.ne.s32.totalorder %s138, %s139
      %p148 = scmp.eq.s32.totalorder %s21, 0
      %p149 = por %p147, %p148
      %p150 = scmp.ne.s32.totalorder %s138, %s139
      %p151 = scmp.eq.s32.totalorder %s22, 1
      %p152 = por %p150, %p151
      %p154 = scmp.ne.s32.totalorder %s139, %s153
      %p155 = scmp.eq.s32.totalorder %s22, 0
      %p156 = por %p154, %p155
      %s158 = sadd.s32 %s157, 1
      %p161 = scmp.eq.s32.totalorder %s16, 1
      %p162 = scmp.ne.s32.totalorder %s157, %s159
      %p163 = scmp.eq.s32.totalorder %s16, 0
      %p164 = por %p162, %p163
      %p165 = scmp.ne.s32.totalorder %s157, %s159
      %p166 = scmp.eq.s32.totalorder %s21, 1
      %p167 = por %p165, %p166
      %p168 = scmp.ne.s32.totalorder %s159, %s160
      %p169 = scmp.eq.s32.totalorder %s21, 0
      %p170 = por %p168, %p169
      %p171 = scmp.ne.s32.totalorder %s159, %s160
      %p172 = scmp.eq.s32.totalorder %s22, 1
      %p173 = por %p171, %p172
      %p175 = scmp.ne.s32.totalorder %s160, %s174
      %p176 = scmp.eq.s32.totalorder %s22, 0
      %p177 = por %p175, %p176
      %s179 = sadd.s32 %s178, 1
      %p182 = scmp.eq.s32.totalorder %s16, 1
      %p183 = scmp.ne.s32.totalorder %s178, %s180
      %p184 = scmp.eq.s32.totalorder %s16, 0
      %p185 = por %p183, %p184
      %p186 = scmp.ne.s32.totalorder %s178, %s180
      %p187 = scmp.eq.s32.totalorder %s21, 1
      %p188 = por %p186, %p187
      %p189 = scmp.ne.s32.totalorder %s180, %s181
      %p190 = scmp.eq.s32.totalorder %s21, 0
      %p191 = por %p189, %p190
      %p192 = scmp.ne.s32.totalorder %s180, %s181
      %p193 = scmp.eq.s32.totalorder %s22, 1
      %p194 = por %p192, %p193
      %p196 = scmp.ne.s32.totalorder %s181, %s195
      %p197 = scmp.eq.s32.totalorder %s22, 0
      %p198 = por %p196, %p197
      %s200 = sadd.s32 %s199, 1
      %p203 = scmp.eq.s32.totalorder %s16, 1
      %p204 = scmp.ne.s32.totalorder %s199, %s201
      %p205 = scmp.eq.s32.totalorder %s16, 0
      %p206 = por %p204, %p205
      %p207 = scmp.ne.s32.totalorder %s199, %s201
      %p208 = scmp.eq.s32.totalorder %s21, 1
      %p209 = por %p207, %p208
      %p210 = scmp.ne.s32.totalorder %s201, %s202
      %p211 = scmp.eq.s32.totalorder %s21, 0
      %p212 = por %p210, %p211
      %p213 = scmp.ne.s32.totalorder %s201, %s202
      %p214 = scmp.eq.s32.totalorder %s22, 1
      %p215 = por %p213, %p214
      %p217 = scmp.ne.s32.totalorder %s202, %s216
      %p218 = scmp.eq.s32.totalorder %s22, 0
      %p219 = por %p217, %p218
      %s220 = ssub.s32 %s23, %s35
      %s221 = ssub.s32 %s24, %s31
      %s222 = sor.u32 %s220, %s221
      %p223 = scmp.eq.s32.totalorder %s222, 0
      %s225 = sadd.s32 %s224, 1
      %s226 = scalar_select %p223, %s224, %s225
      %p229 = pneg %p223
      %p230 = scmp.eq.s32.totalorder %s16, 1
      %p231 = por %p229, %p230
      %p232 = scmp.ne.s32.totalorder %s224, %s227
      %p233 = scmp.eq.s32.totalorder %s16, 0
      %p234 = por %p232, %p233
      %p235 = scmp.ne.s32.totalorder %s224, %s227
      %p236 = scmp.eq.s32.totalorder %s21, 1
      %p237 = por %p235, %p236
      %p238 = scmp.ne.s32.totalorder %s227, %s228
      %p239 = scmp.eq.s32.totalorder %s21, 0
      %p240 = por %p238, %p239
      %p241 = scmp.ne.s32.totalorder %s227, %s228
      %p242 = scmp.eq.s32.totalorder %s22, 1
      %p243 = por %p241, %p242
      %p245 = scmp.ne.s32.totalorder %s228, %s244
      %p246 = scmp.eq.s32.totalorder %s22, 0
      %p247 = por %p245, %p246
      %p248 = scmp.le.s32.totalorder 1, %s16
      %p249 = scmp.lt.s32.totalorder %s16, 3
      %p250 = pnand %p248, %p249
      %p251 = pneg %p250
      // Predicated region
      $region9: #{residual_conv_unit.1} parent=5 // pred_check
        _
      $region10: #{residual_conv_unit.1} parent=5 // pred_check_branch
        %253 = sbr.rel (%p250) target = $region12
      $region11: #{residual_conv_unit.1} parent=5 // pred_region
        %s254 = ssub.s32 %s16, 1
        // Predicated region
        $region13: #{residual_conv_unit.1} parent=11 // pred_check
          %p255 = pneg %p149
        $region14: #{residual_conv_unit.1} parent=11 // pred_check_branch
          %257 = sbr.rel (%p255) target = $region16
        $region15: #{residual_conv_unit.1} parent=11 // pred_region
          _
        $region16: #{residual_conv_unit.1} parent=11 // pred_fallthru
          _
        // Predicated region
        $region17: #{residual_conv_unit.1} parent=11 // pred_check
          %p258 = pneg %p170
        $region18: #{residual_conv_unit.1} parent=11 // pred_check_branch
          %260 = sbr.rel (%p258) target = $region20
        $region19: #{residual_conv_unit.1} parent=11 // pred_region
          _
        $region20: #{residual_conv_unit.1} parent=11 // pred_fallthru
          _
        // Predicated region
        $region21: #{residual_conv_unit.1} parent=11 // pred_check
          %p261 = pneg %p191
        $region22: #{residual_conv_unit.1} parent=11 // pred_check_branch
          %263 = sbr.rel (%p261) target = $region24
        $region23: #{residual_conv_unit.1} parent=11 // pred_region
          _
        $region24: #{residual_conv_unit.1} parent=11 // pred_fallthru
          _
        // Predicated region
        $region25: #{residual_conv_unit.1} parent=11 // pred_check
          %p264 = pneg %p212
        $region26: #{residual_conv_unit.1} parent=11 // pred_check_branch
          %266 = sbr.rel (%p264) target = $region28
        $region27: #{residual_conv_unit.1} parent=11 // pred_region
          _
        $region28: #{residual_conv_unit.1} parent=11 // pred_fallthru
          _
      $region12: #{residual_conv_unit.1} parent=5 // pred_fallthru
        _
      %p267 = scmp.lt.s32.totalorder %s16, 2
      // Predicated region
      $region29: #{residual_conv_unit.1} parent=5 // pred_check
        %p268 = pneg %p267
      $region30: #{residual_conv_unit.1} parent=5 // pred_check_branch
        %270 = sbr.rel (%p268) target = $region32
      $region31: #{residual_conv_unit.1} parent=5 // pred_region
        // Predicated region
        $region33: #{residual_conv_unit.1} parent=31 // pred_check
          %p271 = pneg %p50
        $region34: #{residual_conv_unit.1} parent=31 // pred_check_branch
          %273 = sbr.rel (%p271) target = $region36
        $region35: #{residual_conv_unit.1} parent=31 // pred_region
          %s274 = smul.u32 16, %s24
          %p275 = scmp.lt.s32.totalorder %s23, 1
          %s276 = scalar_select %p275, %s23, 1
          %p277 = scmp.lt.s32.totalorder %s274, 15
          %s278 = scalar_select %p277, %s274, 15
          %s279 = smul.addr %s278, 2
          %s280 = smul.addr %s276, 32
          %s281 = sadd.s32 %s279, %s280
          %s282 = smul.addr %s281, 8
          %s283 = scalar_lea.vmem %s0, %s282
          %s284 = smul.u32 16, %s24
        $region36: #{residual_conv_unit.1} parent=31 // pred_fallthru
          _
        // Predicated region
        $region37: #{residual_conv_unit.1} parent=31 // pred_check
          %p285 = pneg %p86
        $region38: #{residual_conv_unit.1} parent=31 // pred_check_branch
          %287 = sbr.rel (%p285) target = $region40
        $region39: #{residual_conv_unit.1} parent=31 // pred_region
          %s288 = smul.u32 %s24, 8
          %s289 = ssub.s32 %s288, 1
          %p290 = scmp.gt.s32.totalorder %s289, 0
          %s291 = scalar_select %p290, %s289, 0
          %s292 = smul.u32 2, %s291
          %p293 = scmp.lt.s32.totalorder %s23, 1
          %s294 = scalar_select %p293, %s23, 1
          %p295 = scmp.lt.s32.totalorder %s292, 15
          %s296 = scalar_select %p295, %s292, 15
          %s297 = smul.addr %s296, 2
          %s298 = smul.addr %s294, 32
          %s299 = sadd.s32 %s297, %s298
          %s300 = smul.addr %s299, 8
          %s301 = scalar_lea.vmem %s1, %s300
          %s302 = smul.u32 %s24, 8
          %s303 = ssub.s32 %s302, 1
          %p304 = scmp.gt.s32.totalorder %s303, 0
          %s305 = scalar_select %p304, %s303, 0
          %s306 = smul.u32 2, %s305
        $region40: #{residual_conv_unit.1} parent=31 // pred_fallthru
          _
        // Predicated region
        $region41: #{residual_conv_unit.1} parent=31 // pred_check
          %p307 = pneg %p122
        $region42: #{residual_conv_unit.1} parent=31 // pred_check_branch
          %309 = sbr.rel (%p307) target = $region44
        $region43: #{residual_conv_unit.1} parent=31 // pred_region
          %s310 = sadd.s32 %s24, 1
          %s311 = smul.u32 %s310, 8
          %p312 = scmp.lt.s32.totalorder %s311, 7
          %s313 = scalar_select %p312, %s311, 7
          %s314 = smul.u32 2, %s313
          %p315 = scmp.lt.s32.totalorder %s23, 1
          %s316 = scalar_select %p315, %s23, 1
          %p317 = scmp.lt.s32.totalorder %s314, 15
          %s318 = scalar_select %p317, %s314, 15
          %s319 = smul.addr %s318, 2
          %s320 = smul.addr %s316, 32
          %s321 = sadd.s32 %s319, %s320
          %s322 = smul.addr %s321, 8
          %s323 = scalar_lea.vmem %s2, %s322
          %s324 = sadd.s32 %s24, 1
          %s325 = smul.u32 %s324, 8
          %p326 = scmp.lt.s32.totalorder %s325, 7
          %s327 = scalar_select %p326, %s325, 7
          %s328 = smul.u32 2, %s327
        $region44: #{residual_conv_unit.1} parent=31 // pred_fallthru
          _
      $region32: #{residual_conv_unit.1} parent=5 // pred_fallthru
        _
      %p329 = scmp.le.s32.totalorder 1, %s16
      %p330 = scmp.lt.s32.totalorder %s16, 3
      %p331 = pnand %p329, %p330
      %p332 = pneg %p331
      // Predicated region
      $region45: #{residual_conv_unit.1} parent=5 // pred_check
        _
      $region46: #{residual_conv_unit.1} parent=5 // pred_check_branch
        %334 = sbr.rel (%p331) target = $region48
      $region47: #{residual_conv_unit.1} parent=5 // pred_region
        %s335 = ssub.s32 %s16, 1
        %s336 = smul.u32 16, %s26
        %p337 = scmp.lt.s32.totalorder %s25, 1
        %s338 = scalar_select %p337, %s25, 1
        %p339 = scmp.lt.s32.totalorder %s336, 15
        %s340 = scalar_select %p339, %s336, 15
        %s341 = smul.addr %s340, 2
        %s342 = smul.addr %s338, 32
        %s343 = sadd.s32 %s341, %s342
        %s344 = smul.addr %s343, 8
        %s345 = scalar_lea.vmem %s0, %s344
        %p346 = pneg %p56
        %p347 = pneg %p53
        %s348 = smul.u32 %s26, 8
        %s349 = ssub.s32 %s348, 1
        %p350 = scmp.gt.s32.totalorder %s349, 0
        %s351 = scalar_select %p350, %s349, 0
        %s352 = smul.u32 2, %s351
        %p353 = scmp.lt.s32.totalorder %s25, 1
        %s354 = scalar_select %p353, %s25, 1
        %p355 = scmp.lt.s32.totalorder %s352, 15
        %s356 = scalar_select %p355, %s352, 15
        %s357 = smul.addr %s356, 2
        %s358 = smul.addr %s354, 32
        %s359 = sadd.s32 %s357, %s358
        %s360 = smul.addr %s359, 8
        %s361 = scalar_lea.vmem %s1, %s360
        %p362 = pneg %p92
        %p363 = pneg %p89
        %s364 = sadd.s32 %s26, 1
        %s365 = smul.u32 %s364, 8
        %p366 = scmp.lt.s32.totalorder %s365, 7
        %s367 = scalar_select %p366, %s365, 7
        %s368 = smul.u32 2, %s367
        %p369 = scmp.lt.s32.totalorder %s25, 1
        %s370 = scalar_select %p369, %s25, 1
        %p371 = scmp.lt.s32.totalorder %s368, 15
        %s372 = scalar_select %p371, %s368, 15
        %s373 = smul.addr %s372, 2
        %s374 = smul.addr %s370, 32
        %s375 = sadd.s32 %s373, %s374
        %s376 = smul.addr %s375, 8
        %s377 = scalar_lea.vmem %s2, %s376
        %p378 = pneg %p128
        %p379 = pneg %p125
        %p380 = pneg %p149
        %p381 = pneg %p146
        %p382 = pneg %p170
        %p383 = pneg %p167
        %p384 = pneg %p191
        %p385 = pneg %p188
        %p386 = pneg %p212
        %p387 = pneg %p209
        %p388 = pneg %p240
        %p389 = pneg %p237
        %s390 = sand.u32 %s227, 1
        %s391 = scalar_lea.sflag [#allocation5], %s390
        %s392 = sand.u32 %s227, 1
        %s393 = smul.addr %s392, 256
        %s394 = scalar_lea.vmem [#allocation4], %s393
        %s395 = smul.u32 16, %s26
        %p396 = scmp.lt.s32.totalorder %s25, 1
        %s397 = scalar_select %p396, %s25, 1
        %p398 = scmp.lt.s32.totalorder %s395, 15
        %s399 = scalar_select %p398, %s395, 15
        %s400 = smul.addr %s399, 2
        %s401 = smul.addr %s397, 32
        %s402 = sadd.s32 %s400, %s401
        %s403 = smul.addr %s402, 8
        %s404 = scalar_lea.vmem %s0, %s403
        %s405 = smul.u32 16, %s26
        %s406 = smul.u32 %s26, 8
        %s407 = ssub.s32 %s406, 1
        %p408 = scmp.gt.s32.totalorder %s407, 0
        %s409 = scalar_select %p408, %s407, 0
        %s410 = smul.u32 2, %s409
        %p411 = scmp.lt.s32.totalorder %s25, 1
        %s412 = scalar_select %p411, %s25, 1
        %p413 = scmp.lt.s32.totalorder %s410, 15
        %s414 = scalar_select %p413, %s410, 15
        %s415 = smul.addr %s414, 2
        %s416 = smul.addr %s412, 32
        %s417 = sadd.s32 %s415, %s416
        %s418 = smul.addr %s417, 8
        %s419 = scalar_lea.vmem %s1, %s418
        %s420 = smul.u32 %s26, 8
        %s421 = ssub.s32 %s420, 1
        %p422 = scmp.gt.s32.totalorder %s421, 0
        %s423 = scalar_select %p422, %s421, 0
        %s424 = smul.u32 2, %s423
        %s425 = sadd.s32 %s26, 1
        %s426 = smul.u32 %s425, 8
        %p427 = scmp.lt.s32.totalorder %s426, 7
        %s428 = scalar_select %p427, %s426, 7
        %s429 = smul.u32 2, %s428
        %p430 = scmp.lt.s32.totalorder %s25, 1
        %s431 = scalar_select %p430, %s25, 1
        %p432 = scmp.lt.s32.totalorder %s429, 15
        %s433 = scalar_select %p432, %s429, 15
        %s434 = smul.addr %s433, 2
        %s435 = smul.addr %s431, 32
        %s436 = sadd.s32 %s434, %s435
        %s437 = smul.addr %s436, 8
        %s438 = scalar_lea.vmem %s2, %s437
        %s439 = sadd.s32 %s26, 1
        %s440 = smul.u32 %s439, 8
        %p441 = scmp.lt.s32.totalorder %s440, 7
        %s442 = scalar_select %p441, %s440, 7
        %s443 = smul.u32 2, %s442
        %s444 = smul.u32 16, %s26
        %446 = vst [vmem:[#allocation2] sm:$0xf] 0
        %447 = vst [vmem:[#allocation2 + $0x4] sm:$0xf] 0
        %448 = vst [vmem:[#allocation2 + $0x8] sm:$0xf] 0
        %449 = vst [vmem:[#allocation2 + $0xc] sm:$0xf] 0
        %450 = vst [vmem:[#allocation2 + $0x10] sm:$0xf] 0
        %451 = vst [vmem:[#allocation2 + $0x14] sm:$0xf] 0
        %452 = vst [vmem:[#allocation2 + $0x18] sm:$0xf] 0
        %453 = vst [vmem:[#allocation2 + $0x1c] sm:$0xf] 0
        %s454 = scalar_lea.vmem [#allocation2], 352
        %455 = vst [vmem:[%s454] sm:$0xf] 0
        %456 = vst [vmem:[%s454 + $0x4] sm:$0xf] 0
        %457 = vst [vmem:[%s454 + $0x8] sm:$0xf] 0
        %458 = vst [vmem:[%s454 + $0xc] sm:$0xf] 0
        %459 = vst [vmem:[%s454 + $0x10] sm:$0xf] 0
        %460 = vst [vmem:[%s454 + $0x14] sm:$0xf] 0
        %461 = vst [vmem:[%s454 + $0x18] sm:$0xf] 0
        %462 = vst [vmem:[%s454 + $0x1c] sm:$0xf] 0
        %463 = vst [vmem:[#allocation2 + $0x8] sm:$0xf] 0
        %464 = vst [vmem:[#allocation2 + $0xc] sm:$0xf] 0
        %465 = vst [vmem:[#allocation2 + $0x18] sm:$0xf] 0
        %466 = vst [vmem:[#allocation2 + $0x1c] sm:$0xf] 0
        %467 = vst [vmem:[#allocation2 + $0x28] sm:$0xf] 0
        %468 = vst [vmem:[#allocation2 + $0x2c] sm:$0xf] 0
        %469 = vst [vmem:[#allocation2 + $0x38] sm:$0xf] 0
        %470 = vst [vmem:[#allocation2 + $0x3c] sm:$0xf] 0
        %471 = vst [vmem:[#allocation2 + $0x48] sm:$0xf] 0
        %472 = vst [vmem:[#allocation2 + $0x4c] sm:$0xf] 0
        %473 = vst [vmem:[#allocation2 + $0x58] sm:$0xf] 0
        %474 = vst [vmem:[#allocation2 + $0x5c] sm:$0xf] 0
        %475 = vst [vmem:[#allocation2 + $0x68] sm:$0xf] 0
        %476 = vst [vmem:[#allocation2 + $0x6c] sm:$0xf] 0
        %477 = vst [vmem:[#allocation2 + $0x78] sm:$0xf] 0
        %478 = vst [vmem:[#allocation2 + $0x7c] sm:$0xf] 0
        %479 = vst [vmem:[#allocation2 + $0x88] sm:$0xf] 0
        %480 = vst [vmem:[#allocation2 + $0x8c] sm:$0xf] 0
        %481 = vst [vmem:[#allocation2 + $0x98] sm:$0xf] 0
        %482 = vst [vmem:[#allocation2 + $0x9c] sm:$0xf] 0
        %483 = vst [vmem:[#allocation2 + $0xa8] sm:$0xf] 0
        %484 = vst [vmem:[#allocation2 + $0xac] sm:$0xf] 0
        %485 = vst [vmem:[#allocation2 + $0xb8] sm:$0xf] 0
        %486 = vst [vmem:[#allocation2 + $0xbc] sm:$0xf] 0
        %487 = vst [vmem:[#allocation2 + $0xc8] sm:$0xf] 0
        %488 = vst [vmem:[#allocation2 + $0xcc] sm:$0xf] 0
        %489 = vst [vmem:[#allocation2 + $0xd8] sm:$0xf] 0
        %490 = vst [vmem:[#allocation2 + $0xdc] sm:$0xf] 0
        %491 = vst [vmem:[#allocation2 + $0xe8] sm:$0xf] 0
        %492 = vst [vmem:[#allocation2 + $0xec] sm:$0xf] 0
        %493 = vst [vmem:[#allocation2 + $0xf8] sm:$0xf] 0
        %494 = vst [vmem:[#allocation2 + $0xfc] sm:$0xf] 0
        %495 = vst [vmem:[#allocation2 + $0x108] sm:$0xf] 0
        %496 = vst [vmem:[#allocation2 + $0x10c] sm:$0xf] 0
        %497 = vst [vmem:[#allocation2 + $0x118] sm:$0xf] 0
        %498 = vst [vmem:[#allocation2 + $0x11c] sm:$0xf] 0
        %499 = vst [vmem:[#allocation2 + $0x128] sm:$0xf] 0
        %500 = vst [vmem:[#allocation2 + $0x12c] sm:$0xf] 0
        %501 = vst [vmem:[#allocation2 + $0x138] sm:$0xf] 0
        %502 = vst [vmem:[#allocation2 + $0x13c] sm:$0xf] 0
        %503 = vst [vmem:[#allocation2 + $0x148] sm:$0xf] 0
        %504 = vst [vmem:[#allocation2 + $0x14c] sm:$0xf] 0
        %505 = vst [vmem:[#allocation2 + $0x158] sm:$0xf] 0
        %506 = vst [vmem:[#allocation2 + $0x15c] sm:$0xf] 0
        %507 = vst [vmem:[#allocation2 + $0x168] sm:$0xf] 0
        %508 = vst [vmem:[#allocation2 + $0x16c] sm:$0xf] 0
        %509 = vst [vmem:[#allocation2 + $0x178] sm:$0xf] 0
        %510 = vst [vmem:[#allocation2 + $0x17c] sm:$0xf] 0
        %511 = vst [vmem:[#allocation3] sm:$0xf] 0
        %512 = vst [vmem:[#allocation3 + $0x4] sm:$0xf] 0
        %513 = vst [vmem:[#allocation3 + $0x8] sm:$0xf] 0
        %514 = vst [vmem:[#allocation3 + $0xc] sm:$0xf] 0
        %515 = vst [vmem:[#allocation3 + $0x10] sm:$0xf] 0
        %516 = vst [vmem:[#allocation3 + $0x14] sm:$0xf] 0
        %517 = vst [vmem:[#allocation3 + $0x18] sm:$0xf] 0
        %518 = vst [vmem:[#allocation3 + $0x1c] sm:$0xf] 0
        %s519 = scalar_lea.vmem [#allocation3], 320
        %520 = vst [vmem:[%s519] sm:$0xf] 0
        %521 = vst [vmem:[%s519 + $0x4] sm:$0xf] 0
        %522 = vst [vmem:[%s519 + $0x8] sm:$0xf] 0
        %523 = vst [vmem:[%s519 + $0xc] sm:$0xf] 0
        %524 = vst [vmem:[%s519 + $0x10] sm:$0xf] 0
        %525 = vst [vmem:[%s519 + $0x14] sm:$0xf] 0
        %526 = vst [vmem:[%s519 + $0x18] sm:$0xf] 0
        %527 = vst [vmem:[%s519 + $0x1c] sm:$0xf] 0
        %528 = vst [vmem:[#allocation3 + $0x8] sm:$0xf] 0
        %529 = vst [vmem:[#allocation3 + $0xc] sm:$0xf] 0
        %530 = vst [vmem:[#allocation3 + $0x18] sm:$0xf] 0
        %531 = vst [vmem:[#allocation3 + $0x1c] sm:$0xf] 0
        %532 = vst [vmem:[#allocation3 + $0x28] sm:$0xf] 0
        %533 = vst [vmem:[#allocation3 + $0x2c] sm:$0xf] 0
        %534 = vst [vmem:[#allocation3 + $0x38] sm:$0xf] 0
        %535 = vst [vmem:[#allocation3 + $0x3c] sm:$0xf] 0
        %536 = vst [vmem:[#allocation3 + $0x48] sm:$0xf] 0
        %537 = vst [vmem:[#allocation3 + $0x4c] sm:$0xf] 0
        %538 = vst [vmem:[#allocation3 + $0x58] sm:$0xf] 0
        %539 = vst [vmem:[#allocation3 + $0x5c] sm:$0xf] 0
        %540 = vst [vmem:[#allocation3 + $0x68] sm:$0xf] 0
        %541 = vst [vmem:[#allocation3 + $0x6c] sm:$0xf] 0
        %542 = vst [vmem:[#allocation3 + $0x78] sm:$0xf] 0
        %543 = vst [vmem:[#allocation3 + $0x7c] sm:$0xf] 0
        %544 = vst [vmem:[#allocation3 + $0x88] sm:$0xf] 0
        %545 = vst [vmem:[#allocation3 + $0x8c] sm:$0xf] 0
        %546 = vst [vmem:[#allocation3 + $0x98] sm:$0xf] 0
        %547 = vst [vmem:[#allocation3 + $0x9c] sm:$0xf] 0
        %548 = vst [vmem:[#allocation3 + $0xa8] sm:$0xf] 0
        %549 = vst [vmem:[#allocation3 + $0xac] sm:$0xf] 0
        %550 = vst [vmem:[#allocation3 + $0xb8] sm:$0xf] 0
        %551 = vst [vmem:[#allocation3 + $0xbc] sm:$0xf] 0
        %552 = vst [vmem:[#allocation3 + $0xc8] sm:$0xf] 0
        %553 = vst [vmem:[#allocation3 + $0xcc] sm:$0xf] 0
        %554 = vst [vmem:[#allocation3 + $0xd8] sm:$0xf] 0
        %555 = vst [vmem:[#allocation3 + $0xdc] sm:$0xf] 0
        %556 = vst [vmem:[#allocation3 + $0xe8] sm:$0xf] 0
        %557 = vst [vmem:[#allocation3 + $0xec] sm:$0xf] 0
        %558 = vst [vmem:[#allocation3 + $0xf8] sm:$0xf] 0
        %559 = vst [vmem:[#allocation3 + $0xfc] sm:$0xf] 0
        %560 = vst [vmem:[#allocation3 + $0x108] sm:$0xf] 0
        %561 = vst [vmem:[#allocation3 + $0x10c] sm:$0xf] 0
        %562 = vst [vmem:[#allocation3 + $0x118] sm:$0xf] 0
        %563 = vst [vmem:[#allocation3 + $0x11c] sm:$0xf] 0
        %564 = vst [vmem:[#allocation3 + $0x128] sm:$0xf] 0
        %565 = vst [vmem:[#allocation3 + $0x12c] sm:$0xf] 0
        %566 = vst [vmem:[#allocation3 + $0x138] sm:$0xf] 0
        %567 = vst [vmem:[#allocation3 + $0x13c] sm:$0xf] 0
        %568 = vst [vmem:[#allocation3 + $0x148] sm:$0xf] 0
        %569 = vst [vmem:[#allocation3 + $0x14c] sm:$0xf] 0
        %570 = vst [vmem:[#allocation3 + $0x158] sm:$0xf] 0
        %571 = vst [vmem:[#allocation3 + $0x15c] sm:$0xf] 0
        %p572 = scmp.gt.s32.totalorder %s26, 0
        %v573 = vld [vmem:[%s419] sm:$0xff]
        %v574 = vld [vmem:[%s419 + $0x8] sm:$0xff]
        %v575 = vld [vmem:[%s419 + $0x10] sm:$0xff]
        %v576 = vld [vmem:[%s419 + $0x18] sm:$0xff]
        %s577 = scalar_select %p572, 1, 0
        %v578 = vstv %s577
        %vm579 = vcmp.eq.s32.totalorder %v578, 1
        %v580 = vsel %vm579, %v573, 0.0
        %v581 = vsel %vm579, %v574, 0.0
        %v582 = vsel %vm579, %v575, 0.0
        %v583 = vsel %vm579, %v576, 0.0
        %p584 = scmp.lt.s32.totalorder %s26, 0
        %v585 = vld [vmem:[%s438] sm:$0xff]
        %v586 = vld [vmem:[%s438 + $0x8] sm:$0xff]
        %v587 = vld [vmem:[%s438 + $0x10] sm:$0xff]
        %v588 = vld [vmem:[%s438 + $0x18] sm:$0xff]
        %s589 = scalar_select %p584, 1, 0
        %v590 = vstv %s589
        %vm591 = vcmp.eq.s32.totalorder %v590, 1
        %v592 = vsel %vm591, %v585, 0.0
        %v593 = vsel %vm591, %v586, 0.0
        %v594 = vsel %vm591, %v587, 0.0
        %v595 = vsel %vm591, %v588, 0.0
        %v596 = vld [vmem:[%s404] sm:$0xff]
        %v597 = vld [vmem:[%s404 + $0x8] sm:$0xff]
        %v598 = vld [vmem:[%s404 + $0x10] sm:$0xff]
        %v599 = vld [vmem:[%s404 + $0x18] sm:$0xff]
        %v600 = vld [vmem:[%s404 + $0x20] sm:$0xff]
        %v601 = vld [vmem:[%s404 + $0x28] sm:$0xff]
        %v602 = vld [vmem:[%s404 + $0x30] sm:$0xff]
        %v603 = vld [vmem:[%s404 + $0x38] sm:$0xff]
        %v604 = vld [vmem:[%s404 + $0x40] sm:$0xff]
        %v605 = vld [vmem:[%s404 + $0x48] sm:$0xff]
        %v606 = vld [vmem:[%s404 + $0x50] sm:$0xff]
        %v607 = vld [vmem:[%s404 + $0x58] sm:$0xff]
        %v608 = vld [vmem:[%s404 + $0x60] sm:$0xff]
        %v609 = vld [vmem:[%s404 + $0x68] sm:$0xff]
        %v610 = vld [vmem:[%s404 + $0x70] sm:$0xff]
        %v611 = vld [vmem:[%s404 + $0x78] sm:$0xff]
        %v612 = vld [vmem:[%s404 + $0x80] sm:$0xff]
        %v613 = vld [vmem:[%s404 + $0x88] sm:$0xff]
        %v614 = vld [vmem:[%s404 + $0x90] sm:$0xff]
        %v615 = vld [vmem:[%s404 + $0x98] sm:$0xff]
        %v616 = vld [vmem:[%s404 + $0xa0] sm:$0xff]
        %v617 = vld [vmem:[%s404 + $0xa8] sm:$0xff]
        %v618 = vld [vmem:[%s404 + $0xb0] sm:$0xff]
        %v619 = vld [vmem:[%s404 + $0xb8] sm:$0xff]
        %v620 = vld [vmem:[%s404 + $0xc0] sm:$0xff]
        %v621 = vld [vmem:[%s404 + $0xc8] sm:$0xff]
        %v622 = vld [vmem:[%s404 + $0xd0] sm:$0xff]
        %v623 = vld [vmem:[%s404 + $0xd8] sm:$0xff]
        %v624 = vld [vmem:[%s404 + $0xe0] sm:$0xff]
        %v625 = vld [vmem:[%s404 + $0xe8] sm:$0xff]
        %v626 = vld [vmem:[%s404 + $0xf0] sm:$0xff]
        %v627 = vld [vmem:[%s404 + $0xf8] sm:$0xff]
        %v628 = vmax.f32 %v580, 0.0
        %v629 = vmax.f32 %v581, 0.0
        %v630 = vmax.f32 %v582, 0.0
        %v631 = vmax.f32 %v583, 0.0
        %v632 = vpack.c.bf16 %v628, %v628
        %v633 = vpack.c.bf16 %v629, %v629
        %v634 = vpack.c.bf16 %v630, %v630
        %v635 = vpack.c.bf16 %v631, %v631
        %s636 = scalar_lea.vmem [#allocation2], 32
        %637 = vst [vmem:[%s636] sm:$0xf] %v632
        %638 = vst [vmem:[%s636 + $0x4] sm:$0xf] %v633
        %639 = vst [vmem:[%s636 + $0x10] sm:$0xf] %v634
        %640 = vst [vmem:[%s636 + $0x14] sm:$0xf] %v635
        %v641 = vmax.f32 %v596, 0.0
        %v642 = vmax.f32 %v597, 0.0
        %v643 = vmax.f32 %v598, 0.0
        %v644 = vmax.f32 %v599, 0.0
        %v645 = vmax.f32 %v600, 0.0
        %v646 = vmax.f32 %v601, 0.0
        %v647 = vmax.f32 %v602, 0.0
        %v648 = vmax.f32 %v603, 0.0
        %v649 = vmax.f32 %v604, 0.0
        %v650 = vmax.f32 %v605, 0.0
        %v651 = vmax.f32 %v606, 0.0
        %v652 = vmax.f32 %v607, 0.0
        %v653 = vmax.f32 %v608, 0.0
        %v654 = vmax.f32 %v609, 0.0
        %v655 = vmax.f32 %v610, 0.0
        %v656 = vmax.f32 %v611, 0.0
        %v657 = vmax.f32 %v612, 0.0
        %v658 = vmax.f32 %v613, 0.0
        %v659 = vmax.f32 %v614, 0.0
        %v660 = vmax.f32 %v615, 0.0
        %v661 = vmax.f32 %v616, 0.0
        %v662 = vmax.f32 %v617, 0.0
        %v663 = vmax.f32 %v618, 0.0
        %v664 = vmax.f32 %v619, 0.0
        %v665 = vmax.f32 %v620, 0.0
        %v666 = vmax.f32 %v621, 0.0
        %v667 = vmax.f32 %v622, 0.0
        %v668 = vmax.f32 %v623, 0.0
        %v669 = vmax.f32 %v624, 0.0
        %v670 = vmax.f32 %v625, 0.0
        %v671 = vmax.f32 %v626, 0.0
        %v672 = vmax.f32 %v627, 0.0
        %v673 = vpack.c.bf16 %v641, %v641
        %v674 = vpack.c.bf16 %v642, %v642
        %v675 = vpack.c.bf16 %v643, %v643
        %v676 = vpack.c.bf16 %v644, %v644
        %v677 = vpack.c.bf16 %v645, %v645
        %v678 = vpack.c.bf16 %v646, %v646
        %v679 = vpack.c.bf16 %v647, %v647
        %v680 = vpack.c.bf16 %v648, %v648
        %v681 = vpack.c.bf16 %v649, %v649
        %v682 = vpack.c.bf16 %v650, %v650
        %v683 = vpack.c.bf16 %v651, %v651
        %v684 = vpack.c.bf16 %v652, %v652
        %v685 = vpack.c.bf16 %v653, %v653
        %v686 = vpack.c.bf16 %v654, %v654
        %v687 = vpack.c.bf16 %v655, %v655
        %v688 = vpack.c.bf16 %v656, %v656
        %v689 = vpack.c.bf16 %v657, %v657
        %v690 = vpack.c.bf16 %v658, %v658
        %v691 = vpack.c.bf16 %v659, %v659
        %v692 = vpack.c.bf16 %v660, %v660
        %v693 = vpack.c.bf16 %v661, %v661
        %v694 = vpack.c.bf16 %v662, %v662
        %v695 = vpack.c.bf16 %v663, %v663
        %v696 = vpack.c.bf16 %v664, %v664
        %v697 = vpack.c.bf16 %v665, %v665
        %v698 = vpack.c.bf16 %v666, %v666
        %v699 = vpack.c.bf16 %v667, %v667
        %v700 = vpack.c.bf16 %v668, %v668
        %v701 = vpack.c.bf16 %v669, %v669
        %v702 = vpack.c.bf16 %v670, %v670
        %v703 = vpack.c.bf16 %v671, %v671
        %v704 = vpack.c.bf16 %v672, %v672
        %s705 = scalar_lea.vmem [#allocation2], 64
        %706 = vst [vmem:[%s705] sm:$0xf] %v673
        %707 = vst [vmem:[%s705 + $0x4] sm:$0xf] %v674
        %708 = vst [vmem:[%s705 + $0x10] sm:$0xf] %v675
        %709 = vst [vmem:[%s705 + $0x14] sm:$0xf] %v676
        %710 = vst [vmem:[%s705 + $0x20] sm:$0xf] %v677
        %711 = vst [vmem:[%s705 + $0x24] sm:$0xf] %v678
        %712 = vst [vmem:[%s705 + $0x30] sm:$0xf] %v679
        %713 = vst [vmem:[%s705 + $0x34] sm:$0xf] %v680
        %714 = vst [vmem:[%s705 + $0x40] sm:$0xf] %v681
        %715 = vst [vmem:[%s705 + $0x44] sm:$0xf] %v682
        %716 = vst [vmem:[%s705 + $0x50] sm:$0xf] %v683
        %717 = vst [vmem:[%s705 + $0x54] sm:$0xf] %v684
        %718 = vst [vmem:[%s705 + $0x60] sm:$0xf] %v685
        %719 = vst [vmem:[%s705 + $0x64] sm:$0xf] %v686
        %720 = vst [vmem:[%s705 + $0x70] sm:$0xf] %v687
        %721 = vst [vmem:[%s705 + $0x74] sm:$0xf] %v688
        %722 = vst [vmem:[%s705 + $0x80] sm:$0xf] %v689
        %723 = vst [vmem:[%s705 + $0x84] sm:$0xf] %v690
        %724 = vst [vmem:[%s705 + $0x90] sm:$0xf] %v691
        %725 = vst [vmem:[%s705 + $0x94] sm:$0xf] %v692
        %726 = vst [vmem:[%s705 + $0xa0] sm:$0xf] %v693
        %727 = vst [vmem:[%s705 + $0xa4] sm:$0xf] %v694
        %728 = vst [vmem:[%s705 + $0xb0] sm:$0xf] %v695
        %729 = vst [vmem:[%s705 + $0xb4] sm:$0xf] %v696
        %730 = vst [vmem:[%s705 + $0xc0] sm:$0xf] %v697
        %731 = vst [vmem:[%s705 + $0xc4] sm:$0xf] %v698
        %732 = vst [vmem:[%s705 + $0xd0] sm:$0xf] %v699
        %733 = vst [vmem:[%s705 + $0xd4] sm:$0xf] %v700
        %734 = vst [vmem:[%s705 + $0xe0] sm:$0xf] %v701
        %735 = vst [vmem:[%s705 + $0xe4] sm:$0xf] %v702
        %736 = vst [vmem:[%s705 + $0xf0] sm:$0xf] %v703
        %737 = vst [vmem:[%s705 + $0xf4] sm:$0xf] %v704
        %v738 = vmax.f32 %v592, 0.0
        %v739 = vmax.f32 %v593, 0.0
        %v740 = vmax.f32 %v594, 0.0
        %v741 = vmax.f32 %v595, 0.0
        %v742 = vpack.c.bf16 %v738, %v738
        %v743 = vpack.c.bf16 %v739, %v739
        %v744 = vpack.c.bf16 %v740, %v740
        %v745 = vpack.c.bf16 %v741, %v741
        %s746 = scalar_lea.vmem [#allocation2], 320
        %747 = vst [vmem:[%s746] sm:$0xf] %v742
        %748 = vst [vmem:[%s746 + $0x4] sm:$0xf] %v743
        %749 = vst [vmem:[%s746 + $0x10] sm:$0xf] %v744
        %750 = vst [vmem:[%s746 + $0x14] sm:$0xf] %v745
        %s751 = scalar_lea.vmem [#allocation2], 16
        %v752 = vld [vmem:[%s751 + $0xc] sm:$0xf]
        %v753 = vld [vmem:[%s751 + $0x10] sm:$0xf]
        %v754 = vld [vmem:[%s751 + $0x14] sm:$0xf]
        %v755 = vld [vmem:[%s751 + $0x18] sm:$0xf]
        %v756 = vld [vmem:[%s751 + $0x1c] sm:$0xf]
        %v757 = vld [vmem:[%s751 + $0x20] sm:$0xf]
        %v758 = vld [vmem:[%s751 + $0x24] sm:$0xf]
        %v759 = vld [vmem:[%s751 + $0x28] sm:$0xf]
        %v760 = vld [vmem:[%s751 + $0x2c] sm:$0xf]
        %v761 = vld [vmem:[%s751 + $0x30] sm:$0xf]
        %v762 = vld [vmem:[%s751 + $0x34] sm:$0xf]
        %v763 = vld [vmem:[%s751 + $0x38] sm:$0xf]
        %v764 = vld [vmem:[%s751 + $0x3c] sm:$0xf]
        %v765 = vld [vmem:[%s751 + $0x40] sm:$0xf]
        %v766 = vld [vmem:[%s751 + $0x44] sm:$0xf]
        %v767 = vld [vmem:[%s751 + $0x48] sm:$0xf]
        %v768 = vld [vmem:[%s751 + $0x4c] sm:$0xf]
        %v769 = vld [vmem:[%s751 + $0x50] sm:$0xf]
        %v770 = vld [vmem:[%s751 + $0x54] sm:$0xf]
        %v771 = vld [vmem:[%s751 + $0x58] sm:$0xf]
        %v772 = vld [vmem:[%s751 + $0x5c] sm:$0xf]
        %v773 = vld [vmem:[%s751 + $0x60] sm:$0xf]
        %v774 = vld [vmem:[%s751 + $0x64] sm:$0xf]
        %v775 = vld [vmem:[%s751 + $0x68] sm:$0xf]
        %v776 = vld [vmem:[%s751 + $0x6c] sm:$0xf]
        %v777 = vld [vmem:[%s751 + $0x70] sm:$0xf]
        %v778 = vld [vmem:[%s751 + $0x74] sm:$0xf]
        %v779 = vld [vmem:[%s751 + $0x78] sm:$0xf]
        %v780 = vld [vmem:[%s751 + $0x7c] sm:$0xf]
        %v781 = vld [vmem:[%s751 + $0x80] sm:$0xf]
        %v782 = vld [vmem:[%s751 + $0x84] sm:$0xf]
        %v783 = vld [vmem:[%s751 + $0x88] sm:$0xf]
        %v784 = vld [vmem:[%s751 + $0x8c] sm:$0xf]
        %v785 = vld [vmem:[%s751 + $0x90] sm:$0xf]
        %v786 = vld [vmem:[%s751 + $0x94] sm:$0xf]
        %v787 = vld [vmem:[%s751 + $0x98] sm:$0xf]
        %v788 = vld [vmem:[%s751 + $0x9c] sm:$0xf]
        %v789 = vld [vmem:[%s751 + $0xa0] sm:$0xf]
        %v790 = vld [vmem:[%s751 + $0xa4] sm:$0xf]
        %v791 = vld [vmem:[%s751 + $0xa8] sm:$0xf]
        %v792 = vld [vmem:[%s751 + $0xac] sm:$0xf]
        %v793 = vld [vmem:[%s751 + $0xb0] sm:$0xf]
        %v794 = vld [vmem:[%s751 + $0xb4] sm:$0xf]
        %v795 = vld [vmem:[%s751 + $0xb8] sm:$0xf]
        %v796 = vld [vmem:[%s751 + $0xbc] sm:$0xf]
        %v797 = vld [vmem:[%s751 + $0xc0] sm:$0xf]
        %v798 = vld [vmem:[%s751 + $0xc4] sm:$0xf]
        %v799 = vld [vmem:[%s751 + $0xc8] sm:$0xf]
        %v800 = vld [vmem:[%s751 + $0xcc] sm:$0xf]
        %v801 = vld [vmem:[%s751 + $0xd0] sm:$0xf]
        %v802 = vld [vmem:[%s751 + $0xd4] sm:$0xf]
        %v803 = vld [vmem:[%s751 + $0xd8] sm:$0xf]
        %v804 = vld [vmem:[%s751 + $0xdc] sm:$0xf]
        %v805 = vld [vmem:[%s751 + $0xe0] sm:$0xf]
        %v806 = vld [vmem:[%s751 + $0xe4] sm:$0xf]
        %v807 = vld [vmem:[%s751 + $0xe8] sm:$0xf]
        %v808 = vld [vmem:[%s751 + $0xec] sm:$0xf]
        %v809 = vld [vmem:[%s751 + $0xf0] sm:$0xf]
        %v810 = vld [vmem:[%s751 + $0xf4] sm:$0xf]
        %v811 = vld [vmem:[%s751 + $0xf8] sm:$0xf]
        %v812 = vld [vmem:[%s751 + $0xfc] sm:$0xf]
        %v813 = vld [vmem:[%s751 + $0x100] sm:$0xf]
        %v814 = vld [vmem:[%s751 + $0x104] sm:$0xf]
        %v815 = vld [vmem:[%s751 + $0x108] sm:$0xf]
        %v816 = vld [vmem:[%s751 + $0x10c] sm:$0xf]
        %v817 = vld [vmem:[%s751 + $0x110] sm:$0xf]
        %v818 = vld [vmem:[%s751 + $0x114] sm:$0xf]
        %v819 = vld [vmem:[%s751 + $0x118] sm:$0xf]
        %v820 = vld [vmem:[%s751 + $0x11c] sm:$0xf]
        %v821 = vld [vmem:[%s751 + $0x120] sm:$0xf]
        %v822 = vld [vmem:[%s751 + $0x124] sm:$0xf]
        %v823 = vld [vmem:[%s751 + $0x128] sm:$0xf]
        %v824 = vld [vmem:[%s751 + $0x12c] sm:$0xf]
        %v825 = vld [vmem:[%s751 + $0x130] sm:$0xf]
        %v826 = vld [vmem:[%s751 + $0x134] sm:$0xf]
        %v827 = vld [vmem:[%s751 + $0x138] sm:$0xf]
        %v828 = vld [vmem:[%s751 + $0x13c] sm:$0xf]
        %v829 = vld [vmem:[%s751 + $0x140] sm:$0xf]
        %v830 = vld [vmem:[%s751 + $0x144] sm:$0xf]
        %v831 = vld [vmem:[%s751 + $0x148] sm:$0xf]
        %v832 = vld [vmem:[%s751 + $0x14c] sm:$0xf]
        %v833 = vld [vmem:[%s751 + $0x150] sm:$0xf]
        %v907 = vunpack.c.l.b16 %v752
        %v908 = vunpack.c.l.b16 %v753
        %v909 = vunpack.c.l.b16 %v754
        %v910 = vunpack.c.l.b16 %v755
        %v911 = vunpack.c.l.b16 %v756
        %v912 = vunpack.c.l.b16 %v757
        %v913 = vunpack.c.l.b16 %v758
        %v914 = vunpack.c.l.b16 %v759
        %v915 = vunpack.c.l.b16 %v760
        %v916 = vunpack.c.l.b16 %v761
        %v917 = vunpack.c.l.b16 %v762
        %v918 = vunpack.c.l.b16 %v763
        %v919 = vunpack.c.l.b16 %v764
        %v920 = vunpack.c.l.b16 %v765
        %v921 = vunpack.c.l.b16 %v766
        %v922 = vunpack.c.l.b16 %v767
        %v923 = vunpack.c.l.b16 %v768
        %v924 = vunpack.c.l.b16 %v769
        %v925 = vunpack.c.l.b16 %v770
        %v926 = vunpack.c.l.b16 %v771
        %v927 = vunpack.c.l.b16 %v772
        %v928 = vunpack.c.l.b16 %v773
        %v929 = vunpack.c.l.b16 %v774
        %v930 = vunpack.c.l.b16 %v775
        %v931 = vunpack.c.l.b16 %v776
        %v932 = vunpack.c.l.b16 %v777
        %v933 = vunpack.c.l.b16 %v778
        %v934 = vunpack.c.l.b16 %v779
        %v935 = vunpack.c.l.b16 %v780
        %v936 = vunpack.c.l.b16 %v781
        %v937 = vunpack.c.l.b16 %v782
        %v938 = vunpack.c.l.b16 %v783
        %v939 = vunpack.c.l.b16 %v784
        %v940 = vunpack.c.l.b16 %v785
        %v941 = vunpack.c.l.b16 %v786
        %v942 = vunpack.c.l.b16 %v787
        %v943 = vunpack.c.l.b16 %v788
        %v944 = vunpack.c.l.b16 %v789
        %v945 = vunpack.c.l.b16 %v790
        %v946 = vunpack.c.l.b16 %v791
        %v947 = vunpack.c.l.b16 %v792
        %v948 = vunpack.c.l.b16 %v793
        %v949 = vunpack.c.l.b16 %v794
        %v950 = vunpack.c.l.b16 %v795
        %v951 = vunpack.c.l.b16 %v796
        %v952 = vunpack.c.l.b16 %v797
        %v953 = vunpack.c.l.b16 %v798
        %v954 = vunpack.c.l.b16 %v799
        %v955 = vunpack.c.l.b16 %v800
        %v956 = vunpack.c.l.b16 %v801
        %v957 = vunpack.c.l.b16 %v802
        %v958 = vunpack.c.l.b16 %v803
        %v959 = vunpack.c.l.b16 %v804
        %v960 = vunpack.c.l.b16 %v805
        %v961 = vunpack.c.l.b16 %v806
        %v962 = vunpack.c.l.b16 %v807
        %v963 = vunpack.c.l.b16 %v808
        %v964 = vunpack.c.l.b16 %v809
        %v965 = vunpack.c.l.b16 %v810
        %v966 = vunpack.c.l.b16 %v811
        %v967 = vunpack.c.l.b16 %v812
        %v968 = vunpack.c.l.b16 %v813
        %v969 = vunpack.c.l.b16 %v814
        %v970 = vunpack.c.l.b16 %v815
        %v971 = vunpack.c.l.b16 %v816
        %v972 = vunpack.c.l.b16 %v817
        %v973 = vunpack.c.l.b16 %v818
        %v974 = vunpack.c.l.b16 %v819
        %v975 = vunpack.c.l.b16 %v820
        %v976 = vunpack.c.l.b16 %v821
        %v977 = vunpack.c.l.b16 %v822
        %v978 = vunpack.c.l.b16 %v823
        %v979 = vunpack.c.l.b16 %v824
        %v980 = vpack.c.b16 %v908, %v907
        %v981 = vpack.c.b16 %v910, %v909
        %v982 = vpack.c.b16 %v912, %v911
        %v983 = vpack.c.b16 %v914, %v913
        %v984 = vpack.c.b16 %v916, %v915
        %v985 = vpack.c.b16 %v918, %v917
        %v986 = vpack.c.b16 %v920, %v919
        %v987 = vpack.c.b16 %v922, %v921
        %v988 = vpack.c.b16 %v924, %v923
        %v989 = vpack.c.b16 %v926, %v925
        %v990 = vpack.c.b16 %v928, %v927
        %v991 = vpack.c.b16 %v930, %v929
        %v992 = vpack.c.b16 %v932, %v931
        %v993 = vpack.c.b16 %v934, %v933
        %v994 = vpack.c.b16 %v936, %v935
        %v995 = vpack.c.b16 %v938, %v937
        %v996 = vpack.c.b16 %v940, %v939
        %v997 = vpack.c.b16 %v942, %v941
        %v998 = vpack.c.b16 %v944, %v943
        %v999 = vpack.c.b16 %v946, %v945
        %v1000 = vpack.c.b16 %v948, %v947
        %v1001 = vpack.c.b16 %v950, %v949
        %v1002 = vpack.c.b16 %v952, %v951
        %v1003 = vpack.c.b16 %v954, %v953
        %v1004 = vpack.c.b16 %v956, %v955
        %v1005 = vpack.c.b16 %v958, %v957
        %v1006 = vpack.c.b16 %v960, %v959
        %v1007 = vpack.c.b16 %v962, %v961
        %v1008 = vpack.c.b16 %v964, %v963
        %v1009 = vpack.c.b16 %v966, %v965
        %v1010 = vpack.c.b16 %v968, %v967
        %v1011 = vpack.c.b16 %v970, %v969
        %v1012 = vpack.c.b16 %v972, %v971
        %v1013 = vpack.c.b16 %v974, %v973
        %v1014 = vpack.c.b16 %v976, %v975
        %v1015 = vpack.c.b16 %v978, %v977
        %v1016 = vpack.c.b16 %v979, %v979
        %v1017 = vpack.c.b16 %v909, %v908
        %v1018 = vpack.c.b16 %v911, %v910
        %v1019 = vpack.c.b16 %v913, %v912
        %v1020 = vpack.c.b16 %v915, %v914
        %v1021 = vpack.c.b16 %v917, %v916
        %v1022 = vpack.c.b16 %v919, %v918
        %v1023 = vpack.c.b16 %v921, %v920
        %v1024 = vpack.c.b16 %v923, %v922
        %v1025 = vpack.c.b16 %v925, %v924
        %v1026 = vpack.c.b16 %v927, %v926
        %v1027 = vpack.c.b16 %v929, %v928
        %v1028 = vpack.c.b16 %v931, %v930
        %v1029 = vpack.c.b16 %v933, %v932
        %v1030 = vpack.c.b16 %v935, %v934
        %v1031 = vpack.c.b16 %v937, %v936
        %v1032 = vpack.c.b16 %v939, %v938
        %v1033 = vpack.c.b16 %v941, %v940
        %v1034 = vpack.c.b16 %v943, %v942
        %v1035 = vpack.c.b16 %v945, %v944
        %v1036 = vpack.c.b16 %v947, %v946
        %v1037 = vpack.c.b16 %v949, %v948
        %v1038 = vpack.c.b16 %v951, %v950
        %v1039 = vpack.c.b16 %v953, %v952
        %v1040 = vpack.c.b16 %v955, %v954
        %v1041 = vpack.c.b16 %v957, %v956
        %v1042 = vpack.c.b16 %v959, %v958
        %v1043 = vpack.c.b16 %v961, %v960
        %v1044 = vpack.c.b16 %v963, %v962
        %v1045 = vpack.c.b16 %v965, %v964
        %v1046 = vpack.c.b16 %v967, %v966
        %v1047 = vpack.c.b16 %v969, %v968
        %v1048 = vpack.c.b16 %v971, %v970
        %v1049 = vpack.c.b16 %v973, %v972
        %v1050 = vpack.c.b16 %v975, %v974
        %v1051 = vpack.c.b16 %v977, %v976
        %v1052 = vpack.c.b16 %v979, %v978
        %vm1053 = vsmask.f32 3328
        %v1055 = vshrl.u32 %v1017, 16
        %v1057 = vrot.slane %v1055, 4
        %v1058 = vshll.u32 %v1017, 16
        %v1060 = vrot.slane %v1058, 5
        %v1061 = vor.u32 %v1057, %v1060
        %v1063 = vshrl.u32 %v1018, 16
        %v1065 = vrot.slane %v1063, 4
        %v1066 = vshll.u32 %v1018, 16
        %v1068 = vrot.slane %v1066, 5
        %v1069 = vor.u32 %v1065, %v1068
        %v1070 = vsel %vm1053, %v1061, %v1069
        %v1072 = vshrl.u32 %v1019, 16
        %v1074 = vrot.slane %v1072, 4
        %v1075 = vshll.u32 %v1019, 16
        %v1077 = vrot.slane %v1075, 5
        %v1078 = vor.u32 %v1074, %v1077
        %v1079 = vsel %vm1053, %v1069, %v1078
        %v1081 = vshrl.u32 %v1020, 16
        %v1083 = vrot.slane %v1081, 4
        %v1084 = vshll.u32 %v1020, 16
        %v1086 = vrot.slane %v1084, 5
        %v1087 = vor.u32 %v1083, %v1086
        %v1088 = vsel %vm1053, %v1078, %v1087
        %v1090 = vshrl.u32 %v1021, 16
        %v1092 = vrot.slane %v1090, 4
        %v1093 = vshll.u32 %v1021, 16
        %v1095 = vrot.slane %v1093, 5
        %v1096 = vor.u32 %v1092, %v1095
        %v1097 = vsel %vm1053, %v1087, %v1096
        %v1099 = vshrl.u32 %v1022, 16
        %v1101 = vrot.slane %v1099, 4
        %v1102 = vshll.u32 %v1022, 16
        %v1104 = vrot.slane %v1102, 5
        %v1105 = vor.u32 %v1101, %v1104
        %v1106 = vsel %vm1053, %v1096, %v1105
        %v1108 = vshrl.u32 %v1023, 16
        %v1110 = vrot.slane %v1108, 4
        %v1111 = vshll.u32 %v1023, 16
        %v1113 = vrot.slane %v1111, 5
        %v1114 = vor.u32 %v1110, %v1113
        %v1115 = vsel %vm1053, %v1105, %v1114
        %v1117 = vshrl.u32 %v1024, 16
        %v1119 = vrot.slane %v1117, 4
        %v1120 = vshll.u32 %v1024, 16
        %v1122 = vrot.slane %v1120, 5
        %v1123 = vor.u32 %v1119, %v1122
        %v1124 = vsel %vm1053, %v1114, %v1123
        %v1126 = vshrl.u32 %v1025, 16
        %v1128 = vrot.slane %v1126, 4
        %v1129 = vshll.u32 %v1025, 16
        %v1131 = vrot.slane %v1129, 5
        %v1132 = vor.u32 %v1128, %v1131
        %v1133 = vsel %vm1053, %v1123, %v1132
        %v1135 = vshrl.u32 %v1026, 16
        %v1137 = vrot.slane %v1135, 4
        %v1138 = vshll.u32 %v1026, 16
        %v1140 = vrot.slane %v1138, 5
        %v1141 = vor.u32 %v1137, %v1140
        %v1142 = vsel %vm1053, %v1132, %v1141
        %v1144 = vshrl.u32 %v1027, 16
        %v1146 = vrot.slane %v1144, 4
        %v1147 = vshll.u32 %v1027, 16
        %v1149 = vrot.slane %v1147, 5
        %v1150 = vor.u32 %v1146, %v1149
        %v1151 = vsel %vm1053, %v1141, %v1150
        %v1153 = vshrl.u32 %v1028, 16
        %v1155 = vrot.slane %v1153, 4
        %v1156 = vshll.u32 %v1028, 16
        %v1158 = vrot.slane %v1156, 5
        %v1159 = vor.u32 %v1155, %v1158
        %v1160 = vsel %vm1053, %v1150, %v1159
        %v1162 = vshrl.u32 %v1029, 16
        %v1164 = vrot.slane %v1162, 4
        %v1165 = vshll.u32 %v1029, 16
        %v1167 = vrot.slane %v1165, 5
        %v1168 = vor.u32 %v1164, %v1167
        %v1169 = vsel %vm1053, %v1159, %v1168
        %v1171 = vshrl.u32 %v1030, 16
        %v1173 = vrot.slane %v1171, 4
        %v1174 = vshll.u32 %v1030, 16
        %v1176 = vrot.slane %v1174, 5
        %v1177 = vor.u32 %v1173, %v1176
        %v1178 = vsel %vm1053, %v1168, %v1177
        %v1180 = vshrl.u32 %v1031, 16
        %v1182 = vrot.slane %v1180, 4
        %v1183 = vshll.u32 %v1031, 16
        %v1185 = vrot.slane %v1183, 5
        %v1186 = vor.u32 %v1182, %v1185
        %v1187 = vsel %vm1053, %v1177, %v1186
        %v1189 = vshrl.u32 %v1032, 16
        %v1191 = vrot.slane %v1189, 4
        %v1192 = vshll.u32 %v1032, 16
        %v1194 = vrot.slane %v1192, 5
        %v1195 = vor.u32 %v1191, %v1194
        %v1196 = vsel %vm1053, %v1186, %v1195
        %v1198 = vshrl.u32 %v1033, 16
        %v1200 = vrot.slane %v1198, 4
        %v1201 = vshll.u32 %v1033, 16
        %v1203 = vrot.slane %v1201, 5
        %v1204 = vor.u32 %v1200, %v1203
        %v1205 = vsel %vm1053, %v1195, %v1204
        %v1207 = vshrl.u32 %v1034, 16
        %v1209 = vrot.slane %v1207, 4
        %v1210 = vshll.u32 %v1034, 16
        %v1212 = vrot.slane %v1210, 5
        %v1213 = vor.u32 %v1209, %v1212
        %v1214 = vsel %vm1053, %v1204, %v1213
        %v1216 = vshrl.u32 %v1035, 16
        %v1218 = vrot.slane %v1216, 4
        %v1219 = vshll.u32 %v1035, 16
        %v1221 = vrot.slane %v1219, 5
        %v1222 = vor.u32 %v1218, %v1221
        %v1223 = vsel %vm1053, %v1213, %v1222
        %v1225 = vshrl.u32 %v1036, 16
        %v1227 = vrot.slane %v1225, 4
        %v1228 = vshll.u32 %v1036, 16
        %v1230 = vrot.slane %v1228, 5
        %v1231 = vor.u32 %v1227, %v1230
        %v1232 = vsel %vm1053, %v1222, %v1231
        %v1234 = vshrl.u32 %v1037, 16
        %v1236 = vrot.slane %v1234, 4
        %v1237 = vshll.u32 %v1037, 16
        %v1239 = vrot.slane %v1237, 5
        %v1240 = vor.u32 %v1236, %v1239
        %v1241 = vsel %vm1053, %v1231, %v1240
        %v1243 = vshrl.u32 %v1038, 16
        %v1245 = vrot.slane %v1243, 4
        %v1246 = vshll.u32 %v1038, 16
        %v1248 = vrot.slane %v1246, 5
        %v1249 = vor.u32 %v1245, %v1248
        %v1250 = vsel %vm1053, %v1240, %v1249
        %v1252 = vshrl.u32 %v1039, 16
        %v1254 = vrot.slane %v1252, 4
        %v1255 = vshll.u32 %v1039, 16
        %v1257 = vrot.slane %v1255, 5
        %v1258 = vor.u32 %v1254, %v1257
        %v1259 = vsel %vm1053, %v1249, %v1258
        %v1261 = vshrl.u32 %v1040, 16
        %v1263 = vrot.slane %v1261, 4
        %v1264 = vshll.u32 %v1040, 16
        %v1266 = vrot.slane %v1264, 5
        %v1267 = vor.u32 %v1263, %v1266
        %v1268 = vsel %vm1053, %v1258, %v1267
        %v1270 = vshrl.u32 %v1041, 16
        %v1272 = vrot.slane %v1270, 4
        %v1273 = vshll.u32 %v1041, 16
        %v1275 = vrot.slane %v1273, 5
        %v1276 = vor.u32 %v1272, %v1275
        %v1277 = vsel %vm1053, %v1267, %v1276
        %v1279 = vshrl.u32 %v1042, 16
        %v1281 = vrot.slane %v1279, 4
        %v1282 = vshll.u32 %v1042, 16
        %v1284 = vrot.slane %v1282, 5
        %v1285 = vor.u32 %v1281, %v1284
        %v1286 = vsel %vm1053, %v1276, %v1285
        %v1288 = vshrl.u32 %v1043, 16
        %v1290 = vrot.slane %v1288, 4
        %v1291 = vshll.u32 %v1043, 16
        %v1293 = vrot.slane %v1291, 5
        %v1294 = vor.u32 %v1290, %v1293
        %v1295 = vsel %vm1053, %v1285, %v1294
        %v1297 = vshrl.u32 %v1044, 16
        %v1299 = vrot.slane %v1297, 4
        %v1300 = vshll.u32 %v1044, 16
        %v1302 = vrot.slane %v1300, 5
        %v1303 = vor.u32 %v1299, %v1302
        %v1304 = vsel %vm1053, %v1294, %v1303
        %v1306 = vshrl.u32 %v1045, 16
        %v1308 = vrot.slane %v1306, 4
        %v1309 = vshll.u32 %v1045, 16
        %v1311 = vrot.slane %v1309, 5
        %v1312 = vor.u32 %v1308, %v1311
        %v1313 = vsel %vm1053, %v1303, %v1312
        %v1315 = vshrl.u32 %v1046, 16
        %v1317 = vrot.slane %v1315, 4
        %v1318 = vshll.u32 %v1046, 16
        %v1320 = vrot.slane %v1318, 5
        %v1321 = vor.u32 %v1317, %v1320
        %v1322 = vsel %vm1053, %v1312, %v1321
        %v1324 = vshrl.u32 %v1047, 16
        %v1326 = vrot.slane %v1324, 4
        %v1327 = vshll.u32 %v1047, 16
        %v1329 = vrot.slane %v1327, 5
        %v1330 = vor.u32 %v1326, %v1329
        %v1331 = vsel %vm1053, %v1321, %v1330
        %v1333 = vshrl.u32 %v1048, 16
        %v1335 = vrot.slane %v1333, 4
        %v1336 = vshll.u32 %v1048, 16
        %v1338 = vrot.slane %v1336, 5
        %v1339 = vor.u32 %v1335, %v1338
        %v1340 = vsel %vm1053, %v1330, %v1339
        %v1342 = vshrl.u32 %v1049, 16
        %v1344 = vrot.slane %v1342, 4
        %v1345 = vshll.u32 %v1049, 16
        %v1347 = vrot.slane %v1345, 5
        %v1348 = vor.u32 %v1344, %v1347
        %v1349 = vsel %vm1053, %v1339, %v1348
        %v1351 = vshrl.u32 %v1050, 16
        %v1353 = vrot.slane %v1351, 4
        %v1354 = vshll.u32 %v1050, 16
        %v1356 = vrot.slane %v1354, 5
        %v1357 = vor.u32 %v1353, %v1356
        %v1358 = vsel %vm1053, %v1348, %v1357
        %v1360 = vshrl.u32 %v1051, 16
        %v1362 = vrot.slane %v1360, 4
        %v1363 = vshll.u32 %v1051, 16
        %v1365 = vrot.slane %v1363, 5
        %v1366 = vor.u32 %v1362, %v1365
        %v1367 = vsel %vm1053, %v1357, %v1366
        %v1369 = vshrl.u32 %v1052, 16
        %v1371 = vrot.slane %v1369, 4
        %v1372 = vshll.u32 %v1052, 16
        %v1374 = vrot.slane %v1372, 5
        %v1375 = vor.u32 %v1371, %v1374
        %v1376 = vsel %vm1053, %v1366, %v1375
        %v1378 = vunpack.c.l.b16 %v825
        %v1379 = vpack.c.b16 %v1378, %v1378
        %vm1380 = vcmask 1042432
        %v1381 = vrot.slane %v1017, 5
        %v1382 = vrot.slane %v1018, 5
        %v1383 = vsel %vm1380, %v1381, %v1382
        %v1384 = vrot.slane %v1019, 5
        %v1385 = vsel %vm1380, %v1382, %v1384
        %v1386 = vrot.slane %v1020, 5
        %v1387 = vsel %vm1380, %v1384, %v1386
        %v1388 = vrot.slane %v1021, 5
        %v1389 = vsel %vm1380, %v1386, %v1388
        %v1390 = vrot.slane %v1022, 5
        %v1391 = vsel %vm1380, %v1388, %v1390
        %v1392 = vrot.slane %v1023, 5
        %v1393 = vsel %vm1380, %v1390, %v1392
        %v1394 = vrot.slane %v1024, 5
        %v1395 = vsel %vm1380, %v1392, %v1394
        %v1396 = vrot.slane %v1025, 5
        %v1397 = vsel %vm1380, %v1394, %v1396
        %v1398 = vrot.slane %v1026, 5
        %v1399 = vsel %vm1380, %v1396, %v1398
        %v1400 = vrot.slane %v1027, 5
        %v1401 = vsel %vm1380, %v1398, %v1400
        %v1402 = vrot.slane %v1028, 5
        %v1403 = vsel %vm1380, %v1400, %v1402
        %v1404 = vrot.slane %v1029, 5
        %v1405 = vsel %vm1380, %v1402, %v1404
        %v1406 = vrot.slane %v1030, 5
        %v1407 = vsel %vm1380, %v1404, %v1406
        %v1408 = vrot.slane %v1031, 5
        %v1409 = vsel %vm1380, %v1406, %v1408
        %v1410 = vrot.slane %v1032, 5
        %v1411 = vsel %vm1380, %v1408, %v1410
        %v1412 = vrot.slane %v1033, 5
        %v1413 = vsel %vm1380, %v1410, %v1412
        %v1414 = vrot.slane %v1034, 5
        %v1415 = vsel %vm1380, %v1412, %v1414
        %v1416 = vrot.slane %v1035, 5
        %v1417 = vsel %vm1380, %v1414, %v1416
        %v1418 = vrot.slane %v1036, 5
        %v1419 = vsel %vm1380, %v1416, %v1418
        %v1420 = vrot.slane %v1037, 5
        %v1421 = vsel %vm1380, %v1418, %v1420
        %v1422 = vrot.slane %v1038, 5
        %v1423 = vsel %vm1380, %v1420, %v1422
        %v1424 = vrot.slane %v1039, 5
        %v1425 = vsel %vm1380, %v1422, %v1424
        %v1426 = vrot.slane %v1040, 5
        %v1427 = vsel %vm1380, %v1424, %v1426
        %v1428 = vrot.slane %v1041, 5
        %v1429 = vsel %vm1380, %v1426, %v1428
        %v1430 = vrot.slane %v1042, 5
        %v1431 = vsel %vm1380, %v1428, %v1430
        %v1432 = vrot.slane %v1043, 5
        %v1433 = vsel %vm1380, %v1430, %v1432
        %v1434 = vrot.slane %v1044, 5
        %v1435 = vsel %vm1380, %v1432, %v1434
        %v1436 = vrot.slane %v1045, 5
        %v1437 = vsel %vm1380, %v1434, %v1436
        %v1438 = vrot.slane %v1046, 5
        %v1439 = vsel %vm1380, %v1436, %v1438
        %v1440 = vrot.slane %v1047, 5
        %v1441 = vsel %vm1380, %v1438, %v1440
        %v1442 = vrot.slane %v1048, 5
        %v1443 = vsel %vm1380, %v1440, %v1442
        %v1444 = vrot.slane %v1049, 5
        %v1445 = vsel %vm1380, %v1442, %v1444
        %v1446 = vrot.slane %v1050, 5
        %v1447 = vsel %vm1380, %v1444, %v1446
        %v1448 = vrot.slane %v1051, 5
        %v1449 = vsel %vm1380, %v1446, %v1448
        %v1450 = vrot.slane %v1052, 5
        %v1451 = vsel %vm1380, %v1448, %v1450
        %v1452 = vrot.slane %v1379, 5
        %v1453 = vsel %vm1380, %v1450, %v1452
        %v1454 = vld [vmem:[%s3] sm:$0xf]
        %v1455 = vld [vmem:[%s3 + $0x4] sm:$0xf]
        %v1456 = vld [vmem:[%s3 + $0x8] sm:$0xf]
        %v1457 = vld [vmem:[%s3 + $0xc] sm:$0xf]
        %v1458 = vld [vmem:[%s3 + $0x10] sm:$0xf]
        %v1459 = vld [vmem:[%s3 + $0x14] sm:$0xf]
        %v1460 = vld [vmem:[%s3 + $0x18] sm:$0xf]
        %v1461 = vld [vmem:[%s3 + $0x1c] sm:$0xf]
        %v1462 = vld [vmem:[%s3 + $0x20] sm:$0xf]
        %v1463 = vld [vmem:[%s3 + $0x24] sm:$0xf]
        %v1464 = vld [vmem:[%s3 + $0x28] sm:$0xf]
        %v1465 = vld [vmem:[%s3 + $0x2c] sm:$0xf]
        %v1466 = vld [vmem:[%s3 + $0x30] sm:$0xf]
        %v1467 = vld [vmem:[%s3 + $0x34] sm:$0xf]
        %v1468 = vld [vmem:[%s3 + $0x38] sm:$0xf]
        %v1469 = vld [vmem:[%s3 + $0x3c] sm:$0xf]
        %v1470 = vld [vmem:[%s3 + $0x40] sm:$0xf]
        %v1471 = vld [vmem:[%s3 + $0x44] sm:$0xf]
        %v1472 = vld [vmem:[%s3 + $0x48] sm:$0xf]
        %v1473 = vld [vmem:[%s3 + $0x4c] sm:$0xf]
        %v1474 = vld [vmem:[%s3 + $0x50] sm:$0xf]
        %v1475 = vld [vmem:[%s3 + $0x54] sm:$0xf]
        %v1476 = vld [vmem:[%s3 + $0x58] sm:$0xf]
        %v1477 = vld [vmem:[%s3 + $0x5c] sm:$0xf]
        %v1478 = vld [vmem:[%s3 + $0x60] sm:$0xf]
        %v1479 = vld [vmem:[%s3 + $0x64] sm:$0xf]
        %v1480 = vld [vmem:[%s3 + $0x68] sm:$0xf]
        %v1481 = vld [vmem:[%s3 + $0x6c] sm:$0xf]
        %v1482 = vld [vmem:[%s3 + $0x70] sm:$0xf]
        %v1483 = vld [vmem:[%s3 + $0x74] sm:$0xf]
        %v1484 = vld [vmem:[%s3 + $0x78] sm:$0xf]
        %v1485 = vld [vmem:[%s3 + $0x7c] sm:$0xf]
        %v1486 = vld [vmem:[%s3 + $0x80] sm:$0xf]
        %v1487 = vld [vmem:[%s3 + $0x84] sm:$0xf]
        %v1488 = vld [vmem:[%s3 + $0x88] sm:$0xf]
        %v1489 = vld [vmem:[%s3 + $0x8c] sm:$0xf]
        %v1490 = vld [vmem:[%s3 + $0x90] sm:$0xf]
        %v1491 = vld [vmem:[%s3 + $0x94] sm:$0xf]
        %v1492 = vld [vmem:[%s3 + $0x98] sm:$0xf]
        %v1493 = vld [vmem:[%s3 + $0x9c] sm:$0xf]
        %v1494 = vld [vmem:[%s3 + $0xa0] sm:$0xf]
        %v1495 = vld [vmem:[%s3 + $0xa4] sm:$0xf]
        %v1496 = vld [vmem:[%s3 + $0xa8] sm:$0xf]
        %v1497 = vld [vmem:[%s3 + $0xac] sm:$0xf]
        %v1498 = vld [vmem:[%s3 + $0xb0] sm:$0xf]
        %v1499 = vld [vmem:[%s3 + $0xb4] sm:$0xf]
        %v1500 = vld [vmem:[%s3 + $0xb8] sm:$0xf]
        %v1501 = vld [vmem:[%s3 + $0xbc] sm:$0xf]
        %v1505 = vunpack.c.l.b16 %v826
        %v1506 = vunpack.c.l.b16 %v827
        %v1507 = vunpack.c.l.b16 %v828
        %v1508 = vpack.c.b16 %v1378, %v979
        %v1509 = vpack.c.b16 %v1506, %v1505
        %v1510 = vpack.c.b16 %v1507, %v1507
        %v1511 = vpack.c.b16 %v1505, %v1378
        %v1512 = vpack.c.b16 %v1507, %v1506
        %v1514 = vshrl.u32 %v1511, 16
        %v1516 = vrot.slane %v1514, 4
        %v1517 = vshll.u32 %v1511, 16
        %v1519 = vrot.slane %v1517, 5
        %v1520 = vor.u32 %v1516, %v1519
        %v1521 = vsel %vm1053, %v1375, %v1520
        %v1523 = vshrl.u32 %v1512, 16
        %v1525 = vrot.slane %v1523, 4
        %v1526 = vshll.u32 %v1512, 16
        %v1528 = vrot.slane %v1526, 5
        %v1529 = vor.u32 %v1525, %v1528
        %v1530 = vsel %vm1053, %v1520, %v1529
        %v1532 = vunpack.c.l.b16 %v829
        %v1533 = vpack.c.b16 %v1532, %v1532
        %v1534 = vrot.slane %v1511, 5
        %v1535 = vsel %vm1380, %v1450, %v1534
        %v1536 = vrot.slane %v1512, 5
        %v1537 = vsel %vm1380, %v1534, %v1536
        %v1538 = vrot.slane %v1533, 5
        %v1539 = vsel %vm1380, %v1536, %v1538
        %s1540 = scalar_lea.vmem %s3, 192
        %v1541 = vld [vmem:[%s1540] sm:$0xf]
        %v1542 = vld [vmem:[%s1540 + $0x4] sm:$0xf]
        %v1543 = vld [vmem:[%s1540 + $0x8] sm:$0xf]
        %v1544 = vld [vmem:[%s1540 + $0xc] sm:$0xf]
        %v1545 = vld [vmem:[%s1540 + $0x10] sm:$0xf]
        %v1546 = vld [vmem:[%s1540 + $0x14] sm:$0xf]
        %v1547 = vld [vmem:[%s1540 + $0x18] sm:$0xf]
        %v1548 = vld [vmem:[%s1540 + $0x1c] sm:$0xf]
        %v1549 = vld [vmem:[%s1540 + $0x20] sm:$0xf]
        %v1550 = vld [vmem:[%s1540 + $0x24] sm:$0xf]
        %v1551 = vld [vmem:[%s1540 + $0x28] sm:$0xf]
        %v1552 = vld [vmem:[%s1540 + $0x2c] sm:$0xf]
        %v1553 = vld [vmem:[%s1540 + $0x30] sm:$0xf]
        %v1554 = vld [vmem:[%s1540 + $0x34] sm:$0xf]
        %v1555 = vld [vmem:[%s1540 + $0x38] sm:$0xf]
        %v1556 = vld [vmem:[%s1540 + $0x3c] sm:$0xf]
        %v1557 = vld [vmem:[%s1540 + $0x40] sm:$0xf]
        %v1558 = vld [vmem:[%s1540 + $0x44] sm:$0xf]
        %v1559 = vld [vmem:[%s1540 + $0x48] sm:$0xf]
        %v1560 = vld [vmem:[%s1540 + $0x4c] sm:$0xf]
        %v1561 = vld [vmem:[%s1540 + $0x50] sm:$0xf]
        %v1562 = vld [vmem:[%s1540 + $0x54] sm:$0xf]
        %v1563 = vld [vmem:[%s1540 + $0x58] sm:$0xf]
        %v1564 = vld [vmem:[%s1540 + $0x5c] sm:$0xf]
        %v1565 = vld [vmem:[%s1540 + $0x60] sm:$0xf]
        %v1566 = vld [vmem:[%s1540 + $0x64] sm:$0xf]
        %v1567 = vld [vmem:[%s1540 + $0x68] sm:$0xf]
        %v1568 = vld [vmem:[%s1540 + $0x6c] sm:$0xf]
        %v1569 = vld [vmem:[%s1540 + $0x70] sm:$0xf]
        %v1570 = vld [vmem:[%s1540 + $0x74] sm:$0xf]
        %v1571 = vld [vmem:[%s1540 + $0x78] sm:$0xf]
        %v1572 = vld [vmem:[%s1540 + $0x7c] sm:$0xf]
        %v1573 = vld [vmem:[%s1540 + $0x80] sm:$0xf]
        %v1574 = vld [vmem:[%s1540 + $0x84] sm:$0xf]
        %v1575 = vld [vmem:[%s1540 + $0x88] sm:$0xf]
        %v1576 = vld [vmem:[%s1540 + $0x8c] sm:$0xf]
        %v1577 = vld [vmem:[%s1540 + $0x90] sm:$0xf]
        %v1578 = vld [vmem:[%s1540 + $0x94] sm:$0xf]
        %v1579 = vld [vmem:[%s1540 + $0x98] sm:$0xf]
        %v1580 = vld [vmem:[%s1540 + $0x9c] sm:$0xf]
        %v1581 = vld [vmem:[%s1540 + $0xa0] sm:$0xf]
        %v1582 = vld [vmem:[%s1540 + $0xa4] sm:$0xf]
        %v1583 = vld [vmem:[%s1540 + $0xa8] sm:$0xf]
        %v1584 = vld [vmem:[%s1540 + $0xac] sm:$0xf]
        %v1585 = vld [vmem:[%s1540 + $0xb0] sm:$0xf]
        %v1586 = vld [vmem:[%s1540 + $0xb4] sm:$0xf]
        %v1587 = vld [vmem:[%s1540 + $0xb8] sm:$0xf]
        %v1588 = vld [vmem:[%s1540 + $0xbc] sm:$0xf]
        %vm1589 = vsmask.f32 4352
        %v1591 = vshrl.u32 %v982, 16
        %v1593 = vrot.slane %v1591, 3
        %v1594 = vshll.u32 %v982, 16
        %v1596 = vrot.slane %v1594, 4
        %v1597 = vor.u32 %v1593, %v1596
        %v1599 = vshrl.u32 %v983, 16
        %v1601 = vrot.slane %v1599, 3
        %v1602 = vshll.u32 %v983, 16
        %v1604 = vrot.slane %v1602, 4
        %v1605 = vor.u32 %v1601, %v1604
        %v1606 = vsel %vm1589, %v1597, %v1605
        %v1608 = vshrl.u32 %v1078, 16
        %v1610 = vrot.slane %v1608, 3
        %v1611 = vshll.u32 %v1078, 16
        %v1613 = vrot.slane %v1611, 4
        %v1614 = vor.u32 %v1610, %v1613
        %v1616 = vshrl.u32 %v1088, 16
        %v1618 = vrot.slane %v1616, 3
        %v1619 = vshll.u32 %v1088, 16
        %v1621 = vrot.slane %v1619, 4
        %v1622 = vor.u32 %v1618, %v1621
        %v1623 = vsel %vm1589, %v1614, %v1622
        %v1625 = vshrl.u32 %v1384, 16
        %v1627 = vrot.slane %v1625, 3
        %v1628 = vshll.u32 %v1384, 16
        %v1630 = vrot.slane %v1628, 4
        %v1631 = vor.u32 %v1627, %v1630
        %v1633 = vshrl.u32 %v1387, 16
        %v1635 = vrot.slane %v1633, 3
        %v1636 = vshll.u32 %v1387, 16
        %v1638 = vrot.slane %v1636, 4
        %v1639 = vor.u32 %v1635, %v1638
        %v1640 = vsel %vm1589, %v1631, %v1639
        %v1642 = vshrl.u32 %v984, 16
        %v1644 = vrot.slane %v1642, 3
        %v1645 = vshll.u32 %v984, 16
        %v1647 = vrot.slane %v1645, 4
        %v1648 = vor.u32 %v1644, %v1647
        %v1649 = vsel %vm1589, %v1605, %v1648
        %v1651 = vshrl.u32 %v1097, 16
        %v1653 = vrot.slane %v1651, 3
        %v1654 = vshll.u32 %v1097, 16
        %v1656 = vrot.slane %v1654, 4
        %v1657 = vor.u32 %v1653, %v1656
        %v1658 = vsel %vm1589, %v1622, %v1657
        %v1660 = vshrl.u32 %v1389, 16
        %v1662 = vrot.slane %v1660, 3
        %v1663 = vshll.u32 %v1389, 16
        %v1665 = vrot.slane %v1663, 4
        %v1666 = vor.u32 %v1662, %v1665
        %v1667 = vsel %vm1589, %v1639, %v1666
        %v1669 = vshrl.u32 %v985, 16
        %v1671 = vrot.slane %v1669, 3
        %v1672 = vshll.u32 %v985, 16
        %v1674 = vrot.slane %v1672, 4
        %v1675 = vor.u32 %v1671, %v1674
        %v1676 = vsel %vm1589, %v1648, %v1675
        %v1678 = vshrl.u32 %v1106, 16
        %v1680 = vrot.slane %v1678, 3
        %v1681 = vshll.u32 %v1106, 16
        %v1683 = vrot.slane %v1681, 4
        %v1684 = vor.u32 %v1680, %v1683
        %v1685 = vsel %vm1589, %v1657, %v1684
        %v1687 = vshrl.u32 %v1391, 16
        %v1689 = vrot.slane %v1687, 3
        %v1690 = vshll.u32 %v1391, 16
        %v1692 = vrot.slane %v1690, 4
        %v1693 = vor.u32 %v1689, %v1692
        %v1694 = vsel %vm1589, %v1666, %v1693
        %v1696 = vshrl.u32 %v986, 16
        %v1698 = vrot.slane %v1696, 3
        %v1699 = vshll.u32 %v986, 16
        %v1701 = vrot.slane %v1699, 4
        %v1702 = vor.u32 %v1698, %v1701
        %v1703 = vsel %vm1589, %v1675, %v1702
        %v1705 = vshrl.u32 %v1115, 16
        %v1707 = vrot.slane %v1705, 3
        %v1708 = vshll.u32 %v1115, 16
        %v1710 = vrot.slane %v1708, 4
        %v1711 = vor.u32 %v1707, %v1710
        %v1712 = vsel %vm1589, %v1684, %v1711
        %v1714 = vshrl.u32 %v1393, 16
        %v1716 = vrot.slane %v1714, 3
        %v1717 = vshll.u32 %v1393, 16
        %v1719 = vrot.slane %v1717, 4
        %v1720 = vor.u32 %v1716, %v1719
        %v1721 = vsel %vm1589, %v1693, %v1720
        %v1723 = vshrl.u32 %v987, 16
        %v1725 = vrot.slane %v1723, 3
        %v1726 = vshll.u32 %v987, 16
        %v1728 = vrot.slane %v1726, 4
        %v1729 = vor.u32 %v1725, %v1728
        %v1730 = vsel %vm1589, %v1702, %v1729
        %v1732 = vshrl.u32 %v1124, 16
        %v1734 = vrot.slane %v1732, 3
        %v1735 = vshll.u32 %v1124, 16
        %v1737 = vrot.slane %v1735, 4
        %v1738 = vor.u32 %v1734, %v1737
        %v1739 = vsel %vm1589, %v1711, %v1738
        %v1741 = vshrl.u32 %v1395, 16
        %v1743 = vrot.slane %v1741, 3
        %v1744 = vshll.u32 %v1395, 16
        %v1746 = vrot.slane %v1744, 4
        %v1747 = vor.u32 %v1743, %v1746
        %v1748 = vsel %vm1589, %v1720, %v1747
        %v1750 = vshrl.u32 %v988, 16
        %v1752 = vrot.slane %v1750, 3
        %v1753 = vshll.u32 %v988, 16
        %v1755 = vrot.slane %v1753, 4
        %v1756 = vor.u32 %v1752, %v1755
        %v1757 = vsel %vm1589, %v1729, %v1756
        %v1759 = vshrl.u32 %v1133, 16
        %v1761 = vrot.slane %v1759, 3
        %v1762 = vshll.u32 %v1133, 16
        %v1764 = vrot.slane %v1762, 4
        %v1765 = vor.u32 %v1761, %v1764
        %v1766 = vsel %vm1589, %v1738, %v1765
        %v1768 = vshrl.u32 %v1397, 16
        %v1770 = vrot.slane %v1768, 3
        %v1771 = vshll.u32 %v1397, 16
        %v1773 = vrot.slane %v1771, 4
        %v1774 = vor.u32 %v1770, %v1773
        %v1775 = vsel %vm1589, %v1747, %v1774
        %v1777 = vshrl.u32 %v989, 16
        %v1779 = vrot.slane %v1777, 3
        %v1780 = vshll.u32 %v989, 16
        %v1782 = vrot.slane %v1780, 4
        %v1783 = vor.u32 %v1779, %v1782
        %v1784 = vsel %vm1589, %v1756, %v1783
        %v1786 = vshrl.u32 %v1142, 16
        %v1788 = vrot.slane %v1786, 3
        %v1789 = vshll.u32 %v1142, 16
        %v1791 = vrot.slane %v1789, 4
        %v1792 = vor.u32 %v1788, %v1791
        %v1793 = vsel %vm1589, %v1765, %v1792
        %v1795 = vshrl.u32 %v1399, 16
        %v1797 = vrot.slane %v1795, 3
        %v1798 = vshll.u32 %v1399, 16
        %v1800 = vrot.slane %v1798, 4
        %v1801 = vor.u32 %v1797, %v1800
        %v1802 = vsel %vm1589, %v1774, %v1801
        %v1804 = vshrl.u32 %v990, 16
        %v1806 = vrot.slane %v1804, 3
        %v1807 = vshll.u32 %v990, 16
        %v1809 = vrot.slane %v1807, 4
        %v1810 = vor.u32 %v1806, %v1809
        %v1811 = vsel %vm1589, %v1783, %v1810
        %v1813 = vshrl.u32 %v1151, 16
        %v1815 = vrot.slane %v1813, 3
        %v1816 = vshll.u32 %v1151, 16
        %v1818 = vrot.slane %v1816, 4
        %v1819 = vor.u32 %v1815, %v1818
        %v1820 = vsel %vm1589, %v1792, %v1819
        %v1822 = vshrl.u32 %v1401, 16
        %v1824 = vrot.slane %v1822, 3
        %v1825 = vshll.u32 %v1401, 16
        %v1827 = vrot.slane %v1825, 4
        %v1828 = vor.u32 %v1824, %v1827
        %v1829 = vsel %vm1589, %v1801, %v1828
        %v1831 = vshrl.u32 %v991, 16
        %v1833 = vrot.slane %v1831, 3
        %v1834 = vshll.u32 %v991, 16
        %v1836 = vrot.slane %v1834, 4
        %v1837 = vor.u32 %v1833, %v1836
        %v1838 = vsel %vm1589, %v1810, %v1837
        %v1840 = vshrl.u32 %v1160, 16
        %v1842 = vrot.slane %v1840, 3
        %v1843 = vshll.u32 %v1160, 16
        %v1845 = vrot.slane %v1843, 4
        %v1846 = vor.u32 %v1842, %v1845
        %v1847 = vsel %vm1589, %v1819, %v1846
        %v1849 = vshrl.u32 %v1403, 16
        %v1851 = vrot.slane %v1849, 3
        %v1852 = vshll.u32 %v1403, 16
        %v1854 = vrot.slane %v1852, 4
        %v1855 = vor.u32 %v1851, %v1854
        %v1856 = vsel %vm1589, %v1828, %v1855
        %v1858 = vshrl.u32 %v992, 16
        %v1860 = vrot.slane %v1858, 3
        %v1861 = vshll.u32 %v992, 16
        %v1863 = vrot.slane %v1861, 4
        %v1864 = vor.u32 %v1860, %v1863
        %v1865 = vsel %vm1589, %v1837, %v1864
        %v1867 = vshrl.u32 %v1169, 16
        %v1869 = vrot.slane %v1867, 3
        %v1870 = vshll.u32 %v1169, 16
        %v1872 = vrot.slane %v1870, 4
        %v1873 = vor.u32 %v1869, %v1872
        %v1874 = vsel %vm1589, %v1846, %v1873
        %v1876 = vshrl.u32 %v1405, 16
        %v1878 = vrot.slane %v1876, 3
        %v1879 = vshll.u32 %v1405, 16
        %v1881 = vrot.slane %v1879, 4
        %v1882 = vor.u32 %v1878, %v1881
        %v1883 = vsel %vm1589, %v1855, %v1882
        %v1885 = vshrl.u32 %v993, 16
        %v1887 = vrot.slane %v1885, 3
        %v1888 = vshll.u32 %v993, 16
        %v1890 = vrot.slane %v1888, 4
        %v1891 = vor.u32 %v1887, %v1890
        %v1892 = vsel %vm1589, %v1864, %v1891
        %v1894 = vshrl.u32 %v1178, 16
        %v1896 = vrot.slane %v1894, 3
        %v1897 = vshll.u32 %v1178, 16
        %v1899 = vrot.slane %v1897, 4
        %v1900 = vor.u32 %v1896, %v1899
        %v1901 = vsel %vm1589, %v1873, %v1900
        %v1903 = vshrl.u32 %v1407, 16
        %v1905 = vrot.slane %v1903, 3
        %v1906 = vshll.u32 %v1407, 16
        %v1908 = vrot.slane %v1906, 4
        %v1909 = vor.u32 %v1905, %v1908
        %v1910 = vsel %vm1589, %v1882, %v1909
        %v1912 = vshrl.u32 %v994, 16
        %v1914 = vrot.slane %v1912, 3
        %v1915 = vshll.u32 %v994, 16
        %v1917 = vrot.slane %v1915, 4
        %v1918 = vor.u32 %v1914, %v1917
        %v1919 = vsel %vm1589, %v1891, %v1918
        %v1921 = vshrl.u32 %v1187, 16
        %v1923 = vrot.slane %v1921, 3
        %v1924 = vshll.u32 %v1187, 16
        %v1926 = vrot.slane %v1924, 4
        %v1927 = vor.u32 %v1923, %v1926
        %v1928 = vsel %vm1589, %v1900, %v1927
        %v1930 = vshrl.u32 %v1409, 16
        %v1932 = vrot.slane %v1930, 3
        %v1933 = vshll.u32 %v1409, 16
        %v1935 = vrot.slane %v1933, 4
        %v1936 = vor.u32 %v1932, %v1935
        %v1937 = vsel %vm1589, %v1909, %v1936
        %v1939 = vshrl.u32 %v995, 16
        %v1941 = vrot.slane %v1939, 3
        %v1942 = vshll.u32 %v995, 16
        %v1944 = vrot.slane %v1942, 4
        %v1945 = vor.u32 %v1941, %v1944
        %v1946 = vsel %vm1589, %v1918, %v1945
        %v1948 = vshrl.u32 %v1196, 16
        %v1950 = vrot.slane %v1948, 3
        %v1951 = vshll.u32 %v1196, 16
        %v1953 = vrot.slane %v1951, 4
        %v1954 = vor.u32 %v1950, %v1953
        %v1955 = vsel %vm1589, %v1927, %v1954
        %v1957 = vshrl.u32 %v1411, 16
        %v1959 = vrot.slane %v1957, 3
        %v1960 = vshll.u32 %v1411, 16
        %v1962 = vrot.slane %v1960, 4
        %v1963 = vor.u32 %v1959, %v1962
        %v1964 = vsel %vm1589, %v1936, %v1963
        %v1966 = vshrl.u32 %v996, 16
        %v1968 = vrot.slane %v1966, 3
        %v1969 = vshll.u32 %v996, 16
        %v1971 = vrot.slane %v1969, 4
        %v1972 = vor.u32 %v1968, %v1971
        %v1973 = vsel %vm1589, %v1945, %v1972
        %v1975 = vshrl.u32 %v1205, 16
        %v1977 = vrot.slane %v1975, 3
        %v1978 = vshll.u32 %v1205, 16
        %v1980 = vrot.slane %v1978, 4
        %v1981 = vor.u32 %v1977, %v1980
        %v1982 = vsel %vm1589, %v1954, %v1981
        %v1984 = vshrl.u32 %v1413, 16
        %v1986 = vrot.slane %v1984, 3
        %v1987 = vshll.u32 %v1413, 16
        %v1989 = vrot.slane %v1987, 4
        %v1990 = vor.u32 %v1986, %v1989
        %v1991 = vsel %vm1589, %v1963, %v1990
        %v1993 = vshrl.u32 %v997, 16
        %v1995 = vrot.slane %v1993, 3
        %v1996 = vshll.u32 %v997, 16
        %v1998 = vrot.slane %v1996, 4
        %v1999 = vor.u32 %v1995, %v1998
        %v2000 = vsel %vm1589, %v1972, %v1999
        %v2002 = vshrl.u32 %v1214, 16
        %v2004 = vrot.slane %v2002, 3
        %v2005 = vshll.u32 %v1214, 16
        %v2007 = vrot.slane %v2005, 4
        %v2008 = vor.u32 %v2004, %v2007
        %v2009 = vsel %vm1589, %v1981, %v2008
        %v2011 = vshrl.u32 %v1415, 16
        %v2013 = vrot.slane %v2011, 3
        %v2014 = vshll.u32 %v1415, 16
        %v2016 = vrot.slane %v2014, 4
        %v2017 = vor.u32 %v2013, %v2016
        %v2018 = vsel %vm1589, %v1990, %v2017
        %v2020 = vshrl.u32 %v998, 16
        %v2022 = vrot.slane %v2020, 3
        %v2023 = vshll.u32 %v998, 16
        %v2025 = vrot.slane %v2023, 4
        %v2026 = vor.u32 %v2022, %v2025
        %v2027 = vsel %vm1589, %v1999, %v2026
        %v2029 = vshrl.u32 %v1223, 16
        %v2031 = vrot.slane %v2029, 3
        %v2032 = vshll.u32 %v1223, 16
        %v2034 = vrot.slane %v2032, 4
        %v2035 = vor.u32 %v2031, %v2034
        %v2036 = vsel %vm1589, %v2008, %v2035
        %v2038 = vshrl.u32 %v1417, 16
        %v2040 = vrot.slane %v2038, 3
        %v2041 = vshll.u32 %v1417, 16
        %v2043 = vrot.slane %v2041, 4
        %v2044 = vor.u32 %v2040, %v2043
        %v2045 = vsel %vm1589, %v2017, %v2044
        %v2047 = vshrl.u32 %v999, 16
        %v2049 = vrot.slane %v2047, 3
        %v2050 = vshll.u32 %v999, 16
        %v2052 = vrot.slane %v2050, 4
        %v2053 = vor.u32 %v2049, %v2052
        %v2054 = vsel %vm1589, %v2026, %v2053
        %v2056 = vshrl.u32 %v1232, 16
        %v2058 = vrot.slane %v2056, 3
        %v2059 = vshll.u32 %v1232, 16
        %v2061 = vrot.slane %v2059, 4
        %v2062 = vor.u32 %v2058, %v2061
        %v2063 = vsel %vm1589, %v2035, %v2062
        %v2065 = vshrl.u32 %v1419, 16
        %v2067 = vrot.slane %v2065, 3
        %v2068 = vshll.u32 %v1419, 16
        %v2070 = vrot.slane %v2068, 4
        %v2071 = vor.u32 %v2067, %v2070
        %v2072 = vsel %vm1589, %v2044, %v2071
        %v2074 = vshrl.u32 %v1000, 16
        %v2076 = vrot.slane %v2074, 3
        %v2077 = vshll.u32 %v1000, 16
        %v2079 = vrot.slane %v2077, 4
        %v2080 = vor.u32 %v2076, %v2079
        %v2081 = vsel %vm1589, %v2053, %v2080
        %v2083 = vshrl.u32 %v1241, 16
        %v2085 = vrot.slane %v2083, 3
        %v2086 = vshll.u32 %v1241, 16
        %v2088 = vrot.slane %v2086, 4
        %v2089 = vor.u32 %v2085, %v2088
        %v2090 = vsel %vm1589, %v2062, %v2089
        %v2092 = vshrl.u32 %v1421, 16
        %v2094 = vrot.slane %v2092, 3
        %v2095 = vshll.u32 %v1421, 16
        %v2097 = vrot.slane %v2095, 4
        %v2098 = vor.u32 %v2094, %v2097
        %v2099 = vsel %vm1589, %v2071, %v2098
        %v2101 = vshrl.u32 %v1001, 16
        %v2103 = vrot.slane %v2101, 3
        %v2104 = vshll.u32 %v1001, 16
        %v2106 = vrot.slane %v2104, 4
        %v2107 = vor.u32 %v2103, %v2106
        %v2108 = vsel %vm1589, %v2080, %v2107
        %v2110 = vshrl.u32 %v1250, 16
        %v2112 = vrot.slane %v2110, 3
        %v2113 = vshll.u32 %v1250, 16
        %v2115 = vrot.slane %v2113, 4
        %v2116 = vor.u32 %v2112, %v2115
        %v2117 = vsel %vm1589, %v2089, %v2116
        %v2119 = vshrl.u32 %v1423, 16
        %v2121 = vrot.slane %v2119, 3
        %v2122 = vshll.u32 %v1423, 16
        %v2124 = vrot.slane %v2122, 4
        %v2125 = vor.u32 %v2121, %v2124
        %v2126 = vsel %vm1589, %v2098, %v2125
        %v2128 = vshrl.u32 %v1002, 16
        %v2130 = vrot.slane %v2128, 3
        %v2131 = vshll.u32 %v1002, 16
        %v2133 = vrot.slane %v2131, 4
        %v2134 = vor.u32 %v2130, %v2133
        %v2135 = vsel %vm1589, %v2107, %v2134
        %v2137 = vshrl.u32 %v1259, 16
        %v2139 = vrot.slane %v2137, 3
        %v2140 = vshll.u32 %v1259, 16
        %v2142 = vrot.slane %v2140, 4
        %v2143 = vor.u32 %v2139, %v2142
        %v2144 = vsel %vm1589, %v2116, %v2143
        %v2146 = vshrl.u32 %v1425, 16
        %v2148 = vrot.slane %v2146, 3
        %v2149 = vshll.u32 %v1425, 16
        %v2151 = vrot.slane %v2149, 4
        %v2152 = vor.u32 %v2148, %v2151
        %v2153 = vsel %vm1589, %v2125, %v2152
        %v2155 = vshrl.u32 %v1003, 16
        %v2157 = vrot.slane %v2155, 3
        %v2158 = vshll.u32 %v1003, 16
        %v2160 = vrot.slane %v2158, 4
        %v2161 = vor.u32 %v2157, %v2160
        %v2162 = vsel %vm1589, %v2134, %v2161
        %v2164 = vshrl.u32 %v1268, 16
        %v2166 = vrot.slane %v2164, 3
        %v2167 = vshll.u32 %v1268, 16
        %v2169 = vrot.slane %v2167, 4
        %v2170 = vor.u32 %v2166, %v2169
        %v2171 = vsel %vm1589, %v2143, %v2170
        %v2173 = vshrl.u32 %v1427, 16
        %v2175 = vrot.slane %v2173, 3
        %v2176 = vshll.u32 %v1427, 16
        %v2178 = vrot.slane %v2176, 4
        %v2179 = vor.u32 %v2175, %v2178
        %v2180 = vsel %vm1589, %v2152, %v2179
        %v2182 = vshrl.u32 %v1004, 16
        %v2184 = vrot.slane %v2182, 3
        %v2185 = vshll.u32 %v1004, 16
        %v2187 = vrot.slane %v2185, 4
        %v2188 = vor.u32 %v2184, %v2187
        %v2189 = vsel %vm1589, %v2161, %v2188
        %v2191 = vshrl.u32 %v1277, 16
        %v2193 = vrot.slane %v2191, 3
        %v2194 = vshll.u32 %v1277, 16
        %v2196 = vrot.slane %v2194, 4
        %v2197 = vor.u32 %v2193, %v2196
        %v2198 = vsel %vm1589, %v2170, %v2197
        %v2200 = vshrl.u32 %v1429, 16
        %v2202 = vrot.slane %v2200, 3
        %v2203 = vshll.u32 %v1429, 16
        %v2205 = vrot.slane %v2203, 4
        %v2206 = vor.u32 %v2202, %v2205
        %v2207 = vsel %vm1589, %v2179, %v2206
        %v2209 = vshrl.u32 %v1005, 16
        %v2211 = vrot.slane %v2209, 3
        %v2212 = vshll.u32 %v1005, 16
        %v2214 = vrot.slane %v2212, 4
        %v2215 = vor.u32 %v2211, %v2214
        %v2216 = vsel %vm1589, %v2188, %v2215
        %v2218 = vshrl.u32 %v1286, 16
        %v2220 = vrot.slane %v2218, 3
        %v2221 = vshll.u32 %v1286, 16
        %v2223 = vrot.slane %v2221, 4
        %v2224 = vor.u32 %v2220, %v2223
        %v2225 = vsel %vm1589, %v2197, %v2224
        %v2227 = vshrl.u32 %v1431, 16
        %v2229 = vrot.slane %v2227, 3
        %v2230 = vshll.u32 %v1431, 16
        %v2232 = vrot.slane %v2230, 4
        %v2233 = vor.u32 %v2229, %v2232
        %v2234 = vsel %vm1589, %v2206, %v2233
        %v2236 = vshrl.u32 %v1006, 16
        %v2238 = vrot.slane %v2236, 3
        %v2239 = vshll.u32 %v1006, 16
        %v2241 = vrot.slane %v2239, 4
        %v2242 = vor.u32 %v2238, %v2241
        %v2243 = vsel %vm1589, %v2215, %v2242
        %v2245 = vshrl.u32 %v1295, 16
        %v2247 = vrot.slane %v2245, 3
        %v2248 = vshll.u32 %v1295, 16
        %v2250 = vrot.slane %v2248, 4
        %v2251 = vor.u32 %v2247, %v2250
        %v2252 = vsel %vm1589, %v2224, %v2251
        %v2254 = vshrl.u32 %v1433, 16
        %v2256 = vrot.slane %v2254, 3
        %v2257 = vshll.u32 %v1433, 16
        %v2259 = vrot.slane %v2257, 4
        %v2260 = vor.u32 %v2256, %v2259
        %v2261 = vsel %vm1589, %v2233, %v2260
        %v2263 = vshrl.u32 %v1007, 16
        %v2265 = vrot.slane %v2263, 3
        %v2266 = vshll.u32 %v1007, 16
        %v2268 = vrot.slane %v2266, 4
        %v2269 = vor.u32 %v2265, %v2268
        %v2270 = vsel %vm1589, %v2242, %v2269
        %v2272 = vshrl.u32 %v1304, 16
        %v2274 = vrot.slane %v2272, 3
        %v2275 = vshll.u32 %v1304, 16
        %v2277 = vrot.slane %v2275, 4
        %v2278 = vor.u32 %v2274, %v2277
        %v2279 = vsel %vm1589, %v2251, %v2278
        %v2281 = vshrl.u32 %v1435, 16
        %v2283 = vrot.slane %v2281, 3
        %v2284 = vshll.u32 %v1435, 16
        %v2286 = vrot.slane %v2284, 4
        %v2287 = vor.u32 %v2283, %v2286
        %v2288 = vsel %vm1589, %v2260, %v2287
        %v2290 = vshrl.u32 %v1008, 16
        %v2292 = vrot.slane %v2290, 3
        %v2293 = vshll.u32 %v1008, 16
        %v2295 = vrot.slane %v2293, 4
        %v2296 = vor.u32 %v2292, %v2295
        %v2297 = vsel %vm1589, %v2269, %v2296
        %v2299 = vshrl.u32 %v1313, 16
        %v2301 = vrot.slane %v2299, 3
        %v2302 = vshll.u32 %v1313, 16
        %v2304 = vrot.slane %v2302, 4
        %v2305 = vor.u32 %v2301, %v2304
        %v2306 = vsel %vm1589, %v2278, %v2305
        %v2308 = vshrl.u32 %v1437, 16
        %v2310 = vrot.slane %v2308, 3
        %v2311 = vshll.u32 %v1437, 16
        %v2313 = vrot.slane %v2311, 4
        %v2314 = vor.u32 %v2310, %v2313
        %v2315 = vsel %vm1589, %v2287, %v2314
        %v2317 = vshrl.u32 %v1009, 16
        %v2319 = vrot.slane %v2317, 3
        %v2320 = vshll.u32 %v1009, 16
        %v2322 = vrot.slane %v2320, 4
        %v2323 = vor.u32 %v2319, %v2322
        %v2324 = vsel %vm1589, %v2296, %v2323
        %v2326 = vshrl.u32 %v1322, 16
        %v2328 = vrot.slane %v2326, 3
        %v2329 = vshll.u32 %v1322, 16
        %v2331 = vrot.slane %v2329, 4
        %v2332 = vor.u32 %v2328, %v2331
        %v2333 = vsel %vm1589, %v2305, %v2332
        %v2335 = vshrl.u32 %v1439, 16
        %v2337 = vrot.slane %v2335, 3
        %v2338 = vshll.u32 %v1439, 16
        %v2340 = vrot.slane %v2338, 4
        %v2341 = vor.u32 %v2337, %v2340
        %v2342 = vsel %vm1589, %v2314, %v2341
        %v2344 = vshrl.u32 %v1010, 16
        %v2346 = vrot.slane %v2344, 3
        %v2347 = vshll.u32 %v1010, 16
        %v2349 = vrot.slane %v2347, 4
        %v2350 = vor.u32 %v2346, %v2349
        %v2351 = vsel %vm1589, %v2323, %v2350
        %v2353 = vshrl.u32 %v1331, 16
        %v2355 = vrot.slane %v2353, 3
        %v2356 = vshll.u32 %v1331, 16
        %v2358 = vrot.slane %v2356, 4
        %v2359 = vor.u32 %v2355, %v2358
        %v2360 = vsel %vm1589, %v2332, %v2359
        %v2362 = vshrl.u32 %v1441, 16
        %v2364 = vrot.slane %v2362, 3
        %v2365 = vshll.u32 %v1441, 16
        %v2367 = vrot.slane %v2365, 4
        %v2368 = vor.u32 %v2364, %v2367
        %v2369 = vsel %vm1589, %v2341, %v2368
        %v2371 = vshrl.u32 %v1011, 16
        %v2373 = vrot.slane %v2371, 3
        %v2374 = vshll.u32 %v1011, 16
        %v2376 = vrot.slane %v2374, 4
        %v2377 = vor.u32 %v2373, %v2376
        %v2378 = vsel %vm1589, %v2350, %v2377
        %v2380 = vshrl.u32 %v1340, 16
        %v2382 = vrot.slane %v2380, 3
        %v2383 = vshll.u32 %v1340, 16
        %v2385 = vrot.slane %v2383, 4
        %v2386 = vor.u32 %v2382, %v2385
        %v2387 = vsel %vm1589, %v2359, %v2386
        %v2389 = vshrl.u32 %v1443, 16
        %v2391 = vrot.slane %v2389, 3
        %v2392 = vshll.u32 %v1443, 16
        %v2394 = vrot.slane %v2392, 4
        %v2395 = vor.u32 %v2391, %v2394
        %v2396 = vsel %vm1589, %v2368, %v2395
        %v2398 = vshrl.u32 %v1012, 16
        %v2400 = vrot.slane %v2398, 3
        %v2401 = vshll.u32 %v1012, 16
        %v2403 = vrot.slane %v2401, 4
        %v2404 = vor.u32 %v2400, %v2403
        %v2405 = vsel %vm1589, %v2377, %v2404
        %v2407 = vshrl.u32 %v1349, 16
        %v2409 = vrot.slane %v2407, 3
        %v2410 = vshll.u32 %v1349, 16
        %v2412 = vrot.slane %v2410, 4
        %v2413 = vor.u32 %v2409, %v2412
        %v2414 = vsel %vm1589, %v2386, %v2413
        %v2416 = vshrl.u32 %v1445, 16
        %v2418 = vrot.slane %v2416, 3
        %v2419 = vshll.u32 %v1445, 16
        %v2421 = vrot.slane %v2419, 4
        %v2422 = vor.u32 %v2418, %v2421
        %v2423 = vsel %vm1589, %v2395, %v2422
        %v2425 = vshrl.u32 %v1013, 16
        %v2427 = vrot.slane %v2425, 3
        %v2428 = vshll.u32 %v1013, 16
        %v2430 = vrot.slane %v2428, 4
        %v2431 = vor.u32 %v2427, %v2430
        %v2432 = vsel %vm1589, %v2404, %v2431
        %v2434 = vshrl.u32 %v1358, 16
        %v2436 = vrot.slane %v2434, 3
        %v2437 = vshll.u32 %v1358, 16
        %v2439 = vrot.slane %v2437, 4
        %v2440 = vor.u32 %v2436, %v2439
        %v2441 = vsel %vm1589, %v2413, %v2440
        %v2443 = vshrl.u32 %v1447, 16
        %v2445 = vrot.slane %v2443, 3
        %v2446 = vshll.u32 %v1447, 16
        %v2448 = vrot.slane %v2446, 4
        %v2449 = vor.u32 %v2445, %v2448
        %v2450 = vsel %vm1589, %v2422, %v2449
        %v2452 = vshrl.u32 %v1014, 16
        %v2454 = vrot.slane %v2452, 3
        %v2455 = vshll.u32 %v1014, 16
        %v2457 = vrot.slane %v2455, 4
        %v2458 = vor.u32 %v2454, %v2457
        %v2459 = vsel %vm1589, %v2431, %v2458
        %v2461 = vshrl.u32 %v1367, 16
        %v2463 = vrot.slane %v2461, 3
        %v2464 = vshll.u32 %v1367, 16
        %v2466 = vrot.slane %v2464, 4
        %v2467 = vor.u32 %v2463, %v2466
        %v2468 = vsel %vm1589, %v2440, %v2467
        %v2470 = vshrl.u32 %v1449, 16
        %v2472 = vrot.slane %v2470, 3
        %v2473 = vshll.u32 %v1449, 16
        %v2475 = vrot.slane %v2473, 4
        %v2476 = vor.u32 %v2472, %v2475
        %v2477 = vsel %vm1589, %v2449, %v2476
        %v2479 = vshrl.u32 %v1015, 16
        %v2481 = vrot.slane %v2479, 3
        %v2482 = vshll.u32 %v1015, 16
        %v2484 = vrot.slane %v2482, 4
        %v2485 = vor.u32 %v2481, %v2484
        %v2486 = vsel %vm1589, %v2458, %v2485
        %v2488 = vshrl.u32 %v1376, 16
        %v2490 = vrot.slane %v2488, 3
        %v2491 = vshll.u32 %v1376, 16
        %v2493 = vrot.slane %v2491, 4
        %v2494 = vor.u32 %v2490, %v2493
        %v2495 = vsel %vm1589, %v2467, %v2494
        %v2497 = vshrl.u32 %v1451, 16
        %v2499 = vrot.slane %v2497, 3
        %v2500 = vshll.u32 %v1451, 16
        %v2502 = vrot.slane %v2500, 4
        %v2503 = vor.u32 %v2499, %v2502
        %v2504 = vsel %vm1589, %v2476, %v2503
        %v2506 = vshrl.u32 %v1508, 16
        %v2508 = vrot.slane %v2506, 3
        %v2509 = vshll.u32 %v1508, 16
        %v2511 = vrot.slane %v2509, 4
        %v2512 = vor.u32 %v2508, %v2511
        %v2513 = vsel %vm1589, %v2485, %v2512
        %v2515 = vshrl.u32 %v1521, 16
        %v2517 = vrot.slane %v2515, 3
        %v2518 = vshll.u32 %v1521, 16
        %v2520 = vrot.slane %v2518, 4
        %v2521 = vor.u32 %v2517, %v2520
        %v2522 = vsel %vm1589, %v2494, %v2521
        %v2524 = vshrl.u32 %v1535, 16
        %v2526 = vrot.slane %v2524, 3
        %v2527 = vshll.u32 %v1535, 16
        %v2529 = vrot.slane %v2527, 4
        %v2530 = vor.u32 %v2526, %v2529
        %v2531 = vsel %vm1589, %v2503, %v2530
        %v2533 = vshrl.u32 %v1509, 16
        %v2535 = vrot.slane %v2533, 3
        %v2536 = vshll.u32 %v1509, 16
        %v2538 = vrot.slane %v2536, 4
        %v2539 = vor.u32 %v2535, %v2538
        %v2540 = vsel %vm1589, %v2512, %v2539
        %v2542 = vshrl.u32 %v1530, 16
        %v2544 = vrot.slane %v2542, 3
        %v2545 = vshll.u32 %v1530, 16
        %v2547 = vrot.slane %v2545, 4
        %v2548 = vor.u32 %v2544, %v2547
        %v2549 = vsel %vm1589, %v2521, %v2548
        %v2551 = vshrl.u32 %v1537, 16
        %v2553 = vrot.slane %v2551, 3
        %v2554 = vshll.u32 %v1537, 16
        %v2556 = vrot.slane %v2554, 4
        %v2557 = vor.u32 %v2553, %v2556
        %v2558 = vsel %vm1589, %v2530, %v2557
        %v2560 = vshrl.u32 %v1510, 16
        %v2562 = vrot.slane %v2560, 3
        %v2563 = vshll.u32 %v1510, 16
        %v2565 = vrot.slane %v2563, 4
        %v2566 = vor.u32 %v2562, %v2565
        %v2567 = vsel %vm1589, %v2539, %v2566
        %v2569 = vshrl.u32 %v1529, 16
        %v2571 = vrot.slane %v2569, 3
        %v2572 = vshll.u32 %v1529, 16
        %v2574 = vrot.slane %v2572, 4
        %v2575 = vor.u32 %v2571, %v2574
        %v2576 = vsel %vm1589, %v2548, %v2575
        %v2578 = vshrl.u32 %v1539, 16
        %v2580 = vrot.slane %v2578, 3
        %v2581 = vshll.u32 %v1539, 16
        %v2583 = vrot.slane %v2581, 4
        %v2584 = vor.u32 %v2580, %v2583
        %v2585 = vsel %vm1589, %v2557, %v2584
        %v2742 = vunpack.c.l.b16 %v1541
        %v2743 = vunpack.c.l.b16 %v1542
        %v2744 = vunpack.c.l.b16 %v1543
        %v2745 = vunpack.c.l.b16 %v1544
        %v2746 = vunpack.c.l.b16 %v1545
        %v2747 = vunpack.c.l.b16 %v1546
        %v2748 = vunpack.c.l.b16 %v1547
        %v2749 = vunpack.c.l.b16 %v1548
        %v2750 = vunpack.c.l.b16 %v1549
        %v2751 = vunpack.c.l.b16 %v1550
        %v2752 = vunpack.c.l.b16 %v1551
        %v2753 = vunpack.c.l.b16 %v1552
        %v2754 = vunpack.c.l.b16 %v1553
        %v2755 = vunpack.c.l.b16 %v1554
        %v2756 = vunpack.c.l.b16 %v1555
        %v2757 = vunpack.c.l.b16 %v1556
        %v2758 = vunpack.c.l.b16 %v1557
        %v2759 = vunpack.c.l.b16 %v1558
        %v2760 = vunpack.c.l.b16 %v1559
        %v2761 = vunpack.c.l.b16 %v1560
        %v2762 = vunpack.c.l.b16 %v1561
        %v2763 = vunpack.c.l.b16 %v1562
        %v2764 = vunpack.c.l.b16 %v1563
        %v2765 = vunpack.c.l.b16 %v1564
        %v2766 = vunpack.c.l.b16 %v1565
        %v2767 = vunpack.c.l.b16 %v1566
        %v2768 = vunpack.c.l.b16 %v1567
        %v2769 = vunpack.c.l.b16 %v1568
        %v2770 = vunpack.c.l.b16 %v1569
        %v2771 = vunpack.c.l.b16 %v1570
        %v2772 = vunpack.c.l.b16 %v1571
        %v2773 = vunpack.c.l.b16 %v1572
        %v2774 = vunpack.c.l.b16 %v1573
        %v2775 = vunpack.c.l.b16 %v1574
        %v2776 = vunpack.c.l.b16 %v1575
        %v2777 = vunpack.c.l.b16 %v1576
        %v2778 = vunpack.c.l.b16 %v1577
        %v2779 = vunpack.c.l.b16 %v1578
        %v2780 = vunpack.c.l.b16 %v1579
        %v2781 = vunpack.c.l.b16 %v1580
        %v2782 = vunpack.c.l.b16 %v1581
        %v2783 = vunpack.c.l.b16 %v1582
        %v2784 = vunpack.c.l.b16 %v1583
        %v2785 = vunpack.c.l.b16 %v1584
        %v2786 = vunpack.c.l.b16 %v1585
        %v2787 = vunpack.c.l.b16 %v1586
        %v2788 = vunpack.c.l.b16 %v1587
        %v2789 = vunpack.c.l.b16 %v1588
        %v2790 = vpack.c.b16 %v2743, %v2742
        %v2791 = vpack.c.b16 %v2745, %v2744
        %v2792 = vpack.c.b16 %v2747, %v2746
        %v2793 = vpack.c.b16 %v2749, %v2748
        %v2794 = vpack.c.b16 %v2751, %v2750
        %v2795 = vpack.c.b16 %v2753, %v2752
        %v2796 = vpack.c.b16 %v2755, %v2754
        %v2797 = vpack.c.b16 %v2757, %v2756
        %v2798 = vpack.c.b16 %v2759, %v2758
        %v2799 = vpack.c.b16 %v2761, %v2760
        %v2800 = vpack.c.b16 %v2763, %v2762
        %v2801 = vpack.c.b16 %v2765, %v2764
        %v2802 = vpack.c.b16 %v2767, %v2766
        %v2803 = vpack.c.b16 %v2769, %v2768
        %v2804 = vpack.c.b16 %v2771, %v2770
        %v2805 = vpack.c.b16 %v2773, %v2772
        %v2806 = vpack.c.b16 %v2775, %v2774
        %v2807 = vpack.c.b16 %v2777, %v2776
        %v2808 = vpack.c.b16 %v2779, %v2778
        %v2809 = vpack.c.b16 %v2781, %v2780
        %v2810 = vpack.c.b16 %v2783, %v2782
        %v2811 = vpack.c.b16 %v2785, %v2784
        %v2812 = vpack.c.b16 %v2787, %v2786
        %v2813 = vpack.c.b16 %v2789, %v2788
        %2838 = vmatpush.bf16.msra.mxu0 %v2797
        %2839 = vmatpush.bf16.msra.mxu0 %v2796
        %2840 = vmatpush.bf16.msra.mxu0 %v2795
        %2841 = vmatpush.bf16.msra.mxu0 %v2794
        %2842 = vmatpush.bf16.msra.mxu0 %v2793
        %2843 = vmatpush.bf16.msra.mxu0 %v2792
        %2844 = vmatpush.bf16.msra.mxu0 %v2791
        %2845 = vmatpush.bf16.msra.mxu0 %v2790
        %2846 = vmatmul.bf16.gmra.mxu0 %v1606
        %v2847 = vpop.f32.mrf.mxu0
        %v2848 = vadd.f32 0.0, %v2847
        %v2849 = vpop.f32.mrf.mxu0
        %v2850 = vadd.f32 0.0, %v2849
        %2851 = vmatmul.bf16.gmra.mxu0 %v1649
        %v2852 = vpop.f32.mrf.mxu0
        %v2853 = vpop.f32.mrf.mxu0
        %2854 = vmatmul.bf16.gmra.mxu0 %v1676
        %v2855 = vpop.f32.mrf.mxu0
        %v2856 = vadd.f32 0.0, %v2855
        %v2857 = vpop.f32.mrf.mxu0
        %v2858 = vadd.f32 0.0, %v2857
        %2859 = vmatmul.bf16.gmra.mxu0 %v1703
        %v2860 = vpop.f32.mrf.mxu0
        %v2861 = vpop.f32.mrf.mxu0
        %2862 = vmatmul.bf16.gmra.mxu0 %v1730
        %v2863 = vpop.f32.mrf.mxu0
        %v2864 = vadd.f32 0.0, %v2863
        %v2865 = vpop.f32.mrf.mxu0
        %v2866 = vadd.f32 0.0, %v2865
        %2867 = vmatmul.bf16.gmra.mxu0 %v1757
        %v2868 = vpop.f32.mrf.mxu0
        %v2869 = vpop.f32.mrf.mxu0
        %2870 = vmatmul.bf16.gmra.mxu0 %v1784
        %v2871 = vpop.f32.mrf.mxu0
        %v2872 = vadd.f32 0.0, %v2871
        %v2873 = vpop.f32.mrf.mxu0
        %v2874 = vadd.f32 0.0, %v2873
        %2875 = vmatmul.bf16.gmra.mxu0 %v1811
        %v2876 = vpop.f32.mrf.mxu0
        %v2877 = vpop.f32.mrf.mxu0
        %2878 = vmatmul.bf16.gmra.mxu0 %v1838
        %v2879 = vpop.f32.mrf.mxu0
        %v2880 = vadd.f32 0.0, %v2879
        %v2881 = vpop.f32.mrf.mxu0
        %v2882 = vadd.f32 0.0, %v2881
        %2883 = vmatmul.bf16.gmra.mxu0 %v1865
        %v2884 = vpop.f32.mrf.mxu0
        %v2885 = vpop.f32.mrf.mxu0
        %2886 = vmatmul.bf16.gmra.mxu0 %v1892
        %v2887 = vpop.f32.mrf.mxu0
        %v2888 = vadd.f32 0.0, %v2887
        %v2889 = vpop.f32.mrf.mxu0
        %v2890 = vadd.f32 0.0, %v2889
        %2891 = vmatmul.bf16.gmra.mxu0 %v1919
        %v2892 = vpop.f32.mrf.mxu0
        %v2893 = vpop.f32.mrf.mxu0
        %2894 = vmatmul.bf16.gmra.mxu0 %v1946
        %v2895 = vpop.f32.mrf.mxu0
        %v2896 = vadd.f32 0.0, %v2895
        %v2897 = vpop.f32.mrf.mxu0
        %v2898 = vadd.f32 0.0, %v2897
        %2899 = vmatmul.bf16.gmra.mxu0 %v1973
        %v2900 = vpop.f32.mrf.mxu0
        %v2901 = vpop.f32.mrf.mxu0
        %2902 = vmatmul.bf16.gmra.mxu0 %v2000
        %v2903 = vpop.f32.mrf.mxu0
        %v2904 = vadd.f32 0.0, %v2903
        %v2905 = vpop.f32.mrf.mxu0
        %v2906 = vadd.f32 0.0, %v2905
        %2907 = vmatmul.bf16.gmra.mxu0 %v2027
        %v2908 = vpop.f32.mrf.mxu0
        %v2909 = vpop.f32.mrf.mxu0
        %2910 = vmatmul.bf16.gmra.mxu0 %v2054
        %v2911 = vpop.f32.mrf.mxu0
        %v2912 = vadd.f32 0.0, %v2911
        %v2913 = vpop.f32.mrf.mxu0
        %v2914 = vadd.f32 0.0, %v2913
        %2915 = vmatmul.bf16.gmra.mxu0 %v2081
        %v2916 = vpop.f32.mrf.mxu0
        %v2917 = vpop.f32.mrf.mxu0
        %2918 = vmatmul.bf16.gmra.mxu0 %v2108
        %v2919 = vpop.f32.mrf.mxu0
        %v2920 = vadd.f32 0.0, %v2919
        %v2921 = vpop.f32.mrf.mxu0
        %v2922 = vadd.f32 0.0, %v2921
        %2923 = vmatmul.bf16.gmra.mxu0 %v2135
        %v2924 = vpop.f32.mrf.mxu0
        %v2925 = vpop.f32.mrf.mxu0
        %2926 = vmatmul.bf16.gmra.mxu0 %v2162
        %v2927 = vpop.f32.mrf.mxu0
        %v2928 = vadd.f32 0.0, %v2927
        %v2929 = vpop.f32.mrf.mxu0
        %v2930 = vadd.f32 0.0, %v2929
        %2931 = vmatmul.bf16.gmra.mxu0 %v2189
        %v2932 = vpop.f32.mrf.mxu0
        %v2933 = vpop.f32.mrf.mxu0
        %2934 = vmatmul.bf16.gmra.mxu0 %v2216
        %v2935 = vpop.f32.mrf.mxu0
        %v2936 = vadd.f32 0.0, %v2935
        %v2937 = vpop.f32.mrf.mxu0
        %v2938 = vadd.f32 0.0, %v2937
        %2939 = vmatmul.bf16.gmra.mxu0 %v2243
        %v2940 = vpop.f32.mrf.mxu0
        %v2941 = vpop.f32.mrf.mxu0
        %2942 = vmatmul.bf16.gmra.mxu0 %v2270
        %v2943 = vpop.f32.mrf.mxu0
        %v2944 = vadd.f32 0.0, %v2943
        %v2945 = vpop.f32.mrf.mxu0
        %v2946 = vadd.f32 0.0, %v2945
        %2947 = vmatmul.bf16.gmra.mxu0 %v2297
        %v2948 = vpop.f32.mrf.mxu0
        %v2949 = vpop.f32.mrf.mxu0
        %2950 = vmatmul.bf16.gmra.mxu0 %v2324
        %v2951 = vpop.f32.mrf.mxu0
        %v2952 = vadd.f32 0.0, %v2951
        %v2953 = vpop.f32.mrf.mxu0
        %v2954 = vadd.f32 0.0, %v2953
        %2955 = vmatmul.bf16.gmra.mxu0 %v2351
        %v2956 = vpop.f32.mrf.mxu0
        %v2957 = vpop.f32.mrf.mxu0
        %2958 = vmatmul.bf16.gmra.mxu0 %v2378
        %v2959 = vpop.f32.mrf.mxu0
        %v2960 = vadd.f32 0.0, %v2959
        %v2961 = vpop.f32.mrf.mxu0
        %v2962 = vadd.f32 0.0, %v2961
        %2963 = vmatmul.bf16.gmra.mxu0 %v2405
        %v2964 = vpop.f32.mrf.mxu0
        %v2965 = vpop.f32.mrf.mxu0
        %2966 = vmatmul.bf16.gmra.mxu0 %v2432
        %v2967 = vpop.f32.mrf.mxu0
        %v2968 = vadd.f32 0.0, %v2967
        %v2969 = vpop.f32.mrf.mxu0
        %v2970 = vadd.f32 0.0, %v2969
        %2971 = vmatmul.bf16.gmra.mxu0 %v2459
        %v2972 = vpop.f32.mrf.mxu0
        %v2973 = vpop.f32.mrf.mxu0
        %2974 = vmatmul.bf16.gmra.mxu0 %v2486
        %v2975 = vpop.f32.mrf.mxu0
        %v2976 = vadd.f32 0.0, %v2975
        %v2977 = vpop.f32.mrf.mxu0
        %v2978 = vadd.f32 0.0, %v2977
        %2979 = vmatmul.bf16.gmra.mxu0 %v2513
        %v2980 = vpop.f32.mrf.mxu0
        %v2981 = vpop.f32.mrf.mxu0
        %2982 = vmatmul.bf16.gmra.mxu0 %v2540
        %v2983 = vpop.f32.mrf.mxu0
        %v2984 = vadd.f32 0.0, %v2983
        %v2985 = vpop.f32.mrf.mxu0
        %v2986 = vadd.f32 0.0, %v2985
        %2987 = vmatmul.bf16.gmra.mxu0 %v2567
        %v2988 = vpop.f32.mrf.mxu0
        %v2989 = vpop.f32.mrf.mxu0
        %2990 = vdwg.mxu0
        %2991 = vmatpush.bf16.msra.mxu0 %v2805
        %2992 = vmatpush.bf16.msra.mxu0 %v2804
        %2993 = vmatpush.bf16.msra.mxu0 %v2803
        %2994 = vmatpush.bf16.msra.mxu0 %v2802
        %2995 = vmatpush.bf16.msra.mxu0 %v2801
        %2996 = vmatpush.bf16.msra.mxu0 %v2800
        %2997 = vmatpush.bf16.msra.mxu0 %v2799
        %2998 = vmatpush.bf16.msra.mxu0 %v2798
        %2999 = vmatmul.bf16.gmra.mxu0 %v1623
        %v3000 = vpop.f32.mrf.mxu0
        %v3001 = vadd.f32 %v2848, %v3000
        %v3002 = vpop.f32.mrf.mxu0
        %v3003 = vadd.f32 %v2850, %v3002
        %3004 = vmatmul.bf16.gmra.mxu0 %v1658
        %v3005 = vpop.f32.mrf.mxu0
        %v3006 = vpop.f32.mrf.mxu0
        %3007 = vmatmul.bf16.gmra.mxu0 %v1685
        %v3008 = vpop.f32.mrf.mxu0
        %v3009 = vadd.f32 %v2856, %v3008
        %v3010 = vpop.f32.mrf.mxu0
        %v3011 = vadd.f32 %v2858, %v3010
        %3012 = vmatmul.bf16.gmra.mxu0 %v1712
        %v3013 = vpop.f32.mrf.mxu0
        %v3014 = vpop.f32.mrf.mxu0
        %3015 = vmatmul.bf16.gmra.mxu0 %v1739
        %v3016 = vpop.f32.mrf.mxu0
        %v3017 = vadd.f32 %v2864, %v3016
        %v3018 = vpop.f32.mrf.mxu0
        %v3019 = vadd.f32 %v2866, %v3018
        %3020 = vmatmul.bf16.gmra.mxu0 %v1766
        %v3021 = vpop.f32.mrf.mxu0
        %v3022 = vpop.f32.mrf.mxu0
        %3023 = vmatmul.bf16.gmra.mxu0 %v1793
        %v3024 = vpop.f32.mrf.mxu0
        %v3025 = vadd.f32 %v2872, %v3024
        %v3026 = vpop.f32.mrf.mxu0
        %v3027 = vadd.f32 %v2874, %v3026
        %3028 = vmatmul.bf16.gmra.mxu0 %v1820
        %v3029 = vpop.f32.mrf.mxu0
        %v3030 = vpop.f32.mrf.mxu0
        %3031 = vmatmul.bf16.gmra.mxu0 %v1847
        %v3032 = vpop.f32.mrf.mxu0
        %v3033 = vadd.f32 %v2880, %v3032
        %v3034 = vpop.f32.mrf.mxu0
        %v3035 = vadd.f32 %v2882, %v3034
        %3036 = vmatmul.bf16.gmra.mxu0 %v1874
        %v3037 = vpop.f32.mrf.mxu0
        %v3038 = vpop.f32.mrf.mxu0
        %3039 = vmatmul.bf16.gmra.mxu0 %v1901
        %v3040 = vpop.f32.mrf.mxu0
        %v3041 = vadd.f32 %v2888, %v3040
        %v3042 = vpop.f32.mrf.mxu0
        %v3043 = vadd.f32 %v2890, %v3042
        %3044 = vmatmul.bf16.gmra.mxu0 %v1928
        %v3045 = vpop.f32.mrf.mxu0
        %v3046 = vpop.f32.mrf.mxu0
        %3047 = vmatmul.bf16.gmra.mxu0 %v1955
        %v3048 = vpop.f32.mrf.mxu0
        %v3049 = vadd.f32 %v2896, %v3048
        %v3050 = vpop.f32.mrf.mxu0
        %v3051 = vadd.f32 %v2898, %v3050
        %3052 = vmatmul.bf16.gmra.mxu0 %v1982
        %v3053 = vpop.f32.mrf.mxu0
        %v3054 = vpop.f32.mrf.mxu0
        %3055 = vmatmul.bf16.gmra.mxu0 %v2009
        %v3056 = vpop.f32.mrf.mxu0
        %v3057 = vadd.f32 %v2904, %v3056
        %v3058 = vpop.f32.mrf.mxu0
        %v3059 = vadd.f32 %v2906, %v3058
        %3060 = vmatmul.bf16.gmra.mxu0 %v2036
        %v3061 = vpop.f32.mrf.mxu0
        %v3062 = vpop.f32.mrf.mxu0
        %3063 = vmatmul.bf16.gmra.mxu0 %v2063
        %v3064 = vpop.f32.mrf.mxu0
        %v3065 = vadd.f32 %v2912, %v3064
        %v3066 = vpop.f32.mrf.mxu0
        %v3067 = vadd.f32 %v2914, %v3066
        %3068 = vmatmul.bf16.gmra.mxu0 %v2090
        %v3069 = vpop.f32.mrf.mxu0
        %v3070 = vpop.f32.mrf.mxu0
        %3071 = vmatmul.bf16.gmra.mxu0 %v2117
        %v3072 = vpop.f32.mrf.mxu0
        %v3073 = vadd.f32 %v2920, %v3072
        %v3074 = vpop.f32.mrf.mxu0
        %v3075 = vadd.f32 %v2922, %v3074
        %3076 = vmatmul.bf16.gmra.mxu0 %v2144
        %v3077 = vpop.f32.mrf.mxu0
        %v3078 = vpop.f32.mrf.mxu0
        %3079 = vmatmul.bf16.gmra.mxu0 %v2171
        %v3080 = vpop.f32.mrf.mxu0
        %v3081 = vadd.f32 %v2928, %v3080
        %v3082 = vpop.f32.mrf.mxu0
        %v3083 = vadd.f32 %v2930, %v3082
        %3084 = vmatmul.bf16.gmra.mxu0 %v2198
        %v3085 = vpop.f32.mrf.mxu0
        %v3086 = vpop.f32.mrf.mxu0
        %3087 = vmatmul.bf16.gmra.mxu0 %v2225
        %v3088 = vpop.f32.mrf.mxu0
        %v3089 = vadd.f32 %v2936, %v3088
        %v3090 = vpop.f32.mrf.mxu0
        %v3091 = vadd.f32 %v2938, %v3090
        %3092 = vmatmul.bf16.gmra.mxu0 %v2252
        %v3093 = vpop.f32.mrf.mxu0
        %v3094 = vpop.f32.mrf.mxu0
        %3095 = vmatmul.bf16.gmra.mxu0 %v2279
        %v3096 = vpop.f32.mrf.mxu0
        %v3097 = vadd.f32 %v2944, %v3096
        %v3098 = vpop.f32.mrf.mxu0
        %v3099 = vadd.f32 %v2946, %v3098
        %3100 = vmatmul.bf16.gmra.mxu0 %v2306
        %v3101 = vpop.f32.mrf.mxu0
        %v3102 = vpop.f32.mrf.mxu0
        %3103 = vmatmul.bf16.gmra.mxu0 %v2333
        %v3104 = vpop.f32.mrf.mxu0
        %v3105 = vadd.f32 %v2952, %v3104
        %v3106 = vpop.f32.mrf.mxu0
        %v3107 = vadd.f32 %v2954, %v3106
        %3108 = vmatmul.bf16.gmra.mxu0 %v2360
        %v3109 = vpop.f32.mrf.mxu0
        %v3110 = vpop.f32.mrf.mxu0
        %3111 = vmatmul.bf16.gmra.mxu0 %v2387
        %v3112 = vpop.f32.mrf.mxu0
        %v3113 = vadd.f32 %v2960, %v3112
        %v3114 = vpop.f32.mrf.mxu0
        %v3115 = vadd.f32 %v2962, %v3114
        %3116 = vmatmul.bf16.gmra.mxu0 %v2414
        %v3117 = vpop.f32.mrf.mxu0
        %v3118 = vpop.f32.mrf.mxu0
        %3119 = vmatmul.bf16.gmra.mxu0 %v2441
        %v3120 = vpop.f32.mrf.mxu0
        %v3121 = vadd.f32 %v2968, %v3120
        %v3122 = vpop.f32.mrf.mxu0
        %v3123 = vadd.f32 %v2970, %v3122
        %3124 = vmatmul.bf16.gmra.mxu0 %v2468
        %v3125 = vpop.f32.mrf.mxu0
        %v3126 = vpop.f32.mrf.mxu0
        %3127 = vmatmul.bf16.gmra.mxu0 %v2495
        %v3128 = vpop.f32.mrf.mxu0
        %v3129 = vadd.f32 %v2976, %v3128
        %v3130 = vpop.f32.mrf.mxu0
        %v3131 = vadd.f32 %v2978, %v3130
        %3132 = vmatmul.bf16.gmra.mxu0 %v2522
        %v3133 = vpop.f32.mrf.mxu0
        %v3134 = vpop.f32.mrf.mxu0
        %3135 = vmatmul.bf16.gmra.mxu0 %v2549
        %v3136 = vpop.f32.mrf.mxu0
        %v3137 = vadd.f32 %v2984, %v3136
        %v3138 = vpop.f32.mrf.mxu0
        %v3139 = vadd.f32 %v2986, %v3138
        %3140 = vmatmul.bf16.gmra.mxu0 %v2576
        %v3141 = vpop.f32.mrf.mxu0
        %v3142 = vpop.f32.mrf.mxu0
        %3143 = vdwg.mxu0
        %3144 = vmatpush.bf16.msra.mxu0 %v2813
        %3145 = vmatpush.bf16.msra.mxu0 %v2812
        %3146 = vmatpush.bf16.msra.mxu0 %v2811
        %3147 = vmatpush.bf16.msra.mxu0 %v2810
        %3148 = vmatpush.bf16.msra.mxu0 %v2809
        %3149 = vmatpush.bf16.msra.mxu0 %v2808
        %3150 = vmatpush.bf16.msra.mxu0 %v2807
        %3151 = vmatpush.bf16.msra.mxu0 %v2806
        %3152 = vmatmul.bf16.gmra.mxu0 %v1640
        %v3153 = vpop.f32.mrf.mxu0
        %v3154 = vadd.f32 %v3001, %v3153
        %v3155 = vpop.f32.mrf.mxu0
        %v3156 = vadd.f32 %v3003, %v3155
        %3157 = vmatmul.bf16.gmra.mxu0 %v1667
        %v3158 = vpop.f32.mrf.mxu0
        %v3159 = vpop.f32.mrf.mxu0
        %3160 = vmatmul.bf16.gmra.mxu0 %v1694
        %v3161 = vpop.f32.mrf.mxu0
        %v3162 = vadd.f32 %v3009, %v3161
        %v3163 = vpop.f32.mrf.mxu0
        %v3164 = vadd.f32 %v3011, %v3163
        %3165 = vmatmul.bf16.gmra.mxu0 %v1721
        %v3166 = vpop.f32.mrf.mxu0
        %v3167 = vpop.f32.mrf.mxu0
        %3168 = vmatmul.bf16.gmra.mxu0 %v1748
        %v3169 = vpop.f32.mrf.mxu0
        %v3170 = vadd.f32 %v3017, %v3169
        %v3171 = vpop.f32.mrf.mxu0
        %v3172 = vadd.f32 %v3019, %v3171
        %3173 = vmatmul.bf16.gmra.mxu0 %v1775
        %v3174 = vpop.f32.mrf.mxu0
        %v3175 = vpop.f32.mrf.mxu0
        %3176 = vmatmul.bf16.gmra.mxu0 %v1802
        %v3177 = vpop.f32.mrf.mxu0
        %v3178 = vadd.f32 %v3025, %v3177
        %v3179 = vpop.f32.mrf.mxu0
        %v3180 = vadd.f32 %v3027, %v3179
        %3181 = vmatmul.bf16.gmra.mxu0 %v1829
        %v3182 = vpop.f32.mrf.mxu0
        %v3183 = vpop.f32.mrf.mxu0
        %3184 = vmatmul.bf16.gmra.mxu0 %v1856
        %v3185 = vpop.f32.mrf.mxu0
        %v3186 = vadd.f32 %v3033, %v3185
        %v3187 = vpop.f32.mrf.mxu0
        %v3188 = vadd.f32 %v3035, %v3187
        %3189 = vmatmul.bf16.gmra.mxu0 %v1883
        %v3190 = vpop.f32.mrf.mxu0
        %v3191 = vpop.f32.mrf.mxu0
        %3192 = vmatmul.bf16.gmra.mxu0 %v1910
        %v3193 = vpop.f32.mrf.mxu0
        %v3194 = vadd.f32 %v3041, %v3193
        %v3195 = vpop.f32.mrf.mxu0
        %v3196 = vadd.f32 %v3043, %v3195
        %3197 = vmatmul.bf16.gmra.mxu0 %v1937
        %v3198 = vpop.f32.mrf.mxu0
        %v3199 = vpop.f32.mrf.mxu0
        %3200 = vmatmul.bf16.gmra.mxu0 %v1964
        %v3201 = vpop.f32.mrf.mxu0
        %v3202 = vadd.f32 %v3049, %v3201
        %v3203 = vpop.f32.mrf.mxu0
        %v3204 = vadd.f32 %v3051, %v3203
        %3205 = vmatmul.bf16.gmra.mxu0 %v1991
        %v3206 = vpop.f32.mrf.mxu0
        %v3207 = vpop.f32.mrf.mxu0
        %3208 = vmatmul.bf16.gmra.mxu0 %v2018
        %v3209 = vpop.f32.mrf.mxu0
        %v3210 = vadd.f32 %v3057, %v3209
        %v3211 = vpop.f32.mrf.mxu0
        %v3212 = vadd.f32 %v3059, %v3211
        %3213 = vmatmul.bf16.gmra.mxu0 %v2045
        %v3214 = vpop.f32.mrf.mxu0
        %v3215 = vpop.f32.mrf.mxu0
        %3216 = vmatmul.bf16.gmra.mxu0 %v2072
        %v3217 = vpop.f32.mrf.mxu0
        %v3218 = vadd.f32 %v3065, %v3217
        %v3219 = vpop.f32.mrf.mxu0
        %v3220 = vadd.f32 %v3067, %v3219
        %3221 = vmatmul.bf16.gmra.mxu0 %v2099
        %v3222 = vpop.f32.mrf.mxu0
        %v3223 = vpop.f32.mrf.mxu0
        %3224 = vmatmul.bf16.gmra.mxu0 %v2126
        %v3225 = vpop.f32.mrf.mxu0
        %v3226 = vadd.f32 %v3073, %v3225
        %v3227 = vpop.f32.mrf.mxu0
        %v3228 = vadd.f32 %v3075, %v3227
        %3229 = vmatmul.bf16.gmra.mxu0 %v2153
        %v3230 = vpop.f32.mrf.mxu0
        %v3231 = vpop.f32.mrf.mxu0
        %3232 = vmatmul.bf16.gmra.mxu0 %v2180
        %v3233 = vpop.f32.mrf.mxu0
        %v3234 = vadd.f32 %v3081, %v3233
        %v3235 = vpop.f32.mrf.mxu0
        %v3236 = vadd.f32 %v3083, %v3235
        %3237 = vmatmul.bf16.gmra.mxu0 %v2207
        %v3238 = vpop.f32.mrf.mxu0
        %v3239 = vpop.f32.mrf.mxu0
        %3240 = vmatmul.bf16.gmra.mxu0 %v2234
        %v3241 = vpop.f32.mrf.mxu0
        %v3242 = vadd.f32 %v3089, %v3241
        %v3243 = vpop.f32.mrf.mxu0
        %v3244 = vadd.f32 %v3091, %v3243
        %3245 = vmatmul.bf16.gmra.mxu0 %v2261
        %v3246 = vpop.f32.mrf.mxu0
        %v3247 = vpop.f32.mrf.mxu0
        %3248 = vmatmul.bf16.gmra.mxu0 %v2288
        %v3249 = vpop.f32.mrf.mxu0
        %v3250 = vadd.f32 %v3097, %v3249
        %v3251 = vpop.f32.mrf.mxu0
        %v3252 = vadd.f32 %v3099, %v3251
        %3253 = vmatmul.bf16.gmra.mxu0 %v2315
        %v3254 = vpop.f32.mrf.mxu0
        %v3255 = vpop.f32.mrf.mxu0
        %3256 = vmatmul.bf16.gmra.mxu0 %v2342
        %v3257 = vpop.f32.mrf.mxu0
        %v3258 = vadd.f32 %v3105, %v3257
        %v3259 = vpop.f32.mrf.mxu0
        %v3260 = vadd.f32 %v3107, %v3259
        %3261 = vmatmul.bf16.gmra.mxu0 %v2369
        %v3262 = vpop.f32.mrf.mxu0
        %v3263 = vpop.f32.mrf.mxu0
        %3264 = vmatmul.bf16.gmra.mxu0 %v2396
        %v3265 = vpop.f32.mrf.mxu0
        %v3266 = vadd.f32 %v3113, %v3265
        %v3267 = vpop.f32.mrf.mxu0
        %v3268 = vadd.f32 %v3115, %v3267
        %3269 = vmatmul.bf16.gmra.mxu0 %v2423
        %v3270 = vpop.f32.mrf.mxu0
        %v3271 = vpop.f32.mrf.mxu0
        %3272 = vmatmul.bf16.gmra.mxu0 %v2450
        %v3273 = vpop.f32.mrf.mxu0
        %v3274 = vadd.f32 %v3121, %v3273
        %v3275 = vpop.f32.mrf.mxu0
        %v3276 = vadd.f32 %v3123, %v3275
        %3277 = vmatmul.bf16.gmra.mxu0 %v2477
        %v3278 = vpop.f32.mrf.mxu0
        %v3279 = vpop.f32.mrf.mxu0
        %3280 = vmatmul.bf16.gmra.mxu0 %v2504
        %v3281 = vpop.f32.mrf.mxu0
        %v3282 = vadd.f32 %v3129, %v3281
        %v3283 = vpop.f32.mrf.mxu0
        %v3284 = vadd.f32 %v3131, %v3283
        %3285 = vmatmul.bf16.gmra.mxu0 %v2531
        %v3286 = vpop.f32.mrf.mxu0
        %v3287 = vpop.f32.mrf.mxu0
        %3288 = vmatmul.bf16.gmra.mxu0 %v2558
        %v3289 = vpop.f32.mrf.mxu0
        %v3290 = vadd.f32 %v3137, %v3289
        %v3291 = vpop.f32.mrf.mxu0
        %v3292 = vadd.f32 %v3139, %v3291
        %3293 = vmatmul.bf16.gmra.mxu0 %v2585
        %v3294 = vpop.f32.mrf.mxu0
        %v3295 = vpop.f32.mrf.mxu0
        %3296 = vdwg.mxu0
        %v3298 = vshrl.u32 %v980, 16
        %v3300 = vrot.slane %v3298, 3
        %v3301 = vshll.u32 %v980, 16
        %v3303 = vrot.slane %v3301, 4
        %v3304 = vor.u32 %v3300, %v3303
        %v3306 = vshrl.u32 %v981, 16
        %v3308 = vrot.slane %v3306, 3
        %v3309 = vshll.u32 %v981, 16
        %v3311 = vrot.slane %v3309, 4
        %v3312 = vor.u32 %v3308, %v3311
        %v3313 = vsel %vm1589, %v3304, %v3312
        %v3315 = vshrl.u32 %v1061, 16
        %v3317 = vrot.slane %v3315, 3
        %v3318 = vshll.u32 %v1061, 16
        %v3320 = vrot.slane %v3318, 4
        %v3321 = vor.u32 %v3317, %v3320
        %v3323 = vshrl.u32 %v1070, 16
        %v3325 = vrot.slane %v3323, 3
        %v3326 = vshll.u32 %v1070, 16
        %v3328 = vrot.slane %v3326, 4
        %v3329 = vor.u32 %v3325, %v3328
        %v3330 = vsel %vm1589, %v3321, %v3329
        %v3332 = vshrl.u32 %v1381, 16
        %v3334 = vrot.slane %v3332, 3
        %v3335 = vshll.u32 %v1381, 16
        %v3337 = vrot.slane %v3335, 4
        %v3338 = vor.u32 %v3334, %v3337
        %v3340 = vshrl.u32 %v1383, 16
        %v3342 = vrot.slane %v3340, 3
        %v3343 = vshll.u32 %v1383, 16
        %v3345 = vrot.slane %v3343, 4
        %v3346 = vor.u32 %v3342, %v3345
        %v3347 = vsel %vm1589, %v3338, %v3346
        %v3348 = vsel %vm1589, %v3312, %v1597
        %v3350 = vshrl.u32 %v1079, 16
        %v3352 = vrot.slane %v3350, 3
        %v3353 = vshll.u32 %v1079, 16
        %v3355 = vrot.slane %v3353, 4
        %v3356 = vor.u32 %v3352, %v3355
        %v3357 = vsel %vm1589, %v3329, %v3356
        %v3359 = vshrl.u32 %v1385, 16
        %v3361 = vrot.slane %v3359, 3
        %v3362 = vshll.u32 %v1385, 16
        %v3364 = vrot.slane %v3362, 4
        %v3365 = vor.u32 %v3361, %v3364
        %v3366 = vsel %vm1589, %v3346, %v3365
        %v3367 = vsel %vm1589, %v3356, %v1622
        %v3368 = vsel %vm1589, %v3365, %v1639
        %v3370 = vshrl.u32 %v1016, 16
        %v3372 = vrot.slane %v3370, 3
        %v3373 = vshll.u32 %v1016, 16
        %v3375 = vrot.slane %v3373, 4
        %v3376 = vor.u32 %v3372, %v3375
        %v3377 = vsel %vm1589, %v2485, %v3376
        %v3379 = vshrl.u32 %v1375, 16
        %v3381 = vrot.slane %v3379, 3
        %v3382 = vshll.u32 %v1375, 16
        %v3384 = vrot.slane %v3382, 4
        %v3385 = vor.u32 %v3381, %v3384
        %v3386 = vsel %vm1589, %v2494, %v3385
        %v3388 = vshrl.u32 %v1453, 16
        %v3390 = vrot.slane %v3388, 3
        %v3391 = vshll.u32 %v1453, 16
        %v3393 = vrot.slane %v3391, 4
        %v3394 = vor.u32 %v3390, %v3393
        %v3395 = vsel %vm1589, %v2503, %v3394
        %v3455 = vunpack.c.l.b16 %v1454
        %v3456 = vunpack.c.l.b16 %v1455
        %v3457 = vunpack.c.l.b16 %v1456
        %v3458 = vunpack.c.l.b16 %v1457
        %v3459 = vunpack.c.l.b16 %v1458
        %v3460 = vunpack.c.l.b16 %v1459
        %v3461 = vunpack.c.l.b16 %v1460
        %v3462 = vunpack.c.l.b16 %v1461
        %v3463 = vunpack.c.l.b16 %v1462
        %v3464 = vunpack.c.l.b16 %v1463
        %v3465 = vunpack.c.l.b16 %v1464
        %v3466 = vunpack.c.l.b16 %v1465
        %v3467 = vunpack.c.l.b16 %v1466
        %v3468 = vunpack.c.l.b16 %v1467
        %v3469 = vunpack.c.l.b16 %v1468
        %v3470 = vunpack.c.l.b16 %v1469
        %v3471 = vunpack.c.l.b16 %v1470
        %v3472 = vunpack.c.l.b16 %v1471
        %v3473 = vunpack.c.l.b16 %v1472
        %v3474 = vunpack.c.l.b16 %v1473
        %v3475 = vunpack.c.l.b16 %v1474
        %v3476 = vunpack.c.l.b16 %v1475
        %v3477 = vunpack.c.l.b16 %v1476
        %v3478 = vunpack.c.l.b16 %v1477
        %v3479 = vunpack.c.l.b16 %v1478
        %v3480 = vunpack.c.l.b16 %v1479
        %v3481 = vunpack.c.l.b16 %v1480
        %v3482 = vunpack.c.l.b16 %v1481
        %v3483 = vunpack.c.l.b16 %v1482
        %v3484 = vunpack.c.l.b16 %v1483
        %v3485 = vunpack.c.l.b16 %v1484
        %v3486 = vunpack.c.l.b16 %v1485
        %v3487 = vunpack.c.l.b16 %v1486
        %v3488 = vunpack.c.l.b16 %v1487
        %v3489 = vunpack.c.l.b16 %v1488
        %v3490 = vunpack.c.l.b16 %v1489
        %v3491 = vunpack.c.l.b16 %v1490
        %v3492 = vunpack.c.l.b16 %v1491
        %v3493 = vunpack.c.l.b16 %v1492
        %v3494 = vunpack.c.l.b16 %v1493
        %v3495 = vunpack.c.l.b16 %v1494
        %v3496 = vunpack.c.l.b16 %v1495
        %v3497 = vunpack.c.l.b16 %v1496
        %v3498 = vunpack.c.l.b16 %v1497
        %v3499 = vunpack.c.l.b16 %v1498
        %v3500 = vunpack.c.l.b16 %v1499
        %v3501 = vunpack.c.l.b16 %v1500
        %v3502 = vunpack.c.l.b16 %v1501
        %v3503 = vpack.c.b16 %v3456, %v3455
        %v3504 = vpack.c.b16 %v3458, %v3457
        %v3505 = vpack.c.b16 %v3460, %v3459
        %v3506 = vpack.c.b16 %v3462, %v3461
        %v3507 = vpack.c.b16 %v3464, %v3463
        %v3508 = vpack.c.b16 %v3466, %v3465
        %v3509 = vpack.c.b16 %v3468, %v3467
        %v3510 = vpack.c.b16 %v3470, %v3469
        %v3511 = vpack.c.b16 %v3472, %v3471
        %v3512 = vpack.c.b16 %v3474, %v3473
        %v3513 = vpack.c.b16 %v3476, %v3475
        %v3514 = vpack.c.b16 %v3478, %v3477
        %v3515 = vpack.c.b16 %v3480, %v3479
        %v3516 = vpack.c.b16 %v3482, %v3481
        %v3517 = vpack.c.b16 %v3484, %v3483
        %v3518 = vpack.c.b16 %v3486, %v3485
        %v3519 = vpack.c.b16 %v3488, %v3487
        %v3520 = vpack.c.b16 %v3490, %v3489
        %v3521 = vpack.c.b16 %v3492, %v3491
        %v3522 = vpack.c.b16 %v3494, %v3493
        %v3523 = vpack.c.b16 %v3496, %v3495
        %v3524 = vpack.c.b16 %v3498, %v3497
        %v3525 = vpack.c.b16 %v3500, %v3499
        %v3526 = vpack.c.b16 %v3502, %v3501
        %3551 = vmatpush.bf16.msra.mxu0 %v3510
        %3552 = vmatpush.bf16.msra.mxu0 %v3509
        %3553 = vmatpush.bf16.msra.mxu0 %v3508
        %3554 = vmatpush.bf16.msra.mxu0 %v3507
        %3555 = vmatpush.bf16.msra.mxu0 %v3506
        %3556 = vmatpush.bf16.msra.mxu0 %v3505
        %3557 = vmatpush.bf16.msra.mxu0 %v3504
        %3558 = vmatpush.bf16.msra.mxu0 %v3503
        %3559 = vmatmul.bf16.gmra.mxu0 %v3313
        %v3560 = vpop.f32.mrf.mxu0
        %v3561 = vadd.f32 %v3154, %v3560
        %v3562 = vpop.f32.mrf.mxu0
        %v3563 = vadd.f32 %v3156, %v3562
        %3564 = vmatmul.bf16.gmra.mxu0 %v3348
        %v3565 = vpop.f32.mrf.mxu0
        %v3566 = vpop.f32.mrf.mxu0
        %3567 = vmatmul.bf16.gmra.mxu0 %v1606
        %v3568 = vpop.f32.mrf.mxu0
        %v3569 = vadd.f32 %v3162, %v3568
        %v3570 = vpop.f32.mrf.mxu0
        %v3571 = vadd.f32 %v3164, %v3570
        %3572 = vmatmul.bf16.gmra.mxu0 %v1649
        %v3573 = vpop.f32.mrf.mxu0
        %v3574 = vpop.f32.mrf.mxu0
        %3575 = vmatmul.bf16.gmra.mxu0 %v1676
        %v3576 = vpop.f32.mrf.mxu0
        %v3577 = vadd.f32 %v3170, %v3576
        %v3578 = vpop.f32.mrf.mxu0
        %v3579 = vadd.f32 %v3172, %v3578
        %3580 = vmatmul.bf16.gmra.mxu0 %v1703
        %v3581 = vpop.f32.mrf.mxu0
        %v3582 = vpop.f32.mrf.mxu0
        %3583 = vmatmul.bf16.gmra.mxu0 %v1730
        %v3584 = vpop.f32.mrf.mxu0
        %v3585 = vadd.f32 %v3178, %v3584
        %v3586 = vpop.f32.mrf.mxu0
        %v3587 = vadd.f32 %v3180, %v3586
        %3588 = vmatmul.bf16.gmra.mxu0 %v1757
        %v3589 = vpop.f32.mrf.mxu0
        %v3590 = vpop.f32.mrf.mxu0
        %3591 = vmatmul.bf16.gmra.mxu0 %v1784
        %v3592 = vpop.f32.mrf.mxu0
        %v3593 = vadd.f32 %v3186, %v3592
        %v3594 = vpop.f32.mrf.mxu0
        %v3595 = vadd.f32 %v3188, %v3594
        %3596 = vmatmul.bf16.gmra.mxu0 %v1811
        %v3597 = vpop.f32.mrf.mxu0
        %v3598 = vpop.f32.mrf.mxu0
        %3599 = vmatmul.bf16.gmra.mxu0 %v1838
        %v3600 = vpop.f32.mrf.mxu0
        %v3601 = vadd.f32 %v3194, %v3600
        %v3602 = vpop.f32.mrf.mxu0
        %v3603 = vadd.f32 %v3196, %v3602
        %3604 = vmatmul.bf16.gmra.mxu0 %v1865
        %v3605 = vpop.f32.mrf.mxu0
        %v3606 = vpop.f32.mrf.mxu0
        %3607 = vmatmul.bf16.gmra.mxu0 %v1892
        %v3608 = vpop.f32.mrf.mxu0
        %v3609 = vadd.f32 %v3202, %v3608
        %v3610 = vpop.f32.mrf.mxu0
        %v3611 = vadd.f32 %v3204, %v3610
        %3612 = vmatmul.bf16.gmra.mxu0 %v1919
        %v3613 = vpop.f32.mrf.mxu0
        %v3614 = vpop.f32.mrf.mxu0
        %3615 = vmatmul.bf16.gmra.mxu0 %v1946
        %v3616 = vpop.f32.mrf.mxu0
        %v3617 = vadd.f32 %v3210, %v3616
        %v3618 = vpop.f32.mrf.mxu0
        %v3619 = vadd.f32 %v3212, %v3618
        %3620 = vmatmul.bf16.gmra.mxu0 %v1973
        %v3621 = vpop.f32.mrf.mxu0
        %v3622 = vpop.f32.mrf.mxu0
        %3623 = vmatmul.bf16.gmra.mxu0 %v2000
        %v3624 = vpop.f32.mrf.mxu0
        %v3625 = vadd.f32 %v3218, %v3624
        %v3626 = vpop.f32.mrf.mxu0
        %v3627 = vadd.f32 %v3220, %v3626
        %3628 = vmatmul.bf16.gmra.mxu0 %v2027
        %v3629 = vpop.f32.mrf.mxu0
        %v3630 = vpop.f32.mrf.mxu0
        %3631 = vmatmul.bf16.gmra.mxu0 %v2054
        %v3632 = vpop.f32.mrf.mxu0
        %v3633 = vadd.f32 %v3226, %v3632
        %v3634 = vpop.f32.mrf.mxu0
        %v3635 = vadd.f32 %v3228, %v3634
        %3636 = vmatmul.bf16.gmra.mxu0 %v2081
        %v3637 = vpop.f32.mrf.mxu0
        %v3638 = vpop.f32.mrf.mxu0
        %3639 = vmatmul.bf16.gmra.mxu0 %v2108
        %v3640 = vpop.f32.mrf.mxu0
        %v3641 = vadd.f32 %v3234, %v3640
        %v3642 = vpop.f32.mrf.mxu0
        %v3643 = vadd.f32 %v3236, %v3642
        %3644 = vmatmul.bf16.gmra.mxu0 %v2135
        %v3645 = vpop.f32.mrf.mxu0
        %v3646 = vpop.f32.mrf.mxu0
        %3647 = vmatmul.bf16.gmra.mxu0 %v2162
        %v3648 = vpop.f32.mrf.mxu0
        %v3649 = vadd.f32 %v3242, %v3648
        %v3650 = vpop.f32.mrf.mxu0
        %v3651 = vadd.f32 %v3244, %v3650
        %3652 = vmatmul.bf16.gmra.mxu0 %v2189
        %v3653 = vpop.f32.mrf.mxu0
        %v3654 = vpop.f32.mrf.mxu0
        %3655 = vmatmul.bf16.gmra.mxu0 %v2216
        %v3656 = vpop.f32.mrf.mxu0
        %v3657 = vadd.f32 %v3250, %v3656
        %v3658 = vpop.f32.mrf.mxu0
        %v3659 = vadd.f32 %v3252, %v3658
        %3660 = vmatmul.bf16.gmra.mxu0 %v2243
        %v3661 = vpop.f32.mrf.mxu0
        %v3662 = vpop.f32.mrf.mxu0
        %3663 = vmatmul.bf16.gmra.mxu0 %v2270
        %v3664 = vpop.f32.mrf.mxu0
        %v3665 = vadd.f32 %v3258, %v3664
        %v3666 = vpop.f32.mrf.mxu0
        %v3667 = vadd.f32 %v3260, %v3666
        %3668 = vmatmul.bf16.gmra.mxu0 %v2297
        %v3669 = vpop.f32.mrf.mxu0
        %v3670 = vpop.f32.mrf.mxu0
        %3671 = vmatmul.bf16.gmra.mxu0 %v2324
        %v3672 = vpop.f32.mrf.mxu0
        %v3673 = vadd.f32 %v3266, %v3672
        %v3674 = vpop.f32.mrf.mxu0
        %v3675 = vadd.f32 %v3268, %v3674
        %3676 = vmatmul.bf16.gmra.mxu0 %v2351
        %v3677 = vpop.f32.mrf.mxu0
        %v3678 = vpop.f32.mrf.mxu0
        %3679 = vmatmul.bf16.gmra.mxu0 %v2378
        %v3680 = vpop.f32.mrf.mxu0
        %v3681 = vadd.f32 %v3274, %v3680
        %v3682 = vpop.f32.mrf.mxu0
        %v3683 = vadd.f32 %v3276, %v3682
        %3684 = vmatmul.bf16.gmra.mxu0 %v2405
        %v3685 = vpop.f32.mrf.mxu0
        %v3686 = vpop.f32.mrf.mxu0
        %3687 = vmatmul.bf16.gmra.mxu0 %v2432
        %v3688 = vpop.f32.mrf.mxu0
        %v3689 = vadd.f32 %v3282, %v3688
        %v3690 = vpop.f32.mrf.mxu0
        %v3691 = vadd.f32 %v3284, %v3690
        %3692 = vmatmul.bf16.gmra.mxu0 %v2459
        %v3693 = vpop.f32.mrf.mxu0
        %v3694 = vpop.f32.mrf.mxu0
        %3695 = vmatmul.bf16.gmra.mxu0 %v2486
        %v3696 = vpop.f32.mrf.mxu0
        %v3697 = vadd.f32 %v3290, %v3696
        %v3698 = vpop.f32.mrf.mxu0
        %v3699 = vadd.f32 %v3292, %v3698
        %3700 = vmatmul.bf16.gmra.mxu0 %v3377
        %v3701 = vpop.f32.mrf.mxu0
        %v3702 = vpop.f32.mrf.mxu0
        %3703 = vdwg.mxu0
        %3704 = vmatpush.bf16.msra.mxu0 %v3518
        %3705 = vmatpush.bf16.msra.mxu0 %v3517
        %3706 = vmatpush.bf16.msra.mxu0 %v3516
        %3707 = vmatpush.bf16.msra.mxu0 %v3515
        %3708 = vmatpush.bf16.msra.mxu0 %v3514
        %3709 = vmatpush.bf16.msra.mxu0 %v3513
        %3710 = vmatpush.bf16.msra.mxu0 %v3512
        %3711 = vmatpush.bf16.msra.mxu0 %v3511
        %3712 = vmatmul.bf16.gmra.mxu0 %v3330
        %v3713 = vpop.f32.mrf.mxu0
        %v3714 = vadd.f32 %v3561, %v3713
        %v3715 = vpop.f32.mrf.mxu0
        %v3716 = vadd.f32 %v3563, %v3715
        %3717 = vmatmul.bf16.gmra.mxu0 %v3357
        %v3718 = vpop.f32.mrf.mxu0
        %v3719 = vpop.f32.mrf.mxu0
        %3720 = vmatmul.bf16.gmra.mxu0 %v3367
        %v3721 = vpop.f32.mrf.mxu0
        %v3722 = vadd.f32 %v3569, %v3721
        %v3723 = vpop.f32.mrf.mxu0
        %v3724 = vadd.f32 %v3571, %v3723
        %3725 = vmatmul.bf16.gmra.mxu0 %v1658
        %v3726 = vpop.f32.mrf.mxu0
        %v3727 = vpop.f32.mrf.mxu0
        %3728 = vmatmul.bf16.gmra.mxu0 %v1685
        %v3729 = vpop.f32.mrf.mxu0
        %v3730 = vadd.f32 %v3577, %v3729
        %v3731 = vpop.f32.mrf.mxu0
        %v3732 = vadd.f32 %v3579, %v3731
        %3733 = vmatmul.bf16.gmra.mxu0 %v1712
        %v3734 = vpop.f32.mrf.mxu0
        %v3735 = vpop.f32.mrf.mxu0
        %3736 = vmatmul.bf16.gmra.mxu0 %v1739
        %v3737 = vpop.f32.mrf.mxu0
        %v3738 = vadd.f32 %v3585, %v3737
        %v3739 = vpop.f32.mrf.mxu0
        %v3740 = vadd.f32 %v3587, %v3739
        %3741 = vmatmul.bf16.gmra.mxu0 %v1766
        %v3742 = vpop.f32.mrf.mxu0
        %v3743 = vpop.f32.mrf.mxu0
        %3744 = vmatmul.bf16.gmra.mxu0 %v1793
        %v3745 = vpop.f32.mrf.mxu0
        %v3746 = vadd.f32 %v3593, %v3745
        %v3747 = vpop.f32.mrf.mxu0
        %v3748 = vadd.f32 %v3595, %v3747
        %3749 = vmatmul.bf16.gmra.mxu0 %v1820
        %v3750 = vpop.f32.mrf.mxu0
        %v3751 = vpop.f32.mrf.mxu0
        %3752 = vmatmul.bf16.gmra.mxu0 %v1847
        %v3753 = vpop.f32.mrf.mxu0
        %v3754 = vadd.f32 %v3601, %v3753
        %v3755 = vpop.f32.mrf.mxu0
        %v3756 = vadd.f32 %v3603, %v3755
        %3757 = vmatmul.bf16.gmra.mxu0 %v1874
        %v3758 = vpop.f32.mrf.mxu0
        %v3759 = vpop.f32.mrf.mxu0
        %3760 = vmatmul.bf16.gmra.mxu0 %v1901
        %v3761 = vpop.f32.mrf.mxu0
        %v3762 = vadd.f32 %v3609, %v3761
        %v3763 = vpop.f32.mrf.mxu0
        %v3764 = vadd.f32 %v3611, %v3763
        %3765 = vmatmul.bf16.gmra.mxu0 %v1928
        %v3766 = vpop.f32.mrf.mxu0
        %v3767 = vpop.f32.mrf.mxu0
        %3768 = vmatmul.bf16.gmra.mxu0 %v1955
        %v3769 = vpop.f32.mrf.mxu0
        %v3770 = vadd.f32 %v3617, %v3769
        %v3771 = vpop.f32.mrf.mxu0
        %v3772 = vadd.f32 %v3619, %v3771
        %3773 = vmatmul.bf16.gmra.mxu0 %v1982
        %v3774 = vpop.f32.mrf.mxu0
        %v3775 = vpop.f32.mrf.mxu0
        %3776 = vmatmul.bf16.gmra.mxu0 %v2009
        %v3777 = vpop.f32.mrf.mxu0
        %v3778 = vadd.f32 %v3625, %v3777
        %v3779 = vpop.f32.mrf.mxu0
        %v3780 = vadd.f32 %v3627, %v3779
        %3781 = vmatmul.bf16.gmra.mxu0 %v2036
        %v3782 = vpop.f32.mrf.mxu0
        %v3783 = vpop.f32.mrf.mxu0
        %3784 = vmatmul.bf16.gmra.mxu0 %v2063
        %v3785 = vpop.f32.mrf.mxu0
        %v3786 = vadd.f32 %v3633, %v3785
        %v3787 = vpop.f32.mrf.mxu0
        %v3788 = vadd.f32 %v3635, %v3787
        %3789 = vmatmul.bf16.gmra.mxu0 %v2090
        %v3790 = vpop.f32.mrf.mxu0
        %v3791 = vpop.f32.mrf.mxu0
        %3792 = vmatmul.bf16.gmra.mxu0 %v2117
        %v3793 = vpop.f32.mrf.mxu0
        %v3794 = vadd.f32 %v3641, %v3793
        %v3795 = vpop.f32.mrf.mxu0
        %v3796 = vadd.f32 %v3643, %v3795
        %3797 = vmatmul.bf16.gmra.mxu0 %v2144
        %v3798 = vpop.f32.mrf.mxu0
        %v3799 = vpop.f32.mrf.mxu0
        %3800 = vmatmul.bf16.gmra.mxu0 %v2171
        %v3801 = vpop.f32.mrf.mxu0
        %v3802 = vadd.f32 %v3649, %v3801
        %v3803 = vpop.f32.mrf.mxu0
        %v3804 = vadd.f32 %v3651, %v3803
        %3805 = vmatmul.bf16.gmra.mxu0 %v2198
        %v3806 = vpop.f32.mrf.mxu0
        %v3807 = vpop.f32.mrf.mxu0
        %3808 = vmatmul.bf16.gmra.mxu0 %v2225
        %v3809 = vpop.f32.mrf.mxu0
        %v3810 = vadd.f32 %v3657, %v3809
        %v3811 = vpop.f32.mrf.mxu0
        %v3812 = vadd.f32 %v3659, %v3811
        %3813 = vmatmul.bf16.gmra.mxu0 %v2252
        %v3814 = vpop.f32.mrf.mxu0
        %v3815 = vpop.f32.mrf.mxu0
        %3816 = vmatmul.bf16.gmra.mxu0 %v2279
        %v3817 = vpop.f32.mrf.mxu0
        %v3818 = vadd.f32 %v3665, %v3817
        %v3819 = vpop.f32.mrf.mxu0
        %v3820 = vadd.f32 %v3667, %v3819
        %3821 = vmatmul.bf16.gmra.mxu0 %v2306
        %v3822 = vpop.f32.mrf.mxu0
        %v3823 = vpop.f32.mrf.mxu0
        %3824 = vmatmul.bf16.gmra.mxu0 %v2333
        %v3825 = vpop.f32.mrf.mxu0
        %v3826 = vadd.f32 %v3673, %v3825
        %v3827 = vpop.f32.mrf.mxu0
        %v3828 = vadd.f32 %v3675, %v3827
        %3829 = vmatmul.bf16.gmra.mxu0 %v2360
        %v3830 = vpop.f32.mrf.mxu0
        %v3831 = vpop.f32.mrf.mxu0
        %3832 = vmatmul.bf16.gmra.mxu0 %v2387
        %v3833 = vpop.f32.mrf.mxu0
        %v3834 = vadd.f32 %v3681, %v3833
        %v3835 = vpop.f32.mrf.mxu0
        %v3836 = vadd.f32 %v3683, %v3835
        %3837 = vmatmul.bf16.gmra.mxu0 %v2414
        %v3838 = vpop.f32.mrf.mxu0
        %v3839 = vpop.f32.mrf.mxu0
        %3840 = vmatmul.bf16.gmra.mxu0 %v2441
        %v3841 = vpop.f32.mrf.mxu0
        %v3842 = vadd.f32 %v3689, %v3841
        %v3843 = vpop.f32.mrf.mxu0
        %v3844 = vadd.f32 %v3691, %v3843
        %3845 = vmatmul.bf16.gmra.mxu0 %v2468
        %v3846 = vpop.f32.mrf.mxu0
        %v3847 = vpop.f32.mrf.mxu0
        %3848 = vmatmul.bf16.gmra.mxu0 %v2495
        %v3849 = vpop.f32.mrf.mxu0
        %v3850 = vadd.f32 %v3697, %v3849
        %v3851 = vpop.f32.mrf.mxu0
        %v3852 = vadd.f32 %v3699, %v3851
        %3853 = vmatmul.bf16.gmra.mxu0 %v3386
        %v3854 = vpop.f32.mrf.mxu0
        %v3855 = vpop.f32.mrf.mxu0
        %3856 = vdwg.mxu0
        %3857 = vmatpush.bf16.msra.mxu0 %v3526
        %3858 = vmatpush.bf16.msra.mxu0 %v3525
        %3859 = vmatpush.bf16.msra.mxu0 %v3524
        %3860 = vmatpush.bf16.msra.mxu0 %v3523
        %3861 = vmatpush.bf16.msra.mxu0 %v3522
        %3862 = vmatpush.bf16.msra.mxu0 %v3521
        %3863 = vmatpush.bf16.msra.mxu0 %v3520
        %3864 = vmatpush.bf16.msra.mxu0 %v3519
        %3865 = vmatmul.bf16.gmra.mxu0 %v3347
        %v3866 = vpop.f32.mrf.mxu0
        %v3867 = vadd.f32 %v3714, %v3866
        %v3868 = vpop.f32.mrf.mxu0
        %v3869 = vadd.f32 %v3716, %v3868
        %3870 = vmatmul.bf16.gmra.mxu0 %v3366
        %v3871 = vpop.f32.mrf.mxu0
        %v3872 = vpop.f32.mrf.mxu0
        %3873 = vmatmul.bf16.gmra.mxu0 %v3368
        %v3874 = vpop.f32.mrf.mxu0
        %v3875 = vadd.f32 %v3722, %v3874
        %v3876 = vpop.f32.mrf.mxu0
        %v3877 = vadd.f32 %v3724, %v3876
        %3878 = vmatmul.bf16.gmra.mxu0 %v1667
        %v3879 = vpop.f32.mrf.mxu0
        %v3880 = vpop.f32.mrf.mxu0
        %3881 = vmatmul.bf16.gmra.mxu0 %v1694
        %v3882 = vpop.f32.mrf.mxu0
        %v3883 = vadd.f32 %v3730, %v3882
        %v3884 = vpop.f32.mrf.mxu0
        %v3885 = vadd.f32 %v3732, %v3884
        %3886 = vmatmul.bf16.gmra.mxu0 %v1721
        %v3887 = vpop.f32.mrf.mxu0
        %v3888 = vpop.f32.mrf.mxu0
        %3889 = vmatmul.bf16.gmra.mxu0 %v1748
        %v3890 = vpop.f32.mrf.mxu0
        %v3891 = vadd.f32 %v3738, %v3890
        %v3892 = vpop.f32.mrf.mxu0
        %v3893 = vadd.f32 %v3740, %v3892
        %3894 = vmatmul.bf16.gmra.mxu0 %v1775
        %v3895 = vpop.f32.mrf.mxu0
        %v3896 = vpop.f32.mrf.mxu0
        %3897 = vmatmul.bf16.gmra.mxu0 %v1802
        %v3898 = vpop.f32.mrf.mxu0
        %v3899 = vadd.f32 %v3746, %v3898
        %v3900 = vpop.f32.mrf.mxu0
        %v3901 = vadd.f32 %v3748, %v3900
        %3902 = vmatmul.bf16.gmra.mxu0 %v1829
        %v3903 = vpop.f32.mrf.mxu0
        %v3904 = vpop.f32.mrf.mxu0
        %3905 = vmatmul.bf16.gmra.mxu0 %v1856
        %v3906 = vpop.f32.mrf.mxu0
        %v3907 = vadd.f32 %v3754, %v3906
        %v3908 = vpop.f32.mrf.mxu0
        %v3909 = vadd.f32 %v3756, %v3908
        %3910 = vmatmul.bf16.gmra.mxu0 %v1883
        %v3911 = vpop.f32.mrf.mxu0
        %v3912 = vpop.f32.mrf.mxu0
        %3913 = vmatmul.bf16.gmra.mxu0 %v1910
        %v3914 = vpop.f32.mrf.mxu0
        %v3915 = vadd.f32 %v3762, %v3914
        %v3916 = vpop.f32.mrf.mxu0
        %v3917 = vadd.f32 %v3764, %v3916
        %3918 = vmatmul.bf16.gmra.mxu0 %v1937
        %v3919 = vpop.f32.mrf.mxu0
        %v3920 = vpop.f32.mrf.mxu0
        %3921 = vmatmul.bf16.gmra.mxu0 %v1964
        %v3922 = vpop.f32.mrf.mxu0
        %v3923 = vadd.f32 %v3770, %v3922
        %v3924 = vpop.f32.mrf.mxu0
        %v3925 = vadd.f32 %v3772, %v3924
        %3926 = vmatmul.bf16.gmra.mxu0 %v1991
        %v3927 = vpop.f32.mrf.mxu0
        %v3928 = vpop.f32.mrf.mxu0
        %3929 = vmatmul.bf16.gmra.mxu0 %v2018
        %v3930 = vpop.f32.mrf.mxu0
        %v3931 = vadd.f32 %v3778, %v3930
        %v3932 = vpop.f32.mrf.mxu0
        %v3933 = vadd.f32 %v3780, %v3932
        %3934 = vmatmul.bf16.gmra.mxu0 %v2045
        %v3935 = vpop.f32.mrf.mxu0
        %v3936 = vpop.f32.mrf.mxu0
        %3937 = vmatmul.bf16.gmra.mxu0 %v2072
        %v3938 = vpop.f32.mrf.mxu0
        %v3939 = vadd.f32 %v3786, %v3938
        %v3940 = vpop.f32.mrf.mxu0
        %v3941 = vadd.f32 %v3788, %v3940
        %3942 = vmatmul.bf16.gmra.mxu0 %v2099
        %v3943 = vpop.f32.mrf.mxu0
        %v3944 = vpop.f32.mrf.mxu0
        %3945 = vmatmul.bf16.gmra.mxu0 %v2126
        %v3946 = vpop.f32.mrf.mxu0
        %v3947 = vadd.f32 %v3794, %v3946
        %v3948 = vpop.f32.mrf.mxu0
        %v3949 = vadd.f32 %v3796, %v3948
        %3950 = vmatmul.bf16.gmra.mxu0 %v2153
        %v3951 = vpop.f32.mrf.mxu0
        %v3952 = vpop.f32.mrf.mxu0
        %3953 = vmatmul.bf16.gmra.mxu0 %v2180
        %v3954 = vpop.f32.mrf.mxu0
        %v3955 = vadd.f32 %v3802, %v3954
        %v3956 = vpop.f32.mrf.mxu0
        %v3957 = vadd.f32 %v3804, %v3956
        %3958 = vmatmul.bf16.gmra.mxu0 %v2207
        %v3959 = vpop.f32.mrf.mxu0
        %v3960 = vpop.f32.mrf.mxu0
        %3961 = vmatmul.bf16.gmra.mxu0 %v2234
        %v3962 = vpop.f32.mrf.mxu0
        %v3963 = vadd.f32 %v3810, %v3962
        %v3964 = vpop.f32.mrf.mxu0
        %v3965 = vadd.f32 %v3812, %v3964
        %3966 = vmatmul.bf16.gmra.mxu0 %v2261
        %v3967 = vpop.f32.mrf.mxu0
        %v3968 = vpop.f32.mrf.mxu0
        %3969 = vmatmul.bf16.gmra.mxu0 %v2288
        %v3970 = vpop.f32.mrf.mxu0
        %v3971 = vadd.f32 %v3818, %v3970
        %v3972 = vpop.f32.mrf.mxu0
        %v3973 = vadd.f32 %v3820, %v3972
        %3974 = vmatmul.bf16.gmra.mxu0 %v2315
        %v3975 = vpop.f32.mrf.mxu0
        %v3976 = vpop.f32.mrf.mxu0
        %3977 = vmatmul.bf16.gmra.mxu0 %v2342
        %v3978 = vpop.f32.mrf.mxu0
        %v3979 = vadd.f32 %v3826, %v3978
        %v3980 = vpop.f32.mrf.mxu0
        %v3981 = vadd.f32 %v3828, %v3980
        %3982 = vmatmul.bf16.gmra.mxu0 %v2369
        %v3983 = vpop.f32.mrf.mxu0
        %v3984 = vpop.f32.mrf.mxu0
        %3985 = vmatmul.bf16.gmra.mxu0 %v2396
        %v3986 = vpop.f32.mrf.mxu0
        %v3987 = vadd.f32 %v3834, %v3986
        %v3988 = vpop.f32.mrf.mxu0
        %v3989 = vadd.f32 %v3836, %v3988
        %3990 = vmatmul.bf16.gmra.mxu0 %v2423
        %v3991 = vpop.f32.mrf.mxu0
        %v3992 = vpop.f32.mrf.mxu0
        %3993 = vmatmul.bf16.gmra.mxu0 %v2450
        %v3994 = vpop.f32.mrf.mxu0
        %v3995 = vadd.f32 %v3842, %v3994
        %v3996 = vpop.f32.mrf.mxu0
        %v3997 = vadd.f32 %v3844, %v3996
        %3998 = vmatmul.bf16.gmra.mxu0 %v2477
        %v3999 = vpop.f32.mrf.mxu0
        %v4000 = vpop.f32.mrf.mxu0
        %4001 = vmatmul.bf16.gmra.mxu0 %v2504
        %v4002 = vpop.f32.mrf.mxu0
        %v4003 = vadd.f32 %v3850, %v4002
        %v4004 = vpop.f32.mrf.mxu0
        %v4005 = vadd.f32 %v3852, %v4004
        %4006 = vmatmul.bf16.gmra.mxu0 %v3395
        %v4007 = vpop.f32.mrf.mxu0
        %v4008 = vpop.f32.mrf.mxu0
        %4009 = vdwg.mxu0
        %v4013 = vunpack.c.l.b16 %v830
        %v4014 = vunpack.c.l.b16 %v831
        %v4015 = vunpack.c.l.b16 %v832
        %v4016 = vpack.c.b16 %v1532, %v1507
        %v4017 = vpack.c.b16 %v4014, %v4013
        %v4018 = vpack.c.b16 %v4015, %v4015
        %v4019 = vpack.c.b16 %v4013, %v1532
        %v4020 = vpack.c.b16 %v4015, %v4014
        %v4022 = vshrl.u32 %v4019, 16
        %v4024 = vrot.slane %v4022, 4
        %v4025 = vshll.u32 %v4019, 16
        %v4027 = vrot.slane %v4025, 5
        %v4028 = vor.u32 %v4024, %v4027
        %v4029 = vsel %vm1053, %v1529, %v4028
        %v4031 = vshrl.u32 %v4020, 16
        %v4033 = vrot.slane %v4031, 4
        %v4034 = vshll.u32 %v4020, 16
        %v4036 = vrot.slane %v4034, 5
        %v4037 = vor.u32 %v4033, %v4036
        %v4038 = vsel %vm1053, %v4028, %v4037
        %v4040 = vunpack.c.l.b16 %v833
        %v4041 = vpack.c.b16 %v4040, %v4040
        %v4042 = vrot.slane %v4019, 5
        %v4043 = vsel %vm1380, %v1536, %v4042
        %v4044 = vrot.slane %v4020, 5
        %v4045 = vsel %vm1380, %v4042, %v4044
        %v4046 = vrot.slane %v4041, 5
        %v4047 = vsel %vm1380, %v4044, %v4046
        %s4048 = scalar_lea.vmem %s3, 384
        %v4049 = vld [vmem:[%s4048] sm:$0xf]
        %v4050 = vld [vmem:[%s4048 + $0x4] sm:$0xf]
        %v4051 = vld [vmem:[%s4048 + $0x8] sm:$0xf]
        %v4052 = vld [vmem:[%s4048 + $0xc] sm:$0xf]
        %v4053 = vld [vmem:[%s4048 + $0x10] sm:$0xf]
        %v4054 = vld [vmem:[%s4048 + $0x14] sm:$0xf]
        %v4055 = vld [vmem:[%s4048 + $0x18] sm:$0xf]
        %v4056 = vld [vmem:[%s4048 + $0x1c] sm:$0xf]
        %v4057 = vld [vmem:[%s4048 + $0x20] sm:$0xf]
        %v4058 = vld [vmem:[%s4048 + $0x24] sm:$0xf]
        %v4059 = vld [vmem:[%s4048 + $0x28] sm:$0xf]
        %v4060 = vld [vmem:[%s4048 + $0x2c] sm:$0xf]
        %v4061 = vld [vmem:[%s4048 + $0x30] sm:$0xf]
        %v4062 = vld [vmem:[%s4048 + $0x34] sm:$0xf]
        %v4063 = vld [vmem:[%s4048 + $0x38] sm:$0xf]
        %v4064 = vld [vmem:[%s4048 + $0x3c] sm:$0xf]
        %v4065 = vld [vmem:[%s4048 + $0x40] sm:$0xf]
        %v4066 = vld [vmem:[%s4048 + $0x44] sm:$0xf]
        %v4067 = vld [vmem:[%s4048 + $0x48] sm:$0xf]
        %v4068 = vld [vmem:[%s4048 + $0x4c] sm:$0xf]
        %v4069 = vld [vmem:[%s4048 + $0x50] sm:$0xf]
        %v4070 = vld [vmem:[%s4048 + $0x54] sm:$0xf]
        %v4071 = vld [vmem:[%s4048 + $0x58] sm:$0xf]
        %v4072 = vld [vmem:[%s4048 + $0x5c] sm:$0xf]
        %v4073 = vld [vmem:[%s4048 + $0x60] sm:$0xf]
        %v4074 = vld [vmem:[%s4048 + $0x64] sm:$0xf]
        %v4075 = vld [vmem:[%s4048 + $0x68] sm:$0xf]
        %v4076 = vld [vmem:[%s4048 + $0x6c] sm:$0xf]
        %v4077 = vld [vmem:[%s4048 + $0x70] sm:$0xf]
        %v4078 = vld [vmem:[%s4048 + $0x74] sm:$0xf]
        %v4079 = vld [vmem:[%s4048 + $0x78] sm:$0xf]
        %v4080 = vld [vmem:[%s4048 + $0x7c] sm:$0xf]
        %v4081 = vld [vmem:[%s4048 + $0x80] sm:$0xf]
        %v4082 = vld [vmem:[%s4048 + $0x84] sm:$0xf]
        %v4083 = vld [vmem:[%s4048 + $0x88] sm:$0xf]
        %v4084 = vld [vmem:[%s4048 + $0x8c] sm:$0xf]
        %v4085 = vld [vmem:[%s4048 + $0x90] sm:$0xf]
        %v4086 = vld [vmem:[%s4048 + $0x94] sm:$0xf]
        %v4087 = vld [vmem:[%s4048 + $0x98] sm:$0xf]
        %v4088 = vld [vmem:[%s4048 + $0x9c] sm:$0xf]
        %v4089 = vld [vmem:[%s4048 + $0xa0] sm:$0xf]
        %v4090 = vld [vmem:[%s4048 + $0xa4] sm:$0xf]
        %v4091 = vld [vmem:[%s4048 + $0xa8] sm:$0xf]
        %v4092 = vld [vmem:[%s4048 + $0xac] sm:$0xf]
        %v4093 = vld [vmem:[%s4048 + $0xb0] sm:$0xf]
        %v4094 = vld [vmem:[%s4048 + $0xb4] sm:$0xf]
        %v4095 = vld [vmem:[%s4048 + $0xb8] sm:$0xf]
        %v4096 = vld [vmem:[%s4048 + $0xbc] sm:$0xf]
        %v4098 = vshrl.u32 %v1096, 16
        %v4100 = vrot.slane %v4098, 3
        %v4101 = vshll.u32 %v1096, 16
        %v4103 = vrot.slane %v4101, 4
        %v4104 = vor.u32 %v4100, %v4103
        %v4105 = vsel %vm1589, %v4104, %v1684
        %v4107 = vshrl.u32 %v1388, 16
        %v4109 = vrot.slane %v4107, 3
        %v4110 = vshll.u32 %v1388, 16
        %v4112 = vrot.slane %v4110, 4
        %v4113 = vor.u32 %v4109, %v4112
        %v4114 = vsel %vm1589, %v4113, %v1693
        %v4116 = vshrl.u32 %v4016, 16
        %v4118 = vrot.slane %v4116, 3
        %v4119 = vshll.u32 %v4016, 16
        %v4121 = vrot.slane %v4119, 4
        %v4122 = vor.u32 %v4118, %v4121
        %v4123 = vsel %vm1589, %v2539, %v4122
        %v4125 = vshrl.u32 %v4029, 16
        %v4127 = vrot.slane %v4125, 3
        %v4128 = vshll.u32 %v4029, 16
        %v4130 = vrot.slane %v4128, 4
        %v4131 = vor.u32 %v4127, %v4130
        %v4132 = vsel %vm1589, %v2548, %v4131
        %v4134 = vshrl.u32 %v4043, 16
        %v4136 = vrot.slane %v4134, 3
        %v4137 = vshll.u32 %v4043, 16
        %v4139 = vrot.slane %v4137, 4
        %v4140 = vor.u32 %v4136, %v4139
        %v4141 = vsel %vm1589, %v2557, %v4140
        %v4143 = vshrl.u32 %v4017, 16
        %v4145 = vrot.slane %v4143, 3
        %v4146 = vshll.u32 %v4017, 16
        %v4148 = vrot.slane %v4146, 4
        %v4149 = vor.u32 %v4145, %v4148
        %v4150 = vsel %vm1589, %v4122, %v4149
        %v4152 = vshrl.u32 %v4038, 16
        %v4154 = vrot.slane %v4152, 3
        %v4155 = vshll.u32 %v4038, 16
        %v4157 = vrot.slane %v4155, 4
        %v4158 = vor.u32 %v4154, %v4157
        %v4159 = vsel %vm1589, %v4131, %v4158
        %v4161 = vshrl.u32 %v4045, 16
        %v4163 = vrot.slane %v4161, 3
        %v4164 = vshll.u32 %v4045, 16
        %v4166 = vrot.slane %v4164, 4
        %v4167 = vor.u32 %v4163, %v4166
        %v4168 = vsel %vm1589, %v4140, %v4167
        %v4170 = vshrl.u32 %v4018, 16
        %v4172 = vrot.slane %v4170, 3
        %v4173 = vshll.u32 %v4018, 16
        %v4175 = vrot.slane %v4173, 4
        %v4176 = vor.u32 %v4172, %v4175
        %v4177 = vsel %vm1589, %v4149, %v4176
        %v4179 = vshrl.u32 %v4037, 16
        %v4181 = vrot.slane %v4179, 3
        %v4182 = vshll.u32 %v4037, 16
        %v4184 = vrot.slane %v4182, 4
        %v4185 = vor.u32 %v4181, %v4184
        %v4186 = vsel %vm1589, %v4158, %v4185
        %v4188 = vshrl.u32 %v4047, 16
        %v4190 = vrot.slane %v4188, 3
        %v4191 = vshll.u32 %v4047, 16
        %v4193 = vrot.slane %v4191, 4
        %v4194 = vor.u32 %v4190, %v4193
        %v4195 = vsel %vm1589, %v4167, %v4194
        %v4255 = vunpack.c.l.b16 %v4049
        %v4256 = vunpack.c.l.b16 %v4050
        %v4257 = vunpack.c.l.b16 %v4051
        %v4258 = vunpack.c.l.b16 %v4052
        %v4259 = vunpack.c.l.b16 %v4053
        %v4260 = vunpack.c.l.b16 %v4054
        %v4261 = vunpack.c.l.b16 %v4055
        %v4262 = vunpack.c.l.b16 %v4056
        %v4263 = vunpack.c.l.b16 %v4057
        %v4264 = vunpack.c.l.b16 %v4058
        %v4265 = vunpack.c.l.b16 %v4059
        %v4266 = vunpack.c.l.b16 %v4060
        %v4267 = vunpack.c.l.b16 %v4061
        %v4268 = vunpack.c.l.b16 %v4062
        %v4269 = vunpack.c.l.b16 %v4063
        %v4270 = vunpack.c.l.b16 %v4064
        %v4271 = vunpack.c.l.b16 %v4065
        %v4272 = vunpack.c.l.b16 %v4066
        %v4273 = vunpack.c.l.b16 %v4067
        %v4274 = vunpack.c.l.b16 %v4068
        %v4275 = vunpack.c.l.b16 %v4069
        %v4276 = vunpack.c.l.b16 %v4070
        %v4277 = vunpack.c.l.b16 %v4071
        %v4278 = vunpack.c.l.b16 %v4072
        %v4279 = vunpack.c.l.b16 %v4073
        %v4280 = vunpack.c.l.b16 %v4074
        %v4281 = vunpack.c.l.b16 %v4075
        %v4282 = vunpack.c.l.b16 %v4076
        %v4283 = vunpack.c.l.b16 %v4077
        %v4284 = vunpack.c.l.b16 %v4078
        %v4285 = vunpack.c.l.b16 %v4079
        %v4286 = vunpack.c.l.b16 %v4080
        %v4287 = vunpack.c.l.b16 %v4081
        %v4288 = vunpack.c.l.b16 %v4082
        %v4289 = vunpack.c.l.b16 %v4083
        %v4290 = vunpack.c.l.b16 %v4084
        %v4291 = vunpack.c.l.b16 %v4085
        %v4292 = vunpack.c.l.b16 %v4086
        %v4293 = vunpack.c.l.b16 %v4087
        %v4294 = vunpack.c.l.b16 %v4088
        %v4295 = vunpack.c.l.b16 %v4089
        %v4296 = vunpack.c.l.b16 %v4090
        %v4297 = vunpack.c.l.b16 %v4091
        %v4298 = vunpack.c.l.b16 %v4092
        %v4299 = vunpack.c.l.b16 %v4093
        %v4300 = vunpack.c.l.b16 %v4094
        %v4301 = vunpack.c.l.b16 %v4095
        %v4302 = vunpack.c.l.b16 %v4096
        %v4303 = vpack.c.b16 %v4256, %v4255
        %v4304 = vpack.c.b16 %v4258, %v4257
        %v4305 = vpack.c.b16 %v4260, %v4259
        %v4306 = vpack.c.b16 %v4262, %v4261
        %v4307 = vpack.c.b16 %v4264, %v4263
        %v4308 = vpack.c.b16 %v4266, %v4265
        %v4309 = vpack.c.b16 %v4268, %v4267
        %v4310 = vpack.c.b16 %v4270, %v4269
        %v4311 = vpack.c.b16 %v4272, %v4271
        %v4312 = vpack.c.b16 %v4274, %v4273
        %v4313 = vpack.c.b16 %v4276, %v4275
        %v4314 = vpack.c.b16 %v4278, %v4277
        %v4315 = vpack.c.b16 %v4280, %v4279
        %v4316 = vpack.c.b16 %v4282, %v4281
        %v4317 = vpack.c.b16 %v4284, %v4283
        %v4318 = vpack.c.b16 %v4286, %v4285
        %v4319 = vpack.c.b16 %v4288, %v4287
        %v4320 = vpack.c.b16 %v4290, %v4289
        %v4321 = vpack.c.b16 %v4292, %v4291
        %v4322 = vpack.c.b16 %v4294, %v4293
        %v4323 = vpack.c.b16 %v4296, %v4295
        %v4324 = vpack.c.b16 %v4298, %v4297
        %v4325 = vpack.c.b16 %v4300, %v4299
        %v4326 = vpack.c.b16 %v4302, %v4301
        %4351 = vmatpush.bf16.msra.mxu0 %v4310
        %4352 = vmatpush.bf16.msra.mxu0 %v4309
        %4353 = vmatpush.bf16.msra.mxu0 %v4308
        %4354 = vmatpush.bf16.msra.mxu0 %v4307
        %4355 = vmatpush.bf16.msra.mxu0 %v4306
        %4356 = vmatpush.bf16.msra.mxu0 %v4305
        %4357 = vmatpush.bf16.msra.mxu0 %v4304
        %4358 = vmatpush.bf16.msra.mxu0 %v4303
        %4359 = vmatmul.bf16.gmra.mxu0 %v1676
        %v4360 = vpop.f32.mrf.mxu0
        %v4361 = vadd.f32 0.0, %v4360
        %v4362 = vpop.f32.mrf.mxu0
        %v4363 = vadd.f32 0.0, %v4362
        %4364 = vmatmul.bf16.gmra.mxu0 %v1703
        %v4365 = vpop.f32.mrf.mxu0
        %v4366 = vpop.f32.mrf.mxu0
        %4367 = vmatmul.bf16.gmra.mxu0 %v1730
        %v4368 = vpop.f32.mrf.mxu0
        %v4369 = vadd.f32 0.0, %v4368
        %v4370 = vpop.f32.mrf.mxu0
        %v4371 = vadd.f32 0.0, %v4370
        %4372 = vmatmul.bf16.gmra.mxu0 %v1757
        %v4373 = vpop.f32.mrf.mxu0
        %v4374 = vpop.f32.mrf.mxu0
        %4375 = vmatmul.bf16.gmra.mxu0 %v1784
        %v4376 = vpop.f32.mrf.mxu0
        %v4377 = vadd.f32 0.0, %v4376
        %v4378 = vpop.f32.mrf.mxu0
        %v4379 = vadd.f32 0.0, %v4378
        %4380 = vmatmul.bf16.gmra.mxu0 %v1811
        %v4381 = vpop.f32.mrf.mxu0
        %v4382 = vpop.f32.mrf.mxu0
        %4383 = vmatmul.bf16.gmra.mxu0 %v1838
        %v4384 = vpop.f32.mrf.mxu0
        %v4385 = vadd.f32 0.0, %v4384
        %v4386 = vpop.f32.mrf.mxu0
        %v4387 = vadd.f32 0.0, %v4386
        %4388 = vmatmul.bf16.gmra.mxu0 %v1865
        %v4389 = vpop.f32.mrf.mxu0
        %v4390 = vpop.f32.mrf.mxu0
        %4391 = vmatmul.bf16.gmra.mxu0 %v1892
        %v4392 = vpop.f32.mrf.mxu0
        %v4393 = vadd.f32 0.0, %v4392
        %v4394 = vpop.f32.mrf.mxu0
        %v4395 = vadd.f32 0.0, %v4394
        %4396 = vmatmul.bf16.gmra.mxu0 %v1919
        %v4397 = vpop.f32.mrf.mxu0
        %v4398 = vpop.f32.mrf.mxu0
        %4399 = vmatmul.bf16.gmra.mxu0 %v1946
        %v4400 = vpop.f32.mrf.mxu0
        %v4401 = vadd.f32 0.0, %v4400
        %v4402 = vpop.f32.mrf.mxu0
        %v4403 = vadd.f32 0.0, %v4402
        %4404 = vmatmul.bf16.gmra.mxu0 %v1973
        %v4405 = vpop.f32.mrf.mxu0
        %v4406 = vpop.f32.mrf.mxu0
        %4407 = vmatmul.bf16.gmra.mxu0 %v2000
        %v4408 = vpop.f32.mrf.mxu0
        %v4409 = vadd.f32 0.0, %v4408
        %v4410 = vpop.f32.mrf.mxu0
        %v4411 = vadd.f32 0.0, %v4410
        %4412 = vmatmul.bf16.gmra.mxu0 %v2027
        %v4413 = vpop.f32.mrf.mxu0
        %v4414 = vpop.f32.mrf.mxu0
        %4415 = vmatmul.bf16.gmra.mxu0 %v2054
        %v4416 = vpop.f32.mrf.mxu0
        %v4417 = vadd.f32 0.0, %v4416
        %v4418 = vpop.f32.mrf.mxu0
        %v4419 = vadd.f32 0.0, %v4418
        %4420 = vmatmul.bf16.gmra.mxu0 %v2081
        %v4421 = vpop.f32.mrf.mxu0
        %v4422 = vpop.f32.mrf.mxu0
        %4423 = vmatmul.bf16.gmra.mxu0 %v2108
        %v4424 = vpop.f32.mrf.mxu0
        %v4425 = vadd.f32 0.0, %v4424
        %v4426 = vpop.f32.mrf.mxu0
        %v4427 = vadd.f32 0.0, %v4426
        %4428 = vmatmul.bf16.gmra.mxu0 %v2135
        %v4429 = vpop.f32.mrf.mxu0
        %v4430 = vpop.f32.mrf.mxu0
        %4431 = vmatmul.bf16.gmra.mxu0 %v2162
        %v4432 = vpop.f32.mrf.mxu0
        %v4433 = vadd.f32 0.0, %v4432
        %v4434 = vpop.f32.mrf.mxu0
        %v4435 = vadd.f32 0.0, %v4434
        %4436 = vmatmul.bf16.gmra.mxu0 %v2189
        %v4437 = vpop.f32.mrf.mxu0
        %v4438 = vpop.f32.mrf.mxu0
        %4439 = vmatmul.bf16.gmra.mxu0 %v2216
        %v4440 = vpop.f32.mrf.mxu0
        %v4441 = vadd.f32 0.0, %v4440
        %v4442 = vpop.f32.mrf.mxu0
        %v4443 = vadd.f32 0.0, %v4442
        %4444 = vmatmul.bf16.gmra.mxu0 %v2243
        %v4445 = vpop.f32.mrf.mxu0
        %v4446 = vpop.f32.mrf.mxu0
        %4447 = vmatmul.bf16.gmra.mxu0 %v2270
        %v4448 = vpop.f32.mrf.mxu0
        %v4449 = vadd.f32 0.0, %v4448
        %v4450 = vpop.f32.mrf.mxu0
        %v4451 = vadd.f32 0.0, %v4450
        %4452 = vmatmul.bf16.gmra.mxu0 %v2297
        %v4453 = vpop.f32.mrf.mxu0
        %v4454 = vpop.f32.mrf.mxu0
        %4455 = vmatmul.bf16.gmra.mxu0 %v2324
        %v4456 = vpop.f32.mrf.mxu0
        %v4457 = vadd.f32 0.0, %v4456
        %v4458 = vpop.f32.mrf.mxu0
        %v4459 = vadd.f32 0.0, %v4458
        %4460 = vmatmul.bf16.gmra.mxu0 %v2351
        %v4461 = vpop.f32.mrf.mxu0
        %v4462 = vpop.f32.mrf.mxu0
        %4463 = vmatmul.bf16.gmra.mxu0 %v2378
        %v4464 = vpop.f32.mrf.mxu0
        %v4465 = vadd.f32 0.0, %v4464
        %v4466 = vpop.f32.mrf.mxu0
        %v4467 = vadd.f32 0.0, %v4466
        %4468 = vmatmul.bf16.gmra.mxu0 %v2405
        %v4469 = vpop.f32.mrf.mxu0
        %v4470 = vpop.f32.mrf.mxu0
        %4471 = vmatmul.bf16.gmra.mxu0 %v2432
        %v4472 = vpop.f32.mrf.mxu0
        %v4473 = vadd.f32 0.0, %v4472
        %v4474 = vpop.f32.mrf.mxu0
        %v4475 = vadd.f32 0.0, %v4474
        %4476 = vmatmul.bf16.gmra.mxu0 %v2459
        %v4477 = vpop.f32.mrf.mxu0
        %v4478 = vpop.f32.mrf.mxu0
        %4479 = vmatmul.bf16.gmra.mxu0 %v2486
        %v4480 = vpop.f32.mrf.mxu0
        %v4481 = vadd.f32 0.0, %v4480
        %v4482 = vpop.f32.mrf.mxu0
        %v4483 = vadd.f32 0.0, %v4482
        %4484 = vmatmul.bf16.gmra.mxu0 %v2513
        %v4485 = vpop.f32.mrf.mxu0
        %v4486 = vpop.f32.mrf.mxu0
        %4487 = vmatmul.bf16.gmra.mxu0 %v2540
        %v4488 = vpop.f32.mrf.mxu0
        %v4489 = vadd.f32 0.0, %v4488
        %v4490 = vpop.f32.mrf.mxu0
        %v4491 = vadd.f32 0.0, %v4490
        %4492 = vmatmul.bf16.gmra.mxu0 %v4123
        %v4493 = vpop.f32.mrf.mxu0
        %v4494 = vpop.f32.mrf.mxu0
        %4495 = vmatmul.bf16.gmra.mxu0 %v4150
        %v4496 = vpop.f32.mrf.mxu0
        %v4497 = vadd.f32 0.0, %v4496
        %v4498 = vpop.f32.mrf.mxu0
        %v4499 = vadd.f32 0.0, %v4498
        %4500 = vmatmul.bf16.gmra.mxu0 %v4177
        %v4501 = vpop.f32.mrf.mxu0
        %v4502 = vpop.f32.mrf.mxu0
        %4503 = vdwg.mxu0
        %4504 = vmatpush.bf16.msra.mxu0 %v4318
        %4505 = vmatpush.bf16.msra.mxu0 %v4317
        %4506 = vmatpush.bf16.msra.mxu0 %v4316
        %4507 = vmatpush.bf16.msra.mxu0 %v4315
        %4508 = vmatpush.bf16.msra.mxu0 %v4314
        %4509 = vmatpush.bf16.msra.mxu0 %v4313
        %4510 = vmatpush.bf16.msra.mxu0 %v4312
        %4511 = vmatpush.bf16.msra.mxu0 %v4311
        %4512 = vmatmul.bf16.gmra.mxu0 %v4105
        %v4513 = vpop.f32.mrf.mxu0
        %v4514 = vadd.f32 %v4361, %v4513
        %v4515 = vpop.f32.mrf.mxu0
        %v4516 = vadd.f32 %v4363, %v4515
        %4517 = vmatmul.bf16.gmra.mxu0 %v1712
        %v4518 = vpop.f32.mrf.mxu0
        %v4519 = vpop.f32.mrf.mxu0
        %4520 = vmatmul.bf16.gmra.mxu0 %v1739
        %v4521 = vpop.f32.mrf.mxu0
        %v4522 = vadd.f32 %v4369, %v4521
        %v4523 = vpop.f32.mrf.mxu0
        %v4524 = vadd.f32 %v4371, %v4523
        %4525 = vmatmul.bf16.gmra.mxu0 %v1766
        %v4526 = vpop.f32.mrf.mxu0
        %v4527 = vpop.f32.mrf.mxu0
        %4528 = vmatmul.bf16.gmra.mxu0 %v1793
        %v4529 = vpop.f32.mrf.mxu0
        %v4530 = vadd.f32 %v4377, %v4529
        %v4531 = vpop.f32.mrf.mxu0
        %v4532 = vadd.f32 %v4379, %v4531
        %4533 = vmatmul.bf16.gmra.mxu0 %v1820
        %v4534 = vpop.f32.mrf.mxu0
        %v4535 = vpop.f32.mrf.mxu0
        %4536 = vmatmul.bf16.gmra.mxu0 %v1847
        %v4537 = vpop.f32.mrf.mxu0
        %v4538 = vadd.f32 %v4385, %v4537
        %v4539 = vpop.f32.mrf.mxu0
        %v4540 = vadd.f32 %v4387, %v4539
        %4541 = vmatmul.bf16.gmra.mxu0 %v1874
        %v4542 = vpop.f32.mrf.mxu0
        %v4543 = vpop.f32.mrf.mxu0
        %4544 = vmatmul.bf16.gmra.mxu0 %v1901
        %v4545 = vpop.f32.mrf.mxu0
        %v4546 = vadd.f32 %v4393, %v4545
        %v4547 = vpop.f32.mrf.mxu0
        %v4548 = vadd.f32 %v4395, %v4547
        %4549 = vmatmul.bf16.gmra.mxu0 %v1928
        %v4550 = vpop.f32.mrf.mxu0
        %v4551 = vpop.f32.mrf.mxu0
        %4552 = vmatmul.bf16.gmra.mxu0 %v1955
        %v4553 = vpop.f32.mrf.mxu0
        %v4554 = vadd.f32 %v4401, %v4553
        %v4555 = vpop.f32.mrf.mxu0
        %v4556 = vadd.f32 %v4403, %v4555
        %4557 = vmatmul.bf16.gmra.mxu0 %v1982
        %v4558 = vpop.f32.mrf.mxu0
        %v4559 = vpop.f32.mrf.mxu0
        %4560 = vmatmul.bf16.gmra.mxu0 %v2009
        %v4561 = vpop.f32.mrf.mxu0
        %v4562 = vadd.f32 %v4409, %v4561
        %v4563 = vpop.f32.mrf.mxu0
        %v4564 = vadd.f32 %v4411, %v4563
        %4565 = vmatmul.bf16.gmra.mxu0 %v2036
        %v4566 = vpop.f32.mrf.mxu0
        %v4567 = vpop.f32.mrf.mxu0
        %4568 = vmatmul.bf16.gmra.mxu0 %v2063
        %v4569 = vpop.f32.mrf.mxu0
        %v4570 = vadd.f32 %v4417, %v4569
        %v4571 = vpop.f32.mrf.mxu0
        %v4572 = vadd.f32 %v4419, %v4571
        %4573 = vmatmul.bf16.gmra.mxu0 %v2090
        %v4574 = vpop.f32.mrf.mxu0
        %v4575 = vpop.f32.mrf.mxu0
        %4576 = vmatmul.bf16.gmra.mxu0 %v2117
        %v4577 = vpop.f32.mrf.mxu0
        %v4578 = vadd.f32 %v4425, %v4577
        %v4579 = vpop.f32.mrf.mxu0
        %v4580 = vadd.f32 %v4427, %v4579
        %4581 = vmatmul.bf16.gmra.mxu0 %v2144
        %v4582 = vpop.f32.mrf.mxu0
        %v4583 = vpop.f32.mrf.mxu0
        %4584 = vmatmul.bf16.gmra.mxu0 %v2171
        %v4585 = vpop.f32.mrf.mxu0
        %v4586 = vadd.f32 %v4433, %v4585
        %v4587 = vpop.f32.mrf.mxu0
        %v4588 = vadd.f32 %v4435, %v4587
        %4589 = vmatmul.bf16.gmra.mxu0 %v2198
        %v4590 = vpop.f32.mrf.mxu0
        %v4591 = vpop.f32.mrf.mxu0
        %4592 = vmatmul.bf16.gmra.mxu0 %v2225
        %v4593 = vpop.f32.mrf.mxu0
        %v4594 = vadd.f32 %v4441, %v4593
        %v4595 = vpop.f32.mrf.mxu0
        %v4596 = vadd.f32 %v4443, %v4595
        %4597 = vmatmul.bf16.gmra.mxu0 %v2252
        %v4598 = vpop.f32.mrf.mxu0
        %v4599 = vpop.f32.mrf.mxu0
        %4600 = vmatmul.bf16.gmra.mxu0 %v2279
        %v4601 = vpop.f32.mrf.mxu0
        %v4602 = vadd.f32 %v4449, %v4601
        %v4603 = vpop.f32.mrf.mxu0
        %v4604 = vadd.f32 %v4451, %v4603
        %4605 = vmatmul.bf16.gmra.mxu0 %v2306
        %v4606 = vpop.f32.mrf.mxu0
        %v4607 = vpop.f32.mrf.mxu0
        %4608 = vmatmul.bf16.gmra.mxu0 %v2333
        %v4609 = vpop.f32.mrf.mxu0
        %v4610 = vadd.f32 %v4457, %v4609
        %v4611 = vpop.f32.mrf.mxu0
        %v4612 = vadd.f32 %v4459, %v4611
        %4613 = vmatmul.bf16.gmra.mxu0 %v2360
        %v4614 = vpop.f32.mrf.mxu0
        %v4615 = vpop.f32.mrf.mxu0
        %4616 = vmatmul.bf16.gmra.mxu0 %v2387
        %v4617 = vpop.f32.mrf.mxu0
        %v4618 = vadd.f32 %v4465, %v4617
        %v4619 = vpop.f32.mrf.mxu0
        %v4620 = vadd.f32 %v4467, %v4619
        %4621 = vmatmul.bf16.gmra.mxu0 %v2414
        %v4622 = vpop.f32.mrf.mxu0
        %v4623 = vpop.f32.mrf.mxu0
        %4624 = vmatmul.bf16.gmra.mxu0 %v2441
        %v4625 = vpop.f32.mrf.mxu0
        %v4626 = vadd.f32 %v4473, %v4625
        %v4627 = vpop.f32.mrf.mxu0
        %v4628 = vadd.f32 %v4475, %v4627
        %4629 = vmatmul.bf16.gmra.mxu0 %v2468
        %v4630 = vpop.f32.mrf.mxu0
        %v4631 = vpop.f32.mrf.mxu0
        %4632 = vmatmul.bf16.gmra.mxu0 %v2495
        %v4633 = vpop.f32.mrf.mxu0
        %v4634 = vadd.f32 %v4481, %v4633
        %v4635 = vpop.f32.mrf.mxu0
        %v4636 = vadd.f32 %v4483, %v4635
        %4637 = vmatmul.bf16.gmra.mxu0 %v2522
        %v4638 = vpop.f32.mrf.mxu0
        %v4639 = vpop.f32.mrf.mxu0
        %4640 = vmatmul.bf16.gmra.mxu0 %v2549
        %v4641 = vpop.f32.mrf.mxu0
        %v4642 = vadd.f32 %v4489, %v4641
        %v4643 = vpop.f32.mrf.mxu0
        %v4644 = vadd.f32 %v4491, %v4643
        %4645 = vmatmul.bf16.gmra.mxu0 %v4132
        %v4646 = vpop.f32.mrf.mxu0
        %v4647 = vpop.f32.mrf.mxu0
        %4648 = vmatmul.bf16.gmra.mxu0 %v4159
        %v4649 = vpop.f32.mrf.mxu0
        %v4650 = vadd.f32 %v4497, %v4649
        %v4651 = vpop.f32.mrf.mxu0
        %v4652 = vadd.f32 %v4499, %v4651
        %4653 = vmatmul.bf16.gmra.mxu0 %v4186
        %v4654 = vpop.f32.mrf.mxu0
        %v4655 = vpop.f32.mrf.mxu0
        %4656 = vdwg.mxu0
        %4657 = vmatpush.bf16.msra.mxu0 %v4326
        %4658 = vmatpush.bf16.msra.mxu0 %v4325
        %4659 = vmatpush.bf16.msra.mxu0 %v4324
        %4660 = vmatpush.bf16.msra.mxu0 %v4323
        %4661 = vmatpush.bf16.msra.mxu0 %v4322
        %4662 = vmatpush.bf16.msra.mxu0 %v4321
        %4663 = vmatpush.bf16.msra.mxu0 %v4320
        %4664 = vmatpush.bf16.msra.mxu0 %v4319
        %4665 = vmatmul.bf16.gmra.mxu0 %v4114
        %v4666 = vpop.f32.mrf.mxu0
        %v4667 = vadd.f32 %v4514, %v4666
        %v4668 = vpop.f32.mrf.mxu0
        %v4669 = vadd.f32 %v4516, %v4668
        %4670 = vmatmul.bf16.gmra.mxu0 %v1721
        %v4671 = vpop.f32.mrf.mxu0
        %v4672 = vpop.f32.mrf.mxu0
        %4673 = vmatmul.bf16.gmra.mxu0 %v1748
        %v4674 = vpop.f32.mrf.mxu0
        %v4675 = vadd.f32 %v4522, %v4674
        %v4676 = vpop.f32.mrf.mxu0
        %v4677 = vadd.f32 %v4524, %v4676
        %4678 = vmatmul.bf16.gmra.mxu0 %v1775
        %v4679 = vpop.f32.mrf.mxu0
        %v4680 = vpop.f32.mrf.mxu0
        %4681 = vmatmul.bf16.gmra.mxu0 %v1802
        %v4682 = vpop.f32.mrf.mxu0
        %v4683 = vadd.f32 %v4530, %v4682
        %v4684 = vpop.f32.mrf.mxu0
        %v4685 = vadd.f32 %v4532, %v4684
        %4686 = vmatmul.bf16.gmra.mxu0 %v1829
        %v4687 = vpop.f32.mrf.mxu0
        %v4688 = vpop.f32.mrf.mxu0
        %4689 = vmatmul.bf16.gmra.mxu0 %v1856
        %v4690 = vpop.f32.mrf.mxu0
        %v4691 = vadd.f32 %v4538, %v4690
        %v4692 = vpop.f32.mrf.mxu0
        %v4693 = vadd.f32 %v4540, %v4692
        %4694 = vmatmul.bf16.gmra.mxu0 %v1883
        %v4695 = vpop.f32.mrf.mxu0
        %v4696 = vpop.f32.mrf.mxu0
        %4697 = vmatmul.bf16.gmra.mxu0 %v1910
        %v4698 = vpop.f32.mrf.mxu0
        %v4699 = vadd.f32 %v4546, %v4698
        %v4700 = vpop.f32.mrf.mxu0
        %v4701 = vadd.f32 %v4548, %v4700
        %4702 = vmatmul.bf16.gmra.mxu0 %v1937
        %v4703 = vpop.f32.mrf.mxu0
        %v4704 = vpop.f32.mrf.mxu0
        %4705 = vmatmul.bf16.gmra.mxu0 %v1964
        %v4706 = vpop.f32.mrf.mxu0
        %v4707 = vadd.f32 %v4554, %v4706
        %v4708 = vpop.f32.mrf.mxu0
        %v4709 = vadd.f32 %v4556, %v4708
        %4710 = vmatmul.bf16.gmra.mxu0 %v1991
        %v4711 = vpop.f32.mrf.mxu0
        %v4712 = vpop.f32.mrf.mxu0
        %4713 = vmatmul.bf16.gmra.mxu0 %v2018
        %v4714 = vpop.f32.mrf.mxu0
        %v4715 = vadd.f32 %v4562, %v4714
        %v4716 = vpop.f32.mrf.mxu0
        %v4717 = vadd.f32 %v4564, %v4716
        %4718 = vmatmul.bf16.gmra.mxu0 %v2045
        %v4719 = vpop.f32.mrf.mxu0
        %v4720 = vpop.f32.mrf.mxu0
        %4721 = vmatmul.bf16.gmra.mxu0 %v2072
        %v4722 = vpop.f32.mrf.mxu0
        %v4723 = vadd.f32 %v4570, %v4722
        %v4724 = vpop.f32.mrf.mxu0
        %v4725 = vadd.f32 %v4572, %v4724
        %4726 = vmatmul.bf16.gmra.mxu0 %v2099
        %v4727 = vpop.f32.mrf.mxu0
        %v4728 = vpop.f32.mrf.mxu0
        %4729 = vmatmul.bf16.gmra.mxu0 %v2126
        %v4730 = vpop.f32.mrf.mxu0
        %v4731 = vadd.f32 %v4578, %v4730
        %v4732 = vpop.f32.mrf.mxu0
        %v4733 = vadd.f32 %v4580, %v4732
        %4734 = vmatmul.bf16.gmra.mxu0 %v2153
        %v4735 = vpop.f32.mrf.mxu0
        %v4736 = vpop.f32.mrf.mxu0
        %4737 = vmatmul.bf16.gmra.mxu0 %v2180
        %v4738 = vpop.f32.mrf.mxu0
        %v4739 = vadd.f32 %v4586, %v4738
        %v4740 = vpop.f32.mrf.mxu0
        %v4741 = vadd.f32 %v4588, %v4740
        %4742 = vmatmul.bf16.gmra.mxu0 %v2207
        %v4743 = vpop.f32.mrf.mxu0
        %v4744 = vpop.f32.mrf.mxu0
        %4745 = vmatmul.bf16.gmra.mxu0 %v2234
        %v4746 = vpop.f32.mrf.mxu0
        %v4747 = vadd.f32 %v4594, %v4746
        %v4748 = vpop.f32.mrf.mxu0
        %v4749 = vadd.f32 %v4596, %v4748
        %4750 = vmatmul.bf16.gmra.mxu0 %v2261
        %v4751 = vpop.f32.mrf.mxu0
        %v4752 = vpop.f32.mrf.mxu0
        %4753 = vmatmul.bf16.gmra.mxu0 %v2288
        %v4754 = vpop.f32.mrf.mxu0
        %v4755 = vadd.f32 %v4602, %v4754
        %v4756 = vpop.f32.mrf.mxu0
        %v4757 = vadd.f32 %v4604, %v4756
        %4758 = vmatmul.bf16.gmra.mxu0 %v2315
        %v4759 = vpop.f32.mrf.mxu0
        %v4760 = vpop.f32.mrf.mxu0
        %4761 = vmatmul.bf16.gmra.mxu0 %v2342
        %v4762 = vpop.f32.mrf.mxu0
        %v4763 = vadd.f32 %v4610, %v4762
        %v4764 = vpop.f32.mrf.mxu0
        %v4765 = vadd.f32 %v4612, %v4764
        %4766 = vmatmul.bf16.gmra.mxu0 %v2369
        %v4767 = vpop.f32.mrf.mxu0
        %v4768 = vpop.f32.mrf.mxu0
        %4769 = vmatmul.bf16.gmra.mxu0 %v2396
        %v4770 = vpop.f32.mrf.mxu0
        %v4771 = vadd.f32 %v4618, %v4770
        %v4772 = vpop.f32.mrf.mxu0
        %v4773 = vadd.f32 %v4620, %v4772
        %4774 = vmatmul.bf16.gmra.mxu0 %v2423
        %v4775 = vpop.f32.mrf.mxu0
        %v4776 = vpop.f32.mrf.mxu0
        %4777 = vmatmul.bf16.gmra.mxu0 %v2450
        %v4778 = vpop.f32.mrf.mxu0
        %v4779 = vadd.f32 %v4626, %v4778
        %v4780 = vpop.f32.mrf.mxu0
        %v4781 = vadd.f32 %v4628, %v4780
        %4782 = vmatmul.bf16.gmra.mxu0 %v2477
        %v4783 = vpop.f32.mrf.mxu0
        %v4784 = vpop.f32.mrf.mxu0
        %4785 = vmatmul.bf16.gmra.mxu0 %v2504
        %v4786 = vpop.f32.mrf.mxu0
        %v4787 = vadd.f32 %v4634, %v4786
        %v4788 = vpop.f32.mrf.mxu0
        %v4789 = vadd.f32 %v4636, %v4788
        %4790 = vmatmul.bf16.gmra.mxu0 %v2531
        %v4791 = vpop.f32.mrf.mxu0
        %v4792 = vpop.f32.mrf.mxu0
        %4793 = vmatmul.bf16.gmra.mxu0 %v2558
        %v4794 = vpop.f32.mrf.mxu0
        %v4795 = vadd.f32 %v4642, %v4794
        %v4796 = vpop.f32.mrf.mxu0
        %v4797 = vadd.f32 %v4644, %v4796
        %4798 = vmatmul.bf16.gmra.mxu0 %v4141
        %v4799 = vpop.f32.mrf.mxu0
        %v4800 = vpop.f32.mrf.mxu0
        %4801 = vmatmul.bf16.gmra.mxu0 %v4168
        %v4802 = vpop.f32.mrf.mxu0
        %v4803 = vadd.f32 %v4650, %v4802
        %v4804 = vpop.f32.mrf.mxu0
        %v4805 = vadd.f32 %v4652, %v4804
        %4806 = vmatmul.bf16.gmra.mxu0 %v4195
        %v4807 = vpop.f32.mrf.mxu0
        %v4808 = vpop.f32.mrf.mxu0
        %4809 = vdwg.mxu0
        %v4810 = vadd.f32 %v3867, %v4667
        %v4811 = vadd.f32 %v3869, %v4669
        %v4812 = vadd.f32 %v3875, %v4675
        %v4813 = vadd.f32 %v3877, %v4677
        %v4814 = vadd.f32 %v3883, %v4683
        %v4815 = vadd.f32 %v3885, %v4685
        %v4816 = vadd.f32 %v3891, %v4691
        %v4817 = vadd.f32 %v3893, %v4693
        %v4818 = vadd.f32 %v3899, %v4699
        %v4819 = vadd.f32 %v3901, %v4701
        %v4820 = vadd.f32 %v3907, %v4707
        %v4821 = vadd.f32 %v3909, %v4709
        %v4822 = vadd.f32 %v3915, %v4715
        %v4823 = vadd.f32 %v3917, %v4717
        %v4824 = vadd.f32 %v3923, %v4723
        %v4825 = vadd.f32 %v3925, %v4725
        %v4826 = vadd.f32 %v3931, %v4731
        %v4827 = vadd.f32 %v3933, %v4733
        %v4828 = vadd.f32 %v3939, %v4739
        %v4829 = vadd.f32 %v3941, %v4741
        %v4830 = vadd.f32 %v3947, %v4747
        %v4831 = vadd.f32 %v3949, %v4749
        %v4832 = vadd.f32 %v3955, %v4755
        %v4833 = vadd.f32 %v3957, %v4757
        %v4834 = vadd.f32 %v3963, %v4763
        %v4835 = vadd.f32 %v3965, %v4765
        %v4836 = vadd.f32 %v3971, %v4771
        %v4837 = vadd.f32 %v3973, %v4773
        %v4838 = vadd.f32 %v3979, %v4779
        %v4839 = vadd.f32 %v3981, %v4781
        %v4840 = vadd.f32 %v3987, %v4787
        %v4841 = vadd.f32 %v3989, %v4789
        %v4842 = vadd.f32 %v3995, %v4795
        %v4843 = vadd.f32 %v3997, %v4797
        %v4844 = vadd.f32 %v4003, %v4803
        %v4845 = vadd.f32 %v4005, %v4805
        %v4846 = vld [vmem:[%s4] sm:$0x1]
        %v4848 = vperm.slane %v4846, 0
        %v4850 = vadd.f32 %v4810, %v4848
        %v4851 = vadd.f32 %v4811, %v4848
        %v4852 = vadd.f32 %v4812, %v4848
        %v4853 = vadd.f32 %v4813, %v4848
        %v4854 = vadd.f32 %v4814, %v4848
        %v4855 = vadd.f32 %v4815, %v4848
        %v4856 = vadd.f32 %v4816, %v4848
        %v4857 = vadd.f32 %v4817, %v4848
        %v4858 = vadd.f32 %v4818, %v4848
        %v4859 = vadd.f32 %v4819, %v4848
        %v4860 = vadd.f32 %v4820, %v4848
        %v4861 = vadd.f32 %v4821, %v4848
        %v4862 = vadd.f32 %v4822, %v4848
        %v4863 = vadd.f32 %v4823, %v4848
        %v4864 = vadd.f32 %v4824, %v4848
        %v4865 = vadd.f32 %v4825, %v4848
        %v4866 = vadd.f32 %v4826, %v4848
        %v4867 = vadd.f32 %v4827, %v4848
        %v4868 = vadd.f32 %v4828, %v4848
        %v4869 = vadd.f32 %v4829, %v4848
        %v4870 = vadd.f32 %v4830, %v4848
        %v4871 = vadd.f32 %v4831, %v4848
        %v4872 = vadd.f32 %v4832, %v4848
        %v4873 = vadd.f32 %v4833, %v4848
        %v4874 = vadd.f32 %v4834, %v4848
        %v4875 = vadd.f32 %v4835, %v4848
        %v4876 = vadd.f32 %v4836, %v4848
        %v4877 = vadd.f32 %v4837, %v4848
        %v4878 = vadd.f32 %v4838, %v4848
        %v4879 = vadd.f32 %v4839, %v4848
        %v4880 = vadd.f32 %v4840, %v4848
        %v4881 = vadd.f32 %v4841, %v4848
        %v4882 = vadd.f32 %v4842, %v4848
        %v4883 = vadd.f32 %v4843, %v4848
        %v4884 = vadd.f32 %v4844, %v4848
        %v4885 = vadd.f32 %v4845, %v4848
        %v4886 = vmax.f32 %v4850, 0.0
        %v4887 = vmax.f32 %v4851, 0.0
        %v4888 = vmax.f32 %v4852, 0.0
        %v4889 = vmax.f32 %v4853, 0.0
        %v4890 = vmax.f32 %v4854, 0.0
        %v4891 = vmax.f32 %v4855, 0.0
        %v4892 = vmax.f32 %v4856, 0.0
        %v4893 = vmax.f32 %v4857, 0.0
        %v4894 = vmax.f32 %v4858, 0.0
        %v4895 = vmax.f32 %v4859, 0.0
        %v4896 = vmax.f32 %v4860, 0.0
        %v4897 = vmax.f32 %v4861, 0.0
        %v4898 = vmax.f32 %v4862, 0.0
        %v4899 = vmax.f32 %v4863, 0.0
        %v4900 = vmax.f32 %v4864, 0.0
        %v4901 = vmax.f32 %v4865, 0.0
        %v4902 = vmax.f32 %v4866, 0.0
        %v4903 = vmax.f32 %v4867, 0.0
        %v4904 = vmax.f32 %v4868, 0.0
        %v4905 = vmax.f32 %v4869, 0.0
        %v4906 = vmax.f32 %v4870, 0.0
        %v4907 = vmax.f32 %v4871, 0.0
        %v4908 = vmax.f32 %v4872, 0.0
        %v4909 = vmax.f32 %v4873, 0.0
        %v4910 = vmax.f32 %v4874, 0.0
        %v4911 = vmax.f32 %v4875, 0.0
        %v4912 = vmax.f32 %v4876, 0.0
        %v4913 = vmax.f32 %v4877, 0.0
        %v4914 = vmax.f32 %v4878, 0.0
        %v4915 = vmax.f32 %v4879, 0.0
        %v4916 = vmax.f32 %v4880, 0.0
        %v4917 = vmax.f32 %v4881, 0.0
        %v4918 = vmax.f32 %v4882, 0.0
        %v4919 = vmax.f32 %v4883, 0.0
        %v4920 = vmax.f32 %v4884, 0.0
        %v4921 = vmax.f32 %v4885, 0.0
        %v4922 = vpack.c.bf16 %v4886, %v4886
        %v4923 = vpack.c.bf16 %v4887, %v4887
        %v4924 = vpack.c.bf16 %v4888, %v4888
        %v4925 = vpack.c.bf16 %v4889, %v4889
        %v4926 = vpack.c.bf16 %v4890, %v4890
        %v4927 = vpack.c.bf16 %v4891, %v4891
        %v4928 = vpack.c.bf16 %v4892, %v4892
        %v4929 = vpack.c.bf16 %v4893, %v4893
        %v4930 = vpack.c.bf16 %v4894, %v4894
        %v4931 = vpack.c.bf16 %v4895, %v4895
        %v4932 = vpack.c.bf16 %v4896, %v4896
        %v4933 = vpack.c.bf16 %v4897, %v4897
        %v4934 = vpack.c.bf16 %v4898, %v4898
        %v4935 = vpack.c.bf16 %v4899, %v4899
        %v4936 = vpack.c.bf16 %v4900, %v4900
        %v4937 = vpack.c.bf16 %v4901, %v4901
        %v4938 = vpack.c.bf16 %v4902, %v4902
        %v4939 = vpack.c.bf16 %v4903, %v4903
        %v4940 = vpack.c.bf16 %v4904, %v4904
        %v4941 = vpack.c.bf16 %v4905, %v4905
        %v4942 = vpack.c.bf16 %v4906, %v4906
        %v4943 = vpack.c.bf16 %v4907, %v4907
        %v4944 = vpack.c.bf16 %v4908, %v4908
        %v4945 = vpack.c.bf16 %v4909, %v4909
        %v4946 = vpack.c.bf16 %v4910, %v4910
        %v4947 = vpack.c.bf16 %v4911, %v4911
        %v4948 = vpack.c.bf16 %v4912, %v4912
        %v4949 = vpack.c.bf16 %v4913, %v4913
        %v4950 = vpack.c.bf16 %v4914, %v4914
        %v4951 = vpack.c.bf16 %v4915, %v4915
        %v4952 = vpack.c.bf16 %v4916, %v4916
        %v4953 = vpack.c.bf16 %v4917, %v4917
        %v4954 = vpack.c.bf16 %v4918, %v4918
        %v4955 = vpack.c.bf16 %v4919, %v4919
        %v4956 = vpack.c.bf16 %v4920, %v4920
        %v4957 = vpack.c.bf16 %v4921, %v4921
        %s4958 = scalar_lea.vmem [#allocation3], 32
        %4959 = vst [vmem:[%s4958] sm:$0xf] %v4922
        %4960 = vst [vmem:[%s4958 + $0x4] sm:$0xf] %v4923
        %4961 = vst [vmem:[%s4958 + $0x10] sm:$0xf] %v4924
        %4962 = vst [vmem:[%s4958 + $0x14] sm:$0xf] %v4925
        %4963 = vst [vmem:[%s4958 + $0x20] sm:$0xf] %v4926
        %4964 = vst [vmem:[%s4958 + $0x24] sm:$0xf] %v4927
        %4965 = vst [vmem:[%s4958 + $0x30] sm:$0xf] %v4928
        %4966 = vst [vmem:[%s4958 + $0x34] sm:$0xf] %v4929
        %4967 = vst [vmem:[%s4958 + $0x40] sm:$0xf] %v4930
        %4968 = vst [vmem:[%s4958 + $0x44] sm:$0xf] %v4931
        %4969 = vst [vmem:[%s4958 + $0x50] sm:$0xf] %v4932
        %4970 = vst [vmem:[%s4958 + $0x54] sm:$0xf] %v4933
        %4971 = vst [vmem:[%s4958 + $0x60] sm:$0xf] %v4934
        %4972 = vst [vmem:[%s4958 + $0x64] sm:$0xf] %v4935
        %4973 = vst [vmem:[%s4958 + $0x70] sm:$0xf] %v4936
        %4974 = vst [vmem:[%s4958 + $0x74] sm:$0xf] %v4937
        %4975 = vst [vmem:[%s4958 + $0x80] sm:$0xf] %v4938
        %4976 = vst [vmem:[%s4958 + $0x84] sm:$0xf] %v4939
        %4977 = vst [vmem:[%s4958 + $0x90] sm:$0xf] %v4940
        %4978 = vst [vmem:[%s4958 + $0x94] sm:$0xf] %v4941
        %4979 = vst [vmem:[%s4958 + $0xa0] sm:$0xf] %v4942
        %4980 = vst [vmem:[%s4958 + $0xa4] sm:$0xf] %v4943
        %4981 = vst [vmem:[%s4958 + $0xb0] sm:$0xf] %v4944
        %4982 = vst [vmem:[%s4958 + $0xb4] sm:$0xf] %v4945
        %4983 = vst [vmem:[%s4958 + $0xc0] sm:$0xf] %v4946
        %4984 = vst [vmem:[%s4958 + $0xc4] sm:$0xf] %v4947
        %4985 = vst [vmem:[%s4958 + $0xd0] sm:$0xf] %v4948
        %4986 = vst [vmem:[%s4958 + $0xd4] sm:$0xf] %v4949
        %4987 = vst [vmem:[%s4958 + $0xe0] sm:$0xf] %v4950
        %4988 = vst [vmem:[%s4958 + $0xe4] sm:$0xf] %v4951
        %4989 = vst [vmem:[%s4958 + $0xf0] sm:$0xf] %v4952
        %4990 = vst [vmem:[%s4958 + $0xf4] sm:$0xf] %v4953
        %4991 = vst [vmem:[%s4958 + $0x100] sm:$0xf] %v4954
        %4992 = vst [vmem:[%s4958 + $0x104] sm:$0xf] %v4955
        %4993 = vst [vmem:[%s4958 + $0x110] sm:$0xf] %v4956
        %4994 = vst [vmem:[%s4958 + $0x114] sm:$0xf] %v4957
        %p4995 = scmp.eq.s32.totalorder %s26, 0
        // Predicated region
        $region49: #{residual_conv_unit.1} parent=47 // pred_check
          %p4996 = pneg %p4995
        $region50: #{residual_conv_unit.1} parent=47 // pred_check_branch
          %4998 = sbr.rel (%p4996) target = $region52
        $region51: #{residual_conv_unit.1} parent=47 // pred_region
          %4999 = vst [vmem:[%s4958] sm:$0xf] 0
          %5000 = vst [vmem:[%s4958 + $0x4] sm:$0xf] 0
          %s5001 = scalar_lea.vmem [#allocation3], 304
          %5002 = vst [vmem:[%s5001] sm:$0xf] 0
          %5003 = vst [vmem:[%s5001 + $0x4] sm:$0xf] 0
        $region52: #{residual_conv_unit.1} parent=47 // pred_fallthru
          _
        %s5004 = scalar_lea.vmem [#allocation3], 16
        %v5005 = vld [vmem:[%s5004 + $0xc] sm:$0xf]
        %v5006 = vld [vmem:[%s5004 + $0x10] sm:$0xf]
        %v5007 = vld [vmem:[%s5004 + $0x14] sm:$0xf]
        %v5008 = vld [vmem:[%s5004 + $0x18] sm:$0xf]
        %v5009 = vld [vmem:[%s5004 + $0x1c] sm:$0xf]
        %v5010 = vld [vmem:[%s5004 + $0x20] sm:$0xf]
        %v5011 = vld [vmem:[%s5004 + $0x24] sm:$0xf]
        %v5012 = vld [vmem:[%s5004 + $0x28] sm:$0xf]
        %v5013 = vld [vmem:[%s5004 + $0x2c] sm:$0xf]
        %v5014 = vld [vmem:[%s5004 + $0x30] sm:$0xf]
        %v5015 = vld [vmem:[%s5004 + $0x34] sm:$0xf]
        %v5016 = vld [vmem:[%s5004 + $0x38] sm:$0xf]
        %v5017 = vld [vmem:[%s5004 + $0x3c] sm:$0xf]
        %v5018 = vld [vmem:[%s5004 + $0x40] sm:$0xf]
        %v5019 = vld [vmem:[%s5004 + $0x44] sm:$0xf]
        %v5020 = vld [vmem:[%s5004 + $0x48] sm:$0xf]
        %v5021 = vld [vmem:[%s5004 + $0x4c] sm:$0xf]
        %v5022 = vld [vmem:[%s5004 + $0x50] sm:$0xf]
        %v5023 = vld [vmem:[%s5004 + $0x54] sm:$0xf]
        %v5024 = vld [vmem:[%s5004 + $0x58] sm:$0xf]
        %v5025 = vld [vmem:[%s5004 + $0x5c] sm:$0xf]
        %v5026 = vld [vmem:[%s5004 + $0x60] sm:$0xf]
        %v5027 = vld [vmem:[%s5004 + $0x64] sm:$0xf]
        %v5028 = vld [vmem:[%s5004 + $0x68] sm:$0xf]
        %v5029 = vld [vmem:[%s5004 + $0x6c] sm:$0xf]
        %v5030 = vld [vmem:[%s5004 + $0x70] sm:$0xf]
        %v5031 = vld [vmem:[%s5004 + $0x74] sm:$0xf]
        %v5032 = vld [vmem:[%s5004 + $0x78] sm:$0xf]
        %v5033 = vld [vmem:[%s5004 + $0x7c] sm:$0xf]
        %v5034 = vld [vmem:[%s5004 + $0x80] sm:$0xf]
        %v5035 = vld [vmem:[%s5004 + $0x84] sm:$0xf]
        %v5036 = vld [vmem:[%s5004 + $0x88] sm:$0xf]
        %v5037 = vld [vmem:[%s5004 + $0x8c] sm:$0xf]
        %v5038 = vld [vmem:[%s5004 + $0x90] sm:$0xf]
        %v5039 = vld [vmem:[%s5004 + $0x94] sm:$0xf]
        %v5040 = vld [vmem:[%s5004 + $0x98] sm:$0xf]
        %v5041 = vld [vmem:[%s5004 + $0x9c] sm:$0xf]
        %v5042 = vld [vmem:[%s5004 + $0xa0] sm:$0xf]
        %v5043 = vld [vmem:[%s5004 + $0xa4] sm:$0xf]
        %v5044 = vld [vmem:[%s5004 + $0xa8] sm:$0xf]
        %v5045 = vld [vmem:[%s5004 + $0xac] sm:$0xf]
        %v5046 = vld [vmem:[%s5004 + $0xb0] sm:$0xf]
        %v5047 = vld [vmem:[%s5004 + $0xb4] sm:$0xf]
        %v5048 = vld [vmem:[%s5004 + $0xb8] sm:$0xf]
        %v5049 = vld [vmem:[%s5004 + $0xbc] sm:$0xf]
        %v5050 = vld [vmem:[%s5004 + $0xc0] sm:$0xf]
        %v5051 = vld [vmem:[%s5004 + $0xc4] sm:$0xf]
        %v5052 = vld [vmem:[%s5004 + $0xc8] sm:$0xf]
        %v5053 = vld [vmem:[%s5004 + $0xcc] sm:$0xf]
        %v5054 = vld [vmem:[%s5004 + $0xd0] sm:$0xf]
        %v5055 = vld [vmem:[%s5004 + $0xd4] sm:$0xf]
        %v5056 = vld [vmem:[%s5004 + $0xd8] sm:$0xf]
        %v5057 = vld [vmem:[%s5004 + $0xdc] sm:$0xf]
        %v5058 = vld [vmem:[%s5004 + $0xe0] sm:$0xf]
        %v5059 = vld [vmem:[%s5004 + $0xe4] sm:$0xf]
        %v5060 = vld [vmem:[%s5004 + $0xe8] sm:$0xf]
        %v5061 = vld [vmem:[%s5004 + $0xec] sm:$0xf]
        %v5062 = vld [vmem:[%s5004 + $0xf0] sm:$0xf]
        %v5063 = vld [vmem:[%s5004 + $0xf4] sm:$0xf]
        %v5064 = vld [vmem:[%s5004 + $0xf8] sm:$0xf]
        %v5065 = vld [vmem:[%s5004 + $0xfc] sm:$0xf]
        %v5066 = vld [vmem:[%s5004 + $0x100] sm:$0xf]
        %v5067 = vld [vmem:[%s5004 + $0x104] sm:$0xf]
        %v5068 = vld [vmem:[%s5004 + $0x108] sm:$0xf]
        %v5069 = vld [vmem:[%s5004 + $0x10c] sm:$0xf]
        %v5070 = vld [vmem:[%s5004 + $0x110] sm:$0xf]
        %v5071 = vld [vmem:[%s5004 + $0x114] sm:$0xf]
        %v5072 = vld [vmem:[%s5004 + $0x118] sm:$0xf]
        %v5073 = vld [vmem:[%s5004 + $0x11c] sm:$0xf]
        %v5074 = vld [vmem:[%s5004 + $0x120] sm:$0xf]
        %v5075 = vld [vmem:[%s5004 + $0x124] sm:$0xf]
        %v5076 = vld [vmem:[%s5004 + $0x128] sm:$0xf]
        %v5077 = vld [vmem:[%s5004 + $0x12c] sm:$0xf]
        %v5078 = vld [vmem:[%s5004 + $0x130] sm:$0xf]
        %v5144 = vunpack.c.l.b16 %v5005
        %v5145 = vunpack.c.l.b16 %v5006
        %v5146 = vunpack.c.l.b16 %v5007
        %v5147 = vunpack.c.l.b16 %v5008
        %v5148 = vunpack.c.l.b16 %v5009
        %v5149 = vunpack.c.l.b16 %v5010
        %v5150 = vunpack.c.l.b16 %v5011
        %v5151 = vunpack.c.l.b16 %v5012
        %v5152 = vunpack.c.l.b16 %v5013
        %v5153 = vunpack.c.l.b16 %v5014
        %v5154 = vunpack.c.l.b16 %v5015
        %v5155 = vunpack.c.l.b16 %v5016
        %v5156 = vunpack.c.l.b16 %v5017
        %v5157 = vunpack.c.l.b16 %v5018
        %v5158 = vunpack.c.l.b16 %v5019
        %v5159 = vunpack.c.l.b16 %v5020
        %v5160 = vunpack.c.l.b16 %v5021
        %v5161 = vunpack.c.l.b16 %v5022
        %v5162 = vunpack.c.l.b16 %v5023
        %v5163 = vunpack.c.l.b16 %v5024
        %v5164 = vunpack.c.l.b16 %v5025
        %v5165 = vunpack.c.l.b16 %v5026
        %v5166 = vunpack.c.l.b16 %v5027
        %v5167 = vunpack.c.l.b16 %v5028
        %v5168 = vunpack.c.l.b16 %v5029
        %v5169 = vunpack.c.l.b16 %v5030
        %v5170 = vunpack.c.l.b16 %v5031
        %v5171 = vunpack.c.l.b16 %v5032
        %v5172 = vunpack.c.l.b16 %v5033
        %v5173 = vunpack.c.l.b16 %v5034
        %v5174 = vunpack.c.l.b16 %v5035
        %v5175 = vunpack.c.l.b16 %v5036
        %v5176 = vunpack.c.l.b16 %v5037
        %v5177 = vunpack.c.l.b16 %v5038
        %v5178 = vunpack.c.l.b16 %v5039
        %v5179 = vunpack.c.l.b16 %v5040
        %v5180 = vunpack.c.l.b16 %v5041
        %v5181 = vunpack.c.l.b16 %v5042
        %v5182 = vunpack.c.l.b16 %v5043
        %v5183 = vunpack.c.l.b16 %v5044
        %v5184 = vunpack.c.l.b16 %v5045
        %v5185 = vunpack.c.l.b16 %v5046
        %v5186 = vunpack.c.l.b16 %v5047
        %v5187 = vunpack.c.l.b16 %v5048
        %v5188 = vunpack.c.l.b16 %v5049
        %v5189 = vunpack.c.l.b16 %v5050
        %v5190 = vunpack.c.l.b16 %v5051
        %v5191 = vunpack.c.l.b16 %v5052
        %v5192 = vunpack.c.l.b16 %v5053
        %v5193 = vunpack.c.l.b16 %v5054
        %v5194 = vunpack.c.l.b16 %v5055
        %v5195 = vunpack.c.l.b16 %v5056
        %v5196 = vunpack.c.l.b16 %v5057
        %v5197 = vunpack.c.l.b16 %v5058
        %v5198 = vunpack.c.l.b16 %v5059
        %v5199 = vunpack.c.l.b16 %v5060
        %v5200 = vunpack.c.l.b16 %v5061
        %v5201 = vunpack.c.l.b16 %v5062
        %v5202 = vunpack.c.l.b16 %v5063
        %v5203 = vunpack.c.l.b16 %v5064
        %v5204 = vunpack.c.l.b16 %v5065
        %v5205 = vunpack.c.l.b16 %v5066
        %v5206 = vunpack.c.l.b16 %v5067
        %v5207 = vunpack.c.l.b16 %v5068
        %v5208 = vunpack.c.l.b16 %v5069
        %v5209 = vpack.c.b16 %v5145, %v5144
        %v5210 = vpack.c.b16 %v5147, %v5146
        %v5211 = vpack.c.b16 %v5149, %v5148
        %v5212 = vpack.c.b16 %v5151, %v5150
        %v5213 = vpack.c.b16 %v5153, %v5152
        %v5214 = vpack.c.b16 %v5155, %v5154
        %v5215 = vpack.c.b16 %v5157, %v5156
        %v5216 = vpack.c.b16 %v5159, %v5158
        %v5217 = vpack.c.b16 %v5161, %v5160
        %v5218 = vpack.c.b16 %v5163, %v5162
        %v5219 = vpack.c.b16 %v5165, %v5164
        %v5220 = vpack.c.b16 %v5167, %v5166
        %v5221 = vpack.c.b16 %v5169, %v5168
        %v5222 = vpack.c.b16 %v5171, %v5170
        %v5223 = vpack.c.b16 %v5173, %v5172
        %v5224 = vpack.c.b16 %v5175, %v5174
        %v5225 = vpack.c.b16 %v5177, %v5176
        %v5226 = vpack.c.b16 %v5179, %v5178
        %v5227 = vpack.c.b16 %v5181, %v5180
        %v5228 = vpack.c.b16 %v5183, %v5182
        %v5229 = vpack.c.b16 %v5185, %v5184
        %v5230 = vpack.c.b16 %v5187, %v5186
        %v5231 = vpack.c.b16 %v5189, %v5188
        %v5232 = vpack.c.b16 %v5191, %v5190
        %v5233 = vpack.c.b16 %v5193, %v5192
        %v5234 = vpack.c.b16 %v5195, %v5194
        %v5235 = vpack.c.b16 %v5197, %v5196
        %v5236 = vpack.c.b16 %v5199, %v5198
        %v5237 = vpack.c.b16 %v5201, %v5200
        %v5238 = vpack.c.b16 %v5203, %v5202
        %v5239 = vpack.c.b16 %v5205, %v5204
        %v5240 = vpack.c.b16 %v5207, %v5206
        %v5241 = vpack.c.b16 %v5208, %v5208
        %v5242 = vpack.c.b16 %v5146, %v5145
        %v5243 = vpack.c.b16 %v5148, %v5147
        %v5244 = vpack.c.b16 %v5150, %v5149
        %v5245 = vpack.c.b16 %v5152, %v5151
        %v5246 = vpack.c.b16 %v5154, %v5153
        %v5247 = vpack.c.b16 %v5156, %v5155
        %v5248 = vpack.c.b16 %v5158, %v5157
        %v5249 = vpack.c.b16 %v5160, %v5159
        %v5250 = vpack.c.b16 %v5162, %v5161
        %v5251 = vpack.c.b16 %v5164, %v5163
        %v5252 = vpack.c.b16 %v5166, %v5165
        %v5253 = vpack.c.b16 %v5168, %v5167
        %v5254 = vpack.c.b16 %v5170, %v5169
        %v5255 = vpack.c.b16 %v5172, %v5171
        %v5256 = vpack.c.b16 %v5174, %v5173
        %v5257 = vpack.c.b16 %v5176, %v5175
        %v5258 = vpack.c.b16 %v5178, %v5177
        %v5259 = vpack.c.b16 %v5180, %v5179
        %v5260 = vpack.c.b16 %v5182, %v5181
        %v5261 = vpack.c.b16 %v5184, %v5183
        %v5262 = vpack.c.b16 %v5186, %v5185
        %v5263 = vpack.c.b16 %v5188, %v5187
        %v5264 = vpack.c.b16 %v5190, %v5189
        %v5265 = vpack.c.b16 %v5192, %v5191
        %v5266 = vpack.c.b16 %v5194, %v5193
        %v5267 = vpack.c.b16 %v5196, %v5195
        %v5268 = vpack.c.b16 %v5198, %v5197
        %v5269 = vpack.c.b16 %v5200, %v5199
        %v5270 = vpack.c.b16 %v5202, %v5201
        %v5271 = vpack.c.b16 %v5204, %v5203
        %v5272 = vpack.c.b16 %v5206, %v5205
        %v5273 = vpack.c.b16 %v5208, %v5207
        %v5275 = vshrl.u32 %v5242, 16
        %v5277 = vrot.slane %v5275, 4
        %v5278 = vshll.u32 %v5242, 16
        %v5280 = vrot.slane %v5278, 5
        %v5281 = vor.u32 %v5277, %v5280
        %v5283 = vshrl.u32 %v5243, 16
        %v5285 = vrot.slane %v5283, 4
        %v5286 = vshll.u32 %v5243, 16
        %v5288 = vrot.slane %v5286, 5
        %v5289 = vor.u32 %v5285, %v5288
        %v5290 = vsel %vm1053, %v5281, %v5289
        %v5292 = vshrl.u32 %v5244, 16
        %v5294 = vrot.slane %v5292, 4
        %v5295 = vshll.u32 %v5244, 16
        %v5297 = vrot.slane %v5295, 5
        %v5298 = vor.u32 %v5294, %v5297
        %v5299 = vsel %vm1053, %v5289, %v5298
        %v5301 = vshrl.u32 %v5245, 16
        %v5303 = vrot.slane %v5301, 4
        %v5304 = vshll.u32 %v5245, 16
        %v5306 = vrot.slane %v5304, 5
        %v5307 = vor.u32 %v5303, %v5306
        %v5308 = vsel %vm1053, %v5298, %v5307
        %v5310 = vshrl.u32 %v5246, 16
        %v5312 = vrot.slane %v5310, 4
        %v5313 = vshll.u32 %v5246, 16
        %v5315 = vrot.slane %v5313, 5
        %v5316 = vor.u32 %v5312, %v5315
        %v5317 = vsel %vm1053, %v5307, %v5316
        %v5319 = vshrl.u32 %v5247, 16
        %v5321 = vrot.slane %v5319, 4
        %v5322 = vshll.u32 %v5247, 16
        %v5324 = vrot.slane %v5322, 5
        %v5325 = vor.u32 %v5321, %v5324
        %v5326 = vsel %vm1053, %v5316, %v5325
        %v5328 = vshrl.u32 %v5248, 16
        %v5330 = vrot.slane %v5328, 4
        %v5331 = vshll.u32 %v5248, 16
        %v5333 = vrot.slane %v5331, 5
        %v5334 = vor.u32 %v5330, %v5333
        %v5335 = vsel %vm1053, %v5325, %v5334
        %v5337 = vshrl.u32 %v5249, 16
        %v5339 = vrot.slane %v5337, 4
        %v5340 = vshll.u32 %v5249, 16
        %v5342 = vrot.slane %v5340, 5
        %v5343 = vor.u32 %v5339, %v5342
        %v5344 = vsel %vm1053, %v5334, %v5343
        %v5346 = vshrl.u32 %v5250, 16
        %v5348 = vrot.slane %v5346, 4
        %v5349 = vshll.u32 %v5250, 16
        %v5351 = vrot.slane %v5349, 5
        %v5352 = vor.u32 %v5348, %v5351
        %v5353 = vsel %vm1053, %v5343, %v5352
        %v5355 = vshrl.u32 %v5251, 16
        %v5357 = vrot.slane %v5355, 4
        %v5358 = vshll.u32 %v5251, 16
        %v5360 = vrot.slane %v5358, 5
        %v5361 = vor.u32 %v5357, %v5360
        %v5362 = vsel %vm1053, %v5352, %v5361
        %v5364 = vshrl.u32 %v5252, 16
        %v5366 = vrot.slane %v5364, 4
        %v5367 = vshll.u32 %v5252, 16
        %v5369 = vrot.slane %v5367, 5
        %v5370 = vor.u32 %v5366, %v5369
        %v5371 = vsel %vm1053, %v5361, %v5370
        %v5373 = vshrl.u32 %v5253, 16
        %v5375 = vrot.slane %v5373, 4
        %v5376 = vshll.u32 %v5253, 16
        %v5378 = vrot.slane %v5376, 5
        %v5379 = vor.u32 %v5375, %v5378
        %v5380 = vsel %vm1053, %v5370, %v5379
        %v5382 = vshrl.u32 %v5254, 16
        %v5384 = vrot.slane %v5382, 4
        %v5385 = vshll.u32 %v5254, 16
        %v5387 = vrot.slane %v5385, 5
        %v5388 = vor.u32 %v5384, %v5387
        %v5389 = vsel %vm1053, %v5379, %v5388
        %v5391 = vshrl.u32 %v5255, 16
        %v5393 = vrot.slane %v5391, 4
        %v5394 = vshll.u32 %v5255, 16
        %v5396 = vrot.slane %v5394, 5
        %v5397 = vor.u32 %v5393, %v5396
        %v5398 = vsel %vm1053, %v5388, %v5397
        %v5400 = vshrl.u32 %v5256, 16
        %v5402 = vrot.slane %v5400, 4
        %v5403 = vshll.u32 %v5256, 16
        %v5405 = vrot.slane %v5403, 5
        %v5406 = vor.u32 %v5402, %v5405
        %v5407 = vsel %vm1053, %v5397, %v5406
        %v5409 = vshrl.u32 %v5257, 16
        %v5411 = vrot.slane %v5409, 4
        %v5412 = vshll.u32 %v5257, 16
        %v5414 = vrot.slane %v5412, 5
        %v5415 = vor.u32 %v5411, %v5414
        %v5416 = vsel %vm1053, %v5406, %v5415
        %v5418 = vshrl.u32 %v5258, 16
        %v5420 = vrot.slane %v5418, 4
        %v5421 = vshll.u32 %v5258, 16
        %v5423 = vrot.slane %v5421, 5
        %v5424 = vor.u32 %v5420, %v5423
        %v5425 = vsel %vm1053, %v5415, %v5424
        %v5427 = vshrl.u32 %v5259, 16
        %v5429 = vrot.slane %v5427, 4
        %v5430 = vshll.u32 %v5259, 16
        %v5432 = vrot.slane %v5430, 5
        %v5433 = vor.u32 %v5429, %v5432
        %v5434 = vsel %vm1053, %v5424, %v5433
        %v5436 = vshrl.u32 %v5260, 16
        %v5438 = vrot.slane %v5436, 4
        %v5439 = vshll.u32 %v5260, 16
        %v5441 = vrot.slane %v5439, 5
        %v5442 = vor.u32 %v5438, %v5441
        %v5443 = vsel %vm1053, %v5433, %v5442
        %v5445 = vshrl.u32 %v5261, 16
        %v5447 = vrot.slane %v5445, 4
        %v5448 = vshll.u32 %v5261, 16
        %v5450 = vrot.slane %v5448, 5
        %v5451 = vor.u32 %v5447, %v5450
        %v5452 = vsel %vm1053, %v5442, %v5451
        %v5454 = vshrl.u32 %v5262, 16
        %v5456 = vrot.slane %v5454, 4
        %v5457 = vshll.u32 %v5262, 16
        %v5459 = vrot.slane %v5457, 5
        %v5460 = vor.u32 %v5456, %v5459
        %v5461 = vsel %vm1053, %v5451, %v5460
        %v5463 = vshrl.u32 %v5263, 16
        %v5465 = vrot.slane %v5463, 4
        %v5466 = vshll.u32 %v5263, 16
        %v5468 = vrot.slane %v5466, 5
        %v5469 = vor.u32 %v5465, %v5468
        %v5470 = vsel %vm1053, %v5460, %v5469
        %v5472 = vshrl.u32 %v5264, 16
        %v5474 = vrot.slane %v5472, 4
        %v5475 = vshll.u32 %v5264, 16
        %v5477 = vrot.slane %v5475, 5
        %v5478 = vor.u32 %v5474, %v5477
        %v5479 = vsel %vm1053, %v5469, %v5478
        %v5481 = vshrl.u32 %v5265, 16
        %v5483 = vrot.slane %v5481, 4
        %v5484 = vshll.u32 %v5265, 16
        %v5486 = vrot.slane %v5484, 5
        %v5487 = vor.u32 %v5483, %v5486
        %v5488 = vsel %vm1053, %v5478, %v5487
        %v5490 = vshrl.u32 %v5266, 16
        %v5492 = vrot.slane %v5490, 4
        %v5493 = vshll.u32 %v5266, 16
        %v5495 = vrot.slane %v5493, 5
        %v5496 = vor.u32 %v5492, %v5495
        %v5497 = vsel %vm1053, %v5487, %v5496
        %v5499 = vshrl.u32 %v5267, 16
        %v5501 = vrot.slane %v5499, 4
        %v5502 = vshll.u32 %v5267, 16
        %v5504 = vrot.slane %v5502, 5
        %v5505 = vor.u32 %v5501, %v5504
        %v5506 = vsel %vm1053, %v5496, %v5505
        %v5508 = vshrl.u32 %v5268, 16
        %v5510 = vrot.slane %v5508, 4
        %v5511 = vshll.u32 %v5268, 16
        %v5513 = vrot.slane %v5511, 5
        %v5514 = vor.u32 %v5510, %v5513
        %v5515 = vsel %vm1053, %v5505, %v5514
        %v5517 = vshrl.u32 %v5269, 16
        %v5519 = vrot.slane %v5517, 4
        %v5520 = vshll.u32 %v5269, 16
        %v5522 = vrot.slane %v5520, 5
        %v5523 = vor.u32 %v5519, %v5522
        %v5524 = vsel %vm1053, %v5514, %v5523
        %v5526 = vshrl.u32 %v5270, 16
        %v5528 = vrot.slane %v5526, 4
        %v5529 = vshll.u32 %v5270, 16
        %v5531 = vrot.slane %v5529, 5
        %v5532 = vor.u32 %v5528, %v5531
        %v5533 = vsel %vm1053, %v5523, %v5532
        %v5535 = vshrl.u32 %v5271, 16
        %v5537 = vrot.slane %v5535, 4
        %v5538 = vshll.u32 %v5271, 16
        %v5540 = vrot.slane %v5538, 5
        %v5541 = vor.u32 %v5537, %v5540
        %v5542 = vsel %vm1053, %v5532, %v5541
        %v5544 = vshrl.u32 %v5272, 16
        %v5546 = vrot.slane %v5544, 4
        %v5547 = vshll.u32 %v5272, 16
        %v5549 = vrot.slane %v5547, 5
        %v5550 = vor.u32 %v5546, %v5549
        %v5551 = vsel %vm1053, %v5541, %v5550
        %v5553 = vshrl.u32 %v5273, 16
        %v5555 = vrot.slane %v5553, 4
        %v5556 = vshll.u32 %v5273, 16
        %v5558 = vrot.slane %v5556, 5
        %v5559 = vor.u32 %v5555, %v5558
        %v5560 = vsel %vm1053, %v5550, %v5559
        %v5562 = vunpack.c.l.b16 %v5070
        %v5563 = vpack.c.b16 %v5562, %v5562
        %v5564 = vrot.slane %v5242, 5
        %v5565 = vrot.slane %v5243, 5
        %v5566 = vsel %vm1380, %v5564, %v5565
        %v5567 = vrot.slane %v5244, 5
        %v5568 = vsel %vm1380, %v5565, %v5567
        %v5569 = vrot.slane %v5245, 5
        %v5570 = vsel %vm1380, %v5567, %v5569
        %v5571 = vrot.slane %v5246, 5
        %v5572 = vsel %vm1380, %v5569, %v5571
        %v5573 = vrot.slane %v5247, 5
        %v5574 = vsel %vm1380, %v5571, %v5573
        %v5575 = vrot.slane %v5248, 5
        %v5576 = vsel %vm1380, %v5573, %v5575
        %v5577 = vrot.slane %v5249, 5
        %v5578 = vsel %vm1380, %v5575, %v5577
        %v5579 = vrot.slane %v5250, 5
        %v5580 = vsel %vm1380, %v5577, %v5579
        %v5581 = vrot.slane %v5251, 5
        %v5582 = vsel %vm1380, %v5579, %v5581
        %v5583 = vrot.slane %v5252, 5
        %v5584 = vsel %vm1380, %v5581, %v5583
        %v5585 = vrot.slane %v5253, 5
        %v5586 = vsel %vm1380, %v5583, %v5585
        %v5587 = vrot.slane %v5254, 5
        %v5588 = vsel %vm1380, %v5585, %v5587
        %v5589 = vrot.slane %v5255, 5
        %v5590 = vsel %vm1380, %v5587, %v5589
        %v5591 = vrot.slane %v5256, 5
        %v5592 = vsel %vm1380, %v5589, %v5591
        %v5593 = vrot.slane %v5257, 5
        %v5594 = vsel %vm1380, %v5591, %v5593
        %v5595 = vrot.slane %v5258, 5
        %v5596 = vsel %vm1380, %v5593, %v5595
        %v5597 = vrot.slane %v5259, 5
        %v5598 = vsel %vm1380, %v5595, %v5597
        %v5599 = vrot.slane %v5260, 5
        %v5600 = vsel %vm1380, %v5597, %v5599
        %v5601 = vrot.slane %v5261, 5
        %v5602 = vsel %vm1380, %v5599, %v5601
        %v5603 = vrot.slane %v5262, 5
        %v5604 = vsel %vm1380, %v5601, %v5603
        %v5605 = vrot.slane %v5263, 5
        %v5606 = vsel %vm1380, %v5603, %v5605
        %v5607 = vrot.slane %v5264, 5
        %v5608 = vsel %vm1380, %v5605, %v5607
        %v5609 = vrot.slane %v5265, 5
        %v5610 = vsel %vm1380, %v5607, %v5609
        %v5611 = vrot.slane %v5266, 5
        %v5612 = vsel %vm1380, %v5609, %v5611
        %v5613 = vrot.slane %v5267, 5
        %v5614 = vsel %vm1380, %v5611, %v5613
        %v5615 = vrot.slane %v5268, 5
        %v5616 = vsel %vm1380, %v5613, %v5615
        %v5617 = vrot.slane %v5269, 5
        %v5618 = vsel %vm1380, %v5615, %v5617
        %v5619 = vrot.slane %v5270, 5
        %v5620 = vsel %vm1380, %v5617, %v5619
        %v5621 = vrot.slane %v5271, 5
        %v5622 = vsel %vm1380, %v5619, %v5621
        %v5623 = vrot.slane %v5272, 5
        %v5624 = vsel %vm1380, %v5621, %v5623
        %v5625 = vrot.slane %v5273, 5
        %v5626 = vsel %vm1380, %v5623, %v5625
        %v5627 = vrot.slane %v5563, 5
        %v5628 = vsel %vm1380, %v5625, %v5627
        %v5629 = vld [vmem:[%s5] sm:$0xf]
        %v5630 = vld [vmem:[%s5 + $0x4] sm:$0xf]
        %v5631 = vld [vmem:[%s5 + $0x8] sm:$0xf]
        %v5632 = vld [vmem:[%s5 + $0xc] sm:$0xf]
        %v5633 = vld [vmem:[%s5 + $0x10] sm:$0xf]
        %v5634 = vld [vmem:[%s5 + $0x14] sm:$0xf]
        %v5635 = vld [vmem:[%s5 + $0x18] sm:$0xf]
        %v5636 = vld [vmem:[%s5 + $0x1c] sm:$0xf]
        %v5637 = vld [vmem:[%s5 + $0x20] sm:$0xf]
        %v5638 = vld [vmem:[%s5 + $0x24] sm:$0xf]
        %v5639 = vld [vmem:[%s5 + $0x28] sm:$0xf]
        %v5640 = vld [vmem:[%s5 + $0x2c] sm:$0xf]
        %v5641 = vld [vmem:[%s5 + $0x30] sm:$0xf]
        %v5642 = vld [vmem:[%s5 + $0x34] sm:$0xf]
        %v5643 = vld [vmem:[%s5 + $0x38] sm:$0xf]
        %v5644 = vld [vmem:[%s5 + $0x3c] sm:$0xf]
        %v5645 = vld [vmem:[%s5 + $0x40] sm:$0xf]
        %v5646 = vld [vmem:[%s5 + $0x44] sm:$0xf]
        %v5647 = vld [vmem:[%s5 + $0x48] sm:$0xf]
        %v5648 = vld [vmem:[%s5 + $0x4c] sm:$0xf]
        %v5649 = vld [vmem:[%s5 + $0x50] sm:$0xf]
        %v5650 = vld [vmem:[%s5 + $0x54] sm:$0xf]
        %v5651 = vld [vmem:[%s5 + $0x58] sm:$0xf]
        %v5652 = vld [vmem:[%s5 + $0x5c] sm:$0xf]
        %v5653 = vld [vmem:[%s5 + $0x60] sm:$0xf]
        %v5654 = vld [vmem:[%s5 + $0x64] sm:$0xf]
        %v5655 = vld [vmem:[%s5 + $0x68] sm:$0xf]
        %v5656 = vld [vmem:[%s5 + $0x6c] sm:$0xf]
        %v5657 = vld [vmem:[%s5 + $0x70] sm:$0xf]
        %v5658 = vld [vmem:[%s5 + $0x74] sm:$0xf]
        %v5659 = vld [vmem:[%s5 + $0x78] sm:$0xf]
        %v5660 = vld [vmem:[%s5 + $0x7c] sm:$0xf]
        %v5661 = vld [vmem:[%s5 + $0x80] sm:$0xf]
        %v5662 = vld [vmem:[%s5 + $0x84] sm:$0xf]
        %v5663 = vld [vmem:[%s5 + $0x88] sm:$0xf]
        %v5664 = vld [vmem:[%s5 + $0x8c] sm:$0xf]
        %v5665 = vld [vmem:[%s5 + $0x90] sm:$0xf]
        %v5666 = vld [vmem:[%s5 + $0x94] sm:$0xf]
        %v5667 = vld [vmem:[%s5 + $0x98] sm:$0xf]
        %v5668 = vld [vmem:[%s5 + $0x9c] sm:$0xf]
        %v5669 = vld [vmem:[%s5 + $0xa0] sm:$0xf]
        %v5670 = vld [vmem:[%s5 + $0xa4] sm:$0xf]
        %v5671 = vld [vmem:[%s5 + $0xa8] sm:$0xf]
        %v5672 = vld [vmem:[%s5 + $0xac] sm:$0xf]
        %v5673 = vld [vmem:[%s5 + $0xb0] sm:$0xf]
        %v5674 = vld [vmem:[%s5 + $0xb4] sm:$0xf]
        %v5675 = vld [vmem:[%s5 + $0xb8] sm:$0xf]
        %v5676 = vld [vmem:[%s5 + $0xbc] sm:$0xf]
        %v5680 = vunpack.c.l.b16 %v5071
        %v5681 = vunpack.c.l.b16 %v5072
        %v5682 = vunpack.c.l.b16 %v5073
        %v5683 = vpack.c.b16 %v5562, %v5208
        %v5684 = vpack.c.b16 %v5681, %v5680
        %v5685 = vpack.c.b16 %v5682, %v5682
        %v5686 = vpack.c.b16 %v5680, %v5562
        %v5687 = vpack.c.b16 %v5682, %v5681
        %v5689 = vshrl.u32 %v5686, 16
        %v5691 = vrot.slane %v5689, 4
        %v5692 = vshll.u32 %v5686, 16
        %v5694 = vrot.slane %v5692, 5
        %v5695 = vor.u32 %v5691, %v5694
        %v5696 = vsel %vm1053, %v5559, %v5695
        %v5698 = vshrl.u32 %v5687, 16
        %v5700 = vrot.slane %v5698, 4
        %v5701 = vshll.u32 %v5687, 16
        %v5703 = vrot.slane %v5701, 5
        %v5704 = vor.u32 %v5700, %v5703
        %v5705 = vsel %vm1053, %v5695, %v5704
        %v5707 = vunpack.c.l.b16 %v5074
        %v5708 = vpack.c.b16 %v5707, %v5707
        %v5709 = vrot.slane %v5686, 5
        %v5710 = vsel %vm1380, %v5625, %v5709
        %v5711 = vrot.slane %v5687, 5
        %v5712 = vsel %vm1380, %v5709, %v5711
        %v5713 = vrot.slane %v5708, 5
        %v5714 = vsel %vm1380, %v5711, %v5713
        %s5715 = scalar_lea.vmem %s5, 192
        %v5716 = vld [vmem:[%s5715] sm:$0xf]
        %v5717 = vld [vmem:[%s5715 + $0x4] sm:$0xf]
        %v5718 = vld [vmem:[%s5715 + $0x8] sm:$0xf]
        %v5719 = vld [vmem:[%s5715 + $0xc] sm:$0xf]
        %v5720 = vld [vmem:[%s5715 + $0x10] sm:$0xf]
        %v5721 = vld [vmem:[%s5715 + $0x14] sm:$0xf]
        %v5722 = vld [vmem:[%s5715 + $0x18] sm:$0xf]
        %v5723 = vld [vmem:[%s5715 + $0x1c] sm:$0xf]
        %v5724 = vld [vmem:[%s5715 + $0x20] sm:$0xf]
        %v5725 = vld [vmem:[%s5715 + $0x24] sm:$0xf]
        %v5726 = vld [vmem:[%s5715 + $0x28] sm:$0xf]
        %v5727 = vld [vmem:[%s5715 + $0x2c] sm:$0xf]
        %v5728 = vld [vmem:[%s5715 + $0x30] sm:$0xf]
        %v5729 = vld [vmem:[%s5715 + $0x34] sm:$0xf]
        %v5730 = vld [vmem:[%s5715 + $0x38] sm:$0xf]
        %v5731 = vld [vmem:[%s5715 + $0x3c] sm:$0xf]
        %v5732 = vld [vmem:[%s5715 + $0x40] sm:$0xf]
        %v5733 = vld [vmem:[%s5715 + $0x44] sm:$0xf]
        %v5734 = vld [vmem:[%s5715 + $0x48] sm:$0xf]
        %v5735 = vld [vmem:[%s5715 + $0x4c] sm:$0xf]
        %v5736 = vld [vmem:[%s5715 + $0x50] sm:$0xf]
        %v5737 = vld [vmem:[%s5715 + $0x54] sm:$0xf]
        %v5738 = vld [vmem:[%s5715 + $0x58] sm:$0xf]
        %v5739 = vld [vmem:[%s5715 + $0x5c] sm:$0xf]
        %v5740 = vld [vmem:[%s5715 + $0x60] sm:$0xf]
        %v5741 = vld [vmem:[%s5715 + $0x64] sm:$0xf]
        %v5742 = vld [vmem:[%s5715 + $0x68] sm:$0xf]
        %v5743 = vld [vmem:[%s5715 + $0x6c] sm:$0xf]
        %v5744 = vld [vmem:[%s5715 + $0x70] sm:$0xf]
        %v5745 = vld [vmem:[%s5715 + $0x74] sm:$0xf]
        %v5746 = vld [vmem:[%s5715 + $0x78] sm:$0xf]
        %v5747 = vld [vmem:[%s5715 + $0x7c] sm:$0xf]
        %v5748 = vld [vmem:[%s5715 + $0x80] sm:$0xf]
        %v5749 = vld [vmem:[%s5715 + $0x84] sm:$0xf]
        %v5750 = vld [vmem:[%s5715 + $0x88] sm:$0xf]
        %v5751 = vld [vmem:[%s5715 + $0x8c] sm:$0xf]
        %v5752 = vld [vmem:[%s5715 + $0x90] sm:$0xf]
        %v5753 = vld [vmem:[%s5715 + $0x94] sm:$0xf]
        %v5754 = vld [vmem:[%s5715 + $0x98] sm:$0xf]
        %v5755 = vld [vmem:[%s5715 + $0x9c] sm:$0xf]
        %v5756 = vld [vmem:[%s5715 + $0xa0] sm:$0xf]
        %v5757 = vld [vmem:[%s5715 + $0xa4] sm:$0xf]
        %v5758 = vld [vmem:[%s5715 + $0xa8] sm:$0xf]
        %v5759 = vld [vmem:[%s5715 + $0xac] sm:$0xf]
        %v5760 = vld [vmem:[%s5715 + $0xb0] sm:$0xf]
        %v5761 = vld [vmem:[%s5715 + $0xb4] sm:$0xf]
        %v5762 = vld [vmem:[%s5715 + $0xb8] sm:$0xf]
        %v5763 = vld [vmem:[%s5715 + $0xbc] sm:$0xf]
        %v5765 = vshrl.u32 %v5211, 16
        %v5767 = vrot.slane %v5765, 3
        %v5768 = vshll.u32 %v5211, 16
        %v5770 = vrot.slane %v5768, 4
        %v5771 = vor.u32 %v5767, %v5770
        %v5773 = vshrl.u32 %v5212, 16
        %v5775 = vrot.slane %v5773, 3
        %v5776 = vshll.u32 %v5212, 16
        %v5778 = vrot.slane %v5776, 4
        %v5779 = vor.u32 %v5775, %v5778
        %v5780 = vsel %vm1589, %v5771, %v5779
        %v5782 = vshrl.u32 %v5298, 16
        %v5784 = vrot.slane %v5782, 3
        %v5785 = vshll.u32 %v5298, 16
        %v5787 = vrot.slane %v5785, 4
        %v5788 = vor.u32 %v5784, %v5787
        %v5790 = vshrl.u32 %v5308, 16
        %v5792 = vrot.slane %v5790, 3
        %v5793 = vshll.u32 %v5308, 16
        %v5795 = vrot.slane %v5793, 4
        %v5796 = vor.u32 %v5792, %v5795
        %v5797 = vsel %vm1589, %v5788, %v5796
        %v5799 = vshrl.u32 %v5567, 16
        %v5801 = vrot.slane %v5799, 3
        %v5802 = vshll.u32 %v5567, 16
        %v5804 = vrot.slane %v5802, 4
        %v5805 = vor.u32 %v5801, %v5804
        %v5807 = vshrl.u32 %v5570, 16
        %v5809 = vrot.slane %v5807, 3
        %v5810 = vshll.u32 %v5570, 16
        %v5812 = vrot.slane %v5810, 4
        %v5813 = vor.u32 %v5809, %v5812
        %v5814 = vsel %vm1589, %v5805, %v5813
        %v5816 = vshrl.u32 %v5213, 16
        %v5818 = vrot.slane %v5816, 3
        %v5819 = vshll.u32 %v5213, 16
        %v5821 = vrot.slane %v5819, 4
        %v5822 = vor.u32 %v5818, %v5821
        %v5823 = vsel %vm1589, %v5779, %v5822
        %v5825 = vshrl.u32 %v5317, 16
        %v5827 = vrot.slane %v5825, 3
        %v5828 = vshll.u32 %v5317, 16
        %v5830 = vrot.slane %v5828, 4
        %v5831 = vor.u32 %v5827, %v5830
        %v5832 = vsel %vm1589, %v5796, %v5831
        %v5834 = vshrl.u32 %v5572, 16
        %v5836 = vrot.slane %v5834, 3
        %v5837 = vshll.u32 %v5572, 16
        %v5839 = vrot.slane %v5837, 4
        %v5840 = vor.u32 %v5836, %v5839
        %v5841 = vsel %vm1589, %v5813, %v5840
        %v5843 = vshrl.u32 %v5214, 16
        %v5845 = vrot.slane %v5843, 3
        %v5846 = vshll.u32 %v5214, 16
        %v5848 = vrot.slane %v5846, 4
        %v5849 = vor.u32 %v5845, %v5848
        %v5850 = vsel %vm1589, %v5822, %v5849
        %v5852 = vshrl.u32 %v5326, 16
        %v5854 = vrot.slane %v5852, 3
        %v5855 = vshll.u32 %v5326, 16
        %v5857 = vrot.slane %v5855, 4
        %v5858 = vor.u32 %v5854, %v5857
        %v5859 = vsel %vm1589, %v5831, %v5858
        %v5861 = vshrl.u32 %v5574, 16
        %v5863 = vrot.slane %v5861, 3
        %v5864 = vshll.u32 %v5574, 16
        %v5866 = vrot.slane %v5864, 4
        %v5867 = vor.u32 %v5863, %v5866
        %v5868 = vsel %vm1589, %v5840, %v5867
        %v5870 = vshrl.u32 %v5215, 16
        %v5872 = vrot.slane %v5870, 3
        %v5873 = vshll.u32 %v5215, 16
        %v5875 = vrot.slane %v5873, 4
        %v5876 = vor.u32 %v5872, %v5875
        %v5877 = vsel %vm1589, %v5849, %v5876
        %v5879 = vshrl.u32 %v5335, 16
        %v5881 = vrot.slane %v5879, 3
        %v5882 = vshll.u32 %v5335, 16
        %v5884 = vrot.slane %v5882, 4
        %v5885 = vor.u32 %v5881, %v5884
        %v5886 = vsel %vm1589, %v5858, %v5885
        %v5888 = vshrl.u32 %v5576, 16
        %v5890 = vrot.slane %v5888, 3
        %v5891 = vshll.u32 %v5576, 16
        %v5893 = vrot.slane %v5891, 4
        %v5894 = vor.u32 %v5890, %v5893
        %v5895 = vsel %vm1589, %v5867, %v5894
        %v5897 = vshrl.u32 %v5216, 16
        %v5899 = vrot.slane %v5897, 3
        %v5900 = vshll.u32 %v5216, 16
        %v5902 = vrot.slane %v5900, 4
        %v5903 = vor.u32 %v5899, %v5902
        %v5904 = vsel %vm1589, %v5876, %v5903
        %v5906 = vshrl.u32 %v5344, 16
        %v5908 = vrot.slane %v5906, 3
        %v5909 = vshll.u32 %v5344, 16
        %v5911 = vrot.slane %v5909, 4
        %v5912 = vor.u32 %v5908, %v5911
        %v5913 = vsel %vm1589, %v5885, %v5912
        %v5915 = vshrl.u32 %v5578, 16
        %v5917 = vrot.slane %v5915, 3
        %v5918 = vshll.u32 %v5578, 16
        %v5920 = vrot.slane %v5918, 4
        %v5921 = vor.u32 %v5917, %v5920
        %v5922 = vsel %vm1589, %v5894, %v5921
        %v5924 = vshrl.u32 %v5217, 16
        %v5926 = vrot.slane %v5924, 3
        %v5927 = vshll.u32 %v5217, 16
        %v5929 = vrot.slane %v5927, 4
        %v5930 = vor.u32 %v5926, %v5929
        %v5931 = vsel %vm1589, %v5903, %v5930
        %v5933 = vshrl.u32 %v5353, 16
        %v5935 = vrot.slane %v5933, 3
        %v5936 = vshll.u32 %v5353, 16
        %v5938 = vrot.slane %v5936, 4
        %v5939 = vor.u32 %v5935, %v5938
        %v5940 = vsel %vm1589, %v5912, %v5939
        %v5942 = vshrl.u32 %v5580, 16
        %v5944 = vrot.slane %v5942, 3
        %v5945 = vshll.u32 %v5580, 16
        %v5947 = vrot.slane %v5945, 4
        %v5948 = vor.u32 %v5944, %v5947
        %v5949 = vsel %vm1589, %v5921, %v5948
        %v5951 = vshrl.u32 %v5218, 16
        %v5953 = vrot.slane %v5951, 3
        %v5954 = vshll.u32 %v5218, 16
        %v5956 = vrot.slane %v5954, 4
        %v5957 = vor.u32 %v5953, %v5956
        %v5958 = vsel %vm1589, %v5930, %v5957
        %v5960 = vshrl.u32 %v5362, 16
        %v5962 = vrot.slane %v5960, 3
        %v5963 = vshll.u32 %v5362, 16
        %v5965 = vrot.slane %v5963, 4
        %v5966 = vor.u32 %v5962, %v5965
        %v5967 = vsel %vm1589, %v5939, %v5966
        %v5969 = vshrl.u32 %v5582, 16
        %v5971 = vrot.slane %v5969, 3
        %v5972 = vshll.u32 %v5582, 16
        %v5974 = vrot.slane %v5972, 4
        %v5975 = vor.u32 %v5971, %v5974
        %v5976 = vsel %vm1589, %v5948, %v5975
        %v5978 = vshrl.u32 %v5219, 16
        %v5980 = vrot.slane %v5978, 3
        %v5981 = vshll.u32 %v5219, 16
        %v5983 = vrot.slane %v5981, 4
        %v5984 = vor.u32 %v5980, %v5983
        %v5985 = vsel %vm1589, %v5957, %v5984
        %v5987 = vshrl.u32 %v5371, 16
        %v5989 = vrot.slane %v5987, 3
        %v5990 = vshll.u32 %v5371, 16
        %v5992 = vrot.slane %v5990, 4
        %v5993 = vor.u32 %v5989, %v5992
        %v5994 = vsel %vm1589, %v5966, %v5993
        %v5996 = vshrl.u32 %v5584, 16
        %v5998 = vrot.slane %v5996, 3
        %v5999 = vshll.u32 %v5584, 16
        %v6001 = vrot.slane %v5999, 4
        %v6002 = vor.u32 %v5998, %v6001
        %v6003 = vsel %vm1589, %v5975, %v6002
        %v6005 = vshrl.u32 %v5220, 16
        %v6007 = vrot.slane %v6005, 3
        %v6008 = vshll.u32 %v5220, 16
        %v6010 = vrot.slane %v6008, 4
        %v6011 = vor.u32 %v6007, %v6010
        %v6012 = vsel %vm1589, %v5984, %v6011
        %v6014 = vshrl.u32 %v5380, 16
        %v6016 = vrot.slane %v6014, 3
        %v6017 = vshll.u32 %v5380, 16
        %v6019 = vrot.slane %v6017, 4
        %v6020 = vor.u32 %v6016, %v6019
        %v6021 = vsel %vm1589, %v5993, %v6020
        %v6023 = vshrl.u32 %v5586, 16
        %v6025 = vrot.slane %v6023, 3
        %v6026 = vshll.u32 %v5586, 16
        %v6028 = vrot.slane %v6026, 4
        %v6029 = vor.u32 %v6025, %v6028
        %v6030 = vsel %vm1589, %v6002, %v6029
        %v6032 = vshrl.u32 %v5221, 16
        %v6034 = vrot.slane %v6032, 3
        %v6035 = vshll.u32 %v5221, 16
        %v6037 = vrot.slane %v6035, 4
        %v6038 = vor.u32 %v6034, %v6037
        %v6039 = vsel %vm1589, %v6011, %v6038
        %v6041 = vshrl.u32 %v5389, 16
        %v6043 = vrot.slane %v6041, 3
        %v6044 = vshll.u32 %v5389, 16
        %v6046 = vrot.slane %v6044, 4
        %v6047 = vor.u32 %v6043, %v6046
        %v6048 = vsel %vm1589, %v6020, %v6047
        %v6050 = vshrl.u32 %v5588, 16
        %v6052 = vrot.slane %v6050, 3
        %v6053 = vshll.u32 %v5588, 16
        %v6055 = vrot.slane %v6053, 4
        %v6056 = vor.u32 %v6052, %v6055
        %v6057 = vsel %vm1589, %v6029, %v6056
        %v6059 = vshrl.u32 %v5222, 16
        %v6061 = vrot.slane %v6059, 3
        %v6062 = vshll.u32 %v5222, 16
        %v6064 = vrot.slane %v6062, 4
        %v6065 = vor.u32 %v6061, %v6064
        %v6066 = vsel %vm1589, %v6038, %v6065
        %v6068 = vshrl.u32 %v5398, 16
        %v6070 = vrot.slane %v6068, 3
        %v6071 = vshll.u32 %v5398, 16
        %v6073 = vrot.slane %v6071, 4
        %v6074 = vor.u32 %v6070, %v6073
        %v6075 = vsel %vm1589, %v6047, %v6074
        %v6077 = vshrl.u32 %v5590, 16
        %v6079 = vrot.slane %v6077, 3
        %v6080 = vshll.u32 %v5590, 16
        %v6082 = vrot.slane %v6080, 4
        %v6083 = vor.u32 %v6079, %v6082
        %v6084 = vsel %vm1589, %v6056, %v6083
        %v6086 = vshrl.u32 %v5223, 16
        %v6088 = vrot.slane %v6086, 3
        %v6089 = vshll.u32 %v5223, 16
        %v6091 = vrot.slane %v6089, 4
        %v6092 = vor.u32 %v6088, %v6091
        %v6093 = vsel %vm1589, %v6065, %v6092
        %v6095 = vshrl.u32 %v5407, 16
        %v6097 = vrot.slane %v6095, 3
        %v6098 = vshll.u32 %v5407, 16
        %v6100 = vrot.slane %v6098, 4
        %v6101 = vor.u32 %v6097, %v6100
        %v6102 = vsel %vm1589, %v6074, %v6101
        %v6104 = vshrl.u32 %v5592, 16
        %v6106 = vrot.slane %v6104, 3
        %v6107 = vshll.u32 %v5592, 16
        %v6109 = vrot.slane %v6107, 4
        %v6110 = vor.u32 %v6106, %v6109
        %v6111 = vsel %vm1589, %v6083, %v6110
        %v6113 = vshrl.u32 %v5224, 16
        %v6115 = vrot.slane %v6113, 3
        %v6116 = vshll.u32 %v5224, 16
        %v6118 = vrot.slane %v6116, 4
        %v6119 = vor.u32 %v6115, %v6118
        %v6120 = vsel %vm1589, %v6092, %v6119
        %v6122 = vshrl.u32 %v5416, 16
        %v6124 = vrot.slane %v6122, 3
        %v6125 = vshll.u32 %v5416, 16
        %v6127 = vrot.slane %v6125, 4
        %v6128 = vor.u32 %v6124, %v6127
        %v6129 = vsel %vm1589, %v6101, %v6128
        %v6131 = vshrl.u32 %v5594, 16
        %v6133 = vrot.slane %v6131, 3
        %v6134 = vshll.u32 %v5594, 16
        %v6136 = vrot.slane %v6134, 4
        %v6137 = vor.u32 %v6133, %v6136
        %v6138 = vsel %vm1589, %v6110, %v6137
        %v6140 = vshrl.u32 %v5225, 16
        %v6142 = vrot.slane %v6140, 3
        %v6143 = vshll.u32 %v5225, 16
        %v6145 = vrot.slane %v6143, 4
        %v6146 = vor.u32 %v6142, %v6145
        %v6147 = vsel %vm1589, %v6119, %v6146
        %v6149 = vshrl.u32 %v5425, 16
        %v6151 = vrot.slane %v6149, 3
        %v6152 = vshll.u32 %v5425, 16
        %v6154 = vrot.slane %v6152, 4
        %v6155 = vor.u32 %v6151, %v6154
        %v6156 = vsel %vm1589, %v6128, %v6155
        %v6158 = vshrl.u32 %v5596, 16
        %v6160 = vrot.slane %v6158, 3
        %v6161 = vshll.u32 %v5596, 16
        %v6163 = vrot.slane %v6161, 4
        %v6164 = vor.u32 %v6160, %v6163
        %v6165 = vsel %vm1589, %v6137, %v6164
        %v6167 = vshrl.u32 %v5226, 16
        %v6169 = vrot.slane %v6167, 3
        %v6170 = vshll.u32 %v5226, 16
        %v6172 = vrot.slane %v6170, 4
        %v6173 = vor.u32 %v6169, %v6172
        %v6174 = vsel %vm1589, %v6146, %v6173
        %v6176 = vshrl.u32 %v5434, 16
        %v6178 = vrot.slane %v6176, 3
        %v6179 = vshll.u32 %v5434, 16
        %v6181 = vrot.slane %v6179, 4
        %v6182 = vor.u32 %v6178, %v6181
        %v6183 = vsel %vm1589, %v6155, %v6182
        %v6185 = vshrl.u32 %v5598, 16
        %v6187 = vrot.slane %v6185, 3
        %v6188 = vshll.u32 %v5598, 16
        %v6190 = vrot.slane %v6188, 4
        %v6191 = vor.u32 %v6187, %v6190
        %v6192 = vsel %vm1589, %v6164, %v6191
        %v6194 = vshrl.u32 %v5227, 16
        %v6196 = vrot.slane %v6194, 3
        %v6197 = vshll.u32 %v5227, 16
        %v6199 = vrot.slane %v6197, 4
        %v6200 = vor.u32 %v6196, %v6199
        %v6201 = vsel %vm1589, %v6173, %v6200
        %v6203 = vshrl.u32 %v5443, 16
        %v6205 = vrot.slane %v6203, 3
        %v6206 = vshll.u32 %v5443, 16
        %v6208 = vrot.slane %v6206, 4
        %v6209 = vor.u32 %v6205, %v6208
        %v6210 = vsel %vm1589, %v6182, %v6209
        %v6212 = vshrl.u32 %v5600, 16
        %v6214 = vrot.slane %v6212, 3
        %v6215 = vshll.u32 %v5600, 16
        %v6217 = vrot.slane %v6215, 4
        %v6218 = vor.u32 %v6214, %v6217
        %v6219 = vsel %vm1589, %v6191, %v6218
        %v6221 = vshrl.u32 %v5228, 16
        %v6223 = vrot.slane %v6221, 3
        %v6224 = vshll.u32 %v5228, 16
        %v6226 = vrot.slane %v6224, 4
        %v6227 = vor.u32 %v6223, %v6226
        %v6228 = vsel %vm1589, %v6200, %v6227
        %v6230 = vshrl.u32 %v5452, 16
        %v6232 = vrot.slane %v6230, 3
        %v6233 = vshll.u32 %v5452, 16
        %v6235 = vrot.slane %v6233, 4
        %v6236 = vor.u32 %v6232, %v6235
        %v6237 = vsel %vm1589, %v6209, %v6236
        %v6239 = vshrl.u32 %v5602, 16
        %v6241 = vrot.slane %v6239, 3
        %v6242 = vshll.u32 %v5602, 16
        %v6244 = vrot.slane %v6242, 4
        %v6245 = vor.u32 %v6241, %v6244
        %v6246 = vsel %vm1589, %v6218, %v6245
        %v6248 = vshrl.u32 %v5229, 16
        %v6250 = vrot.slane %v6248, 3
        %v6251 = vshll.u32 %v5229, 16
        %v6253 = vrot.slane %v6251, 4
        %v6254 = vor.u32 %v6250, %v6253
        %v6255 = vsel %vm1589, %v6227, %v6254
        %v6257 = vshrl.u32 %v5461, 16
        %v6259 = vrot.slane %v6257, 3
        %v6260 = vshll.u32 %v5461, 16
        %v6262 = vrot.slane %v6260, 4
        %v6263 = vor.u32 %v6259, %v6262
        %v6264 = vsel %vm1589, %v6236, %v6263
        %v6266 = vshrl.u32 %v5604, 16
        %v6268 = vrot.slane %v6266, 3
        %v6269 = vshll.u32 %v5604, 16
        %v6271 = vrot.slane %v6269, 4
        %v6272 = vor.u32 %v6268, %v6271
        %v6273 = vsel %vm1589, %v6245, %v6272
        %v6275 = vshrl.u32 %v5230, 16
        %v6277 = vrot.slane %v6275, 3
        %v6278 = vshll.u32 %v5230, 16
        %v6280 = vrot.slane %v6278, 4
        %v6281 = vor.u32 %v6277, %v6280
        %v6282 = vsel %vm1589, %v6254, %v6281
        %v6284 = vshrl.u32 %v5470, 16
        %v6286 = vrot.slane %v6284, 3
        %v6287 = vshll.u32 %v5470, 16
        %v6289 = vrot.slane %v6287, 4
        %v6290 = vor.u32 %v6286, %v6289
        %v6291 = vsel %vm1589, %v6263, %v6290
        %v6293 = vshrl.u32 %v5606, 16
        %v6295 = vrot.slane %v6293, 3
        %v6296 = vshll.u32 %v5606, 16
        %v6298 = vrot.slane %v6296, 4
        %v6299 = vor.u32 %v6295, %v6298
        %v6300 = vsel %vm1589, %v6272, %v6299
        %v6302 = vshrl.u32 %v5231, 16
        %v6304 = vrot.slane %v6302, 3
        %v6305 = vshll.u32 %v5231, 16
        %v6307 = vrot.slane %v6305, 4
        %v6308 = vor.u32 %v6304, %v6307
        %v6309 = vsel %vm1589, %v6281, %v6308
        %v6311 = vshrl.u32 %v5479, 16
        %v6313 = vrot.slane %v6311, 3
        %v6314 = vshll.u32 %v5479, 16
        %v6316 = vrot.slane %v6314, 4
        %v6317 = vor.u32 %v6313, %v6316
        %v6318 = vsel %vm1589, %v6290, %v6317
        %v6320 = vshrl.u32 %v5608, 16
        %v6322 = vrot.slane %v6320, 3
        %v6323 = vshll.u32 %v5608, 16
        %v6325 = vrot.slane %v6323, 4
        %v6326 = vor.u32 %v6322, %v6325
        %v6327 = vsel %vm1589, %v6299, %v6326
        %v6329 = vshrl.u32 %v5232, 16
        %v6331 = vrot.slane %v6329, 3
        %v6332 = vshll.u32 %v5232, 16
        %v6334 = vrot.slane %v6332, 4
        %v6335 = vor.u32 %v6331, %v6334
        %v6336 = vsel %vm1589, %v6308, %v6335
        %v6338 = vshrl.u32 %v5488, 16
        %v6340 = vrot.slane %v6338, 3
        %v6341 = vshll.u32 %v5488, 16
        %v6343 = vrot.slane %v6341, 4
        %v6344 = vor.u32 %v6340, %v6343
        %v6345 = vsel %vm1589, %v6317, %v6344
        %v6347 = vshrl.u32 %v5610, 16
        %v6349 = vrot.slane %v6347, 3
        %v6350 = vshll.u32 %v5610, 16
        %v6352 = vrot.slane %v6350, 4
        %v6353 = vor.u32 %v6349, %v6352
        %v6354 = vsel %vm1589, %v6326, %v6353
        %v6356 = vshrl.u32 %v5233, 16
        %v6358 = vrot.slane %v6356, 3
        %v6359 = vshll.u32 %v5233, 16
        %v6361 = vrot.slane %v6359, 4
        %v6362 = vor.u32 %v6358, %v6361
        %v6363 = vsel %vm1589, %v6335, %v6362
        %v6365 = vshrl.u32 %v5497, 16
        %v6367 = vrot.slane %v6365, 3
        %v6368 = vshll.u32 %v5497, 16
        %v6370 = vrot.slane %v6368, 4
        %v6371 = vor.u32 %v6367, %v6370
        %v6372 = vsel %vm1589, %v6344, %v6371
        %v6374 = vshrl.u32 %v5612, 16
        %v6376 = vrot.slane %v6374, 3
        %v6377 = vshll.u32 %v5612, 16
        %v6379 = vrot.slane %v6377, 4
        %v6380 = vor.u32 %v6376, %v6379
        %v6381 = vsel %vm1589, %v6353, %v6380
        %v6383 = vshrl.u32 %v5234, 16
        %v6385 = vrot.slane %v6383, 3
        %v6386 = vshll.u32 %v5234, 16
        %v6388 = vrot.slane %v6386, 4
        %v6389 = vor.u32 %v6385, %v6388
        %v6390 = vsel %vm1589, %v6362, %v6389
        %v6392 = vshrl.u32 %v5506, 16
        %v6394 = vrot.slane %v6392, 3
        %v6395 = vshll.u32 %v5506, 16
        %v6397 = vrot.slane %v6395, 4
        %v6398 = vor.u32 %v6394, %v6397
        %v6399 = vsel %vm1589, %v6371, %v6398
        %v6401 = vshrl.u32 %v5614, 16
        %v6403 = vrot.slane %v6401, 3
        %v6404 = vshll.u32 %v5614, 16
        %v6406 = vrot.slane %v6404, 4
        %v6407 = vor.u32 %v6403, %v6406
        %v6408 = vsel %vm1589, %v6380, %v6407
        %v6410 = vshrl.u32 %v5235, 16
        %v6412 = vrot.slane %v6410, 3
        %v6413 = vshll.u32 %v5235, 16
        %v6415 = vrot.slane %v6413, 4
        %v6416 = vor.u32 %v6412, %v6415
        %v6417 = vsel %vm1589, %v6389, %v6416
        %v6419 = vshrl.u32 %v5515, 16
        %v6421 = vrot.slane %v6419, 3
        %v6422 = vshll.u32 %v5515, 16
        %v6424 = vrot.slane %v6422, 4
        %v6425 = vor.u32 %v6421, %v6424
        %v6426 = vsel %vm1589, %v6398, %v6425
        %v6428 = vshrl.u32 %v5616, 16
        %v6430 = vrot.slane %v6428, 3
        %v6431 = vshll.u32 %v5616, 16
        %v6433 = vrot.slane %v6431, 4
        %v6434 = vor.u32 %v6430, %v6433
        %v6435 = vsel %vm1589, %v6407, %v6434
        %v6437 = vshrl.u32 %v5236, 16
        %v6439 = vrot.slane %v6437, 3
        %v6440 = vshll.u32 %v5236, 16
        %v6442 = vrot.slane %v6440, 4
        %v6443 = vor.u32 %v6439, %v6442
        %v6444 = vsel %vm1589, %v6416, %v6443
        %v6446 = vshrl.u32 %v5524, 16
        %v6448 = vrot.slane %v6446, 3
        %v6449 = vshll.u32 %v5524, 16
        %v6451 = vrot.slane %v6449, 4
        %v6452 = vor.u32 %v6448, %v6451
        %v6453 = vsel %vm1589, %v6425, %v6452
        %v6455 = vshrl.u32 %v5618, 16
        %v6457 = vrot.slane %v6455, 3
        %v6458 = vshll.u32 %v5618, 16
        %v6460 = vrot.slane %v6458, 4
        %v6461 = vor.u32 %v6457, %v6460
        %v6462 = vsel %vm1589, %v6434, %v6461
        %v6464 = vshrl.u32 %v5237, 16
        %v6466 = vrot.slane %v6464, 3
        %v6467 = vshll.u32 %v5237, 16
        %v6469 = vrot.slane %v6467, 4
        %v6470 = vor.u32 %v6466, %v6469
        %v6471 = vsel %vm1589, %v6443, %v6470
        %v6473 = vshrl.u32 %v5533, 16
        %v6475 = vrot.slane %v6473, 3
        %v6476 = vshll.u32 %v5533, 16
        %v6478 = vrot.slane %v6476, 4
        %v6479 = vor.u32 %v6475, %v6478
        %v6480 = vsel %vm1589, %v6452, %v6479
        %v6482 = vshrl.u32 %v5620, 16
        %v6484 = vrot.slane %v6482, 3
        %v6485 = vshll.u32 %v5620, 16
        %v6487 = vrot.slane %v6485, 4
        %v6488 = vor.u32 %v6484, %v6487
        %v6489 = vsel %vm1589, %v6461, %v6488
        %v6491 = vshrl.u32 %v5238, 16
        %v6493 = vrot.slane %v6491, 3
        %v6494 = vshll.u32 %v5238, 16
        %v6496 = vrot.slane %v6494, 4
        %v6497 = vor.u32 %v6493, %v6496
        %v6498 = vsel %vm1589, %v6470, %v6497
        %v6500 = vshrl.u32 %v5542, 16
        %v6502 = vrot.slane %v6500, 3
        %v6503 = vshll.u32 %v5542, 16
        %v6505 = vrot.slane %v6503, 4
        %v6506 = vor.u32 %v6502, %v6505
        %v6507 = vsel %vm1589, %v6479, %v6506
        %v6509 = vshrl.u32 %v5622, 16
        %v6511 = vrot.slane %v6509, 3
        %v6512 = vshll.u32 %v5622, 16
        %v6514 = vrot.slane %v6512, 4
        %v6515 = vor.u32 %v6511, %v6514
        %v6516 = vsel %vm1589, %v6488, %v6515
        %v6518 = vshrl.u32 %v5239, 16
        %v6520 = vrot.slane %v6518, 3
        %v6521 = vshll.u32 %v5239, 16
        %v6523 = vrot.slane %v6521, 4
        %v6524 = vor.u32 %v6520, %v6523
        %v6525 = vsel %vm1589, %v6497, %v6524
        %v6527 = vshrl.u32 %v5551, 16
        %v6529 = vrot.slane %v6527, 3
        %v6530 = vshll.u32 %v5551, 16
        %v6532 = vrot.slane %v6530, 4
        %v6533 = vor.u32 %v6529, %v6532
        %v6534 = vsel %vm1589, %v6506, %v6533
        %v6536 = vshrl.u32 %v5624, 16
        %v6538 = vrot.slane %v6536, 3
        %v6539 = vshll.u32 %v5624, 16
        %v6541 = vrot.slane %v6539, 4
        %v6542 = vor.u32 %v6538, %v6541
        %v6543 = vsel %vm1589, %v6515, %v6542
        %v6545 = vshrl.u32 %v5240, 16
        %v6547 = vrot.slane %v6545, 3
        %v6548 = vshll.u32 %v5240, 16
        %v6550 = vrot.slane %v6548, 4
        %v6551 = vor.u32 %v6547, %v6550
        %v6552 = vsel %vm1589, %v6524, %v6551
        %v6554 = vshrl.u32 %v5560, 16
        %v6556 = vrot.slane %v6554, 3
        %v6557 = vshll.u32 %v5560, 16
        %v6559 = vrot.slane %v6557, 4
        %v6560 = vor.u32 %v6556, %v6559
        %v6561 = vsel %vm1589, %v6533, %v6560
        %v6563 = vshrl.u32 %v5626, 16
        %v6565 = vrot.slane %v6563, 3
        %v6566 = vshll.u32 %v5626, 16
        %v6568 = vrot.slane %v6566, 4
        %v6569 = vor.u32 %v6565, %v6568
        %v6570 = vsel %vm1589, %v6542, %v6569
        %v6572 = vshrl.u32 %v5683, 16
        %v6574 = vrot.slane %v6572, 3
        %v6575 = vshll.u32 %v5683, 16
        %v6577 = vrot.slane %v6575, 4
        %v6578 = vor.u32 %v6574, %v6577
        %v6579 = vsel %vm1589, %v6551, %v6578
        %v6581 = vshrl.u32 %v5696, 16
        %v6583 = vrot.slane %v6581, 3
        %v6584 = vshll.u32 %v5696, 16
        %v6586 = vrot.slane %v6584, 4
        %v6587 = vor.u32 %v6583, %v6586
        %v6588 = vsel %vm1589, %v6560, %v6587
        %v6590 = vshrl.u32 %v5710, 16
        %v6592 = vrot.slane %v6590, 3
        %v6593 = vshll.u32 %v5710, 16
        %v6595 = vrot.slane %v6593, 4
        %v6596 = vor.u32 %v6592, %v6595
        %v6597 = vsel %vm1589, %v6569, %v6596
        %v6599 = vshrl.u32 %v5684, 16
        %v6601 = vrot.slane %v6599, 3
        %v6602 = vshll.u32 %v5684, 16
        %v6604 = vrot.slane %v6602, 4
        %v6605 = vor.u32 %v6601, %v6604
        %v6606 = vsel %vm1589, %v6578, %v6605
        %v6608 = vshrl.u32 %v5705, 16
        %v6610 = vrot.slane %v6608, 3
        %v6611 = vshll.u32 %v5705, 16
        %v6613 = vrot.slane %v6611, 4
        %v6614 = vor.u32 %v6610, %v6613
        %v6615 = vsel %vm1589, %v6587, %v6614
        %v6617 = vshrl.u32 %v5712, 16
        %v6619 = vrot.slane %v6617, 3
        %v6620 = vshll.u32 %v5712, 16
        %v6622 = vrot.slane %v6620, 4
        %v6623 = vor.u32 %v6619, %v6622
        %v6624 = vsel %vm1589, %v6596, %v6623
        %v6626 = vshrl.u32 %v5685, 16
        %v6628 = vrot.slane %v6626, 3
        %v6629 = vshll.u32 %v5685, 16
        %v6631 = vrot.slane %v6629, 4
        %v6632 = vor.u32 %v6628, %v6631
        %v6633 = vsel %vm1589, %v6605, %v6632
        %v6635 = vshrl.u32 %v5704, 16
        %v6637 = vrot.slane %v6635, 3
        %v6638 = vshll.u32 %v5704, 16
        %v6640 = vrot.slane %v6638, 4
        %v6641 = vor.u32 %v6637, %v6640
        %v6642 = vsel %vm1589, %v6614, %v6641
        %v6644 = vshrl.u32 %v5714, 16
        %v6646 = vrot.slane %v6644, 3
        %v6647 = vshll.u32 %v5714, 16
        %v6649 = vrot.slane %v6647, 4
        %v6650 = vor.u32 %v6646, %v6649
        %v6651 = vsel %vm1589, %v6623, %v6650
        %v6796 = vunpack.c.l.b16 %v5716
        %v6797 = vunpack.c.l.b16 %v5717
        %v6798 = vunpack.c.l.b16 %v5718
        %v6799 = vunpack.c.l.b16 %v5719
        %v6800 = vunpack.c.l.b16 %v5720
        %v6801 = vunpack.c.l.b16 %v5721
        %v6802 = vunpack.c.l.b16 %v5722
        %v6803 = vunpack.c.l.b16 %v5723
        %v6804 = vunpack.c.l.b16 %v5724
        %v6805 = vunpack.c.l.b16 %v5725
        %v6806 = vunpack.c.l.b16 %v5726
        %v6807 = vunpack.c.l.b16 %v5727
        %v6808 = vunpack.c.l.b16 %v5728
        %v6809 = vunpack.c.l.b16 %v5729
        %v6810 = vunpack.c.l.b16 %v5730
        %v6811 = vunpack.c.l.b16 %v5731
        %v6812 = vunpack.c.l.b16 %v5732
        %v6813 = vunpack.c.l.b16 %v5733
        %v6814 = vunpack.c.l.b16 %v5734
        %v6815 = vunpack.c.l.b16 %v5735
        %v6816 = vunpack.c.l.b16 %v5736
        %v6817 = vunpack.c.l.b16 %v5737
        %v6818 = vunpack.c.l.b16 %v5738
        %v6819 = vunpack.c.l.b16 %v5739
        %v6820 = vunpack.c.l.b16 %v5740
        %v6821 = vunpack.c.l.b16 %v5741
        %v6822 = vunpack.c.l.b16 %v5742
        %v6823 = vunpack.c.l.b16 %v5743
        %v6824 = vunpack.c.l.b16 %v5744
        %v6825 = vunpack.c.l.b16 %v5745
        %v6826 = vunpack.c.l.b16 %v5746
        %v6827 = vunpack.c.l.b16 %v5747
        %v6828 = vunpack.c.l.b16 %v5748
        %v6829 = vunpack.c.l.b16 %v5749
        %v6830 = vunpack.c.l.b16 %v5750
        %v6831 = vunpack.c.l.b16 %v5751
        %v6832 = vunpack.c.l.b16 %v5752
        %v6833 = vunpack.c.l.b16 %v5753
        %v6834 = vunpack.c.l.b16 %v5754
        %v6835 = vunpack.c.l.b16 %v5755
        %v6836 = vunpack.c.l.b16 %v5756
        %v6837 = vunpack.c.l.b16 %v5757
        %v6838 = vunpack.c.l.b16 %v5758
        %v6839 = vunpack.c.l.b16 %v5759
        %v6840 = vunpack.c.l.b16 %v5760
        %v6841 = vunpack.c.l.b16 %v5761
        %v6842 = vunpack.c.l.b16 %v5762
        %v6843 = vunpack.c.l.b16 %v5763
        %v6844 = vpack.c.b16 %v6797, %v6796
        %v6845 = vpack.c.b16 %v6799, %v6798
        %v6846 = vpack.c.b16 %v6801, %v6800
        %v6847 = vpack.c.b16 %v6803, %v6802
        %v6848 = vpack.c.b16 %v6805, %v6804
        %v6849 = vpack.c.b16 %v6807, %v6806
        %v6850 = vpack.c.b16 %v6809, %v6808
        %v6851 = vpack.c.b16 %v6811, %v6810
        %v6852 = vpack.c.b16 %v6813, %v6812
        %v6853 = vpack.c.b16 %v6815, %v6814
        %v6854 = vpack.c.b16 %v6817, %v6816
        %v6855 = vpack.c.b16 %v6819, %v6818
        %v6856 = vpack.c.b16 %v6821, %v6820
        %v6857 = vpack.c.b16 %v6823, %v6822
        %v6858 = vpack.c.b16 %v6825, %v6824
        %v6859 = vpack.c.b16 %v6827, %v6826
        %v6860 = vpack.c.b16 %v6829, %v6828
        %v6861 = vpack.c.b16 %v6831, %v6830
        %v6862 = vpack.c.b16 %v6833, %v6832
        %v6863 = vpack.c.b16 %v6835, %v6834
        %v6864 = vpack.c.b16 %v6837, %v6836
        %v6865 = vpack.c.b16 %v6839, %v6838
        %v6866 = vpack.c.b16 %v6841, %v6840
        %v6867 = vpack.c.b16 %v6843, %v6842
        %6892 = vmatpush.bf16.msra.mxu0 %v6851
        %6893 = vmatpush.bf16.msra.mxu0 %v6850
        %6894 = vmatpush.bf16.msra.mxu0 %v6849
        %6895 = vmatpush.bf16.msra.mxu0 %v6848
        %6896 = vmatpush.bf16.msra.mxu0 %v6847
        %6897 = vmatpush.bf16.msra.mxu0 %v6846
        %6898 = vmatpush.bf16.msra.mxu0 %v6845
        %6899 = vmatpush.bf16.msra.mxu0 %v6844
        %6900 = vmatmul.bf16.gmra.mxu0 %v5780
        %v6901 = vpop.f32.mrf.mxu0
        %v6902 = vadd.f32 0.0, %v6901
        %v6903 = vpop.f32.mrf.mxu0
        %v6904 = vadd.f32 0.0, %v6903
        %6905 = vmatmul.bf16.gmra.mxu0 %v5823
        %v6906 = vpop.f32.mrf.mxu0
        %v6907 = vpop.f32.mrf.mxu0
        %6908 = vmatmul.bf16.gmra.mxu0 %v5850
        %v6909 = vpop.f32.mrf.mxu0
        %v6910 = vadd.f32 0.0, %v6909
        %v6911 = vpop.f32.mrf.mxu0
        %v6912 = vadd.f32 0.0, %v6911
        %6913 = vmatmul.bf16.gmra.mxu0 %v5877
        %v6914 = vpop.f32.mrf.mxu0
        %v6915 = vpop.f32.mrf.mxu0
        %6916 = vmatmul.bf16.gmra.mxu0 %v5904
        %v6917 = vpop.f32.mrf.mxu0
        %v6918 = vadd.f32 0.0, %v6917
        %v6919 = vpop.f32.mrf.mxu0
        %v6920 = vadd.f32 0.0, %v6919
        %6921 = vmatmul.bf16.gmra.mxu0 %v5931
        %v6922 = vpop.f32.mrf.mxu0
        %v6923 = vpop.f32.mrf.mxu0
        %6924 = vmatmul.bf16.gmra.mxu0 %v5958
        %v6925 = vpop.f32.mrf.mxu0
        %v6926 = vadd.f32 0.0, %v6925
        %v6927 = vpop.f32.mrf.mxu0
        %v6928 = vadd.f32 0.0, %v6927
        %6929 = vmatmul.bf16.gmra.mxu0 %v5985
        %v6930 = vpop.f32.mrf.mxu0
        %v6931 = vpop.f32.mrf.mxu0
        %6932 = vmatmul.bf16.gmra.mxu0 %v6012
        %v6933 = vpop.f32.mrf.mxu0
        %v6934 = vadd.f32 0.0, %v6933
        %v6935 = vpop.f32.mrf.mxu0
        %v6936 = vadd.f32 0.0, %v6935
        %6937 = vmatmul.bf16.gmra.mxu0 %v6039
        %v6938 = vpop.f32.mrf.mxu0
        %v6939 = vpop.f32.mrf.mxu0
        %6940 = vmatmul.bf16.gmra.mxu0 %v6066
        %v6941 = vpop.f32.mrf.mxu0
        %v6942 = vadd.f32 0.0, %v6941
        %v6943 = vpop.f32.mrf.mxu0
        %v6944 = vadd.f32 0.0, %v6943
        %6945 = vmatmul.bf16.gmra.mxu0 %v6093
        %v6946 = vpop.f32.mrf.mxu0
        %v6947 = vpop.f32.mrf.mxu0
        %6948 = vmatmul.bf16.gmra.mxu0 %v6120
        %v6949 = vpop.f32.mrf.mxu0
        %v6950 = vadd.f32 0.0, %v6949
        %v6951 = vpop.f32.mrf.mxu0
        %v6952 = vadd.f32 0.0, %v6951
        %6953 = vmatmul.bf16.gmra.mxu0 %v6147
        %v6954 = vpop.f32.mrf.mxu0
        %v6955 = vpop.f32.mrf.mxu0
        %6956 = vmatmul.bf16.gmra.mxu0 %v6174
        %v6957 = vpop.f32.mrf.mxu0
        %v6958 = vadd.f32 0.0, %v6957
        %v6959 = vpop.f32.mrf.mxu0
        %v6960 = vadd.f32 0.0, %v6959
        %6961 = vmatmul.bf16.gmra.mxu0 %v6201
        %v6962 = vpop.f32.mrf.mxu0
        %v6963 = vpop.f32.mrf.mxu0
        %6964 = vmatmul.bf16.gmra.mxu0 %v6228
        %v6965 = vpop.f32.mrf.mxu0
        %v6966 = vadd.f32 0.0, %v6965
        %v6967 = vpop.f32.mrf.mxu0
        %v6968 = vadd.f32 0.0, %v6967
        %6969 = vmatmul.bf16.gmra.mxu0 %v6255
        %v6970 = vpop.f32.mrf.mxu0
        %v6971 = vpop.f32.mrf.mxu0
        %6972 = vmatmul.bf16.gmra.mxu0 %v6282
        %v6973 = vpop.f32.mrf.mxu0
        %v6974 = vadd.f32 0.0, %v6973
        %v6975 = vpop.f32.mrf.mxu0
        %v6976 = vadd.f32 0.0, %v6975
        %6977 = vmatmul.bf16.gmra.mxu0 %v6309
        %v6978 = vpop.f32.mrf.mxu0
        %v6979 = vpop.f32.mrf.mxu0
        %6980 = vmatmul.bf16.gmra.mxu0 %v6336
        %v6981 = vpop.f32.mrf.mxu0
        %v6982 = vadd.f32 0.0, %v6981
        %v6983 = vpop.f32.mrf.mxu0
        %v6984 = vadd.f32 0.0, %v6983
        %6985 = vmatmul.bf16.gmra.mxu0 %v6363
        %v6986 = vpop.f32.mrf.mxu0
        %v6987 = vpop.f32.mrf.mxu0
        %6988 = vmatmul.bf16.gmra.mxu0 %v6390
        %v6989 = vpop.f32.mrf.mxu0
        %v6990 = vadd.f32 0.0, %v6989
        %v6991 = vpop.f32.mrf.mxu0
        %v6992 = vadd.f32 0.0, %v6991
        %6993 = vmatmul.bf16.gmra.mxu0 %v6417
        %v6994 = vpop.f32.mrf.mxu0
        %v6995 = vpop.f32.mrf.mxu0
        %6996 = vmatmul.bf16.gmra.mxu0 %v6444
        %v6997 = vpop.f32.mrf.mxu0
        %v6998 = vadd.f32 0.0, %v6997
        %v6999 = vpop.f32.mrf.mxu0
        %v7000 = vadd.f32 0.0, %v6999
        %7001 = vmatmul.bf16.gmra.mxu0 %v6471
        %v7002 = vpop.f32.mrf.mxu0
        %v7003 = vpop.f32.mrf.mxu0
        %7004 = vmatmul.bf16.gmra.mxu0 %v6498
        %v7005 = vpop.f32.mrf.mxu0
        %v7006 = vadd.f32 0.0, %v7005
        %v7007 = vpop.f32.mrf.mxu0
        %v7008 = vadd.f32 0.0, %v7007
        %7009 = vmatmul.bf16.gmra.mxu0 %v6525
        %v7010 = vpop.f32.mrf.mxu0
        %v7011 = vpop.f32.mrf.mxu0
        %7012 = vmatmul.bf16.gmra.mxu0 %v6552
        %v7013 = vpop.f32.mrf.mxu0
        %v7014 = vadd.f32 0.0, %v7013
        %v7015 = vpop.f32.mrf.mxu0
        %v7016 = vadd.f32 0.0, %v7015
        %7017 = vmatmul.bf16.gmra.mxu0 %v6579
        %v7018 = vpop.f32.mrf.mxu0
        %v7019 = vpop.f32.mrf.mxu0
        %7020 = vmatmul.bf16.gmra.mxu0 %v6606
        %v7021 = vpop.f32.mrf.mxu0
        %v7022 = vadd.f32 0.0, %v7021
        %v7023 = vpop.f32.mrf.mxu0
        %v7024 = vadd.f32 0.0, %v7023
        %7025 = vmatmul.bf16.gmra.mxu0 %v6633
        %v7026 = vpop.f32.mrf.mxu0
        %v7027 = vpop.f32.mrf.mxu0
        %7028 = vdwg.mxu0
        %7029 = vmatpush.bf16.msra.mxu0 %v6859
        %7030 = vmatpush.bf16.msra.mxu0 %v6858
        %7031 = vmatpush.bf16.msra.mxu0 %v6857
        %7032 = vmatpush.bf16.msra.mxu0 %v6856
        %7033 = vmatpush.bf16.msra.mxu0 %v6855
        %7034 = vmatpush.bf16.msra.mxu0 %v6854
        %7035 = vmatpush.bf16.msra.mxu0 %v6853
        %7036 = vmatpush.bf16.msra.mxu0 %v6852
        %7037 = vmatmul.bf16.gmra.mxu0 %v5797
        %v7038 = vpop.f32.mrf.mxu0
        %v7039 = vadd.f32 %v6902, %v7038
        %v7040 = vpop.f32.mrf.mxu0
        %v7041 = vadd.f32 %v6904, %v7040
        %7042 = vmatmul.bf16.gmra.mxu0 %v5832
        %v7043 = vpop.f32.mrf.mxu0
        %v7044 = vpop.f32.mrf.mxu0
        %7045 = vmatmul.bf16.gmra.mxu0 %v5859
        %v7046 = vpop.f32.mrf.mxu0
        %v7047 = vadd.f32 %v6910, %v7046
        %v7048 = vpop.f32.mrf.mxu0
        %v7049 = vadd.f32 %v6912, %v7048
        %7050 = vmatmul.bf16.gmra.mxu0 %v5886
        %v7051 = vpop.f32.mrf.mxu0
        %v7052 = vpop.f32.mrf.mxu0
        %7053 = vmatmul.bf16.gmra.mxu0 %v5913
        %v7054 = vpop.f32.mrf.mxu0
        %v7055 = vadd.f32 %v6918, %v7054
        %v7056 = vpop.f32.mrf.mxu0
        %v7057 = vadd.f32 %v6920, %v7056
        %7058 = vmatmul.bf16.gmra.mxu0 %v5940
        %v7059 = vpop.f32.mrf.mxu0
        %v7060 = vpop.f32.mrf.mxu0
        %7061 = vmatmul.bf16.gmra.mxu0 %v5967
        %v7062 = vpop.f32.mrf.mxu0
        %v7063 = vadd.f32 %v6926, %v7062
        %v7064 = vpop.f32.mrf.mxu0
        %v7065 = vadd.f32 %v6928, %v7064
        %7066 = vmatmul.bf16.gmra.mxu0 %v5994
        %v7067 = vpop.f32.mrf.mxu0
        %v7068 = vpop.f32.mrf.mxu0
        %7069 = vmatmul.bf16.gmra.mxu0 %v6021
        %v7070 = vpop.f32.mrf.mxu0
        %v7071 = vadd.f32 %v6934, %v7070
        %v7072 = vpop.f32.mrf.mxu0
        %v7073 = vadd.f32 %v6936, %v7072
        %7074 = vmatmul.bf16.gmra.mxu0 %v6048
        %v7075 = vpop.f32.mrf.mxu0
        %v7076 = vpop.f32.mrf.mxu0
        %7077 = vmatmul.bf16.gmra.mxu0 %v6075
        %v7078 = vpop.f32.mrf.mxu0
        %v7079 = vadd.f32 %v6942, %v7078
        %v7080 = vpop.f32.mrf.mxu0
        %v7081 = vadd.f32 %v6944, %v7080
        %7082 = vmatmul.bf16.gmra.mxu0 %v6102
        %v7083 = vpop.f32.mrf.mxu0
        %v7084 = vpop.f32.mrf.mxu0
        %7085 = vmatmul.bf16.gmra.mxu0 %v6129
        %v7086 = vpop.f32.mrf.mxu0
        %v7087 = vadd.f32 %v6950, %v7086
        %v7088 = vpop.f32.mrf.mxu0
        %v7089 = vadd.f32 %v6952, %v7088
        %7090 = vmatmul.bf16.gmra.mxu0 %v6156
        %v7091 = vpop.f32.mrf.mxu0
        %v7092 = vpop.f32.mrf.mxu0
        %7093 = vmatmul.bf16.gmra.mxu0 %v6183
        %v7094 = vpop.f32.mrf.mxu0
        %v7095 = vadd.f32 %v6958, %v7094
        %v7096 = vpop.f32.mrf.mxu0
        %v7097 = vadd.f32 %v6960, %v7096
        %7098 = vmatmul.bf16.gmra.mxu0 %v6210
        %v7099 = vpop.f32.mrf.mxu0
        %v7100 = vpop.f32.mrf.mxu0
        %7101 = vmatmul.bf16.gmra.mxu0 %v6237
        %v7102 = vpop.f32.mrf.mxu0
        %v7103 = vadd.f32 %v6966, %v7102
        %v7104 = vpop.f32.mrf.mxu0
        %v7105 = vadd.f32 %v6968, %v7104
        %7106 = vmatmul.bf16.gmra.mxu0 %v6264
        %v7107 = vpop.f32.mrf.mxu0
        %v7108 = vpop.f32.mrf.mxu0
        %7109 = vmatmul.bf16.gmra.mxu0 %v6291
        %v7110 = vpop.f32.mrf.mxu0
        %v7111 = vadd.f32 %v6974, %v7110
        %v7112 = vpop.f32.mrf.mxu0
        %v7113 = vadd.f32 %v6976, %v7112
        %7114 = vmatmul.bf16.gmra.mxu0 %v6318
        %v7115 = vpop.f32.mrf.mxu0
        %v7116 = vpop.f32.mrf.mxu0
        %7117 = vmatmul.bf16.gmra.mxu0 %v6345
        %v7118 = vpop.f32.mrf.mxu0
        %v7119 = vadd.f32 %v6982, %v7118
        %v7120 = vpop.f32.mrf.mxu0
        %v7121 = vadd.f32 %v6984, %v7120
        %7122 = vmatmul.bf16.gmra.mxu0 %v6372
        %v7123 = vpop.f32.mrf.mxu0
        %v7124 = vpop.f32.mrf.mxu0
        %7125 = vmatmul.bf16.gmra.mxu0 %v6399
        %v7126 = vpop.f32.mrf.mxu0
        %v7127 = vadd.f32 %v6990, %v7126
        %v7128 = vpop.f32.mrf.mxu0
        %v7129 = vadd.f32 %v6992, %v7128
        %7130 = vmatmul.bf16.gmra.mxu0 %v6426
        %v7131 = vpop.f32.mrf.mxu0
        %v7132 = vpop.f32.mrf.mxu0
        %7133 = vmatmul.bf16.gmra.mxu0 %v6453
        %v7134 = vpop.f32.mrf.mxu0
        %v7135 = vadd.f32 %v6998, %v7134
        %v7136 = vpop.f32.mrf.mxu0
        %v7137 = vadd.f32 %v7000, %v7136
        %7138 = vmatmul.bf16.gmra.mxu0 %v6480
        %v7139 = vpop.f32.mrf.mxu0
        %v7140 = vpop.f32.mrf.mxu0
        %7141 = vmatmul.bf16.gmra.mxu0 %v6507
        %v7142 = vpop.f32.mrf.mxu0
        %v7143 = vadd.f32 %v7006, %v7142
        %v7144 = vpop.f32.mrf.mxu0
        %v7145 = vadd.f32 %v7008, %v7144
        %7146 = vmatmul.bf16.gmra.mxu0 %v6534
        %v7147 = vpop.f32.mrf.mxu0
        %v7148 = vpop.f32.mrf.mxu0
        %7149 = vmatmul.bf16.gmra.mxu0 %v6561
        %v7150 = vpop.f32.mrf.mxu0
        %v7151 = vadd.f32 %v7014, %v7150
        %v7152 = vpop.f32.mrf.mxu0
        %v7153 = vadd.f32 %v7016, %v7152
        %7154 = vmatmul.bf16.gmra.mxu0 %v6588
        %v7155 = vpop.f32.mrf.mxu0
        %v7156 = vpop.f32.mrf.mxu0
        %7157 = vmatmul.bf16.gmra.mxu0 %v6615
        %v7158 = vpop.f32.mrf.mxu0
        %v7159 = vadd.f32 %v7022, %v7158
        %v7160 = vpop.f32.mrf.mxu0
        %v7161 = vadd.f32 %v7024, %v7160
        %7162 = vmatmul.bf16.gmra.mxu0 %v6642
        %v7163 = vpop.f32.mrf.mxu0
        %v7164 = vpop.f32.mrf.mxu0
        %7165 = vdwg.mxu0
        %7166 = vmatpush.bf16.msra.mxu0 %v6867
        %7167 = vmatpush.bf16.msra.mxu0 %v6866
        %7168 = vmatpush.bf16.msra.mxu0 %v6865
        %7169 = vmatpush.bf16.msra.mxu0 %v6864
        %7170 = vmatpush.bf16.msra.mxu0 %v6863
        %7171 = vmatpush.bf16.msra.mxu0 %v6862
        %7172 = vmatpush.bf16.msra.mxu0 %v6861
        %7173 = vmatpush.bf16.msra.mxu0 %v6860
        %7174 = vmatmul.bf16.gmra.mxu0 %v5814
        %v7175 = vpop.f32.mrf.mxu0
        %v7176 = vadd.f32 %v7039, %v7175
        %v7177 = vpop.f32.mrf.mxu0
        %v7178 = vadd.f32 %v7041, %v7177
        %7179 = vmatmul.bf16.gmra.mxu0 %v5841
        %v7180 = vpop.f32.mrf.mxu0
        %v7181 = vpop.f32.mrf.mxu0
        %7182 = vmatmul.bf16.gmra.mxu0 %v5868
        %v7183 = vpop.f32.mrf.mxu0
        %v7184 = vadd.f32 %v7047, %v7183
        %v7185 = vpop.f32.mrf.mxu0
        %v7186 = vadd.f32 %v7049, %v7185
        %7187 = vmatmul.bf16.gmra.mxu0 %v5895
        %v7188 = vpop.f32.mrf.mxu0
        %v7189 = vpop.f32.mrf.mxu0
        %7190 = vmatmul.bf16.gmra.mxu0 %v5922
        %v7191 = vpop.f32.mrf.mxu0
        %v7192 = vadd.f32 %v7055, %v7191
        %v7193 = vpop.f32.mrf.mxu0
        %v7194 = vadd.f32 %v7057, %v7193
        %7195 = vmatmul.bf16.gmra.mxu0 %v5949
        %v7196 = vpop.f32.mrf.mxu0
        %v7197 = vpop.f32.mrf.mxu0
        %7198 = vmatmul.bf16.gmra.mxu0 %v5976
        %v7199 = vpop.f32.mrf.mxu0
        %v7200 = vadd.f32 %v7063, %v7199
        %v7201 = vpop.f32.mrf.mxu0
        %v7202 = vadd.f32 %v7065, %v7201
        %7203 = vmatmul.bf16.gmra.mxu0 %v6003
        %v7204 = vpop.f32.mrf.mxu0
        %v7205 = vpop.f32.mrf.mxu0
        %7206 = vmatmul.bf16.gmra.mxu0 %v6030
        %v7207 = vpop.f32.mrf.mxu0
        %v7208 = vadd.f32 %v7071, %v7207
        %v7209 = vpop.f32.mrf.mxu0
        %v7210 = vadd.f32 %v7073, %v7209
        %7211 = vmatmul.bf16.gmra.mxu0 %v6057
        %v7212 = vpop.f32.mrf.mxu0
        %v7213 = vpop.f32.mrf.mxu0
        %7214 = vmatmul.bf16.gmra.mxu0 %v6084
        %v7215 = vpop.f32.mrf.mxu0
        %v7216 = vadd.f32 %v7079, %v7215
        %v7217 = vpop.f32.mrf.mxu0
        %v7218 = vadd.f32 %v7081, %v7217
        %7219 = vmatmul.bf16.gmra.mxu0 %v6111
        %v7220 = vpop.f32.mrf.mxu0
        %v7221 = vpop.f32.mrf.mxu0
        %7222 = vmatmul.bf16.gmra.mxu0 %v6138
        %v7223 = vpop.f32.mrf.mxu0
        %v7224 = vadd.f32 %v7087, %v7223
        %v7225 = vpop.f32.mrf.mxu0
        %v7226 = vadd.f32 %v7089, %v7225
        %7227 = vmatmul.bf16.gmra.mxu0 %v6165
        %v7228 = vpop.f32.mrf.mxu0
        %v7229 = vpop.f32.mrf.mxu0
        %7230 = vmatmul.bf16.gmra.mxu0 %v6192
        %v7231 = vpop.f32.mrf.mxu0
        %v7232 = vadd.f32 %v7095, %v7231
        %v7233 = vpop.f32.mrf.mxu0
        %v7234 = vadd.f32 %v7097, %v7233
        %7235 = vmatmul.bf16.gmra.mxu0 %v6219
        %v7236 = vpop.f32.mrf.mxu0
        %v7237 = vpop.f32.mrf.mxu0
        %7238 = vmatmul.bf16.gmra.mxu0 %v6246
        %v7239 = vpop.f32.mrf.mxu0
        %v7240 = vadd.f32 %v7103, %v7239
        %v7241 = vpop.f32.mrf.mxu0
        %v7242 = vadd.f32 %v7105, %v7241
        %7243 = vmatmul.bf16.gmra.mxu0 %v6273
        %v7244 = vpop.f32.mrf.mxu0
        %v7245 = vpop.f32.mrf.mxu0
        %7246 = vmatmul.bf16.gmra.mxu0 %v6300
        %v7247 = vpop.f32.mrf.mxu0
        %v7248 = vadd.f32 %v7111, %v7247
        %v7249 = vpop.f32.mrf.mxu0
        %v7250 = vadd.f32 %v7113, %v7249
        %7251 = vmatmul.bf16.gmra.mxu0 %v6327
        %v7252 = vpop.f32.mrf.mxu0
        %v7253 = vpop.f32.mrf.mxu0
        %7254 = vmatmul.bf16.gmra.mxu0 %v6354
        %v7255 = vpop.f32.mrf.mxu0
        %v7256 = vadd.f32 %v7119, %v7255
        %v7257 = vpop.f32.mrf.mxu0
        %v7258 = vadd.f32 %v7121, %v7257
        %7259 = vmatmul.bf16.gmra.mxu0 %v6381
        %v7260 = vpop.f32.mrf.mxu0
        %v7261 = vpop.f32.mrf.mxu0
        %7262 = vmatmul.bf16.gmra.mxu0 %v6408
        %v7263 = vpop.f32.mrf.mxu0
        %v7264 = vadd.f32 %v7127, %v7263
        %v7265 = vpop.f32.mrf.mxu0
        %v7266 = vadd.f32 %v7129, %v7265
        %7267 = vmatmul.bf16.gmra.mxu0 %v6435
        %v7268 = vpop.f32.mrf.mxu0
        %v7269 = vpop.f32.mrf.mxu0
        %7270 = vmatmul.bf16.gmra.mxu0 %v6462
        %v7271 = vpop.f32.mrf.mxu0
        %v7272 = vadd.f32 %v7135, %v7271
        %v7273 = vpop.f32.mrf.mxu0
        %v7274 = vadd.f32 %v7137, %v7273
        %7275 = vmatmul.bf16.gmra.mxu0 %v6489
        %v7276 = vpop.f32.mrf.mxu0
        %v7277 = vpop.f32.mrf.mxu0
        %7278 = vmatmul.bf16.gmra.mxu0 %v6516
        %v7279 = vpop.f32.mrf.mxu0
        %v7280 = vadd.f32 %v7143, %v7279
        %v7281 = vpop.f32.mrf.mxu0
        %v7282 = vadd.f32 %v7145, %v7281
        %7283 = vmatmul.bf16.gmra.mxu0 %v6543
        %v7284 = vpop.f32.mrf.mxu0
        %v7285 = vpop.f32.mrf.mxu0
        %7286 = vmatmul.bf16.gmra.mxu0 %v6570
        %v7287 = vpop.f32.mrf.mxu0
        %v7288 = vadd.f32 %v7151, %v7287
        %v7289 = vpop.f32.mrf.mxu0
        %v7290 = vadd.f32 %v7153, %v7289
        %7291 = vmatmul.bf16.gmra.mxu0 %v6597
        %v7292 = vpop.f32.mrf.mxu0
        %v7293 = vpop.f32.mrf.mxu0
        %7294 = vmatmul.bf16.gmra.mxu0 %v6624
        %v7295 = vpop.f32.mrf.mxu0
        %v7296 = vadd.f32 %v7159, %v7295
        %v7297 = vpop.f32.mrf.mxu0
        %v7298 = vadd.f32 %v7161, %v7297
        %7299 = vmatmul.bf16.gmra.mxu0 %v6651
        %v7300 = vpop.f32.mrf.mxu0
        %v7301 = vpop.f32.mrf.mxu0
        %7302 = vdwg.mxu0
        %v7304 = vshrl.u32 %v5209, 16
        %v7306 = vrot.slane %v7304, 3
        %v7307 = vshll.u32 %v5209, 16
        %v7309 = vrot.slane %v7307, 4
        %v7310 = vor.u32 %v7306, %v7309
        %v7312 = vshrl.u32 %v5210, 16
        %v7314 = vrot.slane %v7312, 3
        %v7315 = vshll.u32 %v5210, 16
        %v7317 = vrot.slane %v7315, 4
        %v7318 = vor.u32 %v7314, %v7317
        %v7319 = vsel %vm1589, %v7310, %v7318
        %v7321 = vshrl.u32 %v5281, 16
        %v7323 = vrot.slane %v7321, 3
        %v7324 = vshll.u32 %v5281, 16
        %v7326 = vrot.slane %v7324, 4
        %v7327 = vor.u32 %v7323, %v7326
        %v7329 = vshrl.u32 %v5290, 16
        %v7331 = vrot.slane %v7329, 3
        %v7332 = vshll.u32 %v5290, 16
        %v7334 = vrot.slane %v7332, 4
        %v7335 = vor.u32 %v7331, %v7334
        %v7336 = vsel %vm1589, %v7327, %v7335
        %v7338 = vshrl.u32 %v5564, 16
        %v7340 = vrot.slane %v7338, 3
        %v7341 = vshll.u32 %v5564, 16
        %v7343 = vrot.slane %v7341, 4
        %v7344 = vor.u32 %v7340, %v7343
        %v7346 = vshrl.u32 %v5566, 16
        %v7348 = vrot.slane %v7346, 3
        %v7349 = vshll.u32 %v5566, 16
        %v7351 = vrot.slane %v7349, 4
        %v7352 = vor.u32 %v7348, %v7351
        %v7353 = vsel %vm1589, %v7344, %v7352
        %v7354 = vsel %vm1589, %v7318, %v5771
        %v7356 = vshrl.u32 %v5299, 16
        %v7358 = vrot.slane %v7356, 3
        %v7359 = vshll.u32 %v5299, 16
        %v7361 = vrot.slane %v7359, 4
        %v7362 = vor.u32 %v7358, %v7361
        %v7363 = vsel %vm1589, %v7335, %v7362
        %v7365 = vshrl.u32 %v5568, 16
        %v7367 = vrot.slane %v7365, 3
        %v7368 = vshll.u32 %v5568, 16
        %v7370 = vrot.slane %v7368, 4
        %v7371 = vor.u32 %v7367, %v7370
        %v7372 = vsel %vm1589, %v7352, %v7371
        %v7373 = vsel %vm1589, %v7362, %v5796
        %v7374 = vsel %vm1589, %v7371, %v5813
        %v7376 = vshrl.u32 %v5241, 16
        %v7378 = vrot.slane %v7376, 3
        %v7379 = vshll.u32 %v5241, 16
        %v7381 = vrot.slane %v7379, 4
        %v7382 = vor.u32 %v7378, %v7381
        %v7383 = vsel %vm1589, %v6551, %v7382
        %v7385 = vshrl.u32 %v5559, 16
        %v7387 = vrot.slane %v7385, 3
        %v7388 = vshll.u32 %v5559, 16
        %v7390 = vrot.slane %v7388, 4
        %v7391 = vor.u32 %v7387, %v7390
        %v7392 = vsel %vm1589, %v6560, %v7391
        %v7394 = vshrl.u32 %v5628, 16
        %v7396 = vrot.slane %v7394, 3
        %v7397 = vshll.u32 %v5628, 16
        %v7399 = vrot.slane %v7397, 4
        %v7400 = vor.u32 %v7396, %v7399
        %v7401 = vsel %vm1589, %v6569, %v7400
        %v7461 = vunpack.c.l.b16 %v5629
        %v7462 = vunpack.c.l.b16 %v5630
        %v7463 = vunpack.c.l.b16 %v5631
        %v7464 = vunpack.c.l.b16 %v5632
        %v7465 = vunpack.c.l.b16 %v5633
        %v7466 = vunpack.c.l.b16 %v5634
        %v7467 = vunpack.c.l.b16 %v5635
        %v7468 = vunpack.c.l.b16 %v5636
        %v7469 = vunpack.c.l.b16 %v5637
        %v7470 = vunpack.c.l.b16 %v5638
        %v7471 = vunpack.c.l.b16 %v5639
        %v7472 = vunpack.c.l.b16 %v5640
        %v7473 = vunpack.c.l.b16 %v5641
        %v7474 = vunpack.c.l.b16 %v5642
        %v7475 = vunpack.c.l.b16 %v5643
        %v7476 = vunpack.c.l.b16 %v5644
        %v7477 = vunpack.c.l.b16 %v5645
        %v7478 = vunpack.c.l.b16 %v5646
        %v7479 = vunpack.c.l.b16 %v5647
        %v7480 = vunpack.c.l.b16 %v5648
        %v7481 = vunpack.c.l.b16 %v5649
        %v7482 = vunpack.c.l.b16 %v5650
        %v7483 = vunpack.c.l.b16 %v5651
        %v7484 = vunpack.c.l.b16 %v5652
        %v7485 = vunpack.c.l.b16 %v5653
        %v7486 = vunpack.c.l.b16 %v5654
        %v7487 = vunpack.c.l.b16 %v5655
        %v7488 = vunpack.c.l.b16 %v5656
        %v7489 = vunpack.c.l.b16 %v5657
        %v7490 = vunpack.c.l.b16 %v5658
        %v7491 = vunpack.c.l.b16 %v5659
        %v7492 = vunpack.c.l.b16 %v5660
        %v7493 = vunpack.c.l.b16 %v5661
        %v7494 = vunpack.c.l.b16 %v5662
        %v7495 = vunpack.c.l.b16 %v5663
        %v7496 = vunpack.c.l.b16 %v5664
        %v7497 = vunpack.c.l.b16 %v5665
        %v7498 = vunpack.c.l.b16 %v5666
        %v7499 = vunpack.c.l.b16 %v5667
        %v7500 = vunpack.c.l.b16 %v5668
        %v7501 = vunpack.c.l.b16 %v5669
        %v7502 = vunpack.c.l.b16 %v5670
        %v7503 = vunpack.c.l.b16 %v5671
        %v7504 = vunpack.c.l.b16 %v5672
        %v7505 = vunpack.c.l.b16 %v5673
        %v7506 = vunpack.c.l.b16 %v5674
        %v7507 = vunpack.c.l.b16 %v5675
        %v7508 = vunpack.c.l.b16 %v5676
        %v7509 = vpack.c.b16 %v7462, %v7461
        %v7510 = vpack.c.b16 %v7464, %v7463
        %v7511 = vpack.c.b16 %v7466, %v7465
        %v7512 = vpack.c.b16 %v7468, %v7467
        %v7513 = vpack.c.b16 %v7470, %v7469
        %v7514 = vpack.c.b16 %v7472, %v7471
        %v7515 = vpack.c.b16 %v7474, %v7473
        %v7516 = vpack.c.b16 %v7476, %v7475
        %v7517 = vpack.c.b16 %v7478, %v7477
        %v7518 = vpack.c.b16 %v7480, %v7479
        %v7519 = vpack.c.b16 %v7482, %v7481
        %v7520 = vpack.c.b16 %v7484, %v7483
        %v7521 = vpack.c.b16 %v7486, %v7485
        %v7522 = vpack.c.b16 %v7488, %v7487
        %v7523 = vpack.c.b16 %v7490, %v7489
        %v7524 = vpack.c.b16 %v7492, %v7491
        %v7525 = vpack.c.b16 %v7494, %v7493
        %v7526 = vpack.c.b16 %v7496, %v7495
        %v7527 = vpack.c.b16 %v7498, %v7497
        %v7528 = vpack.c.b16 %v7500, %v7499
        %v7529 = vpack.c.b16 %v7502, %v7501
        %v7530 = vpack.c.b16 %v7504, %v7503
        %v7531 = vpack.c.b16 %v7506, %v7505
        %v7532 = vpack.c.b16 %v7508, %v7507
        %7557 = vmatpush.bf16.msra.mxu0 %v7516
        %7558 = vmatpush.bf16.msra.mxu0 %v7515
        %7559 = vmatpush.bf16.msra.mxu0 %v7514
        %7560 = vmatpush.bf16.msra.mxu0 %v7513
        %7561 = vmatpush.bf16.msra.mxu0 %v7512
        %7562 = vmatpush.bf16.msra.mxu0 %v7511
        %7563 = vmatpush.bf16.msra.mxu0 %v7510
        %7564 = vmatpush.bf16.msra.mxu0 %v7509
        %7565 = vmatmul.bf16.gmra.mxu0 %v7319
        %v7566 = vpop.f32.mrf.mxu0
        %v7567 = vadd.f32 %v7176, %v7566
        %v7568 = vpop.f32.mrf.mxu0
        %v7569 = vadd.f32 %v7178, %v7568
        %7570 = vmatmul.bf16.gmra.mxu0 %v7354
        %v7571 = vpop.f32.mrf.mxu0
        %v7572 = vpop.f32.mrf.mxu0
        %7573 = vmatmul.bf16.gmra.mxu0 %v5780
        %v7574 = vpop.f32.mrf.mxu0
        %v7575 = vadd.f32 %v7184, %v7574
        %v7576 = vpop.f32.mrf.mxu0
        %v7577 = vadd.f32 %v7186, %v7576
        %7578 = vmatmul.bf16.gmra.mxu0 %v5823
        %v7579 = vpop.f32.mrf.mxu0
        %v7580 = vpop.f32.mrf.mxu0
        %7581 = vmatmul.bf16.gmra.mxu0 %v5850
        %v7582 = vpop.f32.mrf.mxu0
        %v7583 = vadd.f32 %v7192, %v7582
        %v7584 = vpop.f32.mrf.mxu0
        %v7585 = vadd.f32 %v7194, %v7584
        %7586 = vmatmul.bf16.gmra.mxu0 %v5877
        %v7587 = vpop.f32.mrf.mxu0
        %v7588 = vpop.f32.mrf.mxu0
        %7589 = vmatmul.bf16.gmra.mxu0 %v5904
        %v7590 = vpop.f32.mrf.mxu0
        %v7591 = vadd.f32 %v7200, %v7590
        %v7592 = vpop.f32.mrf.mxu0
        %v7593 = vadd.f32 %v7202, %v7592
        %7594 = vmatmul.bf16.gmra.mxu0 %v5931
        %v7595 = vpop.f32.mrf.mxu0
        %v7596 = vpop.f32.mrf.mxu0
        %7597 = vmatmul.bf16.gmra.mxu0 %v5958
        %v7598 = vpop.f32.mrf.mxu0
        %v7599 = vadd.f32 %v7208, %v7598
        %v7600 = vpop.f32.mrf.mxu0
        %v7601 = vadd.f32 %v7210, %v7600
        %7602 = vmatmul.bf16.gmra.mxu0 %v5985
        %v7603 = vpop.f32.mrf.mxu0
        %v7604 = vpop.f32.mrf.mxu0
        %7605 = vmatmul.bf16.gmra.mxu0 %v6012
        %v7606 = vpop.f32.mrf.mxu0
        %v7607 = vadd.f32 %v7216, %v7606
        %v7608 = vpop.f32.mrf.mxu0
        %v7609 = vadd.f32 %v7218, %v7608
        %7610 = vmatmul.bf16.gmra.mxu0 %v6039
        %v7611 = vpop.f32.mrf.mxu0
        %v7612 = vpop.f32.mrf.mxu0
        %7613 = vmatmul.bf16.gmra.mxu0 %v6066
        %v7614 = vpop.f32.mrf.mxu0
        %v7615 = vadd.f32 %v7224, %v7614
        %v7616 = vpop.f32.mrf.mxu0
        %v7617 = vadd.f32 %v7226, %v7616
        %7618 = vmatmul.bf16.gmra.mxu0 %v6093
        %v7619 = vpop.f32.mrf.mxu0
        %v7620 = vpop.f32.mrf.mxu0
        %7621 = vmatmul.bf16.gmra.mxu0 %v6120
        %v7622 = vpop.f32.mrf.mxu0
        %v7623 = vadd.f32 %v7232, %v7622
        %v7624 = vpop.f32.mrf.mxu0
        %v7625 = vadd.f32 %v7234, %v7624
        %7626 = vmatmul.bf16.gmra.mxu0 %v6147
        %v7627 = vpop.f32.mrf.mxu0
        %v7628 = vpop.f32.mrf.mxu0
        %7629 = vmatmul.bf16.gmra.mxu0 %v6174
        %v7630 = vpop.f32.mrf.mxu0
        %v7631 = vadd.f32 %v7240, %v7630
        %v7632 = vpop.f32.mrf.mxu0
        %v7633 = vadd.f32 %v7242, %v7632
        %7634 = vmatmul.bf16.gmra.mxu0 %v6201
        %v7635 = vpop.f32.mrf.mxu0
        %v7636 = vpop.f32.mrf.mxu0
        %7637 = vmatmul.bf16.gmra.mxu0 %v6228
        %v7638 = vpop.f32.mrf.mxu0
        %v7639 = vadd.f32 %v7248, %v7638
        %v7640 = vpop.f32.mrf.mxu0
        %v7641 = vadd.f32 %v7250, %v7640
        %7642 = vmatmul.bf16.gmra.mxu0 %v6255
        %v7643 = vpop.f32.mrf.mxu0
        %v7644 = vpop.f32.mrf.mxu0
        %7645 = vmatmul.bf16.gmra.mxu0 %v6282
        %v7646 = vpop.f32.mrf.mxu0
        %v7647 = vadd.f32 %v7256, %v7646
        %v7648 = vpop.f32.mrf.mxu0
        %v7649 = vadd.f32 %v7258, %v7648
        %7650 = vmatmul.bf16.gmra.mxu0 %v6309
        %v7651 = vpop.f32.mrf.mxu0
        %v7652 = vpop.f32.mrf.mxu0
        %7653 = vmatmul.bf16.gmra.mxu0 %v6336
        %v7654 = vpop.f32.mrf.mxu0
        %v7655 = vadd.f32 %v7264, %v7654
        %v7656 = vpop.f32.mrf.mxu0
        %v7657 = vadd.f32 %v7266, %v7656
        %7658 = vmatmul.bf16.gmra.mxu0 %v6363
        %v7659 = vpop.f32.mrf.mxu0
        %v7660 = vpop.f32.mrf.mxu0
        %7661 = vmatmul.bf16.gmra.mxu0 %v6390
        %v7662 = vpop.f32.mrf.mxu0
        %v7663 = vadd.f32 %v7272, %v7662
        %v7664 = vpop.f32.mrf.mxu0
        %v7665 = vadd.f32 %v7274, %v7664
        %7666 = vmatmul.bf16.gmra.mxu0 %v6417
        %v7667 = vpop.f32.mrf.mxu0
        %v7668 = vpop.f32.mrf.mxu0
        %7669 = vmatmul.bf16.gmra.mxu0 %v6444
        %v7670 = vpop.f32.mrf.mxu0
        %v7671 = vadd.f32 %v7280, %v7670
        %v7672 = vpop.f32.mrf.mxu0
        %v7673 = vadd.f32 %v7282, %v7672
        %7674 = vmatmul.bf16.gmra.mxu0 %v6471
        %v7675 = vpop.f32.mrf.mxu0
        %v7676 = vpop.f32.mrf.mxu0
        %7677 = vmatmul.bf16.gmra.mxu0 %v6498
        %v7678 = vpop.f32.mrf.mxu0
        %v7679 = vadd.f32 %v7288, %v7678
        %v7680 = vpop.f32.mrf.mxu0
        %v7681 = vadd.f32 %v7290, %v7680
        %7682 = vmatmul.bf16.gmra.mxu0 %v6525
        %v7683 = vpop.f32.mrf.mxu0
        %v7684 = vpop.f32.mrf.mxu0
        %7685 = vmatmul.bf16.gmra.mxu0 %v6552
        %v7686 = vpop.f32.mrf.mxu0
        %v7687 = vadd.f32 %v7296, %v7686
        %v7688 = vpop.f32.mrf.mxu0
        %v7689 = vadd.f32 %v7298, %v7688
        %7690 = vmatmul.bf16.gmra.mxu0 %v7383
        %v7691 = vpop.f32.mrf.mxu0
        %v7692 = vpop.f32.mrf.mxu0
        %7693 = vdwg.mxu0
        %7694 = vmatpush.bf16.msra.mxu0 %v7524
        %7695 = vmatpush.bf16.msra.mxu0 %v7523
        %7696 = vmatpush.bf16.msra.mxu0 %v7522
        %7697 = vmatpush.bf16.msra.mxu0 %v7521
        %7698 = vmatpush.bf16.msra.mxu0 %v7520
        %7699 = vmatpush.bf16.msra.mxu0 %v7519
        %7700 = vmatpush.bf16.msra.mxu0 %v7518
        %7701 = vmatpush.bf16.msra.mxu0 %v7517
        %7702 = vmatmul.bf16.gmra.mxu0 %v7336
        %v7703 = vpop.f32.mrf.mxu0
        %v7704 = vadd.f32 %v7567, %v7703
        %v7705 = vpop.f32.mrf.mxu0
        %v7706 = vadd.f32 %v7569, %v7705
        %7707 = vmatmul.bf16.gmra.mxu0 %v7363
        %v7708 = vpop.f32.mrf.mxu0
        %v7709 = vpop.f32.mrf.mxu0
        %7710 = vmatmul.bf16.gmra.mxu0 %v7373
        %v7711 = vpop.f32.mrf.mxu0
        %v7712 = vadd.f32 %v7575, %v7711
        %v7713 = vpop.f32.mrf.mxu0
        %v7714 = vadd.f32 %v7577, %v7713
        %7715 = vmatmul.bf16.gmra.mxu0 %v5832
        %v7716 = vpop.f32.mrf.mxu0
        %v7717 = vpop.f32.mrf.mxu0
        %7718 = vmatmul.bf16.gmra.mxu0 %v5859
        %v7719 = vpop.f32.mrf.mxu0
        %v7720 = vadd.f32 %v7583, %v7719
        %v7721 = vpop.f32.mrf.mxu0
        %v7722 = vadd.f32 %v7585, %v7721
        %7723 = vmatmul.bf16.gmra.mxu0 %v5886
        %v7724 = vpop.f32.mrf.mxu0
        %v7725 = vpop.f32.mrf.mxu0
        %7726 = vmatmul.bf16.gmra.mxu0 %v5913
        %v7727 = vpop.f32.mrf.mxu0
        %v7728 = vadd.f32 %v7591, %v7727
        %v7729 = vpop.f32.mrf.mxu0
        %v7730 = vadd.f32 %v7593, %v7729
        %7731 = vmatmul.bf16.gmra.mxu0 %v5940
        %v7732 = vpop.f32.mrf.mxu0
        %v7733 = vpop.f32.mrf.mxu0
        %7734 = vmatmul.bf16.gmra.mxu0 %v5967
        %v7735 = vpop.f32.mrf.mxu0
        %v7736 = vadd.f32 %v7599, %v7735
        %v7737 = vpop.f32.mrf.mxu0
        %v7738 = vadd.f32 %v7601, %v7737
        %7739 = vmatmul.bf16.gmra.mxu0 %v5994
        %v7740 = vpop.f32.mrf.mxu0
        %v7741 = vpop.f32.mrf.mxu0
        %7742 = vmatmul.bf16.gmra.mxu0 %v6021
        %v7743 = vpop.f32.mrf.mxu0
        %v7744 = vadd.f32 %v7607, %v7743
        %v7745 = vpop.f32.mrf.mxu0
        %v7746 = vadd.f32 %v7609, %v7745
        %7747 = vmatmul.bf16.gmra.mxu0 %v6048
        %v7748 = vpop.f32.mrf.mxu0
        %v7749 = vpop.f32.mrf.mxu0
        %7750 = vmatmul.bf16.gmra.mxu0 %v6075
        %v7751 = vpop.f32.mrf.mxu0
        %v7752 = vadd.f32 %v7615, %v7751
        %v7753 = vpop.f32.mrf.mxu0
        %v7754 = vadd.f32 %v7617, %v7753
        %7755 = vmatmul.bf16.gmra.mxu0 %v6102
        %v7756 = vpop.f32.mrf.mxu0
        %v7757 = vpop.f32.mrf.mxu0
        %7758 = vmatmul.bf16.gmra.mxu0 %v6129
        %v7759 = vpop.f32.mrf.mxu0
        %v7760 = vadd.f32 %v7623, %v7759
        %v7761 = vpop.f32.mrf.mxu0
        %v7762 = vadd.f32 %v7625, %v7761
        %7763 = vmatmul.bf16.gmra.mxu0 %v6156
        %v7764 = vpop.f32.mrf.mxu0
        %v7765 = vpop.f32.mrf.mxu0
        %7766 = vmatmul.bf16.gmra.mxu0 %v6183
        %v7767 = vpop.f32.mrf.mxu0
        %v7768 = vadd.f32 %v7631, %v7767
        %v7769 = vpop.f32.mrf.mxu0
        %v7770 = vadd.f32 %v7633, %v7769
        %7771 = vmatmul.bf16.gmra.mxu0 %v6210
        %v7772 = vpop.f32.mrf.mxu0
        %v7773 = vpop.f32.mrf.mxu0
        %7774 = vmatmul.bf16.gmra.mxu0 %v6237
        %v7775 = vpop.f32.mrf.mxu0
        %v7776 = vadd.f32 %v7639, %v7775
        %v7777 = vpop.f32.mrf.mxu0
        %v7778 = vadd.f32 %v7641, %v7777
        %7779 = vmatmul.bf16.gmra.mxu0 %v6264
        %v7780 = vpop.f32.mrf.mxu0
        %v7781 = vpop.f32.mrf.mxu0
        %7782 = vmatmul.bf16.gmra.mxu0 %v6291
        %v7783 = vpop.f32.mrf.mxu0
        %v7784 = vadd.f32 %v7647, %v7783
        %v7785 = vpop.f32.mrf.mxu0
        %v7786 = vadd.f32 %v7649, %v7785
        %7787 = vmatmul.bf16.gmra.mxu0 %v6318
        %v7788 = vpop.f32.mrf.mxu0
        %v7789 = vpop.f32.mrf.mxu0
        %7790 = vmatmul.bf16.gmra.mxu0 %v6345
        %v7791 = vpop.f32.mrf.mxu0
        %v7792 = vadd.f32 %v7655, %v7791
        %v7793 = vpop.f32.mrf.mxu0
        %v7794 = vadd.f32 %v7657, %v7793
        %7795 = vmatmul.bf16.gmra.mxu0 %v6372
        %v7796 = vpop.f32.mrf.mxu0
        %v7797 = vpop.f32.mrf.mxu0
        %7798 = vmatmul.bf16.gmra.mxu0 %v6399
        %v7799 = vpop.f32.mrf.mxu0
        %v7800 = vadd.f32 %v7663, %v7799
        %v7801 = vpop.f32.mrf.mxu0
        %v7802 = vadd.f32 %v7665, %v7801
        %7803 = vmatmul.bf16.gmra.mxu0 %v6426
        %v7804 = vpop.f32.mrf.mxu0
        %v7805 = vpop.f32.mrf.mxu0
        %7806 = vmatmul.bf16.gmra.mxu0 %v6453
        %v7807 = vpop.f32.mrf.mxu0
        %v7808 = vadd.f32 %v7671, %v7807
        %v7809 = vpop.f32.mrf.mxu0
        %v7810 = vadd.f32 %v7673, %v7809
        %7811 = vmatmul.bf16.gmra.mxu0 %v6480
        %v7812 = vpop.f32.mrf.mxu0
        %v7813 = vpop.f32.mrf.mxu0
        %7814 = vmatmul.bf16.gmra.mxu0 %v6507
        %v7815 = vpop.f32.mrf.mxu0
        %v7816 = vadd.f32 %v7679, %v7815
        %v7817 = vpop.f32.mrf.mxu0
        %v7818 = vadd.f32 %v7681, %v7817
        %7819 = vmatmul.bf16.gmra.mxu0 %v6534
        %v7820 = vpop.f32.mrf.mxu0
        %v7821 = vpop.f32.mrf.mxu0
        %7822 = vmatmul.bf16.gmra.mxu0 %v6561
        %v7823 = vpop.f32.mrf.mxu0
        %v7824 = vadd.f32 %v7687, %v7823
        %v7825 = vpop.f32.mrf.mxu0
        %v7826 = vadd.f32 %v7689, %v7825
        %7827 = vmatmul.bf16.gmra.mxu0 %v7392
        %v7828 = vpop.f32.mrf.mxu0
        %v7829 = vpop.f32.mrf.mxu0
        %7830 = vdwg.mxu0
        %7831 = vmatpush.bf16.msra.mxu0 %v7532
        %7832 = vmatpush.bf16.msra.mxu0 %v7531
        %7833 = vmatpush.bf16.msra.mxu0 %v7530
        %7834 = vmatpush.bf16.msra.mxu0 %v7529
        %7835 = vmatpush.bf16.msra.mxu0 %v7528
        %7836 = vmatpush.bf16.msra.mxu0 %v7527
        %7837 = vmatpush.bf16.msra.mxu0 %v7526
        %7838 = vmatpush.bf16.msra.mxu0 %v7525
        %7839 = vmatmul.bf16.gmra.mxu0 %v7353
        %v7840 = vpop.f32.mrf.mxu0
        %v7841 = vadd.f32 %v7704, %v7840
        %v7842 = vpop.f32.mrf.mxu0
        %v7843 = vadd.f32 %v7706, %v7842
        %7844 = vmatmul.bf16.gmra.mxu0 %v7372
        %v7845 = vpop.f32.mrf.mxu0
        %v7846 = vpop.f32.mrf.mxu0
        %7847 = vmatmul.bf16.gmra.mxu0 %v7374
        %v7848 = vpop.f32.mrf.mxu0
        %v7849 = vadd.f32 %v7712, %v7848
        %v7850 = vpop.f32.mrf.mxu0
        %v7851 = vadd.f32 %v7714, %v7850
        %7852 = vmatmul.bf16.gmra.mxu0 %v5841
        %v7853 = vpop.f32.mrf.mxu0
        %v7854 = vpop.f32.mrf.mxu0
        %7855 = vmatmul.bf16.gmra.mxu0 %v5868
        %v7856 = vpop.f32.mrf.mxu0
        %v7857 = vadd.f32 %v7720, %v7856
        %v7858 = vpop.f32.mrf.mxu0
        %v7859 = vadd.f32 %v7722, %v7858
        %7860 = vmatmul.bf16.gmra.mxu0 %v5895
        %v7861 = vpop.f32.mrf.mxu0
        %v7862 = vpop.f32.mrf.mxu0
        %7863 = vmatmul.bf16.gmra.mxu0 %v5922
        %v7864 = vpop.f32.mrf.mxu0
        %v7865 = vadd.f32 %v7728, %v7864
        %v7866 = vpop.f32.mrf.mxu0
        %v7867 = vadd.f32 %v7730, %v7866
        %7868 = vmatmul.bf16.gmra.mxu0 %v5949
        %v7869 = vpop.f32.mrf.mxu0
        %v7870 = vpop.f32.mrf.mxu0
        %7871 = vmatmul.bf16.gmra.mxu0 %v5976
        %v7872 = vpop.f32.mrf.mxu0
        %v7873 = vadd.f32 %v7736, %v7872
        %v7874 = vpop.f32.mrf.mxu0
        %v7875 = vadd.f32 %v7738, %v7874
        %7876 = vmatmul.bf16.gmra.mxu0 %v6003
        %v7877 = vpop.f32.mrf.mxu0
        %v7878 = vpop.f32.mrf.mxu0
        %7879 = vmatmul.bf16.gmra.mxu0 %v6030
        %v7880 = vpop.f32.mrf.mxu0
        %v7881 = vadd.f32 %v7744, %v7880
        %v7882 = vpop.f32.mrf.mxu0
        %v7883 = vadd.f32 %v7746, %v7882
        %7884 = vmatmul.bf16.gmra.mxu0 %v6057
        %v7885 = vpop.f32.mrf.mxu0
        %v7886 = vpop.f32.mrf.mxu0
        %7887 = vmatmul.bf16.gmra.mxu0 %v6084
        %v7888 = vpop.f32.mrf.mxu0
        %v7889 = vadd.f32 %v7752, %v7888
        %v7890 = vpop.f32.mrf.mxu0
        %v7891 = vadd.f32 %v7754, %v7890
        %7892 = vmatmul.bf16.gmra.mxu0 %v6111
        %v7893 = vpop.f32.mrf.mxu0
        %v7894 = vpop.f32.mrf.mxu0
        %7895 = vmatmul.bf16.gmra.mxu0 %v6138
        %v7896 = vpop.f32.mrf.mxu0
        %v7897 = vadd.f32 %v7760, %v7896
        %v7898 = vpop.f32.mrf.mxu0
        %v7899 = vadd.f32 %v7762, %v7898
        %7900 = vmatmul.bf16.gmra.mxu0 %v6165
        %v7901 = vpop.f32.mrf.mxu0
        %v7902 = vpop.f32.mrf.mxu0
        %7903 = vmatmul.bf16.gmra.mxu0 %v6192
        %v7904 = vpop.f32.mrf.mxu0
        %v7905 = vadd.f32 %v7768, %v7904
        %v7906 = vpop.f32.mrf.mxu0
        %v7907 = vadd.f32 %v7770, %v7906
        %7908 = vmatmul.bf16.gmra.mxu0 %v6219
        %v7909 = vpop.f32.mrf.mxu0
        %v7910 = vpop.f32.mrf.mxu0
        %7911 = vmatmul.bf16.gmra.mxu0 %v6246
        %v7912 = vpop.f32.mrf.mxu0
        %v7913 = vadd.f32 %v7776, %v7912
        %v7914 = vpop.f32.mrf.mxu0
        %v7915 = vadd.f32 %v7778, %v7914
        %7916 = vmatmul.bf16.gmra.mxu0 %v6273
        %v7917 = vpop.f32.mrf.mxu0
        %v7918 = vpop.f32.mrf.mxu0
        %7919 = vmatmul.bf16.gmra.mxu0 %v6300
        %v7920 = vpop.f32.mrf.mxu0
        %v7921 = vadd.f32 %v7784, %v7920
        %v7922 = vpop.f32.mrf.mxu0
        %v7923 = vadd.f32 %v7786, %v7922
        %7924 = vmatmul.bf16.gmra.mxu0 %v6327
        %v7925 = vpop.f32.mrf.mxu0
        %v7926 = vpop.f32.mrf.mxu0
        %7927 = vmatmul.bf16.gmra.mxu0 %v6354
        %v7928 = vpop.f32.mrf.mxu0
        %v7929 = vadd.f32 %v7792, %v7928
        %v7930 = vpop.f32.mrf.mxu0
        %v7931 = vadd.f32 %v7794, %v7930
        %7932 = vmatmul.bf16.gmra.mxu0 %v6381
        %v7933 = vpop.f32.mrf.mxu0
        %v7934 = vpop.f32.mrf.mxu0
        %7935 = vmatmul.bf16.gmra.mxu0 %v6408
        %v7936 = vpop.f32.mrf.mxu0
        %v7937 = vadd.f32 %v7800, %v7936
        %v7938 = vpop.f32.mrf.mxu0
        %v7939 = vadd.f32 %v7802, %v7938
        %7940 = vmatmul.bf16.gmra.mxu0 %v6435
        %v7941 = vpop.f32.mrf.mxu0
        %v7942 = vpop.f32.mrf.mxu0
        %7943 = vmatmul.bf16.gmra.mxu0 %v6462
        %v7944 = vpop.f32.mrf.mxu0
        %v7945 = vadd.f32 %v7808, %v7944
        %v7946 = vpop.f32.mrf.mxu0
        %v7947 = vadd.f32 %v7810, %v7946
        %7948 = vmatmul.bf16.gmra.mxu0 %v6489
        %v7949 = vpop.f32.mrf.mxu0
        %v7950 = vpop.f32.mrf.mxu0
        %7951 = vmatmul.bf16.gmra.mxu0 %v6516
        %v7952 = vpop.f32.mrf.mxu0
        %v7953 = vadd.f32 %v7816, %v7952
        %v7954 = vpop.f32.mrf.mxu0
        %v7955 = vadd.f32 %v7818, %v7954
        %7956 = vmatmul.bf16.gmra.mxu0 %v6543
        %v7957 = vpop.f32.mrf.mxu0
        %v7958 = vpop.f32.mrf.mxu0
        %7959 = vmatmul.bf16.gmra.mxu0 %v6570
        %v7960 = vpop.f32.mrf.mxu0
        %v7961 = vadd.f32 %v7824, %v7960
        %v7962 = vpop.f32.mrf.mxu0
        %v7963 = vadd.f32 %v7826, %v7962
        %7964 = vmatmul.bf16.gmra.mxu0 %v7401
        %v7965 = vpop.f32.mrf.mxu0
        %v7966 = vpop.f32.mrf.mxu0
        %7967 = vdwg.mxu0
        %v7971 = vunpack.c.l.b16 %v5075
        %v7972 = vunpack.c.l.b16 %v5076
        %v7973 = vunpack.c.l.b16 %v5077
        %v7974 = vpack.c.b16 %v5707, %v5682
        %v7975 = vpack.c.b16 %v7972, %v7971
        %v7976 = vpack.c.b16 %v7973, %v7973
        %v7977 = vpack.c.b16 %v7971, %v5707
        %v7978 = vpack.c.b16 %v7973, %v7972
        %v7980 = vshrl.u32 %v7977, 16
        %v7982 = vrot.slane %v7980, 4
        %v7983 = vshll.u32 %v7977, 16
        %v7985 = vrot.slane %v7983, 5
        %v7986 = vor.u32 %v7982, %v7985
        %v7987 = vsel %vm1053, %v5704, %v7986
        %v7989 = vshrl.u32 %v7978, 16
        %v7991 = vrot.slane %v7989, 4
        %v7992 = vshll.u32 %v7978, 16
        %v7994 = vrot.slane %v7992, 5
        %v7995 = vor.u32 %v7991, %v7994
        %v7996 = vsel %vm1053, %v7986, %v7995
        %v7998 = vunpack.c.l.b16 %v5078
        %v7999 = vpack.c.b16 %v7998, %v7998
        %v8000 = vrot.slane %v7977, 5
        %v8001 = vsel %vm1380, %v5711, %v8000
        %v8002 = vrot.slane %v7978, 5
        %v8003 = vsel %vm1380, %v8000, %v8002
        %v8004 = vrot.slane %v7999, 5
        %v8005 = vsel %vm1380, %v8002, %v8004
        %s8006 = scalar_lea.vmem %s5, 384
        %v8007 = vld [vmem:[%s8006] sm:$0xf]
        %v8008 = vld [vmem:[%s8006 + $0x4] sm:$0xf]
        %v8009 = vld [vmem:[%s8006 + $0x8] sm:$0xf]
        %v8010 = vld [vmem:[%s8006 + $0xc] sm:$0xf]
        %v8011 = vld [vmem:[%s8006 + $0x10] sm:$0xf]
        %v8012 = vld [vmem:[%s8006 + $0x14] sm:$0xf]
        %v8013 = vld [vmem:[%s8006 + $0x18] sm:$0xf]
        %v8014 = vld [vmem:[%s8006 + $0x1c] sm:$0xf]
        %v8015 = vld [vmem:[%s8006 + $0x20] sm:$0xf]
        %v8016 = vld [vmem:[%s8006 + $0x24] sm:$0xf]
        %v8017 = vld [vmem:[%s8006 + $0x28] sm:$0xf]
        %v8018 = vld [vmem:[%s8006 + $0x2c] sm:$0xf]
        %v8019 = vld [vmem:[%s8006 + $0x30] sm:$0xf]
        %v8020 = vld [vmem:[%s8006 + $0x34] sm:$0xf]
        %v8021 = vld [vmem:[%s8006 + $0x38] sm:$0xf]
        %v8022 = vld [vmem:[%s8006 + $0x3c] sm:$0xf]
        %v8023 = vld [vmem:[%s8006 + $0x40] sm:$0xf]
        %v8024 = vld [vmem:[%s8006 + $0x44] sm:$0xf]
        %v8025 = vld [vmem:[%s8006 + $0x48] sm:$0xf]
        %v8026 = vld [vmem:[%s8006 + $0x4c] sm:$0xf]
        %v8027 = vld [vmem:[%s8006 + $0x50] sm:$0xf]
        %v8028 = vld [vmem:[%s8006 + $0x54] sm:$0xf]
        %v8029 = vld [vmem:[%s8006 + $0x58] sm:$0xf]
        %v8030 = vld [vmem:[%s8006 + $0x5c] sm:$0xf]
        %v8031 = vld [vmem:[%s8006 + $0x60] sm:$0xf]
        %v8032 = vld [vmem:[%s8006 + $0x64] sm:$0xf]
        %v8033 = vld [vmem:[%s8006 + $0x68] sm:$0xf]
        %v8034 = vld [vmem:[%s8006 + $0x6c] sm:$0xf]
        %v8035 = vld [vmem:[%s8006 + $0x70] sm:$0xf]
        %v8036 = vld [vmem:[%s8006 + $0x74] sm:$0xf]
        %v8037 = vld [vmem:[%s8006 + $0x78] sm:$0xf]
        %v8038 = vld [vmem:[%s8006 + $0x7c] sm:$0xf]
        %v8039 = vld [vmem:[%s8006 + $0x80] sm:$0xf]
        %v8040 = vld [vmem:[%s8006 + $0x84] sm:$0xf]
        %v8041 = vld [vmem:[%s8006 + $0x88] sm:$0xf]
        %v8042 = vld [vmem:[%s8006 + $0x8c] sm:$0xf]
        %v8043 = vld [vmem:[%s8006 + $0x90] sm:$0xf]
        %v8044 = vld [vmem:[%s8006 + $0x94] sm:$0xf]
        %v8045 = vld [vmem:[%s8006 + $0x98] sm:$0xf]
        %v8046 = vld [vmem:[%s8006 + $0x9c] sm:$0xf]
        %v8047 = vld [vmem:[%s8006 + $0xa0] sm:$0xf]
        %v8048 = vld [vmem:[%s8006 + $0xa4] sm:$0xf]
        %v8049 = vld [vmem:[%s8006 + $0xa8] sm:$0xf]
        %v8050 = vld [vmem:[%s8006 + $0xac] sm:$0xf]
        %v8051 = vld [vmem:[%s8006 + $0xb0] sm:$0xf]
        %v8052 = vld [vmem:[%s8006 + $0xb4] sm:$0xf]
        %v8053 = vld [vmem:[%s8006 + $0xb8] sm:$0xf]
        %v8054 = vld [vmem:[%s8006 + $0xbc] sm:$0xf]
        %v8056 = vshrl.u32 %v5316, 16
        %v8058 = vrot.slane %v8056, 3
        %v8059 = vshll.u32 %v5316, 16
        %v8061 = vrot.slane %v8059, 4
        %v8062 = vor.u32 %v8058, %v8061
        %v8063 = vsel %vm1589, %v8062, %v5858
        %v8065 = vshrl.u32 %v5571, 16
        %v8067 = vrot.slane %v8065, 3
        %v8068 = vshll.u32 %v5571, 16
        %v8070 = vrot.slane %v8068, 4
        %v8071 = vor.u32 %v8067, %v8070
        %v8072 = vsel %vm1589, %v8071, %v5867
        %v8074 = vshrl.u32 %v7974, 16
        %v8076 = vrot.slane %v8074, 3
        %v8077 = vshll.u32 %v7974, 16
        %v8079 = vrot.slane %v8077, 4
        %v8080 = vor.u32 %v8076, %v8079
        %v8081 = vsel %vm1589, %v6605, %v8080
        %v8083 = vshrl.u32 %v7987, 16
        %v8085 = vrot.slane %v8083, 3
        %v8086 = vshll.u32 %v7987, 16
        %v8088 = vrot.slane %v8086, 4
        %v8089 = vor.u32 %v8085, %v8088
        %v8090 = vsel %vm1589, %v6614, %v8089
        %v8092 = vshrl.u32 %v8001, 16
        %v8094 = vrot.slane %v8092, 3
        %v8095 = vshll.u32 %v8001, 16
        %v8097 = vrot.slane %v8095, 4
        %v8098 = vor.u32 %v8094, %v8097
        %v8099 = vsel %vm1589, %v6623, %v8098
        %v8101 = vshrl.u32 %v7975, 16
        %v8103 = vrot.slane %v8101, 3
        %v8104 = vshll.u32 %v7975, 16
        %v8106 = vrot.slane %v8104, 4
        %v8107 = vor.u32 %v8103, %v8106
        %v8108 = vsel %vm1589, %v8080, %v8107
        %v8110 = vshrl.u32 %v7996, 16
        %v8112 = vrot.slane %v8110, 3
        %v8113 = vshll.u32 %v7996, 16
        %v8115 = vrot.slane %v8113, 4
        %v8116 = vor.u32 %v8112, %v8115
        %v8117 = vsel %vm1589, %v8089, %v8116
        %v8119 = vshrl.u32 %v8003, 16
        %v8121 = vrot.slane %v8119, 3
        %v8122 = vshll.u32 %v8003, 16
        %v8124 = vrot.slane %v8122, 4
        %v8125 = vor.u32 %v8121, %v8124
        %v8126 = vsel %vm1589, %v8098, %v8125
        %v8128 = vshrl.u32 %v7976, 16
        %v8130 = vrot.slane %v8128, 3
        %v8131 = vshll.u32 %v7976, 16
        %v8133 = vrot.slane %v8131, 4
        %v8134 = vor.u32 %v8130, %v8133
        %v8135 = vsel %vm1589, %v8107, %v8134
        %v8137 = vshrl.u32 %v7995, 16
        %v8139 = vrot.slane %v8137, 3
        %v8140 = vshll.u32 %v7995, 16
        %v8142 = vrot.slane %v8140, 4
        %v8143 = vor.u32 %v8139, %v8142
        %v8144 = vsel %vm1589, %v8116, %v8143
        %v8146 = vshrl.u32 %v8005, 16
        %v8148 = vrot.slane %v8146, 3
        %v8149 = vshll.u32 %v8005, 16
        %v8151 = vrot.slane %v8149, 4
        %v8152 = vor.u32 %v8148, %v8151
        %v8153 = vsel %vm1589, %v8125, %v8152
        %v8213 = vunpack.c.l.b16 %v8007
        %v8214 = vunpack.c.l.b16 %v8008
        %v8215 = vunpack.c.l.b16 %v8009
        %v8216 = vunpack.c.l.b16 %v8010
        %v8217 = vunpack.c.l.b16 %v8011
        %v8218 = vunpack.c.l.b16 %v8012
        %v8219 = vunpack.c.l.b16 %v8013
        %v8220 = vunpack.c.l.b16 %v8014
        %v8221 = vunpack.c.l.b16 %v8015
        %v8222 = vunpack.c.l.b16 %v8016
        %v8223 = vunpack.c.l.b16 %v8017
        %v8224 = vunpack.c.l.b16 %v8018
        %v8225 = vunpack.c.l.b16 %v8019
        %v8226 = vunpack.c.l.b16 %v8020
        %v8227 = vunpack.c.l.b16 %v8021
        %v8228 = vunpack.c.l.b16 %v8022
        %v8229 = vunpack.c.l.b16 %v8023
        %v8230 = vunpack.c.l.b16 %v8024
        %v8231 = vunpack.c.l.b16 %v8025
        %v8232 = vunpack.c.l.b16 %v8026
        %v8233 = vunpack.c.l.b16 %v8027
        %v8234 = vunpack.c.l.b16 %v8028
        %v8235 = vunpack.c.l.b16 %v8029
        %v8236 = vunpack.c.l.b16 %v8030
        %v8237 = vunpack.c.l.b16 %v8031
        %v8238 = vunpack.c.l.b16 %v8032
        %v8239 = vunpack.c.l.b16 %v8033
        %v8240 = vunpack.c.l.b16 %v8034
        %v8241 = vunpack.c.l.b16 %v8035
        %v8242 = vunpack.c.l.b16 %v8036
        %v8243 = vunpack.c.l.b16 %v8037
        %v8244 = vunpack.c.l.b16 %v8038
        %v8245 = vunpack.c.l.b16 %v8039
        %v8246 = vunpack.c.l.b16 %v8040
        %v8247 = vunpack.c.l.b16 %v8041
        %v8248 = vunpack.c.l.b16 %v8042
        %v8249 = vunpack.c.l.b16 %v8043
        %v8250 = vunpack.c.l.b16 %v8044
        %v8251 = vunpack.c.l.b16 %v8045
        %v8252 = vunpack.c.l.b16 %v8046
        %v8253 = vunpack.c.l.b16 %v8047
        %v8254 = vunpack.c.l.b16 %v8048
        %v8255 = vunpack.c.l.b16 %v8049
        %v8256 = vunpack.c.l.b16 %v8050
        %v8257 = vunpack.c.l.b16 %v8051
        %v8258 = vunpack.c.l.b16 %v8052
        %v8259 = vunpack.c.l.b16 %v8053
        %v8260 = vunpack.c.l.b16 %v8054
        %v8261 = vpack.c.b16 %v8214, %v8213
        %v8262 = vpack.c.b16 %v8216, %v8215
        %v8263 = vpack.c.b16 %v8218, %v8217
        %v8264 = vpack.c.b16 %v8220, %v8219
        %v8265 = vpack.c.b16 %v8222, %v8221
        %v8266 = vpack.c.b16 %v8224, %v8223
        %v8267 = vpack.c.b16 %v8226, %v8225
        %v8268 = vpack.c.b16 %v8228, %v8227
        %v8269 = vpack.c.b16 %v8230, %v8229
        %v8270 = vpack.c.b16 %v8232, %v8231
        %v8271 = vpack.c.b16 %v8234, %v8233
        %v8272 = vpack.c.b16 %v8236, %v8235
        %v8273 = vpack.c.b16 %v8238, %v8237
        %v8274 = vpack.c.b16 %v8240, %v8239
        %v8275 = vpack.c.b16 %v8242, %v8241
        %v8276 = vpack.c.b16 %v8244, %v8243
        %v8277 = vpack.c.b16 %v8246, %v8245
        %v8278 = vpack.c.b16 %v8248, %v8247
        %v8279 = vpack.c.b16 %v8250, %v8249
        %v8280 = vpack.c.b16 %v8252, %v8251
        %v8281 = vpack.c.b16 %v8254, %v8253
        %v8282 = vpack.c.b16 %v8256, %v8255
        %v8283 = vpack.c.b16 %v8258, %v8257
        %v8284 = vpack.c.b16 %v8260, %v8259
        %8309 = vmatpush.bf16.msra.mxu0 %v8268
        %8310 = vmatpush.bf16.msra.mxu0 %v8267
        %8311 = vmatpush.bf16.msra.mxu0 %v8266
        %8312 = vmatpush.bf16.msra.mxu0 %v8265
        %8313 = vmatpush.bf16.msra.mxu0 %v8264
        %8314 = vmatpush.bf16.msra.mxu0 %v8263
        %8315 = vmatpush.bf16.msra.mxu0 %v8262
        %8316 = vmatpush.bf16.msra.mxu0 %v8261
        %8317 = vmatmul.bf16.gmra.mxu0 %v5850
        %v8318 = vpop.f32.mrf.mxu0
        %v8319 = vadd.f32 0.0, %v8318
        %v8320 = vpop.f32.mrf.mxu0
        %v8321 = vadd.f32 0.0, %v8320
        %8322 = vmatmul.bf16.gmra.mxu0 %v5877
        %v8323 = vpop.f32.mrf.mxu0
        %v8324 = vpop.f32.mrf.mxu0
        %8325 = vmatmul.bf16.gmra.mxu0 %v5904
        %v8326 = vpop.f32.mrf.mxu0
        %v8327 = vadd.f32 0.0, %v8326
        %v8328 = vpop.f32.mrf.mxu0
        %v8329 = vadd.f32 0.0, %v8328
        %8330 = vmatmul.bf16.gmra.mxu0 %v5931
        %v8331 = vpop.f32.mrf.mxu0
        %v8332 = vpop.f32.mrf.mxu0
        %8333 = vmatmul.bf16.gmra.mxu0 %v5958
        %v8334 = vpop.f32.mrf.mxu0
        %v8335 = vadd.f32 0.0, %v8334
        %v8336 = vpop.f32.mrf.mxu0
        %v8337 = vadd.f32 0.0, %v8336
        %8338 = vmatmul.bf16.gmra.mxu0 %v5985
        %v8339 = vpop.f32.mrf.mxu0
        %v8340 = vpop.f32.mrf.mxu0
        %8341 = vmatmul.bf16.gmra.mxu0 %v6012
        %v8342 = vpop.f32.mrf.mxu0
        %v8343 = vadd.f32 0.0, %v8342
        %v8344 = vpop.f32.mrf.mxu0
        %v8345 = vadd.f32 0.0, %v8344
        %8346 = vmatmul.bf16.gmra.mxu0 %v6039
        %v8347 = vpop.f32.mrf.mxu0
        %v8348 = vpop.f32.mrf.mxu0
        %8349 = vmatmul.bf16.gmra.mxu0 %v6066
        %v8350 = vpop.f32.mrf.mxu0
        %v8351 = vadd.f32 0.0, %v8350
        %v8352 = vpop.f32.mrf.mxu0
        %v8353 = vadd.f32 0.0, %v8352
        %8354 = vmatmul.bf16.gmra.mxu0 %v6093
        %v8355 = vpop.f32.mrf.mxu0
        %v8356 = vpop.f32.mrf.mxu0
        %8357 = vmatmul.bf16.gmra.mxu0 %v6120
        %v8358 = vpop.f32.mrf.mxu0
        %v8359 = vadd.f32 0.0, %v8358
        %v8360 = vpop.f32.mrf.mxu0
        %v8361 = vadd.f32 0.0, %v8360
        %8362 = vmatmul.bf16.gmra.mxu0 %v6147
        %v8363 = vpop.f32.mrf.mxu0
        %v8364 = vpop.f32.mrf.mxu0
        %8365 = vmatmul.bf16.gmra.mxu0 %v6174
        %v8366 = vpop.f32.mrf.mxu0
        %v8367 = vadd.f32 0.0, %v8366
        %v8368 = vpop.f32.mrf.mxu0
        %v8369 = vadd.f32 0.0, %v8368
        %8370 = vmatmul.bf16.gmra.mxu0 %v6201
        %v8371 = vpop.f32.mrf.mxu0
        %v8372 = vpop.f32.mrf.mxu0
        %8373 = vmatmul.bf16.gmra.mxu0 %v6228
        %v8374 = vpop.f32.mrf.mxu0
        %v8375 = vadd.f32 0.0, %v8374
        %v8376 = vpop.f32.mrf.mxu0
        %v8377 = vadd.f32 0.0, %v8376
        %8378 = vmatmul.bf16.gmra.mxu0 %v6255
        %v8379 = vpop.f32.mrf.mxu0
        %v8380 = vpop.f32.mrf.mxu0
        %8381 = vmatmul.bf16.gmra.mxu0 %v6282
        %v8382 = vpop.f32.mrf.mxu0
        %v8383 = vadd.f32 0.0, %v8382
        %v8384 = vpop.f32.mrf.mxu0
        %v8385 = vadd.f32 0.0, %v8384
        %8386 = vmatmul.bf16.gmra.mxu0 %v6309
        %v8387 = vpop.f32.mrf.mxu0
        %v8388 = vpop.f32.mrf.mxu0
        %8389 = vmatmul.bf16.gmra.mxu0 %v6336
        %v8390 = vpop.f32.mrf.mxu0
        %v8391 = vadd.f32 0.0, %v8390
        %v8392 = vpop.f32.mrf.mxu0
        %v8393 = vadd.f32 0.0, %v8392
        %8394 = vmatmul.bf16.gmra.mxu0 %v6363
        %v8395 = vpop.f32.mrf.mxu0
        %v8396 = vpop.f32.mrf.mxu0
        %8397 = vmatmul.bf16.gmra.mxu0 %v6390
        %v8398 = vpop.f32.mrf.mxu0
        %v8399 = vadd.f32 0.0, %v8398
        %v8400 = vpop.f32.mrf.mxu0
        %v8401 = vadd.f32 0.0, %v8400
        %8402 = vmatmul.bf16.gmra.mxu0 %v6417
        %v8403 = vpop.f32.mrf.mxu0
        %v8404 = vpop.f32.mrf.mxu0
        %8405 = vmatmul.bf16.gmra.mxu0 %v6444
        %v8406 = vpop.f32.mrf.mxu0
        %v8407 = vadd.f32 0.0, %v8406
        %v8408 = vpop.f32.mrf.mxu0
        %v8409 = vadd.f32 0.0, %v8408
        %8410 = vmatmul.bf16.gmra.mxu0 %v6471
        %v8411 = vpop.f32.mrf.mxu0
        %v8412 = vpop.f32.mrf.mxu0
        %8413 = vmatmul.bf16.gmra.mxu0 %v6498
        %v8414 = vpop.f32.mrf.mxu0
        %v8415 = vadd.f32 0.0, %v8414
        %v8416 = vpop.f32.mrf.mxu0
        %v8417 = vadd.f32 0.0, %v8416
        %8418 = vmatmul.bf16.gmra.mxu0 %v6525
        %v8419 = vpop.f32.mrf.mxu0
        %v8420 = vpop.f32.mrf.mxu0
        %8421 = vmatmul.bf16.gmra.mxu0 %v6552
        %v8422 = vpop.f32.mrf.mxu0
        %v8423 = vadd.f32 0.0, %v8422
        %v8424 = vpop.f32.mrf.mxu0
        %v8425 = vadd.f32 0.0, %v8424
        %8426 = vmatmul.bf16.gmra.mxu0 %v6579
        %v8427 = vpop.f32.mrf.mxu0
        %v8428 = vpop.f32.mrf.mxu0
        %8429 = vmatmul.bf16.gmra.mxu0 %v6606
        %v8430 = vpop.f32.mrf.mxu0
        %v8431 = vadd.f32 0.0, %v8430
        %v8432 = vpop.f32.mrf.mxu0
        %v8433 = vadd.f32 0.0, %v8432
        %8434 = vmatmul.bf16.gmra.mxu0 %v8081
        %v8435 = vpop.f32.mrf.mxu0
        %v8436 = vpop.f32.mrf.mxu0
        %8437 = vmatmul.bf16.gmra.mxu0 %v8108
        %v8438 = vpop.f32.mrf.mxu0
        %v8439 = vadd.f32 0.0, %v8438
        %v8440 = vpop.f32.mrf.mxu0
        %v8441 = vadd.f32 0.0, %v8440
        %8442 = vmatmul.bf16.gmra.mxu0 %v8135
        %v8443 = vpop.f32.mrf.mxu0
        %v8444 = vpop.f32.mrf.mxu0
        %8445 = vdwg.mxu0
        %8446 = vmatpush.bf16.msra.mxu0 %v8276
        %8447 = vmatpush.bf16.msra.mxu0 %v8275
        %8448 = vmatpush.bf16.msra.mxu0 %v8274
        %8449 = vmatpush.bf16.msra.mxu0 %v8273
        %8450 = vmatpush.bf16.msra.mxu0 %v8272
        %8451 = vmatpush.bf16.msra.mxu0 %v8271
        %8452 = vmatpush.bf16.msra.mxu0 %v8270
        %8453 = vmatpush.bf16.msra.mxu0 %v8269
        %8454 = vmatmul.bf16.gmra.mxu0 %v8063
        %v8455 = vpop.f32.mrf.mxu0
        %v8456 = vadd.f32 %v8319, %v8455
        %v8457 = vpop.f32.mrf.mxu0
        %v8458 = vadd.f32 %v8321, %v8457
        %8459 = vmatmul.bf16.gmra.mxu0 %v5886
        %v8460 = vpop.f32.mrf.mxu0
        %v8461 = vpop.f32.mrf.mxu0
        %8462 = vmatmul.bf16.gmra.mxu0 %v5913
        %v8463 = vpop.f32.mrf.mxu0
        %v8464 = vadd.f32 %v8327, %v8463
        %v8465 = vpop.f32.mrf.mxu0
        %v8466 = vadd.f32 %v8329, %v8465
        %8467 = vmatmul.bf16.gmra.mxu0 %v5940
        %v8468 = vpop.f32.mrf.mxu0
        %v8469 = vpop.f32.mrf.mxu0
        %8470 = vmatmul.bf16.gmra.mxu0 %v5967
        %v8471 = vpop.f32.mrf.mxu0
        %v8472 = vadd.f32 %v8335, %v8471
        %v8473 = vpop.f32.mrf.mxu0
        %v8474 = vadd.f32 %v8337, %v8473
        %8475 = vmatmul.bf16.gmra.mxu0 %v5994
        %v8476 = vpop.f32.mrf.mxu0
        %v8477 = vpop.f32.mrf.mxu0
        %8478 = vmatmul.bf16.gmra.mxu0 %v6021
        %v8479 = vpop.f32.mrf.mxu0
        %v8480 = vadd.f32 %v8343, %v8479
        %v8481 = vpop.f32.mrf.mxu0
        %v8482 = vadd.f32 %v8345, %v8481
        %8483 = vmatmul.bf16.gmra.mxu0 %v6048
        %v8484 = vpop.f32.mrf.mxu0
        %v8485 = vpop.f32.mrf.mxu0
        %8486 = vmatmul.bf16.gmra.mxu0 %v6075
        %v8487 = vpop.f32.mrf.mxu0
        %v8488 = vadd.f32 %v8351, %v8487
        %v8489 = vpop.f32.mrf.mxu0
        %v8490 = vadd.f32 %v8353, %v8489
        %8491 = vmatmul.bf16.gmra.mxu0 %v6102
        %v8492 = vpop.f32.mrf.mxu0
        %v8493 = vpop.f32.mrf.mxu0
        %8494 = vmatmul.bf16.gmra.mxu0 %v6129
        %v8495 = vpop.f32.mrf.mxu0
        %v8496 = vadd.f32 %v8359, %v8495
        %v8497 = vpop.f32.mrf.mxu0
        %v8498 = vadd.f32 %v8361, %v8497
        %8499 = vmatmul.bf16.gmra.mxu0 %v6156
        %v8500 = vpop.f32.mrf.mxu0
        %v8501 = vpop.f32.mrf.mxu0
        %8502 = vmatmul.bf16.gmra.mxu0 %v6183
        %v8503 = vpop.f32.mrf.mxu0
        %v8504 = vadd.f32 %v8367, %v8503
        %v8505 = vpop.f32.mrf.mxu0
        %v8506 = vadd.f32 %v8369, %v8505
        %8507 = vmatmul.bf16.gmra.mxu0 %v6210
        %v8508 = vpop.f32.mrf.mxu0
        %v8509 = vpop.f32.mrf.mxu0
        %8510 = vmatmul.bf16.gmra.mxu0 %v6237
        %v8511 = vpop.f32.mrf.mxu0
        %v8512 = vadd.f32 %v8375, %v8511
        %v8513 = vpop.f32.mrf.mxu0
        %v8514 = vadd.f32 %v8377, %v8513
        %8515 = vmatmul.bf16.gmra.mxu0 %v6264
        %v8516 = vpop.f32.mrf.mxu0
        %v8517 = vpop.f32.mrf.mxu0
        %8518 = vmatmul.bf16.gmra.mxu0 %v6291
        %v8519 = vpop.f32.mrf.mxu0
        %v8520 = vadd.f32 %v8383, %v8519
        %v8521 = vpop.f32.mrf.mxu0
        %v8522 = vadd.f32 %v8385, %v8521
        %8523 = vmatmul.bf16.gmra.mxu0 %v6318
        %v8524 = vpop.f32.mrf.mxu0
        %v8525 = vpop.f32.mrf.mxu0
        %8526 = vmatmul.bf16.gmra.mxu0 %v6345
        %v8527 = vpop.f32.mrf.mxu0
        %v8528 = vadd.f32 %v8391, %v8527
        %v8529 = vpop.f32.mrf.mxu0
        %v8530 = vadd.f32 %v8393, %v8529
        %8531 = vmatmul.bf16.gmra.mxu0 %v6372
        %v8532 = vpop.f32.mrf.mxu0
        %v8533 = vpop.f32.mrf.mxu0
        %8534 = vmatmul.bf16.gmra.mxu0 %v6399
        %v8535 = vpop.f32.mrf.mxu0
        %v8536 = vadd.f32 %v8399, %v8535
        %v8537 = vpop.f32.mrf.mxu0
        %v8538 = vadd.f32 %v8401, %v8537
        %8539 = vmatmul.bf16.gmra.mxu0 %v6426
        %v8540 = vpop.f32.mrf.mxu0
        %v8541 = vpop.f32.mrf.mxu0
        %8542 = vmatmul.bf16.gmra.mxu0 %v6453
        %v8543 = vpop.f32.mrf.mxu0
        %v8544 = vadd.f32 %v8407, %v8543
        %v8545 = vpop.f32.mrf.mxu0
        %v8546 = vadd.f32 %v8409, %v8545
        %8547 = vmatmul.bf16.gmra.mxu0 %v6480
        %v8548 = vpop.f32.mrf.mxu0
        %v8549 = vpop.f32.mrf.mxu0
        %8550 = vmatmul.bf16.gmra.mxu0 %v6507
        %v8551 = vpop.f32.mrf.mxu0
        %v8552 = vadd.f32 %v8415, %v8551
        %v8553 = vpop.f32.mrf.mxu0
        %v8554 = vadd.f32 %v8417, %v8553
        %8555 = vmatmul.bf16.gmra.mxu0 %v6534
        %v8556 = vpop.f32.mrf.mxu0
        %v8557 = vpop.f32.mrf.mxu0
        %8558 = vmatmul.bf16.gmra.mxu0 %v6561
        %v8559 = vpop.f32.mrf.mxu0
        %v8560 = vadd.f32 %v8423, %v8559
        %v8561 = vpop.f32.mrf.mxu0
        %v8562 = vadd.f32 %v8425, %v8561
        %8563 = vmatmul.bf16.gmra.mxu0 %v6588
        %v8564 = vpop.f32.mrf.mxu0
        %v8565 = vpop.f32.mrf.mxu0
        %8566 = vmatmul.bf16.gmra.mxu0 %v6615
        %v8567 = vpop.f32.mrf.mxu0
        %v8568 = vadd.f32 %v8431, %v8567
        %v8569 = vpop.f32.mrf.mxu0
        %v8570 = vadd.f32 %v8433, %v8569
        %8571 = vmatmul.bf16.gmra.mxu0 %v8090
        %v8572 = vpop.f32.mrf.mxu0
        %v8573 = vpop.f32.mrf.mxu0
        %8574 = vmatmul.bf16.gmra.mxu0 %v8117
        %v8575 = vpop.f32.mrf.mxu0
        %v8576 = vadd.f32 %v8439, %v8575
        %v8577 = vpop.f32.mrf.mxu0
        %v8578 = vadd.f32 %v8441, %v8577
        %8579 = vmatmul.bf16.gmra.mxu0 %v8144
        %v8580 = vpop.f32.mrf.mxu0
        %v8581 = vpop.f32.mrf.mxu0
        %8582 = vdwg.mxu0
        %8583 = vmatpush.bf16.msra.mxu0 %v8284
        %8584 = vmatpush.bf16.msra.mxu0 %v8283
        %8585 = vmatpush.bf16.msra.mxu0 %v8282
        %8586 = vmatpush.bf16.msra.mxu0 %v8281
        %8587 = vmatpush.bf16.msra.mxu0 %v8280
        %8588 = vmatpush.bf16.msra.mxu0 %v8279
        %8589 = vmatpush.bf16.msra.mxu0 %v8278
        %8590 = vmatpush.bf16.msra.mxu0 %v8277
        %8591 = vmatmul.bf16.gmra.mxu0 %v8072
        %v8592 = vpop.f32.mrf.mxu0
        %v8593 = vadd.f32 %v8456, %v8592
        %v8594 = vpop.f32.mrf.mxu0
        %v8595 = vadd.f32 %v8458, %v8594
        %8596 = vmatmul.bf16.gmra.mxu0 %v5895
        %v8597 = vpop.f32.mrf.mxu0
        %v8598 = vpop.f32.mrf.mxu0
        %8599 = vmatmul.bf16.gmra.mxu0 %v5922
        %v8600 = vpop.f32.mrf.mxu0
        %v8601 = vadd.f32 %v8464, %v8600
        %v8602 = vpop.f32.mrf.mxu0
        %v8603 = vadd.f32 %v8466, %v8602
        %8604 = vmatmul.bf16.gmra.mxu0 %v5949
        %v8605 = vpop.f32.mrf.mxu0
        %v8606 = vpop.f32.mrf.mxu0
        %8607 = vmatmul.bf16.gmra.mxu0 %v5976
        %v8608 = vpop.f32.mrf.mxu0
        %v8609 = vadd.f32 %v8472, %v8608
        %v8610 = vpop.f32.mrf.mxu0
        %v8611 = vadd.f32 %v8474, %v8610
        %8612 = vmatmul.bf16.gmra.mxu0 %v6003
        %v8613 = vpop.f32.mrf.mxu0
        %v8614 = vpop.f32.mrf.mxu0
        %8615 = vmatmul.bf16.gmra.mxu0 %v6030
        %v8616 = vpop.f32.mrf.mxu0
        %v8617 = vadd.f32 %v8480, %v8616
        %v8618 = vpop.f32.mrf.mxu0
        %v8619 = vadd.f32 %v8482, %v8618
        %8620 = vmatmul.bf16.gmra.mxu0 %v6057
        %v8621 = vpop.f32.mrf.mxu0
        %v8622 = vpop.f32.mrf.mxu0
        %8623 = vmatmul.bf16.gmra.mxu0 %v6084
        %v8624 = vpop.f32.mrf.mxu0
        %v8625 = vadd.f32 %v8488, %v8624
        %v8626 = vpop.f32.mrf.mxu0
        %v8627 = vadd.f32 %v8490, %v8626
        %8628 = vmatmul.bf16.gmra.mxu0 %v6111
        %v8629 = vpop.f32.mrf.mxu0
        %v8630 = vpop.f32.mrf.mxu0
        %8631 = vmatmul.bf16.gmra.mxu0 %v6138
        %v8632 = vpop.f32.mrf.mxu0
        %v8633 = vadd.f32 %v8496, %v8632
        %v8634 = vpop.f32.mrf.mxu0
        %v8635 = vadd.f32 %v8498, %v8634
        %8636 = vmatmul.bf16.gmra.mxu0 %v6165
        %v8637 = vpop.f32.mrf.mxu0
        %v8638 = vpop.f32.mrf.mxu0
        %8639 = vmatmul.bf16.gmra.mxu0 %v6192
        %v8640 = vpop.f32.mrf.mxu0
        %v8641 = vadd.f32 %v8504, %v8640
        %v8642 = vpop.f32.mrf.mxu0
        %v8643 = vadd.f32 %v8506, %v8642
        %8644 = vmatmul.bf16.gmra.mxu0 %v6219
        %v8645 = vpop.f32.mrf.mxu0
        %v8646 = vpop.f32.mrf.mxu0
        %8647 = vmatmul.bf16.gmra.mxu0 %v6246
        %v8648 = vpop.f32.mrf.mxu0
        %v8649 = vadd.f32 %v8512, %v8648
        %v8650 = vpop.f32.mrf.mxu0
        %v8651 = vadd.f32 %v8514, %v8650
        %8652 = vmatmul.bf16.gmra.mxu0 %v6273
        %v8653 = vpop.f32.mrf.mxu0
        %v8654 = vpop.f32.mrf.mxu0
        %8655 = vmatmul.bf16.gmra.mxu0 %v6300
        %v8656 = vpop.f32.mrf.mxu0
        %v8657 = vadd.f32 %v8520, %v8656
        %v8658 = vpop.f32.mrf.mxu0
        %v8659 = vadd.f32 %v8522, %v8658
        %8660 = vmatmul.bf16.gmra.mxu0 %v6327
        %v8661 = vpop.f32.mrf.mxu0
        %v8662 = vpop.f32.mrf.mxu0
        %8663 = vmatmul.bf16.gmra.mxu0 %v6354
        %v8664 = vpop.f32.mrf.mxu0
        %v8665 = vadd.f32 %v8528, %v8664
        %v8666 = vpop.f32.mrf.mxu0
        %v8667 = vadd.f32 %v8530, %v8666
        %8668 = vmatmul.bf16.gmra.mxu0 %v6381
        %v8669 = vpop.f32.mrf.mxu0
        %v8670 = vpop.f32.mrf.mxu0
        %8671 = vmatmul.bf16.gmra.mxu0 %v6408
        %v8672 = vpop.f32.mrf.mxu0
        %v8673 = vadd.f32 %v8536, %v8672
        %v8674 = vpop.f32.mrf.mxu0
        %v8675 = vadd.f32 %v8538, %v8674
        %8676 = vmatmul.bf16.gmra.mxu0 %v6435
        %v8677 = vpop.f32.mrf.mxu0
        %v8678 = vpop.f32.mrf.mxu0
        %8679 = vmatmul.bf16.gmra.mxu0 %v6462
        %v8680 = vpop.f32.mrf.mxu0
        %v8681 = vadd.f32 %v8544, %v8680
        %v8682 = vpop.f32.mrf.mxu0
        %v8683 = vadd.f32 %v8546, %v8682
        %8684 = vmatmul.bf16.gmra.mxu0 %v6489
        %v8685 = vpop.f32.mrf.mxu0
        %v8686 = vpop.f32.mrf.mxu0
        %8687 = vmatmul.bf16.gmra.mxu0 %v6516
        %v8688 = vpop.f32.mrf.mxu0
        %v8689 = vadd.f32 %v8552, %v8688
        %v8690 = vpop.f32.mrf.mxu0
        %v8691 = vadd.f32 %v8554, %v8690
        %8692 = vmatmul.bf16.gmra.mxu0 %v6543
        %v8693 = vpop.f32.mrf.mxu0
        %v8694 = vpop.f32.mrf.mxu0
        %8695 = vmatmul.bf16.gmra.mxu0 %v6570
        %v8696 = vpop.f32.mrf.mxu0
        %v8697 = vadd.f32 %v8560, %v8696
        %v8698 = vpop.f32.mrf.mxu0
        %v8699 = vadd.f32 %v8562, %v8698
        %8700 = vmatmul.bf16.gmra.mxu0 %v6597
        %v8701 = vpop.f32.mrf.mxu0
        %v8702 = vpop.f32.mrf.mxu0
        %8703 = vmatmul.bf16.gmra.mxu0 %v6624
        %v8704 = vpop.f32.mrf.mxu0
        %v8705 = vadd.f32 %v8568, %v8704
        %v8706 = vpop.f32.mrf.mxu0
        %v8707 = vadd.f32 %v8570, %v8706
        %8708 = vmatmul.bf16.gmra.mxu0 %v8099
        %v8709 = vpop.f32.mrf.mxu0
        %v8710 = vpop.f32.mrf.mxu0
        %8711 = vmatmul.bf16.gmra.mxu0 %v8126
        %v8712 = vpop.f32.mrf.mxu0
        %v8713 = vadd.f32 %v8576, %v8712
        %v8714 = vpop.f32.mrf.mxu0
        %v8715 = vadd.f32 %v8578, %v8714
        %8716 = vmatmul.bf16.gmra.mxu0 %v8153
        %v8717 = vpop.f32.mrf.mxu0
        %v8718 = vpop.f32.mrf.mxu0
        %8719 = vdwg.mxu0
        %v8720 = vadd.f32 %v7841, %v8593
        %v8721 = vadd.f32 %v7843, %v8595
        %v8722 = vadd.f32 %v7849, %v8601
        %v8723 = vadd.f32 %v7851, %v8603
        %v8724 = vadd.f32 %v7857, %v8609
        %v8725 = vadd.f32 %v7859, %v8611
        %v8726 = vadd.f32 %v7865, %v8617
        %v8727 = vadd.f32 %v7867, %v8619
        %v8728 = vadd.f32 %v7873, %v8625
        %v8729 = vadd.f32 %v7875, %v8627
        %v8730 = vadd.f32 %v7881, %v8633
        %v8731 = vadd.f32 %v7883, %v8635
        %v8732 = vadd.f32 %v7889, %v8641
        %v8733 = vadd.f32 %v7891, %v8643
        %v8734 = vadd.f32 %v7897, %v8649
        %v8735 = vadd.f32 %v7899, %v8651
        %v8736 = vadd.f32 %v7905, %v8657
        %v8737 = vadd.f32 %v7907, %v8659
        %v8738 = vadd.f32 %v7913, %v8665
        %v8739 = vadd.f32 %v7915, %v8667
        %v8740 = vadd.f32 %v7921, %v8673
        %v8741 = vadd.f32 %v7923, %v8675
        %v8742 = vadd.f32 %v7929, %v8681
        %v8743 = vadd.f32 %v7931, %v8683
        %v8744 = vadd.f32 %v7937, %v8689
        %v8745 = vadd.f32 %v7939, %v8691
        %v8746 = vadd.f32 %v7945, %v8697
        %v8747 = vadd.f32 %v7947, %v8699
        %v8748 = vadd.f32 %v7953, %v8705
        %v8749 = vadd.f32 %v7955, %v8707
        %v8750 = vadd.f32 %v7961, %v8713
        %v8751 = vadd.f32 %v7963, %v8715
        %v8752 = vld [vmem:[%s6] sm:$0x1]
        %v8754 = vperm.slane %v8752, 0
        %v8756 = vadd.f32 %v8720, %v8754
        %v8757 = vadd.f32 %v8721, %v8754
        %v8758 = vadd.f32 %v8722, %v8754
        %v8759 = vadd.f32 %v8723, %v8754
        %v8760 = vadd.f32 %v8724, %v8754
        %v8761 = vadd.f32 %v8725, %v8754
        %v8762 = vadd.f32 %v8726, %v8754
        %v8763 = vadd.f32 %v8727, %v8754
        %v8764 = vadd.f32 %v8728, %v8754
        %v8765 = vadd.f32 %v8729, %v8754
        %v8766 = vadd.f32 %v8730, %v8754
        %v8767 = vadd.f32 %v8731, %v8754
        %v8768 = vadd.f32 %v8732, %v8754
        %v8769 = vadd.f32 %v8733, %v8754
        %v8770 = vadd.f32 %v8734, %v8754
        %v8771 = vadd.f32 %v8735, %v8754
        %v8772 = vadd.f32 %v8736, %v8754
        %v8773 = vadd.f32 %v8737, %v8754
        %v8774 = vadd.f32 %v8738, %v8754
        %v8775 = vadd.f32 %v8739, %v8754
        %v8776 = vadd.f32 %v8740, %v8754
        %v8777 = vadd.f32 %v8741, %v8754
        %v8778 = vadd.f32 %v8742, %v8754
        %v8779 = vadd.f32 %v8743, %v8754
        %v8780 = vadd.f32 %v8744, %v8754
        %v8781 = vadd.f32 %v8745, %v8754
        %v8782 = vadd.f32 %v8746, %v8754
        %v8783 = vadd.f32 %v8747, %v8754
        %v8784 = vadd.f32 %v8748, %v8754
        %v8785 = vadd.f32 %v8749, %v8754
        %v8786 = vadd.f32 %v8750, %v8754
        %v8787 = vadd.f32 %v8751, %v8754
        %v8788 = vadd.f32 %v8756, %v596
        %v8789 = vadd.f32 %v8757, %v597
        %v8790 = vadd.f32 %v8758, %v598
        %v8791 = vadd.f32 %v8759, %v599
        %v8792 = vadd.f32 %v8760, %v600
        %v8793 = vadd.f32 %v8761, %v601
        %v8794 = vadd.f32 %v8762, %v602
        %v8795 = vadd.f32 %v8763, %v603
        %v8796 = vadd.f32 %v8764, %v604
        %v8797 = vadd.f32 %v8765, %v605
        %v8798 = vadd.f32 %v8766, %v606
        %v8799 = vadd.f32 %v8767, %v607
        %v8800 = vadd.f32 %v8768, %v608
        %v8801 = vadd.f32 %v8769, %v609
        %v8802 = vadd.f32 %v8770, %v610
        %v8803 = vadd.f32 %v8771, %v611
        %v8804 = vadd.f32 %v8772, %v612
        %v8805 = vadd.f32 %v8773, %v613
        %v8806 = vadd.f32 %v8774, %v614
        %v8807 = vadd.f32 %v8775, %v615
        %v8808 = vadd.f32 %v8776, %v616
        %v8809 = vadd.f32 %v8777, %v617
        %v8810 = vadd.f32 %v8778, %v618
        %v8811 = vadd.f32 %v8779, %v619
        %v8812 = vadd.f32 %v8780, %v620
        %v8813 = vadd.f32 %v8781, %v621
        %v8814 = vadd.f32 %v8782, %v622
        %v8815 = vadd.f32 %v8783, %v623
        %v8816 = vadd.f32 %v8784, %v624
        %v8817 = vadd.f32 %v8785, %v625
        %v8818 = vadd.f32 %v8786, %v626
        %v8819 = vadd.f32 %v8787, %v627
        %8820 = vst [vmem:[%s394] sm:$0xff] %v8788
        %8821 = vst [vmem:[%s394 + $0x8] sm:$0xff] %v8789
        %8822 = vst [vmem:[%s394 + $0x10] sm:$0xff] %v8790
        %8823 = vst [vmem:[%s394 + $0x18] sm:$0xff] %v8791
        %8824 = vst [vmem:[%s394 + $0x20] sm:$0xff] %v8792
        %8825 = vst [vmem:[%s394 + $0x28] sm:$0xff] %v8793
        %8826 = vst [vmem:[%s394 + $0x30] sm:$0xff] %v8794
        %8827 = vst [vmem:[%s394 + $0x38] sm:$0xff] %v8795
        %8828 = vst [vmem:[%s394 + $0x40] sm:$0xff] %v8796
        %8829 = vst [vmem:[%s394 + $0x48] sm:$0xff] %v8797
        %8830 = vst [vmem:[%s394 + $0x50] sm:$0xff] %v8798
        %8831 = vst [vmem:[%s394 + $0x58] sm:$0xff] %v8799
        %8832 = vst [vmem:[%s394 + $0x60] sm:$0xff] %v8800
        %8833 = vst [vmem:[%s394 + $0x68] sm:$0xff] %v8801
        %8834 = vst [vmem:[%s394 + $0x70] sm:$0xff] %v8802
        %8835 = vst [vmem:[%s394 + $0x78] sm:$0xff] %v8803
        %8836 = vst [vmem:[%s394 + $0x80] sm:$0xff] %v8804
        %8837 = vst [vmem:[%s394 + $0x88] sm:$0xff] %v8805
        %8838 = vst [vmem:[%s394 + $0x90] sm:$0xff] %v8806
        %8839 = vst [vmem:[%s394 + $0x98] sm:$0xff] %v8807
        %8840 = vst [vmem:[%s394 + $0xa0] sm:$0xff] %v8808
        %8841 = vst [vmem:[%s394 + $0xa8] sm:$0xff] %v8809
        %8842 = vst [vmem:[%s394 + $0xb0] sm:$0xff] %v8810
        %8843 = vst [vmem:[%s394 + $0xb8] sm:$0xff] %v8811
        %8844 = vst [vmem:[%s394 + $0xc0] sm:$0xff] %v8812
        %8845 = vst [vmem:[%s394 + $0xc8] sm:$0xff] %v8813
        %8846 = vst [vmem:[%s394 + $0xd0] sm:$0xff] %v8814
        %8847 = vst [vmem:[%s394 + $0xd8] sm:$0xff] %v8815
        %8848 = vst [vmem:[%s394 + $0xe0] sm:$0xff] %v8816
        %8849 = vst [vmem:[%s394 + $0xe8] sm:$0xff] %v8817
        %8850 = vst [vmem:[%s394 + $0xf0] sm:$0xff] %v8818
        %8851 = vst [vmem:[%s394 + $0xf8] sm:$0xff] %v8819
        %s8852 = sand.u32 %s227, 1
        %s8853 = scalar_lea.sflag [#allocation5], %s8852
        %s8854 = sand.u32 %s227, 1
        %s8855 = smul.addr %s8854, 256
        %s8856 = scalar_lea.vmem [#allocation4], %s8855
        // Predicated region
        $region53: #{residual_conv_unit.1} parent=47 // pred_check
          %p8857 = pneg %p237
        $region54: #{residual_conv_unit.1} parent=47 // pred_check_branch
          %8859 = sbr.rel (%p8857) target = $region56
        $region55: #{residual_conv_unit.1} parent=47 // pred_region
          %s8860 = smul.u32 16, %s26
          %8862 = vsyncadd %s8853, 0
          %s8863 = smul.addr %s8860, 2
          %s8864 = smul.addr %s25, 32
          %s8865 = sadd.s32 %s8863, %s8864
          %s8866 = smul.addr %s8865, 8
          %s8867 = scalar_lea.hbm %s7, %s8866
          %s8868 = sshll.u32 %s8856, 4
          %s8869 = int_to_ptr.vmem [resolvable:$true] %s8868
          %s8870 = sshll.u32 %s8867, 4
          %s8871 = int_to_ptr.hbm [resolvable:$true] %s8870
          %8876 = dma.vmem_to_hbm [thread:$0]  %s8869, 4096, %s8871, %s8853, 128, 128, 8
        $region56: #{residual_conv_unit.1} parent=47 // pred_fallthru
          _
      $region48: #{residual_conv_unit.1} parent=5 // pred_fallthru
        _
      %p8877 = scmp.le.s32.totalorder 2, %s16
      // Predicated region
      $region57: #{residual_conv_unit.1} parent=5 // pred_check
        %p8878 = pneg %p8877
      $region58: #{residual_conv_unit.1} parent=5 // pred_check_branch
        %8880 = sbr.rel (%p8878) target = $region60
      $region59: #{residual_conv_unit.1} parent=5 // pred_region
        %s8881 = ssub.s32 %s16, 2
        // Predicated region
        $region61: #{residual_conv_unit.1} parent=59 // pred_check
          %p8882 = pneg %p243
        $region62: #{residual_conv_unit.1} parent=59 // pred_check_branch
          %8884 = sbr.rel (%p8882) target = $region64
        $region63: #{residual_conv_unit.1} parent=59 // pred_region
          %s8885 = sand.u32 %s228, 1
          %s8886 = scalar_lea.sflag [#allocation5], %s8885
          %s8887 = sand.u32 %s228, 1
          %s8888 = smul.addr %s8887, 256
          %s8889 = scalar_lea.vmem [#allocation4], %s8888
          %8891 = dma.done %s8886, 4096
        $region64: #{residual_conv_unit.1} parent=59 // pred_fallthru
          _
      $region60: #{residual_conv_unit.1} parent=5 // pred_fallthru
        _
    $region6: #{residual_conv_unit.1} parent=1 // loop_footer
      %s20 = sadd.s32 1, %s16
    $region7: #{residual_conv_unit.1} parent=1 // loop_footer_branch
      %15 = sbr.rel target = $region3
    $region8: #{residual_conv_unit.1} parent=1 // loop_exit
      _
    %8892 = vsyncpa [#allocation5], 1
    %s8893 = scalar_lea.sflag [#allocation5], 1
    %8894 = vsyncpa %s8893, 1

</llo_original>
